<compile_context>
chip_gen: v6e
topology: v6e:2x2x1
jax: 0.10.0
libtpu: 0.0.40
codegen_flags: <defaults>
</compile_context>

<pallas_src>
import math

import jax
import jax.numpy as jnp
from jax.experimental import pallas as pl
from jax.experimental.pallas import tpu as pltpu

# ---- module hyper-parameters (globals in the original PyTorch file) ----
EMBED_DIM = 16          # per-input-value sine embedding width (must be even)
FREQ_MIN = 1.0
FREQ_MAX = 128.0
MLP_DEPTH = 8
MLP_DIM = 64
D_INPUT = 3             # e.g. (x, y, z)
SKIPS = (2, 4, 6)

TN = 512                # batch tile (lane dim of every matmul and of the output slab)


def _layer_dims():
    """Return [(in_dim, out_dim)] for each Linear layer, matching NeRF.__init__."""
    embed_dim = EMBED_DIM * D_INPUT
    dims = []
    for i in range(MLP_DEPTH):
        in_dim = embed_dim if i == 0 else MLP_DIM
        out_dim = 4 if i == MLP_DEPTH - 1 else MLP_DIM
        if i in SKIPS:
            in_dim += embed_dim
        dims.append((in_dim, out_dim))
    return dims


def nerf_kernel(x_ref, freqs_ref, phase_ref, *rest):
    """Transposed NeRF forward for one batch tile.

    x_ref:     (D_INPUT, TN)    f32   input points, feature-major
    freqs_ref: (EMBED_DIM, 1)   f32   full_freqs[j] = freqs[j // 2]
    phase_ref: (EMBED_DIM, 1)   f32   0 on even rows, pi/2 on odd rows (sin/cos interleave)
    rest:      per-layer params followed by out_ref (4, TN) f32.
               non-skip layer i: (W_i^T (out,in) bf16, b_i (out,1) f32)
               skip    layer i: (Wh_i^T (64,64) bf16, We_i^T (64,48) bf16, b_i (out,1) f32)
    """
    out_ref = rest[-1]
    params = rest[:-1]

    freqs = freqs_ref[...]                       # (EMBED_DIM, 1)
    phase = phase_ref[...]                       # (EMBED_DIM, 1)

    # Sine embedding: cos(t) == sin(t + pi/2), so one sin() covers the interleaved
    # sin/cos layout. Rows are [value0 x 16, value1 x 16, value2 x 16] (sublane concat,
    # 16-row chunks are (8,)-aligned -> no lane shuffles).
    rows = []
    for f in range(D_INPUT):
        xf = x_ref[f:f + 1, :]                   # (1, TN)
        rows.append(jnp.sin(freqs * xf + phase))  # (EMBED_DIM, TN)
    embed = jnp.concatenate(rows, axis=0)        # (D_INPUT*EMBED_DIM, TN) f32
    embed_bf = embed.astype(jnp.bfloat16)

    h = None
    p = 0
    for i in range(MLP_DEPTH):
        if i in SKIPS:
            w_h = params[p][...]                 # (64, 64) bf16
            w_e = params[p + 1][...]             # (64, 48) bf16
            b = params[p + 2][...]               # (64, 1)  f32
            p += 3
            # Concat-free skip connection: [h, embed] @ W == h @ Wh + embed @ We.
            acc = (jnp.dot(w_h, h.astype(jnp.bfloat16),
                           preferred_element_type=jnp.float32)
                   + jnp.dot(w_e, embed_bf,
                             preferred_element_type=jnp.float32))
        else:
            w = params[p][...]                   # (out, in) bf16
            b = params[p + 1][...]               # (out, 1)  f32
            p += 2
            rhs = embed_bf if i == 0 else h.astype(jnp.bfloat16)
            acc = jnp.dot(w, rhs, preferred_element_type=jnp.float32)
        acc = acc + b                            # (out, TN) + (out, 1), f32
        if i != MLP_DEPTH - 1:
            h = jnp.where(acc >= 0.0, acc, 0.01 * acc)   # F.leaky_relu, slope 0.01
        else:
            out_ref[...] = jax.nn.sigmoid(acc)   # (4, TN): lane-dense store


def _prepare_params(weights, biases):
    """Transpose weights to (out, in), split skip-layer weights, cast to bf16.

    Biases become (out, 1) f32 columns (broadcast along lanes inside the kernel).
    """
    flat = []
    for i, (w, b) in enumerate(zip(weights, biases)):
        wt = jnp.asarray(w, jnp.float32).T                    # (out, in)
        b_col = jnp.asarray(b, jnp.float32).reshape(-1, 1)    # (out, 1)
        if i in SKIPS:
            flat.append(wt[:, :MLP_DIM].astype(jnp.bfloat16))   # h part
            flat.append(wt[:, MLP_DIM:].astype(jnp.bfloat16))   # embed part
        else:
            flat.append(wt.astype(jnp.bfloat16))
        flat.append(b_col)
    return flat


@jax.jit
def nerf_forward(x, weights, biases):
    """x: (n, D_INPUT) f32  ->  (n, 4) f32 (sigmoid outputs)."""
    n = x.shape[0]
    n_pad = pl.cdiv(n, TN) * TN
    grid = (n_pad // TN,)

    # Interleaved sin/cos frequencies: full_freqs[j] = freqs[j//2], phase = 0 / pi/2.
    freqs = jnp.exp(jnp.linspace(math.log(FREQ_MIN), math.log(FREQ_MAX),
                                 EMBED_DIM // 2, dtype=jnp.float32))
    full_freqs = jnp.repeat(freqs, 2).reshape(EMBED_DIM, 1)
    phase = jnp.tile(jnp.array([0.0, math.pi / 2.0], jnp.float32),
                     EMBED_DIM // 2).reshape(EMBED_DIM, 1)

    # Pad the batch to a multiple of TN (padded rows are discarded at the end),
    # and present it feature-major so the kernel's x tile is lane-dense.
    x_t = jnp.pad(x.astype(jnp.float32), ((0, n_pad - n), (0, 0))).T  # (D_INPUT, n_pad)

    flat_params = _prepare_params(weights, biases)

    in_specs = [
        pl.BlockSpec((D_INPUT, TN), lambda i: (0, i)),       # x tile
        pl.BlockSpec((EMBED_DIM, 1), lambda i: (0, 0)),      # frequencies
        pl.BlockSpec((EMBED_DIM, 1), lambda i: (0, 0)),      # phases
    ]
    for prm in flat_params:                                  # whole small params in VMEM
        in_specs.append(pl.BlockSpec(prm.shape, lambda i: (0, 0)))
    out_spec = pl.BlockSpec((4, TN), lambda i: (0, i))       # lane-dense (4, n_pad) slab

    flops_per_pt = sum(2 * i_d * o_d for i_d, o_d in _layer_dims())
    cost = pl.CostEstimate(
        flops=flops_per_pt * n_pad,
        transcendentals=(D_INPUT * EMBED_DIM + 4) * n_pad,
        bytes_accessed=(D_INPUT + 4) * 4 * n_pad
        + sum(prm.size * prm.dtype.itemsize for prm in flat_params),
    )

    out_t = pl.pallas_call(
        nerf_kernel,
        out_shape=jax.ShapeDtypeStruct((4, n_pad), jnp.float32),
        grid_spec=pltpu.PrefetchScalarGridSpec(
            num_scalar_prefetch=0,
            grid=grid,
            in_specs=in_specs,
            out_specs=out_spec,
        ),
        compiler_params=pltpu.CompilerParams(
            dimension_semantics=("parallel",)),
        cost_estimate=cost,
    )(x_t, full_freqs, phase, *flat_params)

    return out_t.T[:n]                                       # (n, 4)


def nerf_reference_f32(x, weights, biases):
    """Plain-JAX f32 reference matching the PyTorch module exactly."""
    freqs = jnp.exp(jnp.linspace(math.log(FREQ_MIN), math.log(FREQ_MAX),
                                 EMBED_DIM // 2, dtype=jnp.float32))
    xe = x[..., None] * freqs                                 # (n, D_INPUT, EMBED_DIM//2)
    embed = jnp.stack([jnp.sin(xe), jnp.cos(xe)], axis=-1)    # interleave sin/cos
    embed = embed.reshape(x.shape[0], -1)                     # (n, D_INPUT*EMBED_DIM)
    h = embed
    for i, (w, b) in enumerate(zip(weights, biases)):
        if i in SKIPS:
            h = jnp.concatenate([h, embed], axis=-1)
        h = h @ w + b
        if i != MLP_DEPTH - 1:
            h = jnp.where(h >= 0.0, h, 0.01 * h)
    return jax.nn.sigmoid(h)


def nerf_reference_bf16(x, weights, biases):
    """Reference mirroring the kernel's numerics (bf16 matmul operands, f32 accum)."""
    freqs = jnp.exp(jnp.linspace(math.log(FREQ_MIN), math.log(FREQ_MAX),
                                 EMBED_DIM // 2, dtype=jnp.float32))
    full_freqs = jnp.repeat(freqs, 2)
    phase = jnp.tile(jnp.array([0.0, math.pi / 2.0], jnp.float32), EMBED_DIM // 2)
    embed = jnp.sin(x[..., None] * full_freqs + phase).reshape(x.shape[0], -1)
    embed_bf = embed.astype(jnp.bfloat16)
    h = embed
    for i, (w, b) in enumerate(zip(weights, biases)):
        w_bf = w.astype(jnp.bfloat16)
        h_bf = h.astype(jnp.bfloat16)
        if i in SKIPS:
            acc = (jnp.dot(h_bf, w_bf[:MLP_DIM], preferred_element_type=jnp.float32)
                   + jnp.dot(embed_bf, w_bf[MLP_DIM:], preferred_element_type=jnp.float32))
        else:
            rhs = embed_bf if i == 0 else h_bf
            acc = jnp.dot(rhs, w_bf, preferred_element_type=jnp.float32)
        acc = acc + b
        if i != MLP_DEPTH - 1:
            h = jnp.where(acc >= 0.0, acc, 0.01 * acc)
        else:
            h = acc
    return jax.nn.sigmoid(h)


if __name__ == "__main__":
    key = jax.random.PRNGKey(0)

    # Deterministic Linear params (PyTorch-style uniform(-1/sqrt(in), 1/sqrt(in))),
    # stored as (in_dim, out_dim) so the math is x @ W + b.
    weights, biases = [], []
    for in_dim, out_dim in _layer_dims():
        key, kw, kb = jax.random.split(key, 3)
        bound = 1.0 / math.sqrt(in_dim)
        weights.append(jax.random.uniform(kw, (in_dim, out_dim), jnp.float32,
                                          -bound, bound))
        biases.append(jax.random.uniform(kb, (out_dim,), jnp.float32, -bound, bound))

    # Batch deliberately NOT a multiple of TN to exercise the padded tail.
    n = 2000
    key, kx = jax.random.split(key)
    x = jax.random.uniform(kx, (n, D_INPUT), jnp.float32, -1.0, 1.0)

    out = jax.block_until_ready(nerf_forward(x, weights, biases))
    assert out.shape == (n, 4), out.shape

    ref_bf16 = nerf_reference_bf16(x, weights, biases)   # same bf16-matmul numerics
    ref_f32 = nerf_reference_f32(x, weights, biases)     # spec-faithful f32
    assert jnp.allclose(out, ref_bf16, atol=5e-3, rtol=0), "mismatch vs bf16 reference"
    assert jnp.allclose(out, ref_f32, atol=5e-2, rtol=0), "mismatch vs f32 reference"

    print("KERNEL_OK")
</pallas_src>

<mosaic_0001>
module attributes {stable_mosaic.version = 11 : i64} {
  func.func @nerf_kernel(%arg0: i32, %arg1: memref<3x512xf32, #tpu.memory_space<vmem>>, %arg2: memref<16x1xf32, #tpu.memory_space<vmem>>, %arg3: memref<16x1xf32, #tpu.memory_space<vmem>>, %arg4: memref<64x48xbf16, #tpu.memory_space<vmem>>, %arg5: memref<64x1xf32, #tpu.memory_space<vmem>>, %arg6: memref<64x64xbf16, #tpu.memory_space<vmem>>, %arg7: memref<64x1xf32, #tpu.memory_space<vmem>>, %arg8: memref<64x64xbf16, #tpu.memory_space<vmem>>, %arg9: memref<64x48xbf16, #tpu.memory_space<vmem>>, %arg10: memref<64x1xf32, #tpu.memory_space<vmem>>, %arg11: memref<64x64xbf16, #tpu.memory_space<vmem>>, %arg12: memref<64x1xf32, #tpu.memory_space<vmem>>, %arg13: memref<64x64xbf16, #tpu.memory_space<vmem>>, %arg14: memref<64x48xbf16, #tpu.memory_space<vmem>>, %arg15: memref<64x1xf32, #tpu.memory_space<vmem>>, %arg16: memref<64x64xbf16, #tpu.memory_space<vmem>>, %arg17: memref<64x1xf32, #tpu.memory_space<vmem>>, %arg18: memref<64x64xbf16, #tpu.memory_space<vmem>>, %arg19: memref<64x48xbf16, #tpu.memory_space<vmem>>, %arg20: memref<64x1xf32, #tpu.memory_space<vmem>>, %arg21: memref<4x64xbf16, #tpu.memory_space<vmem>>, %arg22: memref<4x1xf32, #tpu.memory_space<vmem>>, %arg23: memref<4x512xf32, #tpu.memory_space<vmem>>) attributes {dimension_semantics = [#tpu.dimension_semantics<parallel>], iteration_bounds = array<i64: 4>, scalar_prefetch = 0 : i64, scratch_operands = 0 : i64, tpu.core_type = #tpu.core_type<tc>, window_params = [{transform_indices = @transform_0, window_bounds = array<i64: 3, 512>}, {pipeline_mode = #tpu.pipeline_mode<synchronous>, transform_indices = @transform_1, window_bounds = array<i64: 16, 1>}, {pipeline_mode = #tpu.pipeline_mode<synchronous>, transform_indices = @transform_2, window_bounds = array<i64: 16, 1>}, {pipeline_mode = #tpu.pipeline_mode<synchronous>, transform_indices = @transform_3, window_bounds = array<i64: 64, 48>}, {pipeline_mode = #tpu.pipeline_mode<synchronous>, transform_indices = @transform_4, window_bounds = array<i64: 64, 1>}, {pipeline_mode = #tpu.pipeline_mode<synchronous>, transform_indices = @transform_5, window_bounds = array<i64: 64, 64>}, {pipeline_mode = #tpu.pipeline_mode<synchronous>, transform_indices = @transform_6, window_bounds = array<i64: 64, 1>}, {pipeline_mode = #tpu.pipeline_mode<synchronous>, transform_indices = @transform_7, window_bounds = array<i64: 64, 64>}, {pipeline_mode = #tpu.pipeline_mode<synchronous>, transform_indices = @transform_8, window_bounds = array<i64: 64, 48>}, {pipeline_mode = #tpu.pipeline_mode<synchronous>, transform_indices = @transform_9, window_bounds = array<i64: 64, 1>}, {pipeline_mode = #tpu.pipeline_mode<synchronous>, transform_indices = @transform_10, window_bounds = array<i64: 64, 64>}, {pipeline_mode = #tpu.pipeline_mode<synchronous>, transform_indices = @transform_11, window_bounds = array<i64: 64, 1>}, {pipeline_mode = #tpu.pipeline_mode<synchronous>, transform_indices = @transform_12, window_bounds = array<i64: 64, 64>}, {pipeline_mode = #tpu.pipeline_mode<synchronous>, transform_indices = @transform_13, window_bounds = array<i64: 64, 48>}, {pipeline_mode = #tpu.pipeline_mode<synchronous>, transform_indices = @transform_14, window_bounds = array<i64: 64, 1>}, {pipeline_mode = #tpu.pipeline_mode<synchronous>, transform_indices = @transform_15, window_bounds = array<i64: 64, 64>}, {pipeline_mode = #tpu.pipeline_mode<synchronous>, transform_indices = @transform_16, window_bounds = array<i64: 64, 1>}, {pipeline_mode = #tpu.pipeline_mode<synchronous>, transform_indices = @transform_17, window_bounds = array<i64: 64, 64>}, {pipeline_mode = #tpu.pipeline_mode<synchronous>, transform_indices = @transform_18, window_bounds = array<i64: 64, 48>}, {pipeline_mode = #tpu.pipeline_mode<synchronous>, transform_indices = @transform_19, window_bounds = array<i64: 64, 1>}, {pipeline_mode = #tpu.pipeline_mode<synchronous>, transform_indices = @transform_20, window_bounds = array<i64: 4, 64>}, {pipeline_mode = #tpu.pipeline_mode<synchronous>, transform_indices = @transform_21, window_bounds = array<i64: 4, 1>}, {transform_indices = @transform_22, window_bounds = array<i64: 4, 512>}]} {
    %c0 = arith.constant 0 : index
    %c0_0 = arith.constant 0 : index
    %0 = vector.load %arg2[%c0, %c0_0] : memref<16x1xf32, #tpu.memory_space<vmem>>, vector<16x1xf32>
    %c0_1 = arith.constant 0 : index
    %c0_2 = arith.constant 0 : index
    %1 = vector.load %arg3[%c0_1, %c0_2] : memref<16x1xf32, #tpu.memory_space<vmem>>, vector<16x1xf32>
    %c0_3 = arith.constant 0 : index
    %c0_4 = arith.constant 0 : index
    %2 = vector.load %arg1[%c0_3, %c0_4] : memref<3x512xf32, #tpu.memory_space<vmem>>, vector<1x512xf32>
    %3 = vector.broadcast %0 : vector<16x1xf32> to vector<16x512xf32>
    %4 = vector.broadcast %2 : vector<1x512xf32> to vector<16x512xf32>
    %5 = arith.mulf %3, %4 : vector<16x512xf32>
    %6 = vector.broadcast %1 : vector<16x1xf32> to vector<16x512xf32>
    %7 = arith.addf %5, %6 : vector<16x512xf32>
    %8 = math.sin %7 : vector<16x512xf32>
    %c1 = arith.constant 1 : index
    %c0_5 = arith.constant 0 : index
    %9 = vector.load %arg1[%c1, %c0_5] : memref<3x512xf32, #tpu.memory_space<vmem>>, vector<1x512xf32>
    %10 = vector.broadcast %0 : vector<16x1xf32> to vector<16x512xf32>
    %11 = vector.broadcast %9 : vector<1x512xf32> to vector<16x512xf32>
    %12 = arith.mulf %10, %11 : vector<16x512xf32>
    %13 = vector.broadcast %1 : vector<16x1xf32> to vector<16x512xf32>
    %14 = arith.addf %12, %13 : vector<16x512xf32>
    %15 = math.sin %14 : vector<16x512xf32>
    %c2 = arith.constant 2 : index
    %c0_6 = arith.constant 0 : index
    %16 = vector.load %arg1[%c2, %c0_6] : memref<3x512xf32, #tpu.memory_space<vmem>>, vector<1x512xf32>
    %17 = vector.broadcast %0 : vector<16x1xf32> to vector<16x512xf32>
    %18 = vector.broadcast %16 : vector<1x512xf32> to vector<16x512xf32>
    %19 = arith.mulf %17, %18 : vector<16x512xf32>
    %20 = vector.broadcast %1 : vector<16x1xf32> to vector<16x512xf32>
    %21 = arith.addf %19, %20 : vector<16x512xf32>
    %22 = math.sin %21 : vector<16x512xf32>
    %23 = tpu.concatenate %8, %15, %22 in 0 : vector<16x512xf32>, vector<16x512xf32>, vector<16x512xf32> -> vector<48x512xf32>
    %24 = arith.truncf %23 : vector<48x512xf32> to vector<48x512xbf16>
    %c0_7 = arith.constant 0 : index
    %c0_8 = arith.constant 0 : index
    %25 = vector.load %arg4[%c0_7, %c0_8] : memref<64x48xbf16, #tpu.memory_space<vmem>>, vector<64x48xbf16>
    %c0_9 = arith.constant 0 : index
    %c0_10 = arith.constant 0 : index
    %26 = vector.load %arg5[%c0_9, %c0_10] : memref<64x1xf32, #tpu.memory_space<vmem>>, vector<64x1xf32>
    %cst = arith.constant dense<0.000000e+00> : vector<64x512xf32>
    %27 = tpu.matmul %25, %24, %cst {dimension_numbers = #tpu.dot_dimension_numbers<[1], [0], [0], [1], [0, 0, 1, 1], [], []>} : vector<64x48xbf16>, vector<48x512xbf16>, vector<64x512xf32> -> vector<64x512xf32>
    %28 = vector.broadcast %26 : vector<64x1xf32> to vector<64x512xf32>
    %29 = arith.addf %27, %28 : vector<64x512xf32>
    %cst_11 = arith.constant 0.000000e+00 : f32
    %30 = vector.broadcast %cst_11 : f32 to vector<64x512xf32>
    %31 = arith.cmpf oge, %29, %30 : vector<64x512xf32>
    %cst_12 = arith.constant 0.00999999977 : f32
    %32 = vector.broadcast %cst_12 : f32 to vector<64x512xf32>
    %33 = arith.mulf %32, %29 : vector<64x512xf32>
    %34 = arith.select %31, %29, %33 : vector<64x512xi1>, vector<64x512xf32>
    %c0_13 = arith.constant 0 : index
    %c0_14 = arith.constant 0 : index
    %35 = vector.load %arg6[%c0_13, %c0_14] : memref<64x64xbf16, #tpu.memory_space<vmem>>, vector<64x64xbf16>
    %c0_15 = arith.constant 0 : index
    %c0_16 = arith.constant 0 : index
    %36 = vector.load %arg7[%c0_15, %c0_16] : memref<64x1xf32, #tpu.memory_space<vmem>>, vector<64x1xf32>
    %37 = arith.truncf %34 : vector<64x512xf32> to vector<64x512xbf16>
    %cst_17 = arith.constant dense<0.000000e+00> : vector<64x512xf32>
    %38 = tpu.matmul %35, %37, %cst_17 {dimension_numbers = #tpu.dot_dimension_numbers<[1], [0], [0], [1], [0, 0, 1, 1], [], []>} : vector<64x64xbf16>, vector<64x512xbf16>, vector<64x512xf32> -> vector<64x512xf32>
    %39 = vector.broadcast %36 : vector<64x1xf32> to vector<64x512xf32>
    %40 = arith.addf %38, %39 : vector<64x512xf32>
    %cst_18 = arith.constant 0.000000e+00 : f32
    %41 = vector.broadcast %cst_18 : f32 to vector<64x512xf32>
    %42 = arith.cmpf oge, %40, %41 : vector<64x512xf32>
    %cst_19 = arith.constant 0.00999999977 : f32
    %43 = vector.broadcast %cst_19 : f32 to vector<64x512xf32>
    %44 = arith.mulf %43, %40 : vector<64x512xf32>
    %45 = arith.select %42, %40, %44 : vector<64x512xi1>, vector<64x512xf32>
    %c0_20 = arith.constant 0 : index
    %c0_21 = arith.constant 0 : index
    %46 = vector.load %arg8[%c0_20, %c0_21] : memref<64x64xbf16, #tpu.memory_space<vmem>>, vector<64x64xbf16>
    %c0_22 = arith.constant 0 : index
    %c0_23 = arith.constant 0 : index
    %47 = vector.load %arg9[%c0_22, %c0_23] : memref<64x48xbf16, #tpu.memory_space<vmem>>, vector<64x48xbf16>
    %c0_24 = arith.constant 0 : index
    %c0_25 = arith.constant 0 : index
    %48 = vector.load %arg10[%c0_24, %c0_25] : memref<64x1xf32, #tpu.memory_space<vmem>>, vector<64x1xf32>
    %49 = arith.truncf %45 : vector<64x512xf32> to vector<64x512xbf16>
    %cst_26 = arith.constant dense<0.000000e+00> : vector<64x512xf32>
    %50 = tpu.matmul %46, %49, %cst_26 {dimension_numbers = #tpu.dot_dimension_numbers<[1], [0], [0], [1], [0, 0, 1, 1], [], []>} : vector<64x64xbf16>, vector<64x512xbf16>, vector<64x512xf32> -> vector<64x512xf32>
    %cst_27 = arith.constant dense<0.000000e+00> : vector<64x512xf32>
    %51 = tpu.matmul %47, %24, %cst_27 {dimension_numbers = #tpu.dot_dimension_numbers<[1], [0], [0], [1], [0, 0, 1, 1], [], []>} : vector<64x48xbf16>, vector<48x512xbf16>, vector<64x512xf32> -> vector<64x512xf32>
    %52 = arith.addf %50, %51 : vector<64x512xf32>
    %53 = vector.broadcast %48 : vector<64x1xf32> to vector<64x512xf32>
    %54 = arith.addf %52, %53 : vector<64x512xf32>
    %cst_28 = arith.constant 0.000000e+00 : f32
    %55 = vector.broadcast %cst_28 : f32 to vector<64x512xf32>
    %56 = arith.cmpf oge, %54, %55 : vector<64x512xf32>
    %cst_29 = arith.constant 0.00999999977 : f32
    %57 = vector.broadcast %cst_29 : f32 to vector<64x512xf32>
    %58 = arith.mulf %57, %54 : vector<64x512xf32>
    %59 = arith.select %56, %54, %58 : vector<64x512xi1>, vector<64x512xf32>
    %c0_30 = arith.constant 0 : index
    %c0_31 = arith.constant 0 : index
    %60 = vector.load %arg11[%c0_30, %c0_31] : memref<64x64xbf16, #tpu.memory_space<vmem>>, vector<64x64xbf16>
    %c0_32 = arith.constant 0 : index
    %c0_33 = arith.constant 0 : index
    %61 = vector.load %arg12[%c0_32, %c0_33] : memref<64x1xf32, #tpu.memory_space<vmem>>, vector<64x1xf32>
    %62 = arith.truncf %59 : vector<64x512xf32> to vector<64x512xbf16>
    %cst_34 = arith.constant dense<0.000000e+00> : vector<64x512xf32>
    %63 = tpu.matmul %60, %62, %cst_34 {dimension_numbers = #tpu.dot_dimension_numbers<[1], [0], [0], [1], [0, 0, 1, 1], [], []>} : vector<64x64xbf16>, vector<64x512xbf16>, vector<64x512xf32> -> vector<64x512xf32>
    %64 = vector.broadcast %61 : vector<64x1xf32> to vector<64x512xf32>
    %65 = arith.addf %63, %64 : vector<64x512xf32>
    %cst_35 = arith.constant 0.000000e+00 : f32
    %66 = vector.broadcast %cst_35 : f32 to vector<64x512xf32>
    %67 = arith.cmpf oge, %65, %66 : vector<64x512xf32>
    %cst_36 = arith.constant 0.00999999977 : f32
    %68 = vector.broadcast %cst_36 : f32 to vector<64x512xf32>
    %69 = arith.mulf %68, %65 : vector<64x512xf32>
    %70 = arith.select %67, %65, %69 : vector<64x512xi1>, vector<64x512xf32>
    %c0_37 = arith.constant 0 : index
    %c0_38 = arith.constant 0 : index
    %71 = vector.load %arg13[%c0_37, %c0_38] : memref<64x64xbf16, #tpu.memory_space<vmem>>, vector<64x64xbf16>
    %c0_39 = arith.constant 0 : index
    %c0_40 = arith.constant 0 : index
    %72 = vector.load %arg14[%c0_39, %c0_40] : memref<64x48xbf16, #tpu.memory_space<vmem>>, vector<64x48xbf16>
    %c0_41 = arith.constant 0 : index
    %c0_42 = arith.constant 0 : index
    %73 = vector.load %arg15[%c0_41, %c0_42] : memref<64x1xf32, #tpu.memory_space<vmem>>, vector<64x1xf32>
    %74 = arith.truncf %70 : vector<64x512xf32> to vector<64x512xbf16>
    %cst_43 = arith.constant dense<0.000000e+00> : vector<64x512xf32>
    %75 = tpu.matmul %71, %74, %cst_43 {dimension_numbers = #tpu.dot_dimension_numbers<[1], [0], [0], [1], [0, 0, 1, 1], [], []>} : vector<64x64xbf16>, vector<64x512xbf16>, vector<64x512xf32> -> vector<64x512xf32>
    %cst_44 = arith.constant dense<0.000000e+00> : vector<64x512xf32>
    %76 = tpu.matmul %72, %24, %cst_44 {dimension_numbers = #tpu.dot_dimension_numbers<[1], [0], [0], [1], [0, 0, 1, 1], [], []>} : vector<64x48xbf16>, vector<48x512xbf16>, vector<64x512xf32> -> vector<64x512xf32>
    %77 = arith.addf %75, %76 : vector<64x512xf32>
    %78 = vector.broadcast %73 : vector<64x1xf32> to vector<64x512xf32>
    %79 = arith.addf %77, %78 : vector<64x512xf32>
    %cst_45 = arith.constant 0.000000e+00 : f32
    %80 = vector.broadcast %cst_45 : f32 to vector<64x512xf32>
    %81 = arith.cmpf oge, %79, %80 : vector<64x512xf32>
    %cst_46 = arith.constant 0.00999999977 : f32
    %82 = vector.broadcast %cst_46 : f32 to vector<64x512xf32>
    %83 = arith.mulf %82, %79 : vector<64x512xf32>
    %84 = arith.select %81, %79, %83 : vector<64x512xi1>, vector<64x512xf32>
    %c0_47 = arith.constant 0 : index
    %c0_48 = arith.constant 0 : index
    %85 = vector.load %arg16[%c0_47, %c0_48] : memref<64x64xbf16, #tpu.memory_space<vmem>>, vector<64x64xbf16>
    %c0_49 = arith.constant 0 : index
    %c0_50 = arith.constant 0 : index
    %86 = vector.load %arg17[%c0_49, %c0_50] : memref<64x1xf32, #tpu.memory_space<vmem>>, vector<64x1xf32>
    %87 = arith.truncf %84 : vector<64x512xf32> to vector<64x512xbf16>
    %cst_51 = arith.constant dense<0.000000e+00> : vector<64x512xf32>
    %88 = tpu.matmul %85, %87, %cst_51 {dimension_numbers = #tpu.dot_dimension_numbers<[1], [0], [0], [1], [0, 0, 1, 1], [], []>} : vector<64x64xbf16>, vector<64x512xbf16>, vector<64x512xf32> -> vector<64x512xf32>
    %89 = vector.broadcast %86 : vector<64x1xf32> to vector<64x512xf32>
    %90 = arith.addf %88, %89 : vector<64x512xf32>
    %cst_52 = arith.constant 0.000000e+00 : f32
    %91 = vector.broadcast %cst_52 : f32 to vector<64x512xf32>
    %92 = arith.cmpf oge, %90, %91 : vector<64x512xf32>
    %cst_53 = arith.constant 0.00999999977 : f32
    %93 = vector.broadcast %cst_53 : f32 to vector<64x512xf32>
    %94 = arith.mulf %93, %90 : vector<64x512xf32>
    %95 = arith.select %92, %90, %94 : vector<64x512xi1>, vector<64x512xf32>
    %c0_54 = arith.constant 0 : index
    %c0_55 = arith.constant 0 : index
    %96 = vector.load %arg18[%c0_54, %c0_55] : memref<64x64xbf16, #tpu.memory_space<vmem>>, vector<64x64xbf16>
    %c0_56 = arith.constant 0 : index
    %c0_57 = arith.constant 0 : index
    %97 = vector.load %arg19[%c0_56, %c0_57] : memref<64x48xbf16, #tpu.memory_space<vmem>>, vector<64x48xbf16>
    %c0_58 = arith.constant 0 : index
    %c0_59 = arith.constant 0 : index
    %98 = vector.load %arg20[%c0_58, %c0_59] : memref<64x1xf32, #tpu.memory_space<vmem>>, vector<64x1xf32>
    %99 = arith.truncf %95 : vector<64x512xf32> to vector<64x512xbf16>
    %cst_60 = arith.constant dense<0.000000e+00> : vector<64x512xf32>
    %100 = tpu.matmul %96, %99, %cst_60 {dimension_numbers = #tpu.dot_dimension_numbers<[1], [0], [0], [1], [0, 0, 1, 1], [], []>} : vector<64x64xbf16>, vector<64x512xbf16>, vector<64x512xf32> -> vector<64x512xf32>
    %cst_61 = arith.constant dense<0.000000e+00> : vector<64x512xf32>
    %101 = tpu.matmul %97, %24, %cst_61 {dimension_numbers = #tpu.dot_dimension_numbers<[1], [0], [0], [1], [0, 0, 1, 1], [], []>} : vector<64x48xbf16>, vector<48x512xbf16>, vector<64x512xf32> -> vector<64x512xf32>
    %102 = arith.addf %100, %101 : vector<64x512xf32>
    %103 = vector.broadcast %98 : vector<64x1xf32> to vector<64x512xf32>
    %104 = arith.addf %102, %103 : vector<64x512xf32>
    %cst_62 = arith.constant 0.000000e+00 : f32
    %105 = vector.broadcast %cst_62 : f32 to vector<64x512xf32>
    %106 = arith.cmpf oge, %104, %105 : vector<64x512xf32>
    %cst_63 = arith.constant 0.00999999977 : f32
    %107 = vector.broadcast %cst_63 : f32 to vector<64x512xf32>
    %108 = arith.mulf %107, %104 : vector<64x512xf32>
    %109 = arith.select %106, %104, %108 : vector<64x512xi1>, vector<64x512xf32>
    %c0_64 = arith.constant 0 : index
    %c0_65 = arith.constant 0 : index
    %110 = vector.load %arg21[%c0_64, %c0_65] : memref<4x64xbf16, #tpu.memory_space<vmem>>, vector<4x64xbf16>
    %c0_66 = arith.constant 0 : index
    %c0_67 = arith.constant 0 : index
    %111 = vector.load %arg22[%c0_66, %c0_67] : memref<4x1xf32, #tpu.memory_space<vmem>>, vector<4x1xf32>
    %112 = arith.truncf %109 : vector<64x512xf32> to vector<64x512xbf16>
    %cst_68 = arith.constant dense<0.000000e+00> : vector<4x512xf32>
    %113 = tpu.matmul %110, %112, %cst_68 {dimension_numbers = #tpu.dot_dimension_numbers<[1], [0], [0], [1], [0, 0, 1, 1], [], []>} : vector<4x64xbf16>, vector<64x512xbf16>, vector<4x512xf32> -> vector<4x512xf32>
    %114 = vector.broadcast %111 : vector<4x1xf32> to vector<4x512xf32>
    %115 = arith.addf %113, %114 : vector<4x512xf32>
    %116 = arith.negf %115 : vector<4x512xf32>
    %117 = math.exp %116 : vector<4x512xf32>
    %cst_69 = arith.constant 1.000000e+00 : f32
    %118 = vector.broadcast %cst_69 : f32 to vector<4x512xf32>
    %119 = arith.addf %118, %117 : vector<4x512xf32>
    %120 = arith.divf %118, %119 : vector<4x512xf32>
    %c0_70 = arith.constant 0 : index
    %c0_71 = arith.constant 0 : index
    %121 = vector.load %arg23[%c0_70, %c0_71] : memref<4x512xf32, #tpu.memory_space<vmem>>, vector<4x512xf32>
    tpu.vector_store %arg23[%c0_70, %c0_71], %120 {strides = array<i32>} : memref<4x512xf32, #tpu.memory_space<vmem>>, vector<4x512xf32>,
    return
  }
  func.func @transform_0(%arg0: i32) -> (i32, i32) {
    %c0_i32 = arith.constant 0 : i32
    %c0_i32_0 = arith.constant 0 : i32
    return %c0_i32, %arg0 : i32, i32
  }
  func.func @transform_1(%arg0: i32) -> (i32, i32) {
    %c0_i32 = arith.constant 0 : i32
    %c0_i32_0 = arith.constant 0 : i32
    %c0_i32_1 = arith.constant 0 : i32
    return %c0_i32, %c0_i32_0 : i32, i32
  }
  func.func @transform_2(%arg0: i32) -> (i32, i32) {
    %c0_i32 = arith.constant 0 : i32
    %c0_i32_0 = arith.constant 0 : i32
    %c0_i32_1 = arith.constant 0 : i32
    return %c0_i32, %c0_i32_0 : i32, i32
  }
  func.func @transform_3(%arg0: i32) -> (i32, i32) {
    %c0_i32 = arith.constant 0 : i32
    %c0_i32_0 = arith.constant 0 : i32
    %c0_i32_1 = arith.constant 0 : i32
    return %c0_i32, %c0_i32_0 : i32, i32
  }
  func.func @transform_4(%arg0: i32) -> (i32, i32) {
    %c0_i32 = arith.constant 0 : i32
    %c0_i32_0 = arith.constant 0 : i32
    %c0_i32_1 = arith.constant 0 : i32
    return %c0_i32, %c0_i32_0 : i32, i32
  }
  func.func @transform_5(%arg0: i32) -> (i32, i32) {
    %c0_i32 = arith.constant 0 : i32
    %c0_i32_0 = arith.constant 0 : i32
    %c0_i32_1 = arith.constant 0 : i32
    return %c0_i32, %c0_i32_0 : i32, i32
  }
  func.func @transform_6(%arg0: i32) -> (i32, i32) {
    %c0_i32 = arith.constant 0 : i32
    %c0_i32_0 = arith.constant 0 : i32
    %c0_i32_1 = arith.constant 0 : i32
    return %c0_i32, %c0_i32_0 : i32, i32
  }
  func.func @transform_7(%arg0: i32) -> (i32, i32) {
    %c0_i32 = arith.constant 0 : i32
    %c0_i32_0 = arith.constant 0 : i32
    %c0_i32_1 = arith.constant 0 : i32
    return %c0_i32, %c0_i32_0 : i32, i32
  }
  func.func @transform_8(%arg0: i32) -> (i32, i32) {
    %c0_i32 = arith.constant 0 : i32
    %c0_i32_0 = arith.constant 0 : i32
    %c0_i32_1 = arith.constant 0 : i32
    return %c0_i32, %c0_i32_0 : i32, i32
  }
  func.func @transform_9(%arg0: i32) -> (i32, i32) {
    %c0_i32 = arith.constant 0 : i32
    %c0_i32_0 = arith.constant 0 : i32
    %c0_i32_1 = arith.constant 0 : i32
    return %c0_i32, %c0_i32_0 : i32, i32
  }
  func.func @transform_10(%arg0: i32) -> (i32, i32) {
    %c0_i32 = arith.constant 0 : i32
    %c0_i32_0 = arith.constant 0 : i32
    %c0_i32_1 = arith.constant 0 : i32
    return %c0_i32, %c0_i32_0 : i32, i32
  }
  func.func @transform_11(%arg0: i32) -> (i32, i32) {
    %c0_i32 = arith.constant 0 : i32
    %c0_i32_0 = arith.constant 0 : i32
    %c0_i32_1 = arith.constant 0 : i32
    return %c0_i32, %c0_i32_0 : i32, i32
  }
  func.func @transform_12(%arg0: i32) -> (i32, i32) {
    %c0_i32 = arith.constant 0 : i32
    %c0_i32_0 = arith.constant 0 : i32
    %c0_i32_1 = arith.constant 0 : i32
    return %c0_i32, %c0_i32_0 : i32, i32
  }
  func.func @transform_13(%arg0: i32) -> (i32, i32) {
    %c0_i32 = arith.constant 0 : i32
    %c0_i32_0 = arith.constant 0 : i32
    %c0_i32_1 = arith.constant 0 : i32
    return %c0_i32, %c0_i32_0 : i32, i32
  }
  func.func @transform_14(%arg0: i32) -> (i32, i32) {
    %c0_i32 = arith.constant 0 : i32
    %c0_i32_0 = arith.constant 0 : i32
    %c0_i32_1 = arith.constant 0 : i32
    return %c0_i32, %c0_i32_0 : i32, i32
  }
  func.func @transform_15(%arg0: i32) -> (i32, i32) {
    %c0_i32 = arith.constant 0 : i32
    %c0_i32_0 = arith.constant 0 : i32
    %c0_i32_1 = arith.constant 0 : i32
    return %c0_i32, %c0_i32_0 : i32, i32
  }
  func.func @transform_16(%arg0: i32) -> (i32, i32) {
    %c0_i32 = arith.constant 0 : i32
    %c0_i32_0 = arith.constant 0 : i32
    %c0_i32_1 = arith.constant 0 : i32
    return %c0_i32, %c0_i32_0 : i32, i32
  }
  func.func @transform_17(%arg0: i32) -> (i32, i32) {
    %c0_i32 = arith.constant 0 : i32
    %c0_i32_0 = arith.constant 0 : i32
    %c0_i32_1 = arith.constant 0 : i32
    return %c0_i32, %c0_i32_0 : i32, i32
  }
  func.func @transform_18(%arg0: i32) -> (i32, i32) {
    %c0_i32 = arith.constant 0 : i32
    %c0_i32_0 = arith.constant 0 : i32
    %c0_i32_1 = arith.constant 0 : i32
    return %c0_i32, %c0_i32_0 : i32, i32
  }
  func.func @transform_19(%arg0: i32) -> (i32, i32) {
    %c0_i32 = arith.constant 0 : i32
    %c0_i32_0 = arith.constant 0 : i32
    %c0_i32_1 = arith.constant 0 : i32
    return %c0_i32, %c0_i32_0 : i32, i32
  }
  func.func @transform_20(%arg0: i32) -> (i32, i32) {
    %c0_i32 = arith.constant 0 : i32
    %c0_i32_0 = arith.constant 0 : i32
    %c0_i32_1 = arith.constant 0 : i32
    return %c0_i32, %c0_i32_0 : i32, i32
  }
  func.func @transform_21(%arg0: i32) -> (i32, i32) {
    %c0_i32 = arith.constant 0 : i32
    %c0_i32_0 = arith.constant 0 : i32
    %c0_i32_1 = arith.constant 0 : i32
    return %c0_i32, %c0_i32_0 : i32, i32
  }
  func.func @transform_22(%arg0: i32) -> (i32, i32) {
    %c0_i32 = arith.constant 0 : i32
    %c0_i32_0 = arith.constant 0 : i32
    return %c0_i32, %arg0 : i32, i32
  }
}

</mosaic_0001>

<llo_original>
// kernel: tile.6
$region0: #{tile.6}
  #allocation0 [shape = 's32[1]{0}', space=sflag, size = 0x4, scoped, tag = 'scoped memory for tile.6']
  %s0 = inlined_call_operand.vmem [shape: f32[2], index: 0, kind: input, shape index: {}]
  %s1 = inlined_call_operand.vmem [shape: f32[8,2], index: 1, kind: output, shape index: {}]
  // Predicated region
  $region2: #{tile.6} parent=0 // pred_check
    _
  $region3: #{tile.6} parent=0 // pred_check_branch
    %3 = sbr.rel (0) target = $region5
  $region4: #{tile.6} parent=0 // pred_region
    _
  $region5: #{tile.6} parent=0 // pred_fallthru
    _
  %v4 = vld [vmem:[%s0] ss:$0 sm:$0xff]
  %5 = vst [vmem:[%s1] sm:$0xff] %v4

// kernel: nerf_forward.1
$region0: #{nerf_forward.1}
  #allocation0 [shape = 'u32[]', space=smem, size = 0x4, offset = 0x4, fixed_abs, tag = 'smem constant byte address 0x4 - core index']
  #allocation1 [shape = 'u32[144,128]{1,0:T(1,128)}', space=vmem, size = 0x12000, scoped, tag = 'internal scratch']
  %s0 = inlined_call_operand.vmem [shape: f32[3,2048], index: 0, kind: input, shape index: {}]
  %s1 = inlined_call_operand.vmem [shape: f32[16,1], index: 1, kind: input, shape index: {}]
  %s2 = inlined_call_operand.vmem [shape: f32[16,1], index: 2, kind: input, shape index: {}]
  %s3 = inlined_call_operand.vmem [shape: bf16[64,48], index: 3, kind: input, shape index: {}]
  %s4 = inlined_call_operand.vmem [shape: f32[64,1], index: 4, kind: input, shape index: {}]
  %s5 = inlined_call_operand.vmem [shape: bf16[64,64], index: 5, kind: input, shape index: {}]
  %s6 = inlined_call_operand.vmem [shape: f32[64,1], index: 6, kind: input, shape index: {}]
  %s7 = inlined_call_operand.vmem [shape: bf16[64,64], index: 7, kind: input, shape index: {}]
  %s8 = inlined_call_operand.vmem [shape: bf16[64,48], index: 8, kind: input, shape index: {}]
  %s9 = inlined_call_operand.vmem [shape: f32[64,1], index: 9, kind: input, shape index: {}]
  %s10 = inlined_call_operand.vmem [shape: bf16[64,64], index: 10, kind: input, shape index: {}]
  %s11 = inlined_call_operand.vmem [shape: f32[64,1], index: 11, kind: input, shape index: {}]
  %s12 = inlined_call_operand.vmem [shape: bf16[64,64], index: 12, kind: input, shape index: {}]
  %s13 = inlined_call_operand.vmem [shape: bf16[64,48], index: 13, kind: input, shape index: {}]
  %s14 = inlined_call_operand.vmem [shape: f32[64,1], index: 14, kind: input, shape index: {}]
  %s15 = inlined_call_operand.vmem [shape: bf16[64,64], index: 15, kind: input, shape index: {}]
  %s16 = inlined_call_operand.vmem [shape: f32[64,1], index: 16, kind: input, shape index: {}]
  %s17 = inlined_call_operand.vmem [shape: bf16[64,64], index: 17, kind: input, shape index: {}]
  %s18 = inlined_call_operand.vmem [shape: bf16[64,48], index: 18, kind: input, shape index: {}]
  %s19 = inlined_call_operand.vmem [shape: f32[64,1], index: 19, kind: input, shape index: {}]
  %s20 = inlined_call_operand.vmem [shape: bf16[4,64], index: 20, kind: input, shape index: {}]
  %s21 = inlined_call_operand.vmem [shape: f32[4,1], index: 21, kind: input, shape index: {}]
  %s22 = inlined_call_operand.hbm [shape: f32[4,2048], index: 22, kind: output, shape index: {}]
  %s23 = sld [smem:[#allocation0]]
  $region121: #{nerf_forward.1} parent=0
    _
  %s25 = ssub.s32 1, %s23
  %s26 = scalar_select 0, %s25, %s23
  $region1: #{nerf_forward.1} parent=0
    #allocation2 [shape = 'u8[16384]{0}', space=vmem, size = 0x4000, scoped, tag = 'output window, operand 0']
    #allocation3 [shape = 's32[2]{0}', space=sflag, size = 0x8, scoped, tag = 'scoped memory for nerf_forward.1']
    %27 = vsyncpa [#allocation3], 0
    %s28 = scalar_lea.sflag [#allocation3], 1
    %29 = vsyncpa %s28, 0
    loop: start=0, step=1, limit=6
    $region2: #{nerf_forward.1} parent=1 // loop_pre_header
      _
    $region3: #{nerf_forward.1} parent=1 // loop_header
      %s31 = sphi 0, %s35
      %p32 = scmp.ge.s32.totalorder %s31, 6
      %s41 = sphi 0, %s43
      %s44 = sphi 0, %s41
      %s45 = sphi 0, %s44
      %s61 = sphi 0, %s45
      %s65 = sphi 0, %s65
      %s67 = sphi 0, %s65
      %s68 = sphi 0, %s67
      %s82 = sphi 0, %s68
      %s86 = sphi 0, %s86
      %s88 = sphi 0, %s86
      %s89 = sphi 0, %s88
      %s103 = sphi 0, %s89
      %s107 = sphi 0, %s107
      %s109 = sphi 0, %s107
      %s110 = sphi 0, %s109
      %s124 = sphi 0, %s110
      %s128 = sphi 0, %s128
      %s130 = sphi 0, %s128
      %s131 = sphi 0, %s130
      %s145 = sphi 0, %s131
      %s149 = sphi 0, %s149
      %s151 = sphi 0, %s149
      %s152 = sphi 0, %s151
      %s166 = sphi 0, %s152
      %s170 = sphi 0, %s170
      %s172 = sphi 0, %s170
      %s173 = sphi 0, %s172
      %s187 = sphi 0, %s173
      %s191 = sphi 0, %s191
      %s193 = sphi 0, %s191
      %s194 = sphi 0, %s193
      %s208 = sphi 0, %s194
      %s212 = sphi 0, %s212
      %s214 = sphi 0, %s212
      %s215 = sphi 0, %s214
      %s229 = sphi 0, %s215
      %s233 = sphi 0, %s233
      %s235 = sphi 0, %s233
      %s236 = sphi 0, %s235
      %s250 = sphi 0, %s236
      %s254 = sphi 0, %s254
      %s256 = sphi 0, %s254
      %s257 = sphi 0, %s256
      %s271 = sphi 0, %s257
      %s275 = sphi 0, %s275
      %s277 = sphi 0, %s275
      %s278 = sphi 0, %s277
      %s292 = sphi 0, %s278
      %s296 = sphi 0, %s296
      %s298 = sphi 0, %s296
      %s299 = sphi 0, %s298
      %s313 = sphi 0, %s299
      %s317 = sphi 0, %s317
      %s319 = sphi 0, %s317
      %s320 = sphi 0, %s319
      %s334 = sphi 0, %s320
      %s338 = sphi 0, %s338
      %s340 = sphi 0, %s338
      %s341 = sphi 0, %s340
      %s355 = sphi 0, %s341
      %s359 = sphi 0, %s359
      %s361 = sphi 0, %s359
      %s362 = sphi 0, %s361
      %s376 = sphi 0, %s362
      %s380 = sphi 0, %s380
      %s382 = sphi 0, %s380
      %s383 = sphi 0, %s382
      %s397 = sphi 0, %s383
      %s401 = sphi 0, %s401
      %s403 = sphi 0, %s401
      %s404 = sphi 0, %s403
      %s418 = sphi 0, %s404
      %s422 = sphi 0, %s422
      %s424 = sphi 0, %s422
      %s425 = sphi 0, %s424
      %s439 = sphi 0, %s425
      %s443 = sphi 0, %s443
      %s445 = sphi 0, %s443
      %s446 = sphi 0, %s445
      %s460 = sphi 0, %s446
      %s464 = sphi 0, %s464
      %s466 = sphi 0, %s464
      %s467 = sphi 0, %s466
      %s481 = sphi 0, %s467
      %s485 = sphi 0, %s485
      %s487 = sphi 0, %s485
      %s488 = sphi 0, %s487
      %s502 = sphi 0, %s488
      %s508 = sphi 0, %s510
      %s511 = sphi 0, %s508
      %s512 = sphi 0, %s511
      %s528 = sphi 0, %s512
    $region4: #{nerf_forward.1} parent=1 // loop_header_branch
      %34 = sbr.rel (%p32) target = $region8
    $region5: #{nerf_forward.1} parent=1 // loop_body
      %s36 = ssub.s32 %s31, 1
      %s37 = ssub.s32 %s31, 2
      %s38 = sadd.s32 %s31, 1
      %s39 = ssub.s32 %s31, %s38
      %p40 = scmp.eq.s32.totalorder %s39, 0
      %s42 = sadd.s32 %s41, 1
      %s43 = scalar_select %p40, %s41, %s42
      %p46 = pneg %p40
      %p47 = scmp.eq.s32.totalorder %s31, 3
      %p48 = por %p46, %p47
      %p49 = scmp.ne.s32.totalorder %s41, %s44
      %p50 = scmp.eq.s32.totalorder %s31, 0
      %p51 = por %p49, %p50
      %p52 = scmp.ne.s32.totalorder %s41, %s44
      %p53 = scmp.eq.s32.totalorder %s36, 3
      %p54 = por %p52, %p53
      %p55 = scmp.ne.s32.totalorder %s44, %s45
      %p56 = scmp.eq.s32.totalorder %s36, 0
      %p57 = por %p55, %p56
      %p58 = scmp.ne.s32.totalorder %s44, %s45
      %p59 = scmp.eq.s32.totalorder %s37, 3
      %p60 = por %p58, %p59
      %p62 = scmp.ne.s32.totalorder %s45, %s61
      %p63 = scmp.eq.s32.totalorder %s37, 0
      %p64 = por %p62, %p63
      %s66 = sadd.s32 %s65, 1
      %p69 = scmp.eq.s32.totalorder %s31, 3
      %p70 = scmp.ne.s32.totalorder %s65, %s67
      %p71 = scmp.eq.s32.totalorder %s31, 0
      %p72 = por %p70, %p71
      %p73 = scmp.ne.s32.totalorder %s65, %s67
      %p74 = scmp.eq.s32.totalorder %s36, 3
      %p75 = por %p73, %p74
      %p76 = scmp.ne.s32.totalorder %s67, %s68
      %p77 = scmp.eq.s32.totalorder %s36, 0
      %p78 = por %p76, %p77
      %p79 = scmp.ne.s32.totalorder %s67, %s68
      %p80 = scmp.eq.s32.totalorder %s37, 3
      %p81 = por %p79, %p80
      %p83 = scmp.ne.s32.totalorder %s68, %s82
      %p84 = scmp.eq.s32.totalorder %s37, 0
      %p85 = por %p83, %p84
      %s87 = sadd.s32 %s86, 1
      %p90 = scmp.eq.s32.totalorder %s31, 3
      %p91 = scmp.ne.s32.totalorder %s86, %s88
      %p92 = scmp.eq.s32.totalorder %s31, 0
      %p93 = por %p91, %p92
      %p94 = scmp.ne.s32.totalorder %s86, %s88
      %p95 = scmp.eq.s32.totalorder %s36, 3
      %p96 = por %p94, %p95
      %p97 = scmp.ne.s32.totalorder %s88, %s89
      %p98 = scmp.eq.s32.totalorder %s36, 0
      %p99 = por %p97, %p98
      %p100 = scmp.ne.s32.totalorder %s88, %s89
      %p101 = scmp.eq.s32.totalorder %s37, 3
      %p102 = por %p100, %p101
      %p104 = scmp.ne.s32.totalorder %s89, %s103
      %p105 = scmp.eq.s32.totalorder %s37, 0
      %p106 = por %p104, %p105
      %s108 = sadd.s32 %s107, 1
      %p111 = scmp.eq.s32.totalorder %s31, 3
      %p112 = scmp.ne.s32.totalorder %s107, %s109
      %p113 = scmp.eq.s32.totalorder %s31, 0
      %p114 = por %p112, %p113
      %p115 = scmp.ne.s32.totalorder %s107, %s109
      %p116 = scmp.eq.s32.totalorder %s36, 3
      %p117 = por %p115, %p116
      %p118 = scmp.ne.s32.totalorder %s109, %s110
      %p119 = scmp.eq.s32.totalorder %s36, 0
      %p120 = por %p118, %p119
      %p121 = scmp.ne.s32.totalorder %s109, %s110
      %p122 = scmp.eq.s32.totalorder %s37, 3
      %p123 = por %p121, %p122
      %p125 = scmp.ne.s32.totalorder %s110, %s124
      %p126 = scmp.eq.s32.totalorder %s37, 0
      %p127 = por %p125, %p126
      %s129 = sadd.s32 %s128, 1
      %p132 = scmp.eq.s32.totalorder %s31, 3
      %p133 = scmp.ne.s32.totalorder %s128, %s130
      %p134 = scmp.eq.s32.totalorder %s31, 0
      %p135 = por %p133, %p134
      %p136 = scmp.ne.s32.totalorder %s128, %s130
      %p137 = scmp.eq.s32.totalorder %s36, 3
      %p138 = por %p136, %p137
      %p139 = scmp.ne.s32.totalorder %s130, %s131
      %p140 = scmp.eq.s32.totalorder %s36, 0
      %p141 = por %p139, %p140
      %p142 = scmp.ne.s32.totalorder %s130, %s131
      %p143 = scmp.eq.s32.totalorder %s37, 3
      %p144 = por %p142, %p143
      %p146 = scmp.ne.s32.totalorder %s131, %s145
      %p147 = scmp.eq.s32.totalorder %s37, 0
      %p148 = por %p146, %p147
      %s150 = sadd.s32 %s149, 1
      %p153 = scmp.eq.s32.totalorder %s31, 3
      %p154 = scmp.ne.s32.totalorder %s149, %s151
      %p155 = scmp.eq.s32.totalorder %s31, 0
      %p156 = por %p154, %p155
      %p157 = scmp.ne.s32.totalorder %s149, %s151
      %p158 = scmp.eq.s32.totalorder %s36, 3
      %p159 = por %p157, %p158
      %p160 = scmp.ne.s32.totalorder %s151, %s152
      %p161 = scmp.eq.s32.totalorder %s36, 0
      %p162 = por %p160, %p161
      %p163 = scmp.ne.s32.totalorder %s151, %s152
      %p164 = scmp.eq.s32.totalorder %s37, 3
      %p165 = por %p163, %p164
      %p167 = scmp.ne.s32.totalorder %s152, %s166
      %p168 = scmp.eq.s32.totalorder %s37, 0
      %p169 = por %p167, %p168
      %s171 = sadd.s32 %s170, 1
      %p174 = scmp.eq.s32.totalorder %s31, 3
      %p175 = scmp.ne.s32.totalorder %s170, %s172
      %p176 = scmp.eq.s32.totalorder %s31, 0
      %p177 = por %p175, %p176
      %p178 = scmp.ne.s32.totalorder %s170, %s172
      %p179 = scmp.eq.s32.totalorder %s36, 3
      %p180 = por %p178, %p179
      %p181 = scmp.ne.s32.totalorder %s172, %s173
      %p182 = scmp.eq.s32.totalorder %s36, 0
      %p183 = por %p181, %p182
      %p184 = scmp.ne.s32.totalorder %s172, %s173
      %p185 = scmp.eq.s32.totalorder %s37, 3
      %p186 = por %p184, %p185
      %p188 = scmp.ne.s32.totalorder %s173, %s187
      %p189 = scmp.eq.s32.totalorder %s37, 0
      %p190 = por %p188, %p189
      %s192 = sadd.s32 %s191, 1
      %p195 = scmp.eq.s32.totalorder %s31, 3
      %p196 = scmp.ne.s32.totalorder %s191, %s193
      %p197 = scmp.eq.s32.totalorder %s31, 0
      %p198 = por %p196, %p197
      %p199 = scmp.ne.s32.totalorder %s191, %s193
      %p200 = scmp.eq.s32.totalorder %s36, 3
      %p201 = por %p199, %p200
      %p202 = scmp.ne.s32.totalorder %s193, %s194
      %p203 = scmp.eq.s32.totalorder %s36, 0
      %p204 = por %p202, %p203
      %p205 = scmp.ne.s32.totalorder %s193, %s194
      %p206 = scmp.eq.s32.totalorder %s37, 3
      %p207 = por %p205, %p206
      %p209 = scmp.ne.s32.totalorder %s194, %s208
      %p210 = scmp.eq.s32.totalorder %s37, 0
      %p211 = por %p209, %p210
      %s213 = sadd.s32 %s212, 1
      %p216 = scmp.eq.s32.totalorder %s31, 3
      %p217 = scmp.ne.s32.totalorder %s212, %s214
      %p218 = scmp.eq.s32.totalorder %s31, 0
      %p219 = por %p217, %p218
      %p220 = scmp.ne.s32.totalorder %s212, %s214
      %p221 = scmp.eq.s32.totalorder %s36, 3
      %p222 = por %p220, %p221
      %p223 = scmp.ne.s32.totalorder %s214, %s215
      %p224 = scmp.eq.s32.totalorder %s36, 0
      %p225 = por %p223, %p224
      %p226 = scmp.ne.s32.totalorder %s214, %s215
      %p227 = scmp.eq.s32.totalorder %s37, 3
      %p228 = por %p226, %p227
      %p230 = scmp.ne.s32.totalorder %s215, %s229
      %p231 = scmp.eq.s32.totalorder %s37, 0
      %p232 = por %p230, %p231
      %s234 = sadd.s32 %s233, 1
      %p237 = scmp.eq.s32.totalorder %s31, 3
      %p238 = scmp.ne.s32.totalorder %s233, %s235
      %p239 = scmp.eq.s32.totalorder %s31, 0
      %p240 = por %p238, %p239
      %p241 = scmp.ne.s32.totalorder %s233, %s235
      %p242 = scmp.eq.s32.totalorder %s36, 3
      %p243 = por %p241, %p242
      %p244 = scmp.ne.s32.totalorder %s235, %s236
      %p245 = scmp.eq.s32.totalorder %s36, 0
      %p246 = por %p244, %p245
      %p247 = scmp.ne.s32.totalorder %s235, %s236
      %p248 = scmp.eq.s32.totalorder %s37, 3
      %p249 = por %p247, %p248
      %p251 = scmp.ne.s32.totalorder %s236, %s250
      %p252 = scmp.eq.s32.totalorder %s37, 0
      %p253 = por %p251, %p252
      %s255 = sadd.s32 %s254, 1
      %p258 = scmp.eq.s32.totalorder %s31, 3
      %p259 = scmp.ne.s32.totalorder %s254, %s256
      %p260 = scmp.eq.s32.totalorder %s31, 0
      %p261 = por %p259, %p260
      %p262 = scmp.ne.s32.totalorder %s254, %s256
      %p263 = scmp.eq.s32.totalorder %s36, 3
      %p264 = por %p262, %p263
      %p265 = scmp.ne.s32.totalorder %s256, %s257
      %p266 = scmp.eq.s32.totalorder %s36, 0
      %p267 = por %p265, %p266
      %p268 = scmp.ne.s32.totalorder %s256, %s257
      %p269 = scmp.eq.s32.totalorder %s37, 3
      %p270 = por %p268, %p269
      %p272 = scmp.ne.s32.totalorder %s257, %s271
      %p273 = scmp.eq.s32.totalorder %s37, 0
      %p274 = por %p272, %p273
      %s276 = sadd.s32 %s275, 1
      %p279 = scmp.eq.s32.totalorder %s31, 3
      %p280 = scmp.ne.s32.totalorder %s275, %s277
      %p281 = scmp.eq.s32.totalorder %s31, 0
      %p282 = por %p280, %p281
      %p283 = scmp.ne.s32.totalorder %s275, %s277
      %p284 = scmp.eq.s32.totalorder %s36, 3
      %p285 = por %p283, %p284
      %p286 = scmp.ne.s32.totalorder %s277, %s278
      %p287 = scmp.eq.s32.totalorder %s36, 0
      %p288 = por %p286, %p287
      %p289 = scmp.ne.s32.totalorder %s277, %s278
      %p290 = scmp.eq.s32.totalorder %s37, 3
      %p291 = por %p289, %p290
      %p293 = scmp.ne.s32.totalorder %s278, %s292
      %p294 = scmp.eq.s32.totalorder %s37, 0
      %p295 = por %p293, %p294
      %s297 = sadd.s32 %s296, 1
      %p300 = scmp.eq.s32.totalorder %s31, 3
      %p301 = scmp.ne.s32.totalorder %s296, %s298
      %p302 = scmp.eq.s32.totalorder %s31, 0
      %p303 = por %p301, %p302
      %p304 = scmp.ne.s32.totalorder %s296, %s298
      %p305 = scmp.eq.s32.totalorder %s36, 3
      %p306 = por %p304, %p305
      %p307 = scmp.ne.s32.totalorder %s298, %s299
      %p308 = scmp.eq.s32.totalorder %s36, 0
      %p309 = por %p307, %p308
      %p310 = scmp.ne.s32.totalorder %s298, %s299
      %p311 = scmp.eq.s32.totalorder %s37, 3
      %p312 = por %p310, %p311
      %p314 = scmp.ne.s32.totalorder %s299, %s313
      %p315 = scmp.eq.s32.totalorder %s37, 0
      %p316 = por %p314, %p315
      %s318 = sadd.s32 %s317, 1
      %p321 = scmp.eq.s32.totalorder %s31, 3
      %p322 = scmp.ne.s32.totalorder %s317, %s319
      %p323 = scmp.eq.s32.totalorder %s31, 0
      %p324 = por %p322, %p323
      %p325 = scmp.ne.s32.totalorder %s317, %s319
      %p326 = scmp.eq.s32.totalorder %s36, 3
      %p327 = por %p325, %p326
      %p328 = scmp.ne.s32.totalorder %s319, %s320
      %p329 = scmp.eq.s32.totalorder %s36, 0
      %p330 = por %p328, %p329
      %p331 = scmp.ne.s32.totalorder %s319, %s320
      %p332 = scmp.eq.s32.totalorder %s37, 3
      %p333 = por %p331, %p332
      %p335 = scmp.ne.s32.totalorder %s320, %s334
      %p336 = scmp.eq.s32.totalorder %s37, 0
      %p337 = por %p335, %p336
      %s339 = sadd.s32 %s338, 1
      %p342 = scmp.eq.s32.totalorder %s31, 3
      %p343 = scmp.ne.s32.totalorder %s338, %s340
      %p344 = scmp.eq.s32.totalorder %s31, 0
      %p345 = por %p343, %p344
      %p346 = scmp.ne.s32.totalorder %s338, %s340
      %p347 = scmp.eq.s32.totalorder %s36, 3
      %p348 = por %p346, %p347
      %p349 = scmp.ne.s32.totalorder %s340, %s341
      %p350 = scmp.eq.s32.totalorder %s36, 0
      %p351 = por %p349, %p350
      %p352 = scmp.ne.s32.totalorder %s340, %s341
      %p353 = scmp.eq.s32.totalorder %s37, 3
      %p354 = por %p352, %p353
      %p356 = scmp.ne.s32.totalorder %s341, %s355
      %p357 = scmp.eq.s32.totalorder %s37, 0
      %p358 = por %p356, %p357
      %s360 = sadd.s32 %s359, 1
      %p363 = scmp.eq.s32.totalorder %s31, 3
      %p364 = scmp.ne.s32.totalorder %s359, %s361
      %p365 = scmp.eq.s32.totalorder %s31, 0
      %p366 = por %p364, %p365
      %p367 = scmp.ne.s32.totalorder %s359, %s361
      %p368 = scmp.eq.s32.totalorder %s36, 3
      %p369 = por %p367, %p368
      %p370 = scmp.ne.s32.totalorder %s361, %s362
      %p371 = scmp.eq.s32.totalorder %s36, 0
      %p372 = por %p370, %p371
      %p373 = scmp.ne.s32.totalorder %s361, %s362
      %p374 = scmp.eq.s32.totalorder %s37, 3
      %p375 = por %p373, %p374
      %p377 = scmp.ne.s32.totalorder %s362, %s376
      %p378 = scmp.eq.s32.totalorder %s37, 0
      %p379 = por %p377, %p378
      %s381 = sadd.s32 %s380, 1
      %p384 = scmp.eq.s32.totalorder %s31, 3
      %p385 = scmp.ne.s32.totalorder %s380, %s382
      %p386 = scmp.eq.s32.totalorder %s31, 0
      %p387 = por %p385, %p386
      %p388 = scmp.ne.s32.totalorder %s380, %s382
      %p389 = scmp.eq.s32.totalorder %s36, 3
      %p390 = por %p388, %p389
      %p391 = scmp.ne.s32.totalorder %s382, %s383
      %p392 = scmp.eq.s32.totalorder %s36, 0
      %p393 = por %p391, %p392
      %p394 = scmp.ne.s32.totalorder %s382, %s383
      %p395 = scmp.eq.s32.totalorder %s37, 3
      %p396 = por %p394, %p395
      %p398 = scmp.ne.s32.totalorder %s383, %s397
      %p399 = scmp.eq.s32.totalorder %s37, 0
      %p400 = por %p398, %p399
      %s402 = sadd.s32 %s401, 1
      %p405 = scmp.eq.s32.totalorder %s31, 3
      %p406 = scmp.ne.s32.totalorder %s401, %s403
      %p407 = scmp.eq.s32.totalorder %s31, 0
      %p408 = por %p406, %p407
      %p409 = scmp.ne.s32.totalorder %s401, %s403
      %p410 = scmp.eq.s32.totalorder %s36, 3
      %p411 = por %p409, %p410
      %p412 = scmp.ne.s32.totalorder %s403, %s404
      %p413 = scmp.eq.s32.totalorder %s36, 0
      %p414 = por %p412, %p413
      %p415 = scmp.ne.s32.totalorder %s403, %s404
      %p416 = scmp.eq.s32.totalorder %s37, 3
      %p417 = por %p415, %p416
      %p419 = scmp.ne.s32.totalorder %s404, %s418
      %p420 = scmp.eq.s32.totalorder %s37, 0
      %p421 = por %p419, %p420
      %s423 = sadd.s32 %s422, 1
      %p426 = scmp.eq.s32.totalorder %s31, 3
      %p427 = scmp.ne.s32.totalorder %s422, %s424
      %p428 = scmp.eq.s32.totalorder %s31, 0
      %p429 = por %p427, %p428
      %p430 = scmp.ne.s32.totalorder %s422, %s424
      %p431 = scmp.eq.s32.totalorder %s36, 3
      %p432 = por %p430, %p431
      %p433 = scmp.ne.s32.totalorder %s424, %s425
      %p434 = scmp.eq.s32.totalorder %s36, 0
      %p435 = por %p433, %p434
      %p436 = scmp.ne.s32.totalorder %s424, %s425
      %p437 = scmp.eq.s32.totalorder %s37, 3
      %p438 = por %p436, %p437
      %p440 = scmp.ne.s32.totalorder %s425, %s439
      %p441 = scmp.eq.s32.totalorder %s37, 0
      %p442 = por %p440, %p441
      %s444 = sadd.s32 %s443, 1
      %p447 = scmp.eq.s32.totalorder %s31, 3
      %p448 = scmp.ne.s32.totalorder %s443, %s445
      %p449 = scmp.eq.s32.totalorder %s31, 0
      %p450 = por %p448, %p449
      %p451 = scmp.ne.s32.totalorder %s443, %s445
      %p452 = scmp.eq.s32.totalorder %s36, 3
      %p453 = por %p451, %p452
      %p454 = scmp.ne.s32.totalorder %s445, %s446
      %p455 = scmp.eq.s32.totalorder %s36, 0
      %p456 = por %p454, %p455
      %p457 = scmp.ne.s32.totalorder %s445, %s446
      %p458 = scmp.eq.s32.totalorder %s37, 3
      %p459 = por %p457, %p458
      %p461 = scmp.ne.s32.totalorder %s446, %s460
      %p462 = scmp.eq.s32.totalorder %s37, 0
      %p463 = por %p461, %p462
      %s465 = sadd.s32 %s464, 1
      %p468 = scmp.eq.s32.totalorder %s31, 3
      %p469 = scmp.ne.s32.totalorder %s464, %s466
      %p470 = scmp.eq.s32.totalorder %s31, 0
      %p471 = por %p469, %p470
      %p472 = scmp.ne.s32.totalorder %s464, %s466
      %p473 = scmp.eq.s32.totalorder %s36, 3
      %p474 = por %p472, %p473
      %p475 = scmp.ne.s32.totalorder %s466, %s467
      %p476 = scmp.eq.s32.totalorder %s36, 0
      %p477 = por %p475, %p476
      %p478 = scmp.ne.s32.totalorder %s466, %s467
      %p479 = scmp.eq.s32.totalorder %s37, 3
      %p480 = por %p478, %p479
      %p482 = scmp.ne.s32.totalorder %s467, %s481
      %p483 = scmp.eq.s32.totalorder %s37, 0
      %p484 = por %p482, %p483
      %s486 = sadd.s32 %s485, 1
      %p489 = scmp.eq.s32.totalorder %s31, 3
      %p490 = scmp.ne.s32.totalorder %s485, %s487
      %p491 = scmp.eq.s32.totalorder %s31, 0
      %p492 = por %p490, %p491
      %p493 = scmp.ne.s32.totalorder %s485, %s487
      %p494 = scmp.eq.s32.totalorder %s36, 3
      %p495 = por %p493, %p494
      %p496 = scmp.ne.s32.totalorder %s487, %s488
      %p497 = scmp.eq.s32.totalorder %s36, 0
      %p498 = por %p496, %p497
      %p499 = scmp.ne.s32.totalorder %s487, %s488
      %p500 = scmp.eq.s32.totalorder %s37, 3
      %p501 = por %p499, %p500
      %p503 = scmp.ne.s32.totalorder %s488, %s502
      %p504 = scmp.eq.s32.totalorder %s37, 0
      %p505 = por %p503, %p504
      %s506 = ssub.s32 %s31, %s38
      %p507 = scmp.eq.s32.totalorder %s506, 0
      %s509 = sadd.s32 %s508, 1
      %s510 = scalar_select %p507, %s508, %s509
      %p513 = pneg %p507
      %p514 = scmp.eq.s32.totalorder %s31, 3
      %p515 = por %p513, %p514
      %p516 = scmp.ne.s32.totalorder %s508, %s511
      %p517 = scmp.eq.s32.totalorder %s31, 0
      %p518 = por %p516, %p517
      %p519 = scmp.ne.s32.totalorder %s508, %s511
      %p520 = scmp.eq.s32.totalorder %s36, 3
      %p521 = por %p519, %p520
      %p522 = scmp.ne.s32.totalorder %s511, %s512
      %p523 = scmp.eq.s32.totalorder %s36, 0
      %p524 = por %p522, %p523
      %p525 = scmp.ne.s32.totalorder %s511, %s512
      %p526 = scmp.eq.s32.totalorder %s37, 3
      %p527 = por %p525, %p526
      %p529 = scmp.ne.s32.totalorder %s512, %s528
      %p530 = scmp.eq.s32.totalorder %s37, 0
      %p531 = por %p529, %p530
      %p532 = scmp.le.s32.totalorder 1, %s31
      %p533 = scmp.lt.s32.totalorder %s31, 5
      %p534 = pnand %p532, %p533
      %p535 = pneg %p534
      // Predicated region
      $region9: #{nerf_forward.1} parent=5 // pred_check
        _
      $region10: #{nerf_forward.1} parent=5 // pred_check_branch
        %537 = sbr.rel (%p534) target = $region12
      $region11: #{nerf_forward.1} parent=5 // pred_region
        %s538 = ssub.s32 %s31, 1
        // Predicated region
        $region13: #{nerf_forward.1} parent=11 // pred_check
          %p539 = pneg %p78
        $region14: #{nerf_forward.1} parent=11 // pred_check_branch
          %541 = sbr.rel (%p539) target = $region16
        $region15: #{nerf_forward.1} parent=11 // pred_region
          _
        $region16: #{nerf_forward.1} parent=11 // pred_fallthru
          _
        // Predicated region
        $region17: #{nerf_forward.1} parent=11 // pred_check
          %p542 = pneg %p99
        $region18: #{nerf_forward.1} parent=11 // pred_check_branch
          %544 = sbr.rel (%p542) target = $region20
        $region19: #{nerf_forward.1} parent=11 // pred_region
          _
        $region20: #{nerf_forward.1} parent=11 // pred_fallthru
          _
        // Predicated region
        $region21: #{nerf_forward.1} parent=11 // pred_check
          %p545 = pneg %p120
        $region22: #{nerf_forward.1} parent=11 // pred_check_branch
          %547 = sbr.rel (%p545) target = $region24
        $region23: #{nerf_forward.1} parent=11 // pred_region
          _
        $region24: #{nerf_forward.1} parent=11 // pred_fallthru
          _
        // Predicated region
        $region25: #{nerf_forward.1} parent=11 // pred_check
          %p548 = pneg %p141
        $region26: #{nerf_forward.1} parent=11 // pred_check_branch
          %550 = sbr.rel (%p548) target = $region28
        $region27: #{nerf_forward.1} parent=11 // pred_region
          _
        $region28: #{nerf_forward.1} parent=11 // pred_fallthru
          _
        // Predicated region
        $region29: #{nerf_forward.1} parent=11 // pred_check
          %p551 = pneg %p162
        $region30: #{nerf_forward.1} parent=11 // pred_check_branch
          %553 = sbr.rel (%p551) target = $region32
        $region31: #{nerf_forward.1} parent=11 // pred_region
          _
        $region32: #{nerf_forward.1} parent=11 // pred_fallthru
          _
        // Predicated region
        $region33: #{nerf_forward.1} parent=11 // pred_check
          %p554 = pneg %p183
        $region34: #{nerf_forward.1} parent=11 // pred_check_branch
          %556 = sbr.rel (%p554) target = $region36
        $region35: #{nerf_forward.1} parent=11 // pred_region
          _
        $region36: #{nerf_forward.1} parent=11 // pred_fallthru
          _
        // Predicated region
        $region37: #{nerf_forward.1} parent=11 // pred_check
          %p557 = pneg %p204
        $region38: #{nerf_forward.1} parent=11 // pred_check_branch
          %559 = sbr.rel (%p557) target = $region40
        $region39: #{nerf_forward.1} parent=11 // pred_region
          _
        $region40: #{nerf_forward.1} parent=11 // pred_fallthru
          _
        // Predicated region
        $region41: #{nerf_forward.1} parent=11 // pred_check
          %p560 = pneg %p225
        $region42: #{nerf_forward.1} parent=11 // pred_check_branch
          %562 = sbr.rel (%p560) target = $region44
        $region43: #{nerf_forward.1} parent=11 // pred_region
          _
        $region44: #{nerf_forward.1} parent=11 // pred_fallthru
          _
        // Predicated region
        $region45: #{nerf_forward.1} parent=11 // pred_check
          %p563 = pneg %p246
        $region46: #{nerf_forward.1} parent=11 // pred_check_branch
          %565 = sbr.rel (%p563) target = $region48
        $region47: #{nerf_forward.1} parent=11 // pred_region
          _
        $region48: #{nerf_forward.1} parent=11 // pred_fallthru
          _
        // Predicated region
        $region49: #{nerf_forward.1} parent=11 // pred_check
          %p566 = pneg %p267
        $region50: #{nerf_forward.1} parent=11 // pred_check_branch
          %568 = sbr.rel (%p566) target = $region52
        $region51: #{nerf_forward.1} parent=11 // pred_region
          _
        $region52: #{nerf_forward.1} parent=11 // pred_fallthru
          _
        // Predicated region
        $region53: #{nerf_forward.1} parent=11 // pred_check
          %p569 = pneg %p288
        $region54: #{nerf_forward.1} parent=11 // pred_check_branch
          %571 = sbr.rel (%p569) target = $region56
        $region55: #{nerf_forward.1} parent=11 // pred_region
          _
        $region56: #{nerf_forward.1} parent=11 // pred_fallthru
          _
        // Predicated region
        $region57: #{nerf_forward.1} parent=11 // pred_check
          %p572 = pneg %p309
        $region58: #{nerf_forward.1} parent=11 // pred_check_branch
          %574 = sbr.rel (%p572) target = $region60
        $region59: #{nerf_forward.1} parent=11 // pred_region
          _
        $region60: #{nerf_forward.1} parent=11 // pred_fallthru
          _
        // Predicated region
        $region61: #{nerf_forward.1} parent=11 // pred_check
          %p575 = pneg %p330
        $region62: #{nerf_forward.1} parent=11 // pred_check_branch
          %577 = sbr.rel (%p575) target = $region64
        $region63: #{nerf_forward.1} parent=11 // pred_region
          _
        $region64: #{nerf_forward.1} parent=11 // pred_fallthru
          _
        // Predicated region
        $region65: #{nerf_forward.1} parent=11 // pred_check
          %p578 = pneg %p351
        $region66: #{nerf_forward.1} parent=11 // pred_check_branch
          %580 = sbr.rel (%p578) target = $region68
        $region67: #{nerf_forward.1} parent=11 // pred_region
          _
        $region68: #{nerf_forward.1} parent=11 // pred_fallthru
          _
        // Predicated region
        $region69: #{nerf_forward.1} parent=11 // pred_check
          %p581 = pneg %p372
        $region70: #{nerf_forward.1} parent=11 // pred_check_branch
          %583 = sbr.rel (%p581) target = $region72
        $region71: #{nerf_forward.1} parent=11 // pred_region
          _
        $region72: #{nerf_forward.1} parent=11 // pred_fallthru
          _
        // Predicated region
        $region73: #{nerf_forward.1} parent=11 // pred_check
          %p584 = pneg %p393
        $region74: #{nerf_forward.1} parent=11 // pred_check_branch
          %586 = sbr.rel (%p584) target = $region76
        $region75: #{nerf_forward.1} parent=11 // pred_region
          _
        $region76: #{nerf_forward.1} parent=11 // pred_fallthru
          _
        // Predicated region
        $region77: #{nerf_forward.1} parent=11 // pred_check
          %p587 = pneg %p414
        $region78: #{nerf_forward.1} parent=11 // pred_check_branch
          %589 = sbr.rel (%p587) target = $region80
        $region79: #{nerf_forward.1} parent=11 // pred_region
          _
        $region80: #{nerf_forward.1} parent=11 // pred_fallthru
          _
        // Predicated region
        $region81: #{nerf_forward.1} parent=11 // pred_check
          %p590 = pneg %p435
        $region82: #{nerf_forward.1} parent=11 // pred_check_branch
          %592 = sbr.rel (%p590) target = $region84
        $region83: #{nerf_forward.1} parent=11 // pred_region
          _
        $region84: #{nerf_forward.1} parent=11 // pred_fallthru
          _
        // Predicated region
        $region85: #{nerf_forward.1} parent=11 // pred_check
          %p593 = pneg %p456
        $region86: #{nerf_forward.1} parent=11 // pred_check_branch
          %595 = sbr.rel (%p593) target = $region88
        $region87: #{nerf_forward.1} parent=11 // pred_region
          _
        $region88: #{nerf_forward.1} parent=11 // pred_fallthru
          _
        // Predicated region
        $region89: #{nerf_forward.1} parent=11 // pred_check
          %p596 = pneg %p477
        $region90: #{nerf_forward.1} parent=11 // pred_check_branch
          %598 = sbr.rel (%p596) target = $region92
        $region91: #{nerf_forward.1} parent=11 // pred_region
          _
        $region92: #{nerf_forward.1} parent=11 // pred_fallthru
          _
        // Predicated region
        $region93: #{nerf_forward.1} parent=11 // pred_check
          %p599 = pneg %p498
        $region94: #{nerf_forward.1} parent=11 // pred_check_branch
          %601 = sbr.rel (%p599) target = $region96
        $region95: #{nerf_forward.1} parent=11 // pred_region
          _
        $region96: #{nerf_forward.1} parent=11 // pred_fallthru
          _
      $region12: #{nerf_forward.1} parent=5 // pred_fallthru
        _
      %p602 = scmp.lt.s32.totalorder %s31, 4
      // Predicated region
      $region97: #{nerf_forward.1} parent=5 // pred_check
        %p603 = pneg %p602
      $region98: #{nerf_forward.1} parent=5 // pred_check_branch
        %605 = sbr.rel (%p603) target = $region100
      $region99: #{nerf_forward.1} parent=5 // pred_region
        // Predicated region
        $region101: #{nerf_forward.1} parent=99 // pred_check
          %p606 = pneg %p51
        $region102: #{nerf_forward.1} parent=99 // pred_check_branch
          %608 = sbr.rel (%p606) target = $region104
        $region103: #{nerf_forward.1} parent=99 // pred_region
          %s609 = smul.u32 4, %s31
          %p610 = scmp.lt.s32.totalorder %s609, 15
          %s611 = scalar_select %p610, %s609, 15
          %s612 = smul.addr %s611, 4
          %s613 = scalar_lea.vmem %s0, %s612
          %s614 = smul.u32 4, %s31
        $region104: #{nerf_forward.1} parent=99 // pred_fallthru
          _
      $region100: #{nerf_forward.1} parent=5 // pred_fallthru
        _
      %p615 = scmp.le.s32.totalorder 1, %s31
      %p616 = scmp.lt.s32.totalorder %s31, 5
      %p617 = pnand %p615, %p616
      %p618 = pneg %p617
      // Predicated region
      $region105: #{nerf_forward.1} parent=5 // pred_check
        _
      $region106: #{nerf_forward.1} parent=5 // pred_check_branch
        %620 = sbr.rel (%p617) target = $region108
      $region107: #{nerf_forward.1} parent=5 // pred_region
        %s621 = ssub.s32 %s31, 1
        %s622 = smul.u32 4, %s36
        %p623 = scmp.lt.s32.totalorder %s622, 15
        %s624 = scalar_select %p623, %s622, 15
        %s625 = smul.addr %s624, 4
        %s626 = scalar_lea.vmem %s0, %s625
        %p627 = pneg %p57
        %p628 = pneg %p54
        %p629 = pneg %p78
        %p630 = pneg %p75
        %p631 = pneg %p99
        %p632 = pneg %p96
        %p633 = pneg %p120
        %p634 = pneg %p117
        %p635 = pneg %p141
        %p636 = pneg %p138
        %p637 = pneg %p162
        %p638 = pneg %p159
        %p639 = pneg %p183
        %p640 = pneg %p180
        %p641 = pneg %p204
        %p642 = pneg %p201
        %p643 = pneg %p225
        %p644 = pneg %p222
        %p645 = pneg %p246
        %p646 = pneg %p243
        %p647 = pneg %p267
        %p648 = pneg %p264
        %p649 = pneg %p288
        %p650 = pneg %p285
        %p651 = pneg %p309
        %p652 = pneg %p306
        %p653 = pneg %p330
        %p654 = pneg %p327
        %p655 = pneg %p351
        %p656 = pneg %p348
        %p657 = pneg %p372
        %p658 = pneg %p369
        %p659 = pneg %p393
        %p660 = pneg %p390
        %p661 = pneg %p414
        %p662 = pneg %p411
        %p663 = pneg %p435
        %p664 = pneg %p432
        %p665 = pneg %p456
        %p666 = pneg %p453
        %p667 = pneg %p477
        %p668 = pneg %p474
        %p669 = pneg %p498
        %p670 = pneg %p495
        %p671 = pneg %p524
        %p672 = pneg %p521
        %s673 = sand.u32 %s511, 1
        %s674 = scalar_lea.sflag [#allocation3], %s673
        %s675 = sand.u32 %s511, 1
        %s676 = smul.addr %s675, 16
        %s677 = scalar_lea.vmem [#allocation2], %s676
        %s678 = smul.u32 4, %s36
        %p679 = scmp.lt.s32.totalorder %s678, 15
        %s680 = scalar_select %p679, %s678, 15
        %s681 = smul.addr %s680, 4
        %s682 = scalar_lea.vmem %s0, %s681
        %s683 = smul.u32 4, %s36
        %s684 = smul.u32 4, %s36
        %v686 = vld [vmem:[%s1] sm:$0xff]
        %v687 = vld [vmem:[%s1 + $0x8] sm:$0xff]
        %v688 = vld [vmem:[%s2] sm:$0xff]
        %v689 = vld [vmem:[%s2 + $0x8] sm:$0xff]
        %v690 = vld [vmem:[%s682] ss:$4 sm:$0xf]
        %692 = vset.pattern.permute.xlu0 0
        %693 = vperm.xlu0 %692, %v686
        %v694 = vpop.permute.xlu0 %693
        %697 = vset.pattern.permute.xlu0 0
        %698 = vperm.xlu0 %697, %v687
        %v699 = vpop.permute.xlu0 %698
        %v702 = vlaneseq
        %v703 = vshrl.u32 %v702, 7
        %v704 = vsub.s32 0, %v703
        %v705 = vrot.slane %v690, %v704
        %v706 = vlaneseq
        %v707 = vshrl.u32 %v706, 7
        %v708 = vsub.s32 1, %v707
        %v709 = vrot.slane %v690, %v708
        %v710 = vlaneseq
        %v711 = vshrl.u32 %v710, 7
        %v712 = vsub.s32 2, %v711
        %v713 = vrot.slane %v690, %v712
        %v714 = vlaneseq
        %v715 = vshrl.u32 %v714, 7
        %v716 = vsub.s32 3, %v715
        %v717 = vrot.slane %v690, %v716
        %v722 = vmul.f32 %v694, %v705
        %v723 = vmul.f32 %v694, %v709
        %v724 = vmul.f32 %v694, %v713
        %v725 = vmul.f32 %v694, %v717
        %v726 = vmul.f32 %v699, %v705
        %v727 = vmul.f32 %v699, %v709
        %v728 = vmul.f32 %v699, %v713
        %v729 = vmul.f32 %v699, %v717
        %731 = vset.pattern.permute.xlu0 0
        %732 = vperm.xlu0 %731, %v688
        %v733 = vpop.permute.xlu0 %732
        %736 = vset.pattern.permute.xlu0 0
        %737 = vperm.xlu0 %736, %v689
        %v738 = vpop.permute.xlu0 %737
        %v740 = vadd.f32 %v722, %v733
        %v741 = vadd.f32 %v723, %v733
        %v742 = vadd.f32 %v724, %v733
        %v743 = vadd.f32 %v725, %v733
        %v744 = vadd.f32 %v726, %v738
        %v745 = vadd.f32 %v727, %v738
        %v746 = vadd.f32 %v728, %v738
        %v747 = vadd.f32 %v729, %v738
        %v748 = vand.u32 2147483647, %v740
        %vm749 = vcmp.le.f32.partialorder %v748, 0.7853982
        %vm750 = vcmp.lt.s32.totalorder %v740, 0
        %v751 = vand.u32 %v740, 2139095040
        %v752 = vshrl.u32 %v751, 23
        %v753 = vsub.s32 %v752, 127
        %v754 = vand.u32 2147483647, %v740
        %v755 = vand.u32 %v754, 8388607
        %v756 = vor.u32 %v755, 8388608
        %v757 = vsub.s32 0, %v756
        %v758 = vadd.s32 %v753, 1
        %vm759 = vcmp.gt.s32.totalorder %v758, 0
        %v760 = vsel %vm759, %v758, 0
        %v761 = vshrl.u32 %v760, 5
        %v762 = vand.u32 %v760, 31
        %v763 = vsub.s32 32, %v762
        %v764 = vshrl.u32 683565275, %v763
        %v765 = vshll.u32 683565275, %v762
        %v766 = vshrl.u32 2475754826, %v763
        %v767 = vor.u32 %v765, %v766
        %v768 = vshll.u32 2475754826, %v762
        %v769 = vshrl.u32 2131351028, %v763
        %v770 = vor.u32 %v768, %v769
        %v771 = vshll.u32 2131351028, %v762
        %v772 = vshrl.u32 2102212464, %v763
        %v773 = vor.u32 %v771, %v772
        %v774 = vshll.u32 2102212464, %v762
        %v775 = vshrl.u32 920167782, %v763
        %v776 = vor.u32 %v774, %v775
        %v777 = vshll.u32 920167782, %v762
        %v778 = vshrl.u32 1326507024, %v763
        %v779 = vor.u32 %v777, %v778
        %vm780 = vcmp.lt.s32.totalorder %v761, 1
        %vm781 = vcmp.lt.s32.totalorder %v761, 2
        %vm782 = vcmp.lt.s32.totalorder %v761, 3
        %vm783 = vcmp.lt.s32.totalorder %v761, 4
        %v784 = vsel %vm780, %v764, %v767
        %v785 = vsel %vm783, %v773, 2102212464
        %v786 = vsel %vm782, %v770, %v785
        %v787 = vsel %vm781, %v784, %v786
        %v788 = vsel %vm780, %v767, %v770
        %v789 = vsel %vm783, %v776, 920167782
        %v790 = vsel %vm782, %v773, %v789
        %v791 = vsel %vm781, %v788, %v790
        %v792 = vsel %vm780, %v770, %v773
        %v793 = vsel %vm783, %v779, 1326507024
        %v794 = vsel %vm782, %v776, %v793
        %v795 = vsel %vm781, %v792, %v794
        %v796 = vshll.u32 %v756, 8
        %v797 = vmul.u32.u64.compose %v796, %v795
        %v798 = vextract.low.u32 %v797
        %v799 = vextract.high.u32 %v797
        %v800 = vmul.u32.u64.compose %v796, %v791
        %v801 = vextract.low.u32 %v800
        %v802 = vextract.high.u32 %v800
        %v803 = vmul.u32 %v796, %v787
        %v804 = vadd.s32 %v799, %v801
        %vm805 = vc.u32 %v799, %v801
        %v806 = vadd.s32 %v802, 1
        %v807 = vsel %vm805, %v806, %v802
        %v808 = vadd.s32 %v803, %v807
        %v809 = vadd.s32 %v808, 536870912
        %v810 = vshrl.u32 %v809, 30
        %v811 = vshll.u32 %v810, 30
        %v812 = vsub.s32 %v808, %v811
        %vm813 = vcmp.lt.s32.totalorder %v812, 0
        %v814 = vsub.s32 0, %v812
        %v815 = vsel %vm813, %v814, %v812
        %v816 = vclz %v815
        %v817 = vsub.s32 %v816, 2
        %vm818 = vcmp.gt.s32.totalorder 0, %v817
        %v819 = vsel %vm818, 0, %v817
        %v820 = vsub.s32 32, %v819
        %v821 = vshll.u32 %v812, %v819
        %v822 = vshrl.u32 %v804, %v820
        %v823 = vor.u32 %v821, %v822
        %v824 = vsub.s32 4294967266, %v819
        %v825 = vadd.s32 %v824, 127
        %v826 = vshll.u32 %v825, 23
        %v827 = vor.u32 4788187, %v826
        %v828 = vand.u32 2147483647, %v827
        %v830 = vcvt.s32.f32 %v823
        %v831 = vmul.f32 %v830, %v828
        %v832 = vxor.u32 %v831, 2147483648
        %v833 = vsel %vm750, %v832, %v831
        %v834 = vsub.s32 4, %v810
        %v835 = vsel %vm750, %v834, %v810
        %v836 = vsel %vm749, %v740, %v833
        %v837 = vsel %vm749, 0, %v835
        %v838 = vcosq.f32.pop %v836
        %v839 = vsinq.f32.pop %v836
        %vm840 = vweird.f32 %v740
        %v841 = vadd.s32 %v837, 3
        %v842 = vand.u32 %v841, 3
        %vm843 = vcmp.lt.s32.totalorder %v842, 2
        %vm844 = vcmp.eq.s32.totalorder %v842, 0
        %v845 = vxor.u32 %v839, 2147483648
        %v846 = vsel %vm844, %v838, %v845
        %vm847 = vcmp.eq.s32.totalorder %v842, 2
        %v848 = vxor.u32 %v838, 2147483648
        %v849 = vsel %vm847, %v848, %v839
        %v850 = vsel %vm843, %v846, %v849
        %v851 = vsel %vm840, nan, %v850
        %v852 = vand.u32 2147483647, %v741
        %vm853 = vcmp.le.f32.partialorder %v852, 0.7853982
        %vm854 = vcmp.lt.s32.totalorder %v741, 0
        %v855 = vand.u32 %v741, 2139095040
        %v856 = vshrl.u32 %v855, 23
        %v857 = vsub.s32 %v856, 127
        %v858 = vand.u32 2147483647, %v741
        %v859 = vand.u32 %v858, 8388607
        %v860 = vor.u32 %v859, 8388608
        %v861 = vsub.s32 0, %v860
        %v862 = vadd.s32 %v857, 1
        %vm863 = vcmp.gt.s32.totalorder %v862, 0
        %v864 = vsel %vm863, %v862, 0
        %v865 = vshrl.u32 %v864, 5
        %v866 = vand.u32 %v864, 31
        %v867 = vsub.s32 32, %v866
        %v868 = vshrl.u32 683565275, %v867
        %v869 = vshll.u32 683565275, %v866
        %v870 = vshrl.u32 2475754826, %v867
        %v871 = vor.u32 %v869, %v870
        %v872 = vshll.u32 2475754826, %v866
        %v873 = vshrl.u32 2131351028, %v867
        %v874 = vor.u32 %v872, %v873
        %v875 = vshll.u32 2131351028, %v866
        %v876 = vshrl.u32 2102212464, %v867
        %v877 = vor.u32 %v875, %v876
        %v878 = vshll.u32 2102212464, %v866
        %v879 = vshrl.u32 920167782, %v867
        %v880 = vor.u32 %v878, %v879
        %v881 = vshll.u32 920167782, %v866
        %v882 = vshrl.u32 1326507024, %v867
        %v883 = vor.u32 %v881, %v882
        %vm884 = vcmp.lt.s32.totalorder %v865, 1
        %vm885 = vcmp.lt.s32.totalorder %v865, 2
        %vm886 = vcmp.lt.s32.totalorder %v865, 3
        %vm887 = vcmp.lt.s32.totalorder %v865, 4
        %v888 = vsel %vm884, %v868, %v871
        %v889 = vsel %vm887, %v877, 2102212464
        %v890 = vsel %vm886, %v874, %v889
        %v891 = vsel %vm885, %v888, %v890
        %v892 = vsel %vm884, %v871, %v874
        %v893 = vsel %vm887, %v880, 920167782
        %v894 = vsel %vm886, %v877, %v893
        %v895 = vsel %vm885, %v892, %v894
        %v896 = vsel %vm884, %v874, %v877
        %v897 = vsel %vm887, %v883, 1326507024
        %v898 = vsel %vm886, %v880, %v897
        %v899 = vsel %vm885, %v896, %v898
        %v900 = vshll.u32 %v860, 8
        %v901 = vmul.u32.u64.compose %v900, %v899
        %v902 = vextract.low.u32 %v901
        %v903 = vextract.high.u32 %v901
        %v904 = vmul.u32.u64.compose %v900, %v895
        %v905 = vextract.low.u32 %v904
        %v906 = vextract.high.u32 %v904
        %v907 = vmul.u32 %v900, %v891
        %v908 = vadd.s32 %v903, %v905
        %vm909 = vc.u32 %v903, %v905
        %v910 = vadd.s32 %v906, 1
        %v911 = vsel %vm909, %v910, %v906
        %v912 = vadd.s32 %v907, %v911
        %v913 = vadd.s32 %v912, 536870912
        %v914 = vshrl.u32 %v913, 30
        %v915 = vshll.u32 %v914, 30
        %v916 = vsub.s32 %v912, %v915
        %vm917 = vcmp.lt.s32.totalorder %v916, 0
        %v918 = vsub.s32 0, %v916
        %v919 = vsel %vm917, %v918, %v916
        %v920 = vclz %v919
        %v921 = vsub.s32 %v920, 2
        %vm922 = vcmp.gt.s32.totalorder 0, %v921
        %v923 = vsel %vm922, 0, %v921
        %v924 = vsub.s32 32, %v923
        %v925 = vshll.u32 %v916, %v923
        %v926 = vshrl.u32 %v908, %v924
        %v927 = vor.u32 %v925, %v926
        %v928 = vsub.s32 4294967266, %v923
        %v929 = vadd.s32 %v928, 127
        %v930 = vshll.u32 %v929, 23
        %v931 = vor.u32 4788187, %v930
        %v932 = vand.u32 2147483647, %v931
        %v934 = vcvt.s32.f32 %v927
        %v935 = vmul.f32 %v934, %v932
        %v936 = vxor.u32 %v935, 2147483648
        %v937 = vsel %vm854, %v936, %v935
        %v938 = vsub.s32 4, %v914
        %v939 = vsel %vm854, %v938, %v914
        %v940 = vsel %vm853, %v741, %v937
        %v941 = vsel %vm853, 0, %v939
        %v942 = vcosq.f32.pop %v940
        %v943 = vsinq.f32.pop %v940
        %vm944 = vweird.f32 %v741
        %v945 = vadd.s32 %v941, 3
        %v946 = vand.u32 %v945, 3
        %vm947 = vcmp.lt.s32.totalorder %v946, 2
        %vm948 = vcmp.eq.s32.totalorder %v946, 0
        %v949 = vxor.u32 %v943, 2147483648
        %v950 = vsel %vm948, %v942, %v949
        %vm951 = vcmp.eq.s32.totalorder %v946, 2
        %v952 = vxor.u32 %v942, 2147483648
        %v953 = vsel %vm951, %v952, %v943
        %v954 = vsel %vm947, %v950, %v953
        %v955 = vsel %vm944, nan, %v954
        %v956 = vand.u32 2147483647, %v742
        %vm957 = vcmp.le.f32.partialorder %v956, 0.7853982
        %vm958 = vcmp.lt.s32.totalorder %v742, 0
        %v959 = vand.u32 %v742, 2139095040
        %v960 = vshrl.u32 %v959, 23
        %v961 = vsub.s32 %v960, 127
        %v962 = vand.u32 2147483647, %v742
        %v963 = vand.u32 %v962, 8388607
        %v964 = vor.u32 %v963, 8388608
        %v965 = vsub.s32 0, %v964
        %v966 = vadd.s32 %v961, 1
        %vm967 = vcmp.gt.s32.totalorder %v966, 0
        %v968 = vsel %vm967, %v966, 0
        %v969 = vshrl.u32 %v968, 5
        %v970 = vand.u32 %v968, 31
        %v971 = vsub.s32 32, %v970
        %v972 = vshrl.u32 683565275, %v971
        %v973 = vshll.u32 683565275, %v970
        %v974 = vshrl.u32 2475754826, %v971
        %v975 = vor.u32 %v973, %v974
        %v976 = vshll.u32 2475754826, %v970
        %v977 = vshrl.u32 2131351028, %v971
        %v978 = vor.u32 %v976, %v977
        %v979 = vshll.u32 2131351028, %v970
        %v980 = vshrl.u32 2102212464, %v971
        %v981 = vor.u32 %v979, %v980
        %v982 = vshll.u32 2102212464, %v970
        %v983 = vshrl.u32 920167782, %v971
        %v984 = vor.u32 %v982, %v983
        %v985 = vshll.u32 920167782, %v970
        %v986 = vshrl.u32 1326507024, %v971
        %v987 = vor.u32 %v985, %v986
        %vm988 = vcmp.lt.s32.totalorder %v969, 1
        %vm989 = vcmp.lt.s32.totalorder %v969, 2
        %vm990 = vcmp.lt.s32.totalorder %v969, 3
        %vm991 = vcmp.lt.s32.totalorder %v969, 4
        %v992 = vsel %vm988, %v972, %v975
        %v993 = vsel %vm991, %v981, 2102212464
        %v994 = vsel %vm990, %v978, %v993
        %v995 = vsel %vm989, %v992, %v994
        %v996 = vsel %vm988, %v975, %v978
        %v997 = vsel %vm991, %v984, 920167782
        %v998 = vsel %vm990, %v981, %v997
        %v999 = vsel %vm989, %v996, %v998
        %v1000 = vsel %vm988, %v978, %v981
        %v1001 = vsel %vm991, %v987, 1326507024
        %v1002 = vsel %vm990, %v984, %v1001
        %v1003 = vsel %vm989, %v1000, %v1002
        %v1004 = vshll.u32 %v964, 8
        %v1005 = vmul.u32.u64.compose %v1004, %v1003
        %v1006 = vextract.low.u32 %v1005
        %v1007 = vextract.high.u32 %v1005
        %v1008 = vmul.u32.u64.compose %v1004, %v999
        %v1009 = vextract.low.u32 %v1008
        %v1010 = vextract.high.u32 %v1008
        %v1011 = vmul.u32 %v1004, %v995
        %v1012 = vadd.s32 %v1007, %v1009
        %vm1013 = vc.u32 %v1007, %v1009
        %v1014 = vadd.s32 %v1010, 1
        %v1015 = vsel %vm1013, %v1014, %v1010
        %v1016 = vadd.s32 %v1011, %v1015
        %v1017 = vadd.s32 %v1016, 536870912
        %v1018 = vshrl.u32 %v1017, 30
        %v1019 = vshll.u32 %v1018, 30
        %v1020 = vsub.s32 %v1016, %v1019
        %vm1021 = vcmp.lt.s32.totalorder %v1020, 0
        %v1022 = vsub.s32 0, %v1020
        %v1023 = vsel %vm1021, %v1022, %v1020
        %v1024 = vclz %v1023
        %v1025 = vsub.s32 %v1024, 2
        %vm1026 = vcmp.gt.s32.totalorder 0, %v1025
        %v1027 = vsel %vm1026, 0, %v1025
        %v1028 = vsub.s32 32, %v1027
        %v1029 = vshll.u32 %v1020, %v1027
        %v1030 = vshrl.u32 %v1012, %v1028
        %v1031 = vor.u32 %v1029, %v1030
        %v1032 = vsub.s32 4294967266, %v1027
        %v1033 = vadd.s32 %v1032, 127
        %v1034 = vshll.u32 %v1033, 23
        %v1035 = vor.u32 4788187, %v1034
        %v1036 = vand.u32 2147483647, %v1035
        %v1038 = vcvt.s32.f32 %v1031
        %v1039 = vmul.f32 %v1038, %v1036
        %v1040 = vxor.u32 %v1039, 2147483648
        %v1041 = vsel %vm958, %v1040, %v1039
        %v1042 = vsub.s32 4, %v1018
        %v1043 = vsel %vm958, %v1042, %v1018
        %v1044 = vsel %vm957, %v742, %v1041
        %v1045 = vsel %vm957, 0, %v1043
        %v1046 = vcosq.f32.pop %v1044
        %v1047 = vsinq.f32.pop %v1044
        %vm1048 = vweird.f32 %v742
        %v1049 = vadd.s32 %v1045, 3
        %v1050 = vand.u32 %v1049, 3
        %vm1051 = vcmp.lt.s32.totalorder %v1050, 2
        %vm1052 = vcmp.eq.s32.totalorder %v1050, 0
        %v1053 = vxor.u32 %v1047, 2147483648
        %v1054 = vsel %vm1052, %v1046, %v1053
        %vm1055 = vcmp.eq.s32.totalorder %v1050, 2
        %v1056 = vxor.u32 %v1046, 2147483648
        %v1057 = vsel %vm1055, %v1056, %v1047
        %v1058 = vsel %vm1051, %v1054, %v1057
        %v1059 = vsel %vm1048, nan, %v1058
        %v1060 = vand.u32 2147483647, %v743
        %vm1061 = vcmp.le.f32.partialorder %v1060, 0.7853982
        %vm1062 = vcmp.lt.s32.totalorder %v743, 0
        %v1063 = vand.u32 %v743, 2139095040
        %v1064 = vshrl.u32 %v1063, 23
        %v1065 = vsub.s32 %v1064, 127
        %v1066 = vand.u32 2147483647, %v743
        %v1067 = vand.u32 %v1066, 8388607
        %v1068 = vor.u32 %v1067, 8388608
        %v1069 = vsub.s32 0, %v1068
        %v1070 = vadd.s32 %v1065, 1
        %vm1071 = vcmp.gt.s32.totalorder %v1070, 0
        %v1072 = vsel %vm1071, %v1070, 0
        %v1073 = vshrl.u32 %v1072, 5
        %v1074 = vand.u32 %v1072, 31
        %v1075 = vsub.s32 32, %v1074
        %v1076 = vshrl.u32 683565275, %v1075
        %v1077 = vshll.u32 683565275, %v1074
        %v1078 = vshrl.u32 2475754826, %v1075
        %v1079 = vor.u32 %v1077, %v1078
        %v1080 = vshll.u32 2475754826, %v1074
        %v1081 = vshrl.u32 2131351028, %v1075
        %v1082 = vor.u32 %v1080, %v1081
        %v1083 = vshll.u32 2131351028, %v1074
        %v1084 = vshrl.u32 2102212464, %v1075
        %v1085 = vor.u32 %v1083, %v1084
        %v1086 = vshll.u32 2102212464, %v1074
        %v1087 = vshrl.u32 920167782, %v1075
        %v1088 = vor.u32 %v1086, %v1087
        %v1089 = vshll.u32 920167782, %v1074
        %v1090 = vshrl.u32 1326507024, %v1075
        %v1091 = vor.u32 %v1089, %v1090
        %vm1092 = vcmp.lt.s32.totalorder %v1073, 1
        %vm1093 = vcmp.lt.s32.totalorder %v1073, 2
        %vm1094 = vcmp.lt.s32.totalorder %v1073, 3
        %vm1095 = vcmp.lt.s32.totalorder %v1073, 4
        %v1096 = vsel %vm1092, %v1076, %v1079
        %v1097 = vsel %vm1095, %v1085, 2102212464
        %v1098 = vsel %vm1094, %v1082, %v1097
        %v1099 = vsel %vm1093, %v1096, %v1098
        %v1100 = vsel %vm1092, %v1079, %v1082
        %v1101 = vsel %vm1095, %v1088, 920167782
        %v1102 = vsel %vm1094, %v1085, %v1101
        %v1103 = vsel %vm1093, %v1100, %v1102
        %v1104 = vsel %vm1092, %v1082, %v1085
        %v1105 = vsel %vm1095, %v1091, 1326507024
        %v1106 = vsel %vm1094, %v1088, %v1105
        %v1107 = vsel %vm1093, %v1104, %v1106
        %v1108 = vshll.u32 %v1068, 8
        %v1109 = vmul.u32.u64.compose %v1108, %v1107
        %v1110 = vextract.low.u32 %v1109
        %v1111 = vextract.high.u32 %v1109
        %v1112 = vmul.u32.u64.compose %v1108, %v1103
        %v1113 = vextract.low.u32 %v1112
        %v1114 = vextract.high.u32 %v1112
        %v1115 = vmul.u32 %v1108, %v1099
        %v1116 = vadd.s32 %v1111, %v1113
        %vm1117 = vc.u32 %v1111, %v1113
        %v1118 = vadd.s32 %v1114, 1
        %v1119 = vsel %vm1117, %v1118, %v1114
        %v1120 = vadd.s32 %v1115, %v1119
        %v1121 = vadd.s32 %v1120, 536870912
        %v1122 = vshrl.u32 %v1121, 30
        %v1123 = vshll.u32 %v1122, 30
        %v1124 = vsub.s32 %v1120, %v1123
        %vm1125 = vcmp.lt.s32.totalorder %v1124, 0
        %v1126 = vsub.s32 0, %v1124
        %v1127 = vsel %vm1125, %v1126, %v1124
        %v1128 = vclz %v1127
        %v1129 = vsub.s32 %v1128, 2
        %vm1130 = vcmp.gt.s32.totalorder 0, %v1129
        %v1131 = vsel %vm1130, 0, %v1129
        %v1132 = vsub.s32 32, %v1131
        %v1133 = vshll.u32 %v1124, %v1131
        %v1134 = vshrl.u32 %v1116, %v1132
        %v1135 = vor.u32 %v1133, %v1134
        %v1136 = vsub.s32 4294967266, %v1131
        %v1137 = vadd.s32 %v1136, 127
        %v1138 = vshll.u32 %v1137, 23
        %v1139 = vor.u32 4788187, %v1138
        %v1140 = vand.u32 2147483647, %v1139
        %v1142 = vcvt.s32.f32 %v1135
        %v1143 = vmul.f32 %v1142, %v1140
        %v1144 = vxor.u32 %v1143, 2147483648
        %v1145 = vsel %vm1062, %v1144, %v1143
        %v1146 = vsub.s32 4, %v1122
        %v1147 = vsel %vm1062, %v1146, %v1122
        %v1148 = vsel %vm1061, %v743, %v1145
        %v1149 = vsel %vm1061, 0, %v1147
        %v1150 = vcosq.f32.pop %v1148
        %v1151 = vsinq.f32.pop %v1148
        %vm1152 = vweird.f32 %v743
        %v1153 = vadd.s32 %v1149, 3
        %v1154 = vand.u32 %v1153, 3
        %vm1155 = vcmp.lt.s32.totalorder %v1154, 2
        %vm1156 = vcmp.eq.s32.totalorder %v1154, 0
        %v1157 = vxor.u32 %v1151, 2147483648
        %v1158 = vsel %vm1156, %v1150, %v1157
        %vm1159 = vcmp.eq.s32.totalorder %v1154, 2
        %v1160 = vxor.u32 %v1150, 2147483648
        %v1161 = vsel %vm1159, %v1160, %v1151
        %v1162 = vsel %vm1155, %v1158, %v1161
        %v1163 = vsel %vm1152, nan, %v1162
        %v1164 = vand.u32 2147483647, %v744
        %vm1165 = vcmp.le.f32.partialorder %v1164, 0.7853982
        %vm1166 = vcmp.lt.s32.totalorder %v744, 0
        %v1167 = vand.u32 %v744, 2139095040
        %v1168 = vshrl.u32 %v1167, 23
        %v1169 = vsub.s32 %v1168, 127
        %v1170 = vand.u32 2147483647, %v744
        %v1171 = vand.u32 %v1170, 8388607
        %v1172 = vor.u32 %v1171, 8388608
        %v1173 = vsub.s32 0, %v1172
        %v1174 = vadd.s32 %v1169, 1
        %vm1175 = vcmp.gt.s32.totalorder %v1174, 0
        %v1176 = vsel %vm1175, %v1174, 0
        %v1177 = vshrl.u32 %v1176, 5
        %v1178 = vand.u32 %v1176, 31
        %v1179 = vsub.s32 32, %v1178
        %v1180 = vshrl.u32 683565275, %v1179
        %v1181 = vshll.u32 683565275, %v1178
        %v1182 = vshrl.u32 2475754826, %v1179
        %v1183 = vor.u32 %v1181, %v1182
        %v1184 = vshll.u32 2475754826, %v1178
        %v1185 = vshrl.u32 2131351028, %v1179
        %v1186 = vor.u32 %v1184, %v1185
        %v1187 = vshll.u32 2131351028, %v1178
        %v1188 = vshrl.u32 2102212464, %v1179
        %v1189 = vor.u32 %v1187, %v1188
        %v1190 = vshll.u32 2102212464, %v1178
        %v1191 = vshrl.u32 920167782, %v1179
        %v1192 = vor.u32 %v1190, %v1191
        %v1193 = vshll.u32 920167782, %v1178
        %v1194 = vshrl.u32 1326507024, %v1179
        %v1195 = vor.u32 %v1193, %v1194
        %vm1196 = vcmp.lt.s32.totalorder %v1177, 1
        %vm1197 = vcmp.lt.s32.totalorder %v1177, 2
        %vm1198 = vcmp.lt.s32.totalorder %v1177, 3
        %vm1199 = vcmp.lt.s32.totalorder %v1177, 4
        %v1200 = vsel %vm1196, %v1180, %v1183
        %v1201 = vsel %vm1199, %v1189, 2102212464
        %v1202 = vsel %vm1198, %v1186, %v1201
        %v1203 = vsel %vm1197, %v1200, %v1202
        %v1204 = vsel %vm1196, %v1183, %v1186
        %v1205 = vsel %vm1199, %v1192, 920167782
        %v1206 = vsel %vm1198, %v1189, %v1205
        %v1207 = vsel %vm1197, %v1204, %v1206
        %v1208 = vsel %vm1196, %v1186, %v1189
        %v1209 = vsel %vm1199, %v1195, 1326507024
        %v1210 = vsel %vm1198, %v1192, %v1209
        %v1211 = vsel %vm1197, %v1208, %v1210
        %v1212 = vshll.u32 %v1172, 8
        %v1213 = vmul.u32.u64.compose %v1212, %v1211
        %v1214 = vextract.low.u32 %v1213
        %v1215 = vextract.high.u32 %v1213
        %v1216 = vmul.u32.u64.compose %v1212, %v1207
        %v1217 = vextract.low.u32 %v1216
        %v1218 = vextract.high.u32 %v1216
        %v1219 = vmul.u32 %v1212, %v1203
        %v1220 = vadd.s32 %v1215, %v1217
        %vm1221 = vc.u32 %v1215, %v1217
        %v1222 = vadd.s32 %v1218, 1
        %v1223 = vsel %vm1221, %v1222, %v1218
        %v1224 = vadd.s32 %v1219, %v1223
        %v1225 = vadd.s32 %v1224, 536870912
        %v1226 = vshrl.u32 %v1225, 30
        %v1227 = vshll.u32 %v1226, 30
        %v1228 = vsub.s32 %v1224, %v1227
        %vm1229 = vcmp.lt.s32.totalorder %v1228, 0
        %v1230 = vsub.s32 0, %v1228
        %v1231 = vsel %vm1229, %v1230, %v1228
        %v1232 = vclz %v1231
        %v1233 = vsub.s32 %v1232, 2
        %vm1234 = vcmp.gt.s32.totalorder 0, %v1233
        %v1235 = vsel %vm1234, 0, %v1233
        %v1236 = vsub.s32 32, %v1235
        %v1237 = vshll.u32 %v1228, %v1235
        %v1238 = vshrl.u32 %v1220, %v1236
        %v1239 = vor.u32 %v1237, %v1238
        %v1240 = vsub.s32 4294967266, %v1235
        %v1241 = vadd.s32 %v1240, 127
        %v1242 = vshll.u32 %v1241, 23
        %v1243 = vor.u32 4788187, %v1242
        %v1244 = vand.u32 2147483647, %v1243
        %v1246 = vcvt.s32.f32 %v1239
        %v1247 = vmul.f32 %v1246, %v1244
        %v1248 = vxor.u32 %v1247, 2147483648
        %v1249 = vsel %vm1166, %v1248, %v1247
        %v1250 = vsub.s32 4, %v1226
        %v1251 = vsel %vm1166, %v1250, %v1226
        %v1252 = vsel %vm1165, %v744, %v1249
        %v1253 = vsel %vm1165, 0, %v1251
        %v1254 = vcosq.f32.pop %v1252
        %v1255 = vsinq.f32.pop %v1252
        %vm1256 = vweird.f32 %v744
        %v1257 = vadd.s32 %v1253, 3
        %v1258 = vand.u32 %v1257, 3
        %vm1259 = vcmp.lt.s32.totalorder %v1258, 2
        %vm1260 = vcmp.eq.s32.totalorder %v1258, 0
        %v1261 = vxor.u32 %v1255, 2147483648
        %v1262 = vsel %vm1260, %v1254, %v1261
        %vm1263 = vcmp.eq.s32.totalorder %v1258, 2
        %v1264 = vxor.u32 %v1254, 2147483648
        %v1265 = vsel %vm1263, %v1264, %v1255
        %v1266 = vsel %vm1259, %v1262, %v1265
        %v1267 = vsel %vm1256, nan, %v1266
        %v1268 = vand.u32 2147483647, %v745
        %vm1269 = vcmp.le.f32.partialorder %v1268, 0.7853982
        %vm1270 = vcmp.lt.s32.totalorder %v745, 0
        %v1271 = vand.u32 %v745, 2139095040
        %v1272 = vshrl.u32 %v1271, 23
        %v1273 = vsub.s32 %v1272, 127
        %v1274 = vand.u32 2147483647, %v745
        %v1275 = vand.u32 %v1274, 8388607
        %v1276 = vor.u32 %v1275, 8388608
        %v1277 = vsub.s32 0, %v1276
        %v1278 = vadd.s32 %v1273, 1
        %vm1279 = vcmp.gt.s32.totalorder %v1278, 0
        %v1280 = vsel %vm1279, %v1278, 0
        %v1281 = vshrl.u32 %v1280, 5
        %v1282 = vand.u32 %v1280, 31
        %v1283 = vsub.s32 32, %v1282
        %v1284 = vshrl.u32 683565275, %v1283
        %v1285 = vshll.u32 683565275, %v1282
        %v1286 = vshrl.u32 2475754826, %v1283
        %v1287 = vor.u32 %v1285, %v1286
        %v1288 = vshll.u32 2475754826, %v1282
        %v1289 = vshrl.u32 2131351028, %v1283
        %v1290 = vor.u32 %v1288, %v1289
        %v1291 = vshll.u32 2131351028, %v1282
        %v1292 = vshrl.u32 2102212464, %v1283
        %v1293 = vor.u32 %v1291, %v1292
        %v1294 = vshll.u32 2102212464, %v1282
        %v1295 = vshrl.u32 920167782, %v1283
        %v1296 = vor.u32 %v1294, %v1295
        %v1297 = vshll.u32 920167782, %v1282
        %v1298 = vshrl.u32 1326507024, %v1283
        %v1299 = vor.u32 %v1297, %v1298
        %vm1300 = vcmp.lt.s32.totalorder %v1281, 1
        %vm1301 = vcmp.lt.s32.totalorder %v1281, 2
        %vm1302 = vcmp.lt.s32.totalorder %v1281, 3
        %vm1303 = vcmp.lt.s32.totalorder %v1281, 4
        %v1304 = vsel %vm1300, %v1284, %v1287
        %v1305 = vsel %vm1303, %v1293, 2102212464
        %v1306 = vsel %vm1302, %v1290, %v1305
        %v1307 = vsel %vm1301, %v1304, %v1306
        %v1308 = vsel %vm1300, %v1287, %v1290
        %v1309 = vsel %vm1303, %v1296, 920167782
        %v1310 = vsel %vm1302, %v1293, %v1309
        %v1311 = vsel %vm1301, %v1308, %v1310
        %v1312 = vsel %vm1300, %v1290, %v1293
        %v1313 = vsel %vm1303, %v1299, 1326507024
        %v1314 = vsel %vm1302, %v1296, %v1313
        %v1315 = vsel %vm1301, %v1312, %v1314
        %v1316 = vshll.u32 %v1276, 8
        %v1317 = vmul.u32.u64.compose %v1316, %v1315
        %v1318 = vextract.low.u32 %v1317
        %v1319 = vextract.high.u32 %v1317
        %v1320 = vmul.u32.u64.compose %v1316, %v1311
        %v1321 = vextract.low.u32 %v1320
        %v1322 = vextract.high.u32 %v1320
        %v1323 = vmul.u32 %v1316, %v1307
        %v1324 = vadd.s32 %v1319, %v1321
        %vm1325 = vc.u32 %v1319, %v1321
        %v1326 = vadd.s32 %v1322, 1
        %v1327 = vsel %vm1325, %v1326, %v1322
        %v1328 = vadd.s32 %v1323, %v1327
        %v1329 = vadd.s32 %v1328, 536870912
        %v1330 = vshrl.u32 %v1329, 30
        %v1331 = vshll.u32 %v1330, 30
        %v1332 = vsub.s32 %v1328, %v1331
        %vm1333 = vcmp.lt.s32.totalorder %v1332, 0
        %v1334 = vsub.s32 0, %v1332
        %v1335 = vsel %vm1333, %v1334, %v1332
        %v1336 = vclz %v1335
        %v1337 = vsub.s32 %v1336, 2
        %vm1338 = vcmp.gt.s32.totalorder 0, %v1337
        %v1339 = vsel %vm1338, 0, %v1337
        %v1340 = vsub.s32 32, %v1339
        %v1341 = vshll.u32 %v1332, %v1339
        %v1342 = vshrl.u32 %v1324, %v1340
        %v1343 = vor.u32 %v1341, %v1342
        %v1344 = vsub.s32 4294967266, %v1339
        %v1345 = vadd.s32 %v1344, 127
        %v1346 = vshll.u32 %v1345, 23
        %v1347 = vor.u32 4788187, %v1346
        %v1348 = vand.u32 2147483647, %v1347
        %v1350 = vcvt.s32.f32 %v1343
        %v1351 = vmul.f32 %v1350, %v1348
        %v1352 = vxor.u32 %v1351, 2147483648
        %v1353 = vsel %vm1270, %v1352, %v1351
        %v1354 = vsub.s32 4, %v1330
        %v1355 = vsel %vm1270, %v1354, %v1330
        %v1356 = vsel %vm1269, %v745, %v1353
        %v1357 = vsel %vm1269, 0, %v1355
        %v1358 = vcosq.f32.pop %v1356
        %v1359 = vsinq.f32.pop %v1356
        %vm1360 = vweird.f32 %v745
        %v1361 = vadd.s32 %v1357, 3
        %v1362 = vand.u32 %v1361, 3
        %vm1363 = vcmp.lt.s32.totalorder %v1362, 2
        %vm1364 = vcmp.eq.s32.totalorder %v1362, 0
        %v1365 = vxor.u32 %v1359, 2147483648
        %v1366 = vsel %vm1364, %v1358, %v1365
        %vm1367 = vcmp.eq.s32.totalorder %v1362, 2
        %v1368 = vxor.u32 %v1358, 2147483648
        %v1369 = vsel %vm1367, %v1368, %v1359
        %v1370 = vsel %vm1363, %v1366, %v1369
        %v1371 = vsel %vm1360, nan, %v1370
        %v1372 = vand.u32 2147483647, %v746
        %vm1373 = vcmp.le.f32.partialorder %v1372, 0.7853982
        %vm1374 = vcmp.lt.s32.totalorder %v746, 0
        %v1375 = vand.u32 %v746, 2139095040
        %v1376 = vshrl.u32 %v1375, 23
        %v1377 = vsub.s32 %v1376, 127
        %v1378 = vand.u32 2147483647, %v746
        %v1379 = vand.u32 %v1378, 8388607
        %v1380 = vor.u32 %v1379, 8388608
        %v1381 = vsub.s32 0, %v1380
        %v1382 = vadd.s32 %v1377, 1
        %vm1383 = vcmp.gt.s32.totalorder %v1382, 0
        %v1384 = vsel %vm1383, %v1382, 0
        %v1385 = vshrl.u32 %v1384, 5
        %v1386 = vand.u32 %v1384, 31
        %v1387 = vsub.s32 32, %v1386
        %v1388 = vshrl.u32 683565275, %v1387
        %v1389 = vshll.u32 683565275, %v1386
        %v1390 = vshrl.u32 2475754826, %v1387
        %v1391 = vor.u32 %v1389, %v1390
        %v1392 = vshll.u32 2475754826, %v1386
        %v1393 = vshrl.u32 2131351028, %v1387
        %v1394 = vor.u32 %v1392, %v1393
        %v1395 = vshll.u32 2131351028, %v1386
        %v1396 = vshrl.u32 2102212464, %v1387
        %v1397 = vor.u32 %v1395, %v1396
        %v1398 = vshll.u32 2102212464, %v1386
        %v1399 = vshrl.u32 920167782, %v1387
        %v1400 = vor.u32 %v1398, %v1399
        %v1401 = vshll.u32 920167782, %v1386
        %v1402 = vshrl.u32 1326507024, %v1387
        %v1403 = vor.u32 %v1401, %v1402
        %vm1404 = vcmp.lt.s32.totalorder %v1385, 1
        %vm1405 = vcmp.lt.s32.totalorder %v1385, 2
        %vm1406 = vcmp.lt.s32.totalorder %v1385, 3
        %vm1407 = vcmp.lt.s32.totalorder %v1385, 4
        %v1408 = vsel %vm1404, %v1388, %v1391
        %v1409 = vsel %vm1407, %v1397, 2102212464
        %v1410 = vsel %vm1406, %v1394, %v1409
        %v1411 = vsel %vm1405, %v1408, %v1410
        %v1412 = vsel %vm1404, %v1391, %v1394
        %v1413 = vsel %vm1407, %v1400, 920167782
        %v1414 = vsel %vm1406, %v1397, %v1413
        %v1415 = vsel %vm1405, %v1412, %v1414
        %v1416 = vsel %vm1404, %v1394, %v1397
        %v1417 = vsel %vm1407, %v1403, 1326507024
        %v1418 = vsel %vm1406, %v1400, %v1417
        %v1419 = vsel %vm1405, %v1416, %v1418
        %v1420 = vshll.u32 %v1380, 8
        %v1421 = vmul.u32.u64.compose %v1420, %v1419
        %v1422 = vextract.low.u32 %v1421
        %v1423 = vextract.high.u32 %v1421
        %v1424 = vmul.u32.u64.compose %v1420, %v1415
        %v1425 = vextract.low.u32 %v1424
        %v1426 = vextract.high.u32 %v1424
        %v1427 = vmul.u32 %v1420, %v1411
        %v1428 = vadd.s32 %v1423, %v1425
        %vm1429 = vc.u32 %v1423, %v1425
        %v1430 = vadd.s32 %v1426, 1
        %v1431 = vsel %vm1429, %v1430, %v1426
        %v1432 = vadd.s32 %v1427, %v1431
        %v1433 = vadd.s32 %v1432, 536870912
        %v1434 = vshrl.u32 %v1433, 30
        %v1435 = vshll.u32 %v1434, 30
        %v1436 = vsub.s32 %v1432, %v1435
        %vm1437 = vcmp.lt.s32.totalorder %v1436, 0
        %v1438 = vsub.s32 0, %v1436
        %v1439 = vsel %vm1437, %v1438, %v1436
        %v1440 = vclz %v1439
        %v1441 = vsub.s32 %v1440, 2
        %vm1442 = vcmp.gt.s32.totalorder 0, %v1441
        %v1443 = vsel %vm1442, 0, %v1441
        %v1444 = vsub.s32 32, %v1443
        %v1445 = vshll.u32 %v1436, %v1443
        %v1446 = vshrl.u32 %v1428, %v1444
        %v1447 = vor.u32 %v1445, %v1446
        %v1448 = vsub.s32 4294967266, %v1443
        %v1449 = vadd.s32 %v1448, 127
        %v1450 = vshll.u32 %v1449, 23
        %v1451 = vor.u32 4788187, %v1450
        %v1452 = vand.u32 2147483647, %v1451
        %v1454 = vcvt.s32.f32 %v1447
        %v1455 = vmul.f32 %v1454, %v1452
        %v1456 = vxor.u32 %v1455, 2147483648
        %v1457 = vsel %vm1374, %v1456, %v1455
        %v1458 = vsub.s32 4, %v1434
        %v1459 = vsel %vm1374, %v1458, %v1434
        %v1460 = vsel %vm1373, %v746, %v1457
        %v1461 = vsel %vm1373, 0, %v1459
        %v1462 = vcosq.f32.pop %v1460
        %v1463 = vsinq.f32.pop %v1460
        %vm1464 = vweird.f32 %v746
        %v1465 = vadd.s32 %v1461, 3
        %v1466 = vand.u32 %v1465, 3
        %vm1467 = vcmp.lt.s32.totalorder %v1466, 2
        %vm1468 = vcmp.eq.s32.totalorder %v1466, 0
        %v1469 = vxor.u32 %v1463, 2147483648
        %v1470 = vsel %vm1468, %v1462, %v1469
        %vm1471 = vcmp.eq.s32.totalorder %v1466, 2
        %v1472 = vxor.u32 %v1462, 2147483648
        %v1473 = vsel %vm1471, %v1472, %v1463
        %v1474 = vsel %vm1467, %v1470, %v1473
        %v1475 = vsel %vm1464, nan, %v1474
        %v1476 = vand.u32 2147483647, %v747
        %vm1477 = vcmp.le.f32.partialorder %v1476, 0.7853982
        %vm1478 = vcmp.lt.s32.totalorder %v747, 0
        %v1479 = vand.u32 %v747, 2139095040
        %v1480 = vshrl.u32 %v1479, 23
        %v1481 = vsub.s32 %v1480, 127
        %v1482 = vand.u32 2147483647, %v747
        %v1483 = vand.u32 %v1482, 8388607
        %v1484 = vor.u32 %v1483, 8388608
        %v1485 = vsub.s32 0, %v1484
        %v1486 = vadd.s32 %v1481, 1
        %vm1487 = vcmp.gt.s32.totalorder %v1486, 0
        %v1488 = vsel %vm1487, %v1486, 0
        %v1489 = vshrl.u32 %v1488, 5
        %v1490 = vand.u32 %v1488, 31
        %v1491 = vsub.s32 32, %v1490
        %v1492 = vshrl.u32 683565275, %v1491
        %v1493 = vshll.u32 683565275, %v1490
        %v1494 = vshrl.u32 2475754826, %v1491
        %v1495 = vor.u32 %v1493, %v1494
        %v1496 = vshll.u32 2475754826, %v1490
        %v1497 = vshrl.u32 2131351028, %v1491
        %v1498 = vor.u32 %v1496, %v1497
        %v1499 = vshll.u32 2131351028, %v1490
        %v1500 = vshrl.u32 2102212464, %v1491
        %v1501 = vor.u32 %v1499, %v1500
        %v1502 = vshll.u32 2102212464, %v1490
        %v1503 = vshrl.u32 920167782, %v1491
        %v1504 = vor.u32 %v1502, %v1503
        %v1505 = vshll.u32 920167782, %v1490
        %v1506 = vshrl.u32 1326507024, %v1491
        %v1507 = vor.u32 %v1505, %v1506
        %vm1508 = vcmp.lt.s32.totalorder %v1489, 1
        %vm1509 = vcmp.lt.s32.totalorder %v1489, 2
        %vm1510 = vcmp.lt.s32.totalorder %v1489, 3
        %vm1511 = vcmp.lt.s32.totalorder %v1489, 4
        %v1512 = vsel %vm1508, %v1492, %v1495
        %v1513 = vsel %vm1511, %v1501, 2102212464
        %v1514 = vsel %vm1510, %v1498, %v1513
        %v1515 = vsel %vm1509, %v1512, %v1514
        %v1516 = vsel %vm1508, %v1495, %v1498
        %v1517 = vsel %vm1511, %v1504, 920167782
        %v1518 = vsel %vm1510, %v1501, %v1517
        %v1519 = vsel %vm1509, %v1516, %v1518
        %v1520 = vsel %vm1508, %v1498, %v1501
        %v1521 = vsel %vm1511, %v1507, 1326507024
        %v1522 = vsel %vm1510, %v1504, %v1521
        %v1523 = vsel %vm1509, %v1520, %v1522
        %v1524 = vshll.u32 %v1484, 8
        %v1525 = vmul.u32.u64.compose %v1524, %v1523
        %v1526 = vextract.low.u32 %v1525
        %v1527 = vextract.high.u32 %v1525
        %v1528 = vmul.u32.u64.compose %v1524, %v1519
        %v1529 = vextract.low.u32 %v1528
        %v1530 = vextract.high.u32 %v1528
        %v1531 = vmul.u32 %v1524, %v1515
        %v1532 = vadd.s32 %v1527, %v1529
        %vm1533 = vc.u32 %v1527, %v1529
        %v1534 = vadd.s32 %v1530, 1
        %v1535 = vsel %vm1533, %v1534, %v1530
        %v1536 = vadd.s32 %v1531, %v1535
        %v1537 = vadd.s32 %v1536, 536870912
        %v1538 = vshrl.u32 %v1537, 30
        %v1539 = vshll.u32 %v1538, 30
        %v1540 = vsub.s32 %v1536, %v1539
        %vm1541 = vcmp.lt.s32.totalorder %v1540, 0
        %v1542 = vsub.s32 0, %v1540
        %v1543 = vsel %vm1541, %v1542, %v1540
        %v1544 = vclz %v1543
        %v1545 = vsub.s32 %v1544, 2
        %vm1546 = vcmp.gt.s32.totalorder 0, %v1545
        %v1547 = vsel %vm1546, 0, %v1545
        %v1548 = vsub.s32 32, %v1547
        %v1549 = vshll.u32 %v1540, %v1547
        %v1550 = vshrl.u32 %v1532, %v1548
        %v1551 = vor.u32 %v1549, %v1550
        %v1552 = vsub.s32 4294967266, %v1547
        %v1553 = vadd.s32 %v1552, 127
        %v1554 = vshll.u32 %v1553, 23
        %v1555 = vor.u32 4788187, %v1554
        %v1556 = vand.u32 2147483647, %v1555
        %v1558 = vcvt.s32.f32 %v1551
        %v1559 = vmul.f32 %v1558, %v1556
        %v1560 = vxor.u32 %v1559, 2147483648
        %v1561 = vsel %vm1478, %v1560, %v1559
        %v1562 = vsub.s32 4, %v1538
        %v1563 = vsel %vm1478, %v1562, %v1538
        %v1564 = vsel %vm1477, %v747, %v1561
        %v1565 = vsel %vm1477, 0, %v1563
        %v1566 = vcosq.f32.pop %v1564
        %v1567 = vsinq.f32.pop %v1564
        %vm1568 = vweird.f32 %v747
        %v1569 = vadd.s32 %v1565, 3
        %v1570 = vand.u32 %v1569, 3
        %vm1571 = vcmp.lt.s32.totalorder %v1570, 2
        %vm1572 = vcmp.eq.s32.totalorder %v1570, 0
        %v1573 = vxor.u32 %v1567, 2147483648
        %v1574 = vsel %vm1572, %v1566, %v1573
        %vm1575 = vcmp.eq.s32.totalorder %v1570, 2
        %v1576 = vxor.u32 %v1566, 2147483648
        %v1577 = vsel %vm1575, %v1576, %v1567
        %v1578 = vsel %vm1571, %v1574, %v1577
        %v1579 = vsel %vm1568, nan, %v1578
        %s1580 = scalar_lea.vmem %s682, 1
        %v1581 = vld [vmem:[%s1580] ss:$4 sm:$0xf]
        %v1583 = vlaneseq
        %v1584 = vshrl.u32 %v1583, 7
        %v1585 = vsub.s32 0, %v1584
        %v1586 = vrot.slane %v1581, %v1585
        %v1587 = vlaneseq
        %v1588 = vshrl.u32 %v1587, 7
        %v1589 = vsub.s32 1, %v1588
        %v1590 = vrot.slane %v1581, %v1589
        %v1591 = vlaneseq
        %v1592 = vshrl.u32 %v1591, 7
        %v1593 = vsub.s32 2, %v1592
        %v1594 = vrot.slane %v1581, %v1593
        %v1595 = vlaneseq
        %v1596 = vshrl.u32 %v1595, 7
        %v1597 = vsub.s32 3, %v1596
        %v1598 = vrot.slane %v1581, %v1597
        %v1603 = vmul.f32 %v694, %v1586
        %v1604 = vmul.f32 %v694, %v1590
        %v1605 = vmul.f32 %v694, %v1594
        %v1606 = vmul.f32 %v694, %v1598
        %v1607 = vmul.f32 %v699, %v1586
        %v1608 = vmul.f32 %v699, %v1590
        %v1609 = vmul.f32 %v699, %v1594
        %v1610 = vmul.f32 %v699, %v1598
        %v1611 = vadd.f32 %v1603, %v733
        %v1612 = vadd.f32 %v1604, %v733
        %v1613 = vadd.f32 %v1605, %v733
        %v1614 = vadd.f32 %v1606, %v733
        %v1615 = vadd.f32 %v1607, %v738
        %v1616 = vadd.f32 %v1608, %v738
        %v1617 = vadd.f32 %v1609, %v738
        %v1618 = vadd.f32 %v1610, %v738
        %v1619 = vand.u32 2147483647, %v1611
        %vm1620 = vcmp.le.f32.partialorder %v1619, 0.7853982
        %vm1621 = vcmp.lt.s32.totalorder %v1611, 0
        %v1622 = vand.u32 %v1611, 2139095040
        %v1623 = vshrl.u32 %v1622, 23
        %v1624 = vsub.s32 %v1623, 127
        %v1625 = vand.u32 2147483647, %v1611
        %v1626 = vand.u32 %v1625, 8388607
        %v1627 = vor.u32 %v1626, 8388608
        %v1628 = vsub.s32 0, %v1627
        %v1629 = vadd.s32 %v1624, 1
        %vm1630 = vcmp.gt.s32.totalorder %v1629, 0
        %v1631 = vsel %vm1630, %v1629, 0
        %v1632 = vshrl.u32 %v1631, 5
        %v1633 = vand.u32 %v1631, 31
        %v1634 = vsub.s32 32, %v1633
        %v1635 = vshrl.u32 683565275, %v1634
        %v1636 = vshll.u32 683565275, %v1633
        %v1637 = vshrl.u32 2475754826, %v1634
        %v1638 = vor.u32 %v1636, %v1637
        %v1639 = vshll.u32 2475754826, %v1633
        %v1640 = vshrl.u32 2131351028, %v1634
        %v1641 = vor.u32 %v1639, %v1640
        %v1642 = vshll.u32 2131351028, %v1633
        %v1643 = vshrl.u32 2102212464, %v1634
        %v1644 = vor.u32 %v1642, %v1643
        %v1645 = vshll.u32 2102212464, %v1633
        %v1646 = vshrl.u32 920167782, %v1634
        %v1647 = vor.u32 %v1645, %v1646
        %v1648 = vshll.u32 920167782, %v1633
        %v1649 = vshrl.u32 1326507024, %v1634
        %v1650 = vor.u32 %v1648, %v1649
        %vm1651 = vcmp.lt.s32.totalorder %v1632, 1
        %vm1652 = vcmp.lt.s32.totalorder %v1632, 2
        %vm1653 = vcmp.lt.s32.totalorder %v1632, 3
        %vm1654 = vcmp.lt.s32.totalorder %v1632, 4
        %v1655 = vsel %vm1651, %v1635, %v1638
        %v1656 = vsel %vm1654, %v1644, 2102212464
        %v1657 = vsel %vm1653, %v1641, %v1656
        %v1658 = vsel %vm1652, %v1655, %v1657
        %v1659 = vsel %vm1651, %v1638, %v1641
        %v1660 = vsel %vm1654, %v1647, 920167782
        %v1661 = vsel %vm1653, %v1644, %v1660
        %v1662 = vsel %vm1652, %v1659, %v1661
        %v1663 = vsel %vm1651, %v1641, %v1644
        %v1664 = vsel %vm1654, %v1650, 1326507024
        %v1665 = vsel %vm1653, %v1647, %v1664
        %v1666 = vsel %vm1652, %v1663, %v1665
        %v1667 = vshll.u32 %v1627, 8
        %v1668 = vmul.u32.u64.compose %v1667, %v1666
        %v1669 = vextract.low.u32 %v1668
        %v1670 = vextract.high.u32 %v1668
        %v1671 = vmul.u32.u64.compose %v1667, %v1662
        %v1672 = vextract.low.u32 %v1671
        %v1673 = vextract.high.u32 %v1671
        %v1674 = vmul.u32 %v1667, %v1658
        %v1675 = vadd.s32 %v1670, %v1672
        %vm1676 = vc.u32 %v1670, %v1672
        %v1677 = vadd.s32 %v1673, 1
        %v1678 = vsel %vm1676, %v1677, %v1673
        %v1679 = vadd.s32 %v1674, %v1678
        %v1680 = vadd.s32 %v1679, 536870912
        %v1681 = vshrl.u32 %v1680, 30
        %v1682 = vshll.u32 %v1681, 30
        %v1683 = vsub.s32 %v1679, %v1682
        %vm1684 = vcmp.lt.s32.totalorder %v1683, 0
        %v1685 = vsub.s32 0, %v1683
        %v1686 = vsel %vm1684, %v1685, %v1683
        %v1687 = vclz %v1686
        %v1688 = vsub.s32 %v1687, 2
        %vm1689 = vcmp.gt.s32.totalorder 0, %v1688
        %v1690 = vsel %vm1689, 0, %v1688
        %v1691 = vsub.s32 32, %v1690
        %v1692 = vshll.u32 %v1683, %v1690
        %v1693 = vshrl.u32 %v1675, %v1691
        %v1694 = vor.u32 %v1692, %v1693
        %v1695 = vsub.s32 4294967266, %v1690
        %v1696 = vadd.s32 %v1695, 127
        %v1697 = vshll.u32 %v1696, 23
        %v1698 = vor.u32 4788187, %v1697
        %v1699 = vand.u32 2147483647, %v1698
        %v1701 = vcvt.s32.f32 %v1694
        %v1702 = vmul.f32 %v1701, %v1699
        %v1703 = vxor.u32 %v1702, 2147483648
        %v1704 = vsel %vm1621, %v1703, %v1702
        %v1705 = vsub.s32 4, %v1681
        %v1706 = vsel %vm1621, %v1705, %v1681
        %v1707 = vsel %vm1620, %v1611, %v1704
        %v1708 = vsel %vm1620, 0, %v1706
        %v1709 = vcosq.f32.pop %v1707
        %v1710 = vsinq.f32.pop %v1707
        %vm1711 = vweird.f32 %v1611
        %v1712 = vadd.s32 %v1708, 3
        %v1713 = vand.u32 %v1712, 3
        %vm1714 = vcmp.lt.s32.totalorder %v1713, 2
        %vm1715 = vcmp.eq.s32.totalorder %v1713, 0
        %v1716 = vxor.u32 %v1710, 2147483648
        %v1717 = vsel %vm1715, %v1709, %v1716
        %vm1718 = vcmp.eq.s32.totalorder %v1713, 2
        %v1719 = vxor.u32 %v1709, 2147483648
        %v1720 = vsel %vm1718, %v1719, %v1710
        %v1721 = vsel %vm1714, %v1717, %v1720
        %v1722 = vsel %vm1711, nan, %v1721
        %v1723 = vand.u32 2147483647, %v1612
        %vm1724 = vcmp.le.f32.partialorder %v1723, 0.7853982
        %vm1725 = vcmp.lt.s32.totalorder %v1612, 0
        %v1726 = vand.u32 %v1612, 2139095040
        %v1727 = vshrl.u32 %v1726, 23
        %v1728 = vsub.s32 %v1727, 127
        %v1729 = vand.u32 2147483647, %v1612
        %v1730 = vand.u32 %v1729, 8388607
        %v1731 = vor.u32 %v1730, 8388608
        %v1732 = vsub.s32 0, %v1731
        %v1733 = vadd.s32 %v1728, 1
        %vm1734 = vcmp.gt.s32.totalorder %v1733, 0
        %v1735 = vsel %vm1734, %v1733, 0
        %v1736 = vshrl.u32 %v1735, 5
        %v1737 = vand.u32 %v1735, 31
        %v1738 = vsub.s32 32, %v1737
        %v1739 = vshrl.u32 683565275, %v1738
        %v1740 = vshll.u32 683565275, %v1737
        %v1741 = vshrl.u32 2475754826, %v1738
        %v1742 = vor.u32 %v1740, %v1741
        %v1743 = vshll.u32 2475754826, %v1737
        %v1744 = vshrl.u32 2131351028, %v1738
        %v1745 = vor.u32 %v1743, %v1744
        %v1746 = vshll.u32 2131351028, %v1737
        %v1747 = vshrl.u32 2102212464, %v1738
        %v1748 = vor.u32 %v1746, %v1747
        %v1749 = vshll.u32 2102212464, %v1737
        %v1750 = vshrl.u32 920167782, %v1738
        %v1751 = vor.u32 %v1749, %v1750
        %v1752 = vshll.u32 920167782, %v1737
        %v1753 = vshrl.u32 1326507024, %v1738
        %v1754 = vor.u32 %v1752, %v1753
        %vm1755 = vcmp.lt.s32.totalorder %v1736, 1
        %vm1756 = vcmp.lt.s32.totalorder %v1736, 2
        %vm1757 = vcmp.lt.s32.totalorder %v1736, 3
        %vm1758 = vcmp.lt.s32.totalorder %v1736, 4
        %v1759 = vsel %vm1755, %v1739, %v1742
        %v1760 = vsel %vm1758, %v1748, 2102212464
        %v1761 = vsel %vm1757, %v1745, %v1760
        %v1762 = vsel %vm1756, %v1759, %v1761
        %v1763 = vsel %vm1755, %v1742, %v1745
        %v1764 = vsel %vm1758, %v1751, 920167782
        %v1765 = vsel %vm1757, %v1748, %v1764
        %v1766 = vsel %vm1756, %v1763, %v1765
        %v1767 = vsel %vm1755, %v1745, %v1748
        %v1768 = vsel %vm1758, %v1754, 1326507024
        %v1769 = vsel %vm1757, %v1751, %v1768
        %v1770 = vsel %vm1756, %v1767, %v1769
        %v1771 = vshll.u32 %v1731, 8
        %v1772 = vmul.u32.u64.compose %v1771, %v1770
        %v1773 = vextract.low.u32 %v1772
        %v1774 = vextract.high.u32 %v1772
        %v1775 = vmul.u32.u64.compose %v1771, %v1766
        %v1776 = vextract.low.u32 %v1775
        %v1777 = vextract.high.u32 %v1775
        %v1778 = vmul.u32 %v1771, %v1762
        %v1779 = vadd.s32 %v1774, %v1776
        %vm1780 = vc.u32 %v1774, %v1776
        %v1781 = vadd.s32 %v1777, 1
        %v1782 = vsel %vm1780, %v1781, %v1777
        %v1783 = vadd.s32 %v1778, %v1782
        %v1784 = vadd.s32 %v1783, 536870912
        %v1785 = vshrl.u32 %v1784, 30
        %v1786 = vshll.u32 %v1785, 30
        %v1787 = vsub.s32 %v1783, %v1786
        %vm1788 = vcmp.lt.s32.totalorder %v1787, 0
        %v1789 = vsub.s32 0, %v1787
        %v1790 = vsel %vm1788, %v1789, %v1787
        %v1791 = vclz %v1790
        %v1792 = vsub.s32 %v1791, 2
        %vm1793 = vcmp.gt.s32.totalorder 0, %v1792
        %v1794 = vsel %vm1793, 0, %v1792
        %v1795 = vsub.s32 32, %v1794
        %v1796 = vshll.u32 %v1787, %v1794
        %v1797 = vshrl.u32 %v1779, %v1795
        %v1798 = vor.u32 %v1796, %v1797
        %v1799 = vsub.s32 4294967266, %v1794
        %v1800 = vadd.s32 %v1799, 127
        %v1801 = vshll.u32 %v1800, 23
        %v1802 = vor.u32 4788187, %v1801
        %v1803 = vand.u32 2147483647, %v1802
        %v1805 = vcvt.s32.f32 %v1798
        %v1806 = vmul.f32 %v1805, %v1803
        %v1807 = vxor.u32 %v1806, 2147483648
        %v1808 = vsel %vm1725, %v1807, %v1806
        %v1809 = vsub.s32 4, %v1785
        %v1810 = vsel %vm1725, %v1809, %v1785
        %v1811 = vsel %vm1724, %v1612, %v1808
        %v1812 = vsel %vm1724, 0, %v1810
        %v1813 = vcosq.f32.pop %v1811
        %v1814 = vsinq.f32.pop %v1811
        %vm1815 = vweird.f32 %v1612
        %v1816 = vadd.s32 %v1812, 3
        %v1817 = vand.u32 %v1816, 3
        %vm1818 = vcmp.lt.s32.totalorder %v1817, 2
        %vm1819 = vcmp.eq.s32.totalorder %v1817, 0
        %v1820 = vxor.u32 %v1814, 2147483648
        %v1821 = vsel %vm1819, %v1813, %v1820
        %vm1822 = vcmp.eq.s32.totalorder %v1817, 2
        %v1823 = vxor.u32 %v1813, 2147483648
        %v1824 = vsel %vm1822, %v1823, %v1814
        %v1825 = vsel %vm1818, %v1821, %v1824
        %v1826 = vsel %vm1815, nan, %v1825
        %v1827 = vand.u32 2147483647, %v1613
        %vm1828 = vcmp.le.f32.partialorder %v1827, 0.7853982
        %vm1829 = vcmp.lt.s32.totalorder %v1613, 0
        %v1830 = vand.u32 %v1613, 2139095040
        %v1831 = vshrl.u32 %v1830, 23
        %v1832 = vsub.s32 %v1831, 127
        %v1833 = vand.u32 2147483647, %v1613
        %v1834 = vand.u32 %v1833, 8388607
        %v1835 = vor.u32 %v1834, 8388608
        %v1836 = vsub.s32 0, %v1835
        %v1837 = vadd.s32 %v1832, 1
        %vm1838 = vcmp.gt.s32.totalorder %v1837, 0
        %v1839 = vsel %vm1838, %v1837, 0
        %v1840 = vshrl.u32 %v1839, 5
        %v1841 = vand.u32 %v1839, 31
        %v1842 = vsub.s32 32, %v1841
        %v1843 = vshrl.u32 683565275, %v1842
        %v1844 = vshll.u32 683565275, %v1841
        %v1845 = vshrl.u32 2475754826, %v1842
        %v1846 = vor.u32 %v1844, %v1845
        %v1847 = vshll.u32 2475754826, %v1841
        %v1848 = vshrl.u32 2131351028, %v1842
        %v1849 = vor.u32 %v1847, %v1848
        %v1850 = vshll.u32 2131351028, %v1841
        %v1851 = vshrl.u32 2102212464, %v1842
        %v1852 = vor.u32 %v1850, %v1851
        %v1853 = vshll.u32 2102212464, %v1841
        %v1854 = vshrl.u32 920167782, %v1842
        %v1855 = vor.u32 %v1853, %v1854
        %v1856 = vshll.u32 920167782, %v1841
        %v1857 = vshrl.u32 1326507024, %v1842
        %v1858 = vor.u32 %v1856, %v1857
        %vm1859 = vcmp.lt.s32.totalorder %v1840, 1
        %vm1860 = vcmp.lt.s32.totalorder %v1840, 2
        %vm1861 = vcmp.lt.s32.totalorder %v1840, 3
        %vm1862 = vcmp.lt.s32.totalorder %v1840, 4
        %v1863 = vsel %vm1859, %v1843, %v1846
        %v1864 = vsel %vm1862, %v1852, 2102212464
        %v1865 = vsel %vm1861, %v1849, %v1864
        %v1866 = vsel %vm1860, %v1863, %v1865
        %v1867 = vsel %vm1859, %v1846, %v1849
        %v1868 = vsel %vm1862, %v1855, 920167782
        %v1869 = vsel %vm1861, %v1852, %v1868
        %v1870 = vsel %vm1860, %v1867, %v1869
        %v1871 = vsel %vm1859, %v1849, %v1852
        %v1872 = vsel %vm1862, %v1858, 1326507024
        %v1873 = vsel %vm1861, %v1855, %v1872
        %v1874 = vsel %vm1860, %v1871, %v1873
        %v1875 = vshll.u32 %v1835, 8
        %v1876 = vmul.u32.u64.compose %v1875, %v1874
        %v1877 = vextract.low.u32 %v1876
        %v1878 = vextract.high.u32 %v1876
        %v1879 = vmul.u32.u64.compose %v1875, %v1870
        %v1880 = vextract.low.u32 %v1879
        %v1881 = vextract.high.u32 %v1879
        %v1882 = vmul.u32 %v1875, %v1866
        %v1883 = vadd.s32 %v1878, %v1880
        %vm1884 = vc.u32 %v1878, %v1880
        %v1885 = vadd.s32 %v1881, 1
        %v1886 = vsel %vm1884, %v1885, %v1881
        %v1887 = vadd.s32 %v1882, %v1886
        %v1888 = vadd.s32 %v1887, 536870912
        %v1889 = vshrl.u32 %v1888, 30
        %v1890 = vshll.u32 %v1889, 30
        %v1891 = vsub.s32 %v1887, %v1890
        %vm1892 = vcmp.lt.s32.totalorder %v1891, 0
        %v1893 = vsub.s32 0, %v1891
        %v1894 = vsel %vm1892, %v1893, %v1891
        %v1895 = vclz %v1894
        %v1896 = vsub.s32 %v1895, 2
        %vm1897 = vcmp.gt.s32.totalorder 0, %v1896
        %v1898 = vsel %vm1897, 0, %v1896
        %v1899 = vsub.s32 32, %v1898
        %v1900 = vshll.u32 %v1891, %v1898
        %v1901 = vshrl.u32 %v1883, %v1899
        %v1902 = vor.u32 %v1900, %v1901
        %v1903 = vsub.s32 4294967266, %v1898
        %v1904 = vadd.s32 %v1903, 127
        %v1905 = vshll.u32 %v1904, 23
        %v1906 = vor.u32 4788187, %v1905
        %v1907 = vand.u32 2147483647, %v1906
        %v1909 = vcvt.s32.f32 %v1902
        %v1910 = vmul.f32 %v1909, %v1907
        %v1911 = vxor.u32 %v1910, 2147483648
        %v1912 = vsel %vm1829, %v1911, %v1910
        %v1913 = vsub.s32 4, %v1889
        %v1914 = vsel %vm1829, %v1913, %v1889
        %v1915 = vsel %vm1828, %v1613, %v1912
        %v1916 = vsel %vm1828, 0, %v1914
        %v1917 = vcosq.f32.pop %v1915
        %v1918 = vsinq.f32.pop %v1915
        %vm1919 = vweird.f32 %v1613
        %v1920 = vadd.s32 %v1916, 3
        %v1921 = vand.u32 %v1920, 3
        %vm1922 = vcmp.lt.s32.totalorder %v1921, 2
        %vm1923 = vcmp.eq.s32.totalorder %v1921, 0
        %v1924 = vxor.u32 %v1918, 2147483648
        %v1925 = vsel %vm1923, %v1917, %v1924
        %vm1926 = vcmp.eq.s32.totalorder %v1921, 2
        %v1927 = vxor.u32 %v1917, 2147483648
        %v1928 = vsel %vm1926, %v1927, %v1918
        %v1929 = vsel %vm1922, %v1925, %v1928
        %v1930 = vsel %vm1919, nan, %v1929
        %v1931 = vand.u32 2147483647, %v1614
        %vm1932 = vcmp.le.f32.partialorder %v1931, 0.7853982
        %vm1933 = vcmp.lt.s32.totalorder %v1614, 0
        %v1934 = vand.u32 %v1614, 2139095040
        %v1935 = vshrl.u32 %v1934, 23
        %v1936 = vsub.s32 %v1935, 127
        %v1937 = vand.u32 2147483647, %v1614
        %v1938 = vand.u32 %v1937, 8388607
        %v1939 = vor.u32 %v1938, 8388608
        %v1940 = vsub.s32 0, %v1939
        %v1941 = vadd.s32 %v1936, 1
        %vm1942 = vcmp.gt.s32.totalorder %v1941, 0
        %v1943 = vsel %vm1942, %v1941, 0
        %v1944 = vshrl.u32 %v1943, 5
        %v1945 = vand.u32 %v1943, 31
        %v1946 = vsub.s32 32, %v1945
        %v1947 = vshrl.u32 683565275, %v1946
        %v1948 = vshll.u32 683565275, %v1945
        %v1949 = vshrl.u32 2475754826, %v1946
        %v1950 = vor.u32 %v1948, %v1949
        %v1951 = vshll.u32 2475754826, %v1945
        %v1952 = vshrl.u32 2131351028, %v1946
        %v1953 = vor.u32 %v1951, %v1952
        %v1954 = vshll.u32 2131351028, %v1945
        %v1955 = vshrl.u32 2102212464, %v1946
        %v1956 = vor.u32 %v1954, %v1955
        %v1957 = vshll.u32 2102212464, %v1945
        %v1958 = vshrl.u32 920167782, %v1946
        %v1959 = vor.u32 %v1957, %v1958
        %v1960 = vshll.u32 920167782, %v1945
        %v1961 = vshrl.u32 1326507024, %v1946
        %v1962 = vor.u32 %v1960, %v1961
        %vm1963 = vcmp.lt.s32.totalorder %v1944, 1
        %vm1964 = vcmp.lt.s32.totalorder %v1944, 2
        %vm1965 = vcmp.lt.s32.totalorder %v1944, 3
        %vm1966 = vcmp.lt.s32.totalorder %v1944, 4
        %v1967 = vsel %vm1963, %v1947, %v1950
        %v1968 = vsel %vm1966, %v1956, 2102212464
        %v1969 = vsel %vm1965, %v1953, %v1968
        %v1970 = vsel %vm1964, %v1967, %v1969
        %v1971 = vsel %vm1963, %v1950, %v1953
        %v1972 = vsel %vm1966, %v1959, 920167782
        %v1973 = vsel %vm1965, %v1956, %v1972
        %v1974 = vsel %vm1964, %v1971, %v1973
        %v1975 = vsel %vm1963, %v1953, %v1956
        %v1976 = vsel %vm1966, %v1962, 1326507024
        %v1977 = vsel %vm1965, %v1959, %v1976
        %v1978 = vsel %vm1964, %v1975, %v1977
        %v1979 = vshll.u32 %v1939, 8
        %v1980 = vmul.u32.u64.compose %v1979, %v1978
        %v1981 = vextract.low.u32 %v1980
        %v1982 = vextract.high.u32 %v1980
        %v1983 = vmul.u32.u64.compose %v1979, %v1974
        %v1984 = vextract.low.u32 %v1983
        %v1985 = vextract.high.u32 %v1983
        %v1986 = vmul.u32 %v1979, %v1970
        %v1987 = vadd.s32 %v1982, %v1984
        %vm1988 = vc.u32 %v1982, %v1984
        %v1989 = vadd.s32 %v1985, 1
        %v1990 = vsel %vm1988, %v1989, %v1985
        %v1991 = vadd.s32 %v1986, %v1990
        %v1992 = vadd.s32 %v1991, 536870912
        %v1993 = vshrl.u32 %v1992, 30
        %v1994 = vshll.u32 %v1993, 30
        %v1995 = vsub.s32 %v1991, %v1994
        %vm1996 = vcmp.lt.s32.totalorder %v1995, 0
        %v1997 = vsub.s32 0, %v1995
        %v1998 = vsel %vm1996, %v1997, %v1995
        %v1999 = vclz %v1998
        %v2000 = vsub.s32 %v1999, 2
        %vm2001 = vcmp.gt.s32.totalorder 0, %v2000
        %v2002 = vsel %vm2001, 0, %v2000
        %v2003 = vsub.s32 32, %v2002
        %v2004 = vshll.u32 %v1995, %v2002
        %v2005 = vshrl.u32 %v1987, %v2003
        %v2006 = vor.u32 %v2004, %v2005
        %v2007 = vsub.s32 4294967266, %v2002
        %v2008 = vadd.s32 %v2007, 127
        %v2009 = vshll.u32 %v2008, 23
        %v2010 = vor.u32 4788187, %v2009
        %v2011 = vand.u32 2147483647, %v2010
        %v2013 = vcvt.s32.f32 %v2006
        %v2014 = vmul.f32 %v2013, %v2011
        %v2015 = vxor.u32 %v2014, 2147483648
        %v2016 = vsel %vm1933, %v2015, %v2014
        %v2017 = vsub.s32 4, %v1993
        %v2018 = vsel %vm1933, %v2017, %v1993
        %v2019 = vsel %vm1932, %v1614, %v2016
        %v2020 = vsel %vm1932, 0, %v2018
        %v2021 = vcosq.f32.pop %v2019
        %v2022 = vsinq.f32.pop %v2019
        %vm2023 = vweird.f32 %v1614
        %v2024 = vadd.s32 %v2020, 3
        %v2025 = vand.u32 %v2024, 3
        %vm2026 = vcmp.lt.s32.totalorder %v2025, 2
        %vm2027 = vcmp.eq.s32.totalorder %v2025, 0
        %v2028 = vxor.u32 %v2022, 2147483648
        %v2029 = vsel %vm2027, %v2021, %v2028
        %vm2030 = vcmp.eq.s32.totalorder %v2025, 2
        %v2031 = vxor.u32 %v2021, 2147483648
        %v2032 = vsel %vm2030, %v2031, %v2022
        %v2033 = vsel %vm2026, %v2029, %v2032
        %v2034 = vsel %vm2023, nan, %v2033
        %v2035 = vand.u32 2147483647, %v1615
        %vm2036 = vcmp.le.f32.partialorder %v2035, 0.7853982
        %vm2037 = vcmp.lt.s32.totalorder %v1615, 0
        %v2038 = vand.u32 %v1615, 2139095040
        %v2039 = vshrl.u32 %v2038, 23
        %v2040 = vsub.s32 %v2039, 127
        %v2041 = vand.u32 2147483647, %v1615
        %v2042 = vand.u32 %v2041, 8388607
        %v2043 = vor.u32 %v2042, 8388608
        %v2044 = vsub.s32 0, %v2043
        %v2045 = vadd.s32 %v2040, 1
        %vm2046 = vcmp.gt.s32.totalorder %v2045, 0
        %v2047 = vsel %vm2046, %v2045, 0
        %v2048 = vshrl.u32 %v2047, 5
        %v2049 = vand.u32 %v2047, 31
        %v2050 = vsub.s32 32, %v2049
        %v2051 = vshrl.u32 683565275, %v2050
        %v2052 = vshll.u32 683565275, %v2049
        %v2053 = vshrl.u32 2475754826, %v2050
        %v2054 = vor.u32 %v2052, %v2053
        %v2055 = vshll.u32 2475754826, %v2049
        %v2056 = vshrl.u32 2131351028, %v2050
        %v2057 = vor.u32 %v2055, %v2056
        %v2058 = vshll.u32 2131351028, %v2049
        %v2059 = vshrl.u32 2102212464, %v2050
        %v2060 = vor.u32 %v2058, %v2059
        %v2061 = vshll.u32 2102212464, %v2049
        %v2062 = vshrl.u32 920167782, %v2050
        %v2063 = vor.u32 %v2061, %v2062
        %v2064 = vshll.u32 920167782, %v2049
        %v2065 = vshrl.u32 1326507024, %v2050
        %v2066 = vor.u32 %v2064, %v2065
        %vm2067 = vcmp.lt.s32.totalorder %v2048, 1
        %vm2068 = vcmp.lt.s32.totalorder %v2048, 2
        %vm2069 = vcmp.lt.s32.totalorder %v2048, 3
        %vm2070 = vcmp.lt.s32.totalorder %v2048, 4
        %v2071 = vsel %vm2067, %v2051, %v2054
        %v2072 = vsel %vm2070, %v2060, 2102212464
        %v2073 = vsel %vm2069, %v2057, %v2072
        %v2074 = vsel %vm2068, %v2071, %v2073
        %v2075 = vsel %vm2067, %v2054, %v2057
        %v2076 = vsel %vm2070, %v2063, 920167782
        %v2077 = vsel %vm2069, %v2060, %v2076
        %v2078 = vsel %vm2068, %v2075, %v2077
        %v2079 = vsel %vm2067, %v2057, %v2060
        %v2080 = vsel %vm2070, %v2066, 1326507024
        %v2081 = vsel %vm2069, %v2063, %v2080
        %v2082 = vsel %vm2068, %v2079, %v2081
        %v2083 = vshll.u32 %v2043, 8
        %v2084 = vmul.u32.u64.compose %v2083, %v2082
        %v2085 = vextract.low.u32 %v2084
        %v2086 = vextract.high.u32 %v2084
        %v2087 = vmul.u32.u64.compose %v2083, %v2078
        %v2088 = vextract.low.u32 %v2087
        %v2089 = vextract.high.u32 %v2087
        %v2090 = vmul.u32 %v2083, %v2074
        %v2091 = vadd.s32 %v2086, %v2088
        %vm2092 = vc.u32 %v2086, %v2088
        %v2093 = vadd.s32 %v2089, 1
        %v2094 = vsel %vm2092, %v2093, %v2089
        %v2095 = vadd.s32 %v2090, %v2094
        %v2096 = vadd.s32 %v2095, 536870912
        %v2097 = vshrl.u32 %v2096, 30
        %v2098 = vshll.u32 %v2097, 30
        %v2099 = vsub.s32 %v2095, %v2098
        %vm2100 = vcmp.lt.s32.totalorder %v2099, 0
        %v2101 = vsub.s32 0, %v2099
        %v2102 = vsel %vm2100, %v2101, %v2099
        %v2103 = vclz %v2102
        %v2104 = vsub.s32 %v2103, 2
        %vm2105 = vcmp.gt.s32.totalorder 0, %v2104
        %v2106 = vsel %vm2105, 0, %v2104
        %v2107 = vsub.s32 32, %v2106
        %v2108 = vshll.u32 %v2099, %v2106
        %v2109 = vshrl.u32 %v2091, %v2107
        %v2110 = vor.u32 %v2108, %v2109
        %v2111 = vsub.s32 4294967266, %v2106
        %v2112 = vadd.s32 %v2111, 127
        %v2113 = vshll.u32 %v2112, 23
        %v2114 = vor.u32 4788187, %v2113
        %v2115 = vand.u32 2147483647, %v2114
        %v2117 = vcvt.s32.f32 %v2110
        %v2118 = vmul.f32 %v2117, %v2115
        %v2119 = vxor.u32 %v2118, 2147483648
        %v2120 = vsel %vm2037, %v2119, %v2118
        %v2121 = vsub.s32 4, %v2097
        %v2122 = vsel %vm2037, %v2121, %v2097
        %v2123 = vsel %vm2036, %v1615, %v2120
        %v2124 = vsel %vm2036, 0, %v2122
        %v2125 = vcosq.f32.pop %v2123
        %v2126 = vsinq.f32.pop %v2123
        %vm2127 = vweird.f32 %v1615
        %v2128 = vadd.s32 %v2124, 3
        %v2129 = vand.u32 %v2128, 3
        %vm2130 = vcmp.lt.s32.totalorder %v2129, 2
        %vm2131 = vcmp.eq.s32.totalorder %v2129, 0
        %v2132 = vxor.u32 %v2126, 2147483648
        %v2133 = vsel %vm2131, %v2125, %v2132
        %vm2134 = vcmp.eq.s32.totalorder %v2129, 2
        %v2135 = vxor.u32 %v2125, 2147483648
        %v2136 = vsel %vm2134, %v2135, %v2126
        %v2137 = vsel %vm2130, %v2133, %v2136
        %v2138 = vsel %vm2127, nan, %v2137
        %v2139 = vand.u32 2147483647, %v1616
        %vm2140 = vcmp.le.f32.partialorder %v2139, 0.7853982
        %vm2141 = vcmp.lt.s32.totalorder %v1616, 0
        %v2142 = vand.u32 %v1616, 2139095040
        %v2143 = vshrl.u32 %v2142, 23
        %v2144 = vsub.s32 %v2143, 127
        %v2145 = vand.u32 2147483647, %v1616
        %v2146 = vand.u32 %v2145, 8388607
        %v2147 = vor.u32 %v2146, 8388608
        %v2148 = vsub.s32 0, %v2147
        %v2149 = vadd.s32 %v2144, 1
        %vm2150 = vcmp.gt.s32.totalorder %v2149, 0
        %v2151 = vsel %vm2150, %v2149, 0
        %v2152 = vshrl.u32 %v2151, 5
        %v2153 = vand.u32 %v2151, 31
        %v2154 = vsub.s32 32, %v2153
        %v2155 = vshrl.u32 683565275, %v2154
        %v2156 = vshll.u32 683565275, %v2153
        %v2157 = vshrl.u32 2475754826, %v2154
        %v2158 = vor.u32 %v2156, %v2157
        %v2159 = vshll.u32 2475754826, %v2153
        %v2160 = vshrl.u32 2131351028, %v2154
        %v2161 = vor.u32 %v2159, %v2160
        %v2162 = vshll.u32 2131351028, %v2153
        %v2163 = vshrl.u32 2102212464, %v2154
        %v2164 = vor.u32 %v2162, %v2163
        %v2165 = vshll.u32 2102212464, %v2153
        %v2166 = vshrl.u32 920167782, %v2154
        %v2167 = vor.u32 %v2165, %v2166
        %v2168 = vshll.u32 920167782, %v2153
        %v2169 = vshrl.u32 1326507024, %v2154
        %v2170 = vor.u32 %v2168, %v2169
        %vm2171 = vcmp.lt.s32.totalorder %v2152, 1
        %vm2172 = vcmp.lt.s32.totalorder %v2152, 2
        %vm2173 = vcmp.lt.s32.totalorder %v2152, 3
        %vm2174 = vcmp.lt.s32.totalorder %v2152, 4
        %v2175 = vsel %vm2171, %v2155, %v2158
        %v2176 = vsel %vm2174, %v2164, 2102212464
        %v2177 = vsel %vm2173, %v2161, %v2176
        %v2178 = vsel %vm2172, %v2175, %v2177
        %v2179 = vsel %vm2171, %v2158, %v2161
        %v2180 = vsel %vm2174, %v2167, 920167782
        %v2181 = vsel %vm2173, %v2164, %v2180
        %v2182 = vsel %vm2172, %v2179, %v2181
        %v2183 = vsel %vm2171, %v2161, %v2164
        %v2184 = vsel %vm2174, %v2170, 1326507024
        %v2185 = vsel %vm2173, %v2167, %v2184
        %v2186 = vsel %vm2172, %v2183, %v2185
        %v2187 = vshll.u32 %v2147, 8
        %v2188 = vmul.u32.u64.compose %v2187, %v2186
        %v2189 = vextract.low.u32 %v2188
        %v2190 = vextract.high.u32 %v2188
        %v2191 = vmul.u32.u64.compose %v2187, %v2182
        %v2192 = vextract.low.u32 %v2191
        %v2193 = vextract.high.u32 %v2191
        %v2194 = vmul.u32 %v2187, %v2178
        %v2195 = vadd.s32 %v2190, %v2192
        %vm2196 = vc.u32 %v2190, %v2192
        %v2197 = vadd.s32 %v2193, 1
        %v2198 = vsel %vm2196, %v2197, %v2193
        %v2199 = vadd.s32 %v2194, %v2198
        %v2200 = vadd.s32 %v2199, 536870912
        %v2201 = vshrl.u32 %v2200, 30
        %v2202 = vshll.u32 %v2201, 30
        %v2203 = vsub.s32 %v2199, %v2202
        %vm2204 = vcmp.lt.s32.totalorder %v2203, 0
        %v2205 = vsub.s32 0, %v2203
        %v2206 = vsel %vm2204, %v2205, %v2203
        %v2207 = vclz %v2206
        %v2208 = vsub.s32 %v2207, 2
        %vm2209 = vcmp.gt.s32.totalorder 0, %v2208
        %v2210 = vsel %vm2209, 0, %v2208
        %v2211 = vsub.s32 32, %v2210
        %v2212 = vshll.u32 %v2203, %v2210
        %v2213 = vshrl.u32 %v2195, %v2211
        %v2214 = vor.u32 %v2212, %v2213
        %v2215 = vsub.s32 4294967266, %v2210
        %v2216 = vadd.s32 %v2215, 127
        %v2217 = vshll.u32 %v2216, 23
        %v2218 = vor.u32 4788187, %v2217
        %v2219 = vand.u32 2147483647, %v2218
        %v2221 = vcvt.s32.f32 %v2214
        %v2222 = vmul.f32 %v2221, %v2219
        %v2223 = vxor.u32 %v2222, 2147483648
        %v2224 = vsel %vm2141, %v2223, %v2222
        %v2225 = vsub.s32 4, %v2201
        %v2226 = vsel %vm2141, %v2225, %v2201
        %v2227 = vsel %vm2140, %v1616, %v2224
        %v2228 = vsel %vm2140, 0, %v2226
        %v2229 = vcosq.f32.pop %v2227
        %v2230 = vsinq.f32.pop %v2227
        %vm2231 = vweird.f32 %v1616
        %v2232 = vadd.s32 %v2228, 3
        %v2233 = vand.u32 %v2232, 3
        %vm2234 = vcmp.lt.s32.totalorder %v2233, 2
        %vm2235 = vcmp.eq.s32.totalorder %v2233, 0
        %v2236 = vxor.u32 %v2230, 2147483648
        %v2237 = vsel %vm2235, %v2229, %v2236
        %vm2238 = vcmp.eq.s32.totalorder %v2233, 2
        %v2239 = vxor.u32 %v2229, 2147483648
        %v2240 = vsel %vm2238, %v2239, %v2230
        %v2241 = vsel %vm2234, %v2237, %v2240
        %v2242 = vsel %vm2231, nan, %v2241
        %v2243 = vand.u32 2147483647, %v1617
        %vm2244 = vcmp.le.f32.partialorder %v2243, 0.7853982
        %vm2245 = vcmp.lt.s32.totalorder %v1617, 0
        %v2246 = vand.u32 %v1617, 2139095040
        %v2247 = vshrl.u32 %v2246, 23
        %v2248 = vsub.s32 %v2247, 127
        %v2249 = vand.u32 2147483647, %v1617
        %v2250 = vand.u32 %v2249, 8388607
        %v2251 = vor.u32 %v2250, 8388608
        %v2252 = vsub.s32 0, %v2251
        %v2253 = vadd.s32 %v2248, 1
        %vm2254 = vcmp.gt.s32.totalorder %v2253, 0
        %v2255 = vsel %vm2254, %v2253, 0
        %v2256 = vshrl.u32 %v2255, 5
        %v2257 = vand.u32 %v2255, 31
        %v2258 = vsub.s32 32, %v2257
        %v2259 = vshrl.u32 683565275, %v2258
        %v2260 = vshll.u32 683565275, %v2257
        %v2261 = vshrl.u32 2475754826, %v2258
        %v2262 = vor.u32 %v2260, %v2261
        %v2263 = vshll.u32 2475754826, %v2257
        %v2264 = vshrl.u32 2131351028, %v2258
        %v2265 = vor.u32 %v2263, %v2264
        %v2266 = vshll.u32 2131351028, %v2257
        %v2267 = vshrl.u32 2102212464, %v2258
        %v2268 = vor.u32 %v2266, %v2267
        %v2269 = vshll.u32 2102212464, %v2257
        %v2270 = vshrl.u32 920167782, %v2258
        %v2271 = vor.u32 %v2269, %v2270
        %v2272 = vshll.u32 920167782, %v2257
        %v2273 = vshrl.u32 1326507024, %v2258
        %v2274 = vor.u32 %v2272, %v2273
        %vm2275 = vcmp.lt.s32.totalorder %v2256, 1
        %vm2276 = vcmp.lt.s32.totalorder %v2256, 2
        %vm2277 = vcmp.lt.s32.totalorder %v2256, 3
        %vm2278 = vcmp.lt.s32.totalorder %v2256, 4
        %v2279 = vsel %vm2275, %v2259, %v2262
        %v2280 = vsel %vm2278, %v2268, 2102212464
        %v2281 = vsel %vm2277, %v2265, %v2280
        %v2282 = vsel %vm2276, %v2279, %v2281
        %v2283 = vsel %vm2275, %v2262, %v2265
        %v2284 = vsel %vm2278, %v2271, 920167782
        %v2285 = vsel %vm2277, %v2268, %v2284
        %v2286 = vsel %vm2276, %v2283, %v2285
        %v2287 = vsel %vm2275, %v2265, %v2268
        %v2288 = vsel %vm2278, %v2274, 1326507024
        %v2289 = vsel %vm2277, %v2271, %v2288
        %v2290 = vsel %vm2276, %v2287, %v2289
        %v2291 = vshll.u32 %v2251, 8
        %v2292 = vmul.u32.u64.compose %v2291, %v2290
        %v2293 = vextract.low.u32 %v2292
        %v2294 = vextract.high.u32 %v2292
        %v2295 = vmul.u32.u64.compose %v2291, %v2286
        %v2296 = vextract.low.u32 %v2295
        %v2297 = vextract.high.u32 %v2295
        %v2298 = vmul.u32 %v2291, %v2282
        %v2299 = vadd.s32 %v2294, %v2296
        %vm2300 = vc.u32 %v2294, %v2296
        %v2301 = vadd.s32 %v2297, 1
        %v2302 = vsel %vm2300, %v2301, %v2297
        %v2303 = vadd.s32 %v2298, %v2302
        %v2304 = vadd.s32 %v2303, 536870912
        %v2305 = vshrl.u32 %v2304, 30
        %v2306 = vshll.u32 %v2305, 30
        %v2307 = vsub.s32 %v2303, %v2306
        %vm2308 = vcmp.lt.s32.totalorder %v2307, 0
        %v2309 = vsub.s32 0, %v2307
        %v2310 = vsel %vm2308, %v2309, %v2307
        %v2311 = vclz %v2310
        %v2312 = vsub.s32 %v2311, 2
        %vm2313 = vcmp.gt.s32.totalorder 0, %v2312
        %v2314 = vsel %vm2313, 0, %v2312
        %v2315 = vsub.s32 32, %v2314
        %v2316 = vshll.u32 %v2307, %v2314
        %v2317 = vshrl.u32 %v2299, %v2315
        %v2318 = vor.u32 %v2316, %v2317
        %v2319 = vsub.s32 4294967266, %v2314
        %v2320 = vadd.s32 %v2319, 127
        %v2321 = vshll.u32 %v2320, 23
        %v2322 = vor.u32 4788187, %v2321
        %v2323 = vand.u32 2147483647, %v2322
        %v2325 = vcvt.s32.f32 %v2318
        %v2326 = vmul.f32 %v2325, %v2323
        %v2327 = vxor.u32 %v2326, 2147483648
        %v2328 = vsel %vm2245, %v2327, %v2326
        %v2329 = vsub.s32 4, %v2305
        %v2330 = vsel %vm2245, %v2329, %v2305
        %v2331 = vsel %vm2244, %v1617, %v2328
        %v2332 = vsel %vm2244, 0, %v2330
        %v2333 = vcosq.f32.pop %v2331
        %v2334 = vsinq.f32.pop %v2331
        %vm2335 = vweird.f32 %v1617
        %v2336 = vadd.s32 %v2332, 3
        %v2337 = vand.u32 %v2336, 3
        %vm2338 = vcmp.lt.s32.totalorder %v2337, 2
        %vm2339 = vcmp.eq.s32.totalorder %v2337, 0
        %v2340 = vxor.u32 %v2334, 2147483648
        %v2341 = vsel %vm2339, %v2333, %v2340
        %vm2342 = vcmp.eq.s32.totalorder %v2337, 2
        %v2343 = vxor.u32 %v2333, 2147483648
        %v2344 = vsel %vm2342, %v2343, %v2334
        %v2345 = vsel %vm2338, %v2341, %v2344
        %v2346 = vsel %vm2335, nan, %v2345
        %v2347 = vand.u32 2147483647, %v1618
        %vm2348 = vcmp.le.f32.partialorder %v2347, 0.7853982
        %vm2349 = vcmp.lt.s32.totalorder %v1618, 0
        %v2350 = vand.u32 %v1618, 2139095040
        %v2351 = vshrl.u32 %v2350, 23
        %v2352 = vsub.s32 %v2351, 127
        %v2353 = vand.u32 2147483647, %v1618
        %v2354 = vand.u32 %v2353, 8388607
        %v2355 = vor.u32 %v2354, 8388608
        %v2356 = vsub.s32 0, %v2355
        %v2357 = vadd.s32 %v2352, 1
        %vm2358 = vcmp.gt.s32.totalorder %v2357, 0
        %v2359 = vsel %vm2358, %v2357, 0
        %v2360 = vshrl.u32 %v2359, 5
        %v2361 = vand.u32 %v2359, 31
        %v2362 = vsub.s32 32, %v2361
        %v2363 = vshrl.u32 683565275, %v2362
        %v2364 = vshll.u32 683565275, %v2361
        %v2365 = vshrl.u32 2475754826, %v2362
        %v2366 = vor.u32 %v2364, %v2365
        %v2367 = vshll.u32 2475754826, %v2361
        %v2368 = vshrl.u32 2131351028, %v2362
        %v2369 = vor.u32 %v2367, %v2368
        %v2370 = vshll.u32 2131351028, %v2361
        %v2371 = vshrl.u32 2102212464, %v2362
        %v2372 = vor.u32 %v2370, %v2371
        %v2373 = vshll.u32 2102212464, %v2361
        %v2374 = vshrl.u32 920167782, %v2362
        %v2375 = vor.u32 %v2373, %v2374
        %v2376 = vshll.u32 920167782, %v2361
        %v2377 = vshrl.u32 1326507024, %v2362
        %v2378 = vor.u32 %v2376, %v2377
        %vm2379 = vcmp.lt.s32.totalorder %v2360, 1
        %vm2380 = vcmp.lt.s32.totalorder %v2360, 2
        %vm2381 = vcmp.lt.s32.totalorder %v2360, 3
        %vm2382 = vcmp.lt.s32.totalorder %v2360, 4
        %v2383 = vsel %vm2379, %v2363, %v2366
        %v2384 = vsel %vm2382, %v2372, 2102212464
        %v2385 = vsel %vm2381, %v2369, %v2384
        %v2386 = vsel %vm2380, %v2383, %v2385
        %v2387 = vsel %vm2379, %v2366, %v2369
        %v2388 = vsel %vm2382, %v2375, 920167782
        %v2389 = vsel %vm2381, %v2372, %v2388
        %v2390 = vsel %vm2380, %v2387, %v2389
        %v2391 = vsel %vm2379, %v2369, %v2372
        %v2392 = vsel %vm2382, %v2378, 1326507024
        %v2393 = vsel %vm2381, %v2375, %v2392
        %v2394 = vsel %vm2380, %v2391, %v2393
        %v2395 = vshll.u32 %v2355, 8
        %v2396 = vmul.u32.u64.compose %v2395, %v2394
        %v2397 = vextract.low.u32 %v2396
        %v2398 = vextract.high.u32 %v2396
        %v2399 = vmul.u32.u64.compose %v2395, %v2390
        %v2400 = vextract.low.u32 %v2399
        %v2401 = vextract.high.u32 %v2399
        %v2402 = vmul.u32 %v2395, %v2386
        %v2403 = vadd.s32 %v2398, %v2400
        %vm2404 = vc.u32 %v2398, %v2400
        %v2405 = vadd.s32 %v2401, 1
        %v2406 = vsel %vm2404, %v2405, %v2401
        %v2407 = vadd.s32 %v2402, %v2406
        %v2408 = vadd.s32 %v2407, 536870912
        %v2409 = vshrl.u32 %v2408, 30
        %v2410 = vshll.u32 %v2409, 30
        %v2411 = vsub.s32 %v2407, %v2410
        %vm2412 = vcmp.lt.s32.totalorder %v2411, 0
        %v2413 = vsub.s32 0, %v2411
        %v2414 = vsel %vm2412, %v2413, %v2411
        %v2415 = vclz %v2414
        %v2416 = vsub.s32 %v2415, 2
        %vm2417 = vcmp.gt.s32.totalorder 0, %v2416
        %v2418 = vsel %vm2417, 0, %v2416
        %v2419 = vsub.s32 32, %v2418
        %v2420 = vshll.u32 %v2411, %v2418
        %v2421 = vshrl.u32 %v2403, %v2419
        %v2422 = vor.u32 %v2420, %v2421
        %v2423 = vsub.s32 4294967266, %v2418
        %v2424 = vadd.s32 %v2423, 127
        %v2425 = vshll.u32 %v2424, 23
        %v2426 = vor.u32 4788187, %v2425
        %v2427 = vand.u32 2147483647, %v2426
        %v2429 = vcvt.s32.f32 %v2422
        %v2430 = vmul.f32 %v2429, %v2427
        %v2431 = vxor.u32 %v2430, 2147483648
        %v2432 = vsel %vm2349, %v2431, %v2430
        %v2433 = vsub.s32 4, %v2409
        %v2434 = vsel %vm2349, %v2433, %v2409
        %v2435 = vsel %vm2348, %v1618, %v2432
        %v2436 = vsel %vm2348, 0, %v2434
        %v2437 = vcosq.f32.pop %v2435
        %v2438 = vsinq.f32.pop %v2435
        %vm2439 = vweird.f32 %v1618
        %v2440 = vadd.s32 %v2436, 3
        %v2441 = vand.u32 %v2440, 3
        %vm2442 = vcmp.lt.s32.totalorder %v2441, 2
        %vm2443 = vcmp.eq.s32.totalorder %v2441, 0
        %v2444 = vxor.u32 %v2438, 2147483648
        %v2445 = vsel %vm2443, %v2437, %v2444
        %vm2446 = vcmp.eq.s32.totalorder %v2441, 2
        %v2447 = vxor.u32 %v2437, 2147483648
        %v2448 = vsel %vm2446, %v2447, %v2438
        %v2449 = vsel %vm2442, %v2445, %v2448
        %v2450 = vsel %vm2439, nan, %v2449
        %s2451 = scalar_lea.vmem %s682, 2
        %v2452 = vld [vmem:[%s2451] ss:$4 sm:$0xf]
        %v2454 = vlaneseq
        %v2455 = vshrl.u32 %v2454, 7
        %v2456 = vsub.s32 0, %v2455
        %v2457 = vrot.slane %v2452, %v2456
        %v2458 = vlaneseq
        %v2459 = vshrl.u32 %v2458, 7
        %v2460 = vsub.s32 1, %v2459
        %v2461 = vrot.slane %v2452, %v2460
        %v2462 = vlaneseq
        %v2463 = vshrl.u32 %v2462, 7
        %v2464 = vsub.s32 2, %v2463
        %v2465 = vrot.slane %v2452, %v2464
        %v2466 = vlaneseq
        %v2467 = vshrl.u32 %v2466, 7
        %v2468 = vsub.s32 3, %v2467
        %v2469 = vrot.slane %v2452, %v2468
        %v2474 = vmul.f32 %v694, %v2457
        %v2475 = vmul.f32 %v694, %v2461
        %v2476 = vmul.f32 %v694, %v2465
        %v2477 = vmul.f32 %v694, %v2469
        %v2478 = vmul.f32 %v699, %v2457
        %v2479 = vmul.f32 %v699, %v2461
        %v2480 = vmul.f32 %v699, %v2465
        %v2481 = vmul.f32 %v699, %v2469
        %v2482 = vadd.f32 %v2474, %v733
        %v2483 = vadd.f32 %v2475, %v733
        %v2484 = vadd.f32 %v2476, %v733
        %v2485 = vadd.f32 %v2477, %v733
        %v2486 = vadd.f32 %v2478, %v738
        %v2487 = vadd.f32 %v2479, %v738
        %v2488 = vadd.f32 %v2480, %v738
        %v2489 = vadd.f32 %v2481, %v738
        %v2490 = vand.u32 2147483647, %v2482
        %vm2491 = vcmp.le.f32.partialorder %v2490, 0.7853982
        %vm2492 = vcmp.lt.s32.totalorder %v2482, 0
        %v2493 = vand.u32 %v2482, 2139095040
        %v2494 = vshrl.u32 %v2493, 23
        %v2495 = vsub.s32 %v2494, 127
        %v2496 = vand.u32 2147483647, %v2482
        %v2497 = vand.u32 %v2496, 8388607
        %v2498 = vor.u32 %v2497, 8388608
        %v2499 = vsub.s32 0, %v2498
        %v2500 = vadd.s32 %v2495, 1
        %vm2501 = vcmp.gt.s32.totalorder %v2500, 0
        %v2502 = vsel %vm2501, %v2500, 0
        %v2503 = vshrl.u32 %v2502, 5
        %v2504 = vand.u32 %v2502, 31
        %v2505 = vsub.s32 32, %v2504
        %v2506 = vshrl.u32 683565275, %v2505
        %v2507 = vshll.u32 683565275, %v2504
        %v2508 = vshrl.u32 2475754826, %v2505
        %v2509 = vor.u32 %v2507, %v2508
        %v2510 = vshll.u32 2475754826, %v2504
        %v2511 = vshrl.u32 2131351028, %v2505
        %v2512 = vor.u32 %v2510, %v2511
        %v2513 = vshll.u32 2131351028, %v2504
        %v2514 = vshrl.u32 2102212464, %v2505
        %v2515 = vor.u32 %v2513, %v2514
        %v2516 = vshll.u32 2102212464, %v2504
        %v2517 = vshrl.u32 920167782, %v2505
        %v2518 = vor.u32 %v2516, %v2517
        %v2519 = vshll.u32 920167782, %v2504
        %v2520 = vshrl.u32 1326507024, %v2505
        %v2521 = vor.u32 %v2519, %v2520
        %vm2522 = vcmp.lt.s32.totalorder %v2503, 1
        %vm2523 = vcmp.lt.s32.totalorder %v2503, 2
        %vm2524 = vcmp.lt.s32.totalorder %v2503, 3
        %vm2525 = vcmp.lt.s32.totalorder %v2503, 4
        %v2526 = vsel %vm2522, %v2506, %v2509
        %v2527 = vsel %vm2525, %v2515, 2102212464
        %v2528 = vsel %vm2524, %v2512, %v2527
        %v2529 = vsel %vm2523, %v2526, %v2528
        %v2530 = vsel %vm2522, %v2509, %v2512
        %v2531 = vsel %vm2525, %v2518, 920167782
        %v2532 = vsel %vm2524, %v2515, %v2531
        %v2533 = vsel %vm2523, %v2530, %v2532
        %v2534 = vsel %vm2522, %v2512, %v2515
        %v2535 = vsel %vm2525, %v2521, 1326507024
        %v2536 = vsel %vm2524, %v2518, %v2535
        %v2537 = vsel %vm2523, %v2534, %v2536
        %v2538 = vshll.u32 %v2498, 8
        %v2539 = vmul.u32.u64.compose %v2538, %v2537
        %v2540 = vextract.low.u32 %v2539
        %v2541 = vextract.high.u32 %v2539
        %v2542 = vmul.u32.u64.compose %v2538, %v2533
        %v2543 = vextract.low.u32 %v2542
        %v2544 = vextract.high.u32 %v2542
        %v2545 = vmul.u32 %v2538, %v2529
        %v2546 = vadd.s32 %v2541, %v2543
        %vm2547 = vc.u32 %v2541, %v2543
        %v2548 = vadd.s32 %v2544, 1
        %v2549 = vsel %vm2547, %v2548, %v2544
        %v2550 = vadd.s32 %v2545, %v2549
        %v2551 = vadd.s32 %v2550, 536870912
        %v2552 = vshrl.u32 %v2551, 30
        %v2553 = vshll.u32 %v2552, 30
        %v2554 = vsub.s32 %v2550, %v2553
        %vm2555 = vcmp.lt.s32.totalorder %v2554, 0
        %v2556 = vsub.s32 0, %v2554
        %v2557 = vsel %vm2555, %v2556, %v2554
        %v2558 = vclz %v2557
        %v2559 = vsub.s32 %v2558, 2
        %vm2560 = vcmp.gt.s32.totalorder 0, %v2559
        %v2561 = vsel %vm2560, 0, %v2559
        %v2562 = vsub.s32 32, %v2561
        %v2563 = vshll.u32 %v2554, %v2561
        %v2564 = vshrl.u32 %v2546, %v2562
        %v2565 = vor.u32 %v2563, %v2564
        %v2566 = vsub.s32 4294967266, %v2561
        %v2567 = vadd.s32 %v2566, 127
        %v2568 = vshll.u32 %v2567, 23
        %v2569 = vor.u32 4788187, %v2568
        %v2570 = vand.u32 2147483647, %v2569
        %v2572 = vcvt.s32.f32 %v2565
        %v2573 = vmul.f32 %v2572, %v2570
        %v2574 = vxor.u32 %v2573, 2147483648
        %v2575 = vsel %vm2492, %v2574, %v2573
        %v2576 = vsub.s32 4, %v2552
        %v2577 = vsel %vm2492, %v2576, %v2552
        %v2578 = vsel %vm2491, %v2482, %v2575
        %v2579 = vsel %vm2491, 0, %v2577
        %v2580 = vcosq.f32.pop %v2578
        %v2581 = vsinq.f32.pop %v2578
        %vm2582 = vweird.f32 %v2482
        %v2583 = vadd.s32 %v2579, 3
        %v2584 = vand.u32 %v2583, 3
        %vm2585 = vcmp.lt.s32.totalorder %v2584, 2
        %vm2586 = vcmp.eq.s32.totalorder %v2584, 0
        %v2587 = vxor.u32 %v2581, 2147483648
        %v2588 = vsel %vm2586, %v2580, %v2587
        %vm2589 = vcmp.eq.s32.totalorder %v2584, 2
        %v2590 = vxor.u32 %v2580, 2147483648
        %v2591 = vsel %vm2589, %v2590, %v2581
        %v2592 = vsel %vm2585, %v2588, %v2591
        %v2593 = vsel %vm2582, nan, %v2592
        %v2594 = vand.u32 2147483647, %v2483
        %vm2595 = vcmp.le.f32.partialorder %v2594, 0.7853982
        %vm2596 = vcmp.lt.s32.totalorder %v2483, 0
        %v2597 = vand.u32 %v2483, 2139095040
        %v2598 = vshrl.u32 %v2597, 23
        %v2599 = vsub.s32 %v2598, 127
        %v2600 = vand.u32 2147483647, %v2483
        %v2601 = vand.u32 %v2600, 8388607
        %v2602 = vor.u32 %v2601, 8388608
        %v2603 = vsub.s32 0, %v2602
        %v2604 = vadd.s32 %v2599, 1
        %vm2605 = vcmp.gt.s32.totalorder %v2604, 0
        %v2606 = vsel %vm2605, %v2604, 0
        %v2607 = vshrl.u32 %v2606, 5
        %v2608 = vand.u32 %v2606, 31
        %v2609 = vsub.s32 32, %v2608
        %v2610 = vshrl.u32 683565275, %v2609
        %v2611 = vshll.u32 683565275, %v2608
        %v2612 = vshrl.u32 2475754826, %v2609
        %v2613 = vor.u32 %v2611, %v2612
        %v2614 = vshll.u32 2475754826, %v2608
        %v2615 = vshrl.u32 2131351028, %v2609
        %v2616 = vor.u32 %v2614, %v2615
        %v2617 = vshll.u32 2131351028, %v2608
        %v2618 = vshrl.u32 2102212464, %v2609
        %v2619 = vor.u32 %v2617, %v2618
        %v2620 = vshll.u32 2102212464, %v2608
        %v2621 = vshrl.u32 920167782, %v2609
        %v2622 = vor.u32 %v2620, %v2621
        %v2623 = vshll.u32 920167782, %v2608
        %v2624 = vshrl.u32 1326507024, %v2609
        %v2625 = vor.u32 %v2623, %v2624
        %vm2626 = vcmp.lt.s32.totalorder %v2607, 1
        %vm2627 = vcmp.lt.s32.totalorder %v2607, 2
        %vm2628 = vcmp.lt.s32.totalorder %v2607, 3
        %vm2629 = vcmp.lt.s32.totalorder %v2607, 4
        %v2630 = vsel %vm2626, %v2610, %v2613
        %v2631 = vsel %vm2629, %v2619, 2102212464
        %v2632 = vsel %vm2628, %v2616, %v2631
        %v2633 = vsel %vm2627, %v2630, %v2632
        %v2634 = vsel %vm2626, %v2613, %v2616
        %v2635 = vsel %vm2629, %v2622, 920167782
        %v2636 = vsel %vm2628, %v2619, %v2635
        %v2637 = vsel %vm2627, %v2634, %v2636
        %v2638 = vsel %vm2626, %v2616, %v2619
        %v2639 = vsel %vm2629, %v2625, 1326507024
        %v2640 = vsel %vm2628, %v2622, %v2639
        %v2641 = vsel %vm2627, %v2638, %v2640
        %v2642 = vshll.u32 %v2602, 8
        %v2643 = vmul.u32.u64.compose %v2642, %v2641
        %v2644 = vextract.low.u32 %v2643
        %v2645 = vextract.high.u32 %v2643
        %v2646 = vmul.u32.u64.compose %v2642, %v2637
        %v2647 = vextract.low.u32 %v2646
        %v2648 = vextract.high.u32 %v2646
        %v2649 = vmul.u32 %v2642, %v2633
        %v2650 = vadd.s32 %v2645, %v2647
        %vm2651 = vc.u32 %v2645, %v2647
        %v2652 = vadd.s32 %v2648, 1
        %v2653 = vsel %vm2651, %v2652, %v2648
        %v2654 = vadd.s32 %v2649, %v2653
        %v2655 = vadd.s32 %v2654, 536870912
        %v2656 = vshrl.u32 %v2655, 30
        %v2657 = vshll.u32 %v2656, 30
        %v2658 = vsub.s32 %v2654, %v2657
        %vm2659 = vcmp.lt.s32.totalorder %v2658, 0
        %v2660 = vsub.s32 0, %v2658
        %v2661 = vsel %vm2659, %v2660, %v2658
        %v2662 = vclz %v2661
        %v2663 = vsub.s32 %v2662, 2
        %vm2664 = vcmp.gt.s32.totalorder 0, %v2663
        %v2665 = vsel %vm2664, 0, %v2663
        %v2666 = vsub.s32 32, %v2665
        %v2667 = vshll.u32 %v2658, %v2665
        %v2668 = vshrl.u32 %v2650, %v2666
        %v2669 = vor.u32 %v2667, %v2668
        %v2670 = vsub.s32 4294967266, %v2665
        %v2671 = vadd.s32 %v2670, 127
        %v2672 = vshll.u32 %v2671, 23
        %v2673 = vor.u32 4788187, %v2672
        %v2674 = vand.u32 2147483647, %v2673
        %v2676 = vcvt.s32.f32 %v2669
        %v2677 = vmul.f32 %v2676, %v2674
        %v2678 = vxor.u32 %v2677, 2147483648
        %v2679 = vsel %vm2596, %v2678, %v2677
        %v2680 = vsub.s32 4, %v2656
        %v2681 = vsel %vm2596, %v2680, %v2656
        %v2682 = vsel %vm2595, %v2483, %v2679
        %v2683 = vsel %vm2595, 0, %v2681
        %v2684 = vcosq.f32.pop %v2682
        %v2685 = vsinq.f32.pop %v2682
        %vm2686 = vweird.f32 %v2483
        %v2687 = vadd.s32 %v2683, 3
        %v2688 = vand.u32 %v2687, 3
        %vm2689 = vcmp.lt.s32.totalorder %v2688, 2
        %vm2690 = vcmp.eq.s32.totalorder %v2688, 0
        %v2691 = vxor.u32 %v2685, 2147483648
        %v2692 = vsel %vm2690, %v2684, %v2691
        %vm2693 = vcmp.eq.s32.totalorder %v2688, 2
        %v2694 = vxor.u32 %v2684, 2147483648
        %v2695 = vsel %vm2693, %v2694, %v2685
        %v2696 = vsel %vm2689, %v2692, %v2695
        %v2697 = vsel %vm2686, nan, %v2696
        %v2698 = vand.u32 2147483647, %v2484
        %vm2699 = vcmp.le.f32.partialorder %v2698, 0.7853982
        %vm2700 = vcmp.lt.s32.totalorder %v2484, 0
        %v2701 = vand.u32 %v2484, 2139095040
        %v2702 = vshrl.u32 %v2701, 23
        %v2703 = vsub.s32 %v2702, 127
        %v2704 = vand.u32 2147483647, %v2484
        %v2705 = vand.u32 %v2704, 8388607
        %v2706 = vor.u32 %v2705, 8388608
        %v2707 = vsub.s32 0, %v2706
        %v2708 = vadd.s32 %v2703, 1
        %vm2709 = vcmp.gt.s32.totalorder %v2708, 0
        %v2710 = vsel %vm2709, %v2708, 0
        %v2711 = vshrl.u32 %v2710, 5
        %v2712 = vand.u32 %v2710, 31
        %v2713 = vsub.s32 32, %v2712
        %v2714 = vshrl.u32 683565275, %v2713
        %v2715 = vshll.u32 683565275, %v2712
        %v2716 = vshrl.u32 2475754826, %v2713
        %v2717 = vor.u32 %v2715, %v2716
        %v2718 = vshll.u32 2475754826, %v2712
        %v2719 = vshrl.u32 2131351028, %v2713
        %v2720 = vor.u32 %v2718, %v2719
        %v2721 = vshll.u32 2131351028, %v2712
        %v2722 = vshrl.u32 2102212464, %v2713
        %v2723 = vor.u32 %v2721, %v2722
        %v2724 = vshll.u32 2102212464, %v2712
        %v2725 = vshrl.u32 920167782, %v2713
        %v2726 = vor.u32 %v2724, %v2725
        %v2727 = vshll.u32 920167782, %v2712
        %v2728 = vshrl.u32 1326507024, %v2713
        %v2729 = vor.u32 %v2727, %v2728
        %vm2730 = vcmp.lt.s32.totalorder %v2711, 1
        %vm2731 = vcmp.lt.s32.totalorder %v2711, 2
        %vm2732 = vcmp.lt.s32.totalorder %v2711, 3
        %vm2733 = vcmp.lt.s32.totalorder %v2711, 4
        %v2734 = vsel %vm2730, %v2714, %v2717
        %v2735 = vsel %vm2733, %v2723, 2102212464
        %v2736 = vsel %vm2732, %v2720, %v2735
        %v2737 = vsel %vm2731, %v2734, %v2736
        %v2738 = vsel %vm2730, %v2717, %v2720
        %v2739 = vsel %vm2733, %v2726, 920167782
        %v2740 = vsel %vm2732, %v2723, %v2739
        %v2741 = vsel %vm2731, %v2738, %v2740
        %v2742 = vsel %vm2730, %v2720, %v2723
        %v2743 = vsel %vm2733, %v2729, 1326507024
        %v2744 = vsel %vm2732, %v2726, %v2743
        %v2745 = vsel %vm2731, %v2742, %v2744
        %v2746 = vshll.u32 %v2706, 8
        %v2747 = vmul.u32.u64.compose %v2746, %v2745
        %v2748 = vextract.low.u32 %v2747
        %v2749 = vextract.high.u32 %v2747
        %v2750 = vmul.u32.u64.compose %v2746, %v2741
        %v2751 = vextract.low.u32 %v2750
        %v2752 = vextract.high.u32 %v2750
        %v2753 = vmul.u32 %v2746, %v2737
        %v2754 = vadd.s32 %v2749, %v2751
        %vm2755 = vc.u32 %v2749, %v2751
        %v2756 = vadd.s32 %v2752, 1
        %v2757 = vsel %vm2755, %v2756, %v2752
        %v2758 = vadd.s32 %v2753, %v2757
        %v2759 = vadd.s32 %v2758, 536870912
        %v2760 = vshrl.u32 %v2759, 30
        %v2761 = vshll.u32 %v2760, 30
        %v2762 = vsub.s32 %v2758, %v2761
        %vm2763 = vcmp.lt.s32.totalorder %v2762, 0
        %v2764 = vsub.s32 0, %v2762
        %v2765 = vsel %vm2763, %v2764, %v2762
        %v2766 = vclz %v2765
        %v2767 = vsub.s32 %v2766, 2
        %vm2768 = vcmp.gt.s32.totalorder 0, %v2767
        %v2769 = vsel %vm2768, 0, %v2767
        %v2770 = vsub.s32 32, %v2769
        %v2771 = vshll.u32 %v2762, %v2769
        %v2772 = vshrl.u32 %v2754, %v2770
        %v2773 = vor.u32 %v2771, %v2772
        %v2774 = vsub.s32 4294967266, %v2769
        %v2775 = vadd.s32 %v2774, 127
        %v2776 = vshll.u32 %v2775, 23
        %v2777 = vor.u32 4788187, %v2776
        %v2778 = vand.u32 2147483647, %v2777
        %v2780 = vcvt.s32.f32 %v2773
        %v2781 = vmul.f32 %v2780, %v2778
        %v2782 = vxor.u32 %v2781, 2147483648
        %v2783 = vsel %vm2700, %v2782, %v2781
        %v2784 = vsub.s32 4, %v2760
        %v2785 = vsel %vm2700, %v2784, %v2760
        %v2786 = vsel %vm2699, %v2484, %v2783
        %v2787 = vsel %vm2699, 0, %v2785
        %v2788 = vcosq.f32.pop %v2786
        %v2789 = vsinq.f32.pop %v2786
        %vm2790 = vweird.f32 %v2484
        %v2791 = vadd.s32 %v2787, 3
        %v2792 = vand.u32 %v2791, 3
        %vm2793 = vcmp.lt.s32.totalorder %v2792, 2
        %vm2794 = vcmp.eq.s32.totalorder %v2792, 0
        %v2795 = vxor.u32 %v2789, 2147483648
        %v2796 = vsel %vm2794, %v2788, %v2795
        %vm2797 = vcmp.eq.s32.totalorder %v2792, 2
        %v2798 = vxor.u32 %v2788, 2147483648
        %v2799 = vsel %vm2797, %v2798, %v2789
        %v2800 = vsel %vm2793, %v2796, %v2799
        %v2801 = vsel %vm2790, nan, %v2800
        %v2802 = vand.u32 2147483647, %v2485
        %vm2803 = vcmp.le.f32.partialorder %v2802, 0.7853982
        %vm2804 = vcmp.lt.s32.totalorder %v2485, 0
        %v2805 = vand.u32 %v2485, 2139095040
        %v2806 = vshrl.u32 %v2805, 23
        %v2807 = vsub.s32 %v2806, 127
        %v2808 = vand.u32 2147483647, %v2485
        %v2809 = vand.u32 %v2808, 8388607
        %v2810 = vor.u32 %v2809, 8388608
        %v2811 = vsub.s32 0, %v2810
        %v2812 = vadd.s32 %v2807, 1
        %vm2813 = vcmp.gt.s32.totalorder %v2812, 0
        %v2814 = vsel %vm2813, %v2812, 0
        %v2815 = vshrl.u32 %v2814, 5
        %v2816 = vand.u32 %v2814, 31
        %v2817 = vsub.s32 32, %v2816
        %v2818 = vshrl.u32 683565275, %v2817
        %v2819 = vshll.u32 683565275, %v2816
        %v2820 = vshrl.u32 2475754826, %v2817
        %v2821 = vor.u32 %v2819, %v2820
        %v2822 = vshll.u32 2475754826, %v2816
        %v2823 = vshrl.u32 2131351028, %v2817
        %v2824 = vor.u32 %v2822, %v2823
        %v2825 = vshll.u32 2131351028, %v2816
        %v2826 = vshrl.u32 2102212464, %v2817
        %v2827 = vor.u32 %v2825, %v2826
        %v2828 = vshll.u32 2102212464, %v2816
        %v2829 = vshrl.u32 920167782, %v2817
        %v2830 = vor.u32 %v2828, %v2829
        %v2831 = vshll.u32 920167782, %v2816
        %v2832 = vshrl.u32 1326507024, %v2817
        %v2833 = vor.u32 %v2831, %v2832
        %vm2834 = vcmp.lt.s32.totalorder %v2815, 1
        %vm2835 = vcmp.lt.s32.totalorder %v2815, 2
        %vm2836 = vcmp.lt.s32.totalorder %v2815, 3
        %vm2837 = vcmp.lt.s32.totalorder %v2815, 4
        %v2838 = vsel %vm2834, %v2818, %v2821
        %v2839 = vsel %vm2837, %v2827, 2102212464
        %v2840 = vsel %vm2836, %v2824, %v2839
        %v2841 = vsel %vm2835, %v2838, %v2840
        %v2842 = vsel %vm2834, %v2821, %v2824
        %v2843 = vsel %vm2837, %v2830, 920167782
        %v2844 = vsel %vm2836, %v2827, %v2843
        %v2845 = vsel %vm2835, %v2842, %v2844
        %v2846 = vsel %vm2834, %v2824, %v2827
        %v2847 = vsel %vm2837, %v2833, 1326507024
        %v2848 = vsel %vm2836, %v2830, %v2847
        %v2849 = vsel %vm2835, %v2846, %v2848
        %v2850 = vshll.u32 %v2810, 8
        %v2851 = vmul.u32.u64.compose %v2850, %v2849
        %v2852 = vextract.low.u32 %v2851
        %v2853 = vextract.high.u32 %v2851
        %v2854 = vmul.u32.u64.compose %v2850, %v2845
        %v2855 = vextract.low.u32 %v2854
        %v2856 = vextract.high.u32 %v2854
        %v2857 = vmul.u32 %v2850, %v2841
        %v2858 = vadd.s32 %v2853, %v2855
        %vm2859 = vc.u32 %v2853, %v2855
        %v2860 = vadd.s32 %v2856, 1
        %v2861 = vsel %vm2859, %v2860, %v2856
        %v2862 = vadd.s32 %v2857, %v2861
        %v2863 = vadd.s32 %v2862, 536870912
        %v2864 = vshrl.u32 %v2863, 30
        %v2865 = vshll.u32 %v2864, 30
        %v2866 = vsub.s32 %v2862, %v2865
        %vm2867 = vcmp.lt.s32.totalorder %v2866, 0
        %v2868 = vsub.s32 0, %v2866
        %v2869 = vsel %vm2867, %v2868, %v2866
        %v2870 = vclz %v2869
        %v2871 = vsub.s32 %v2870, 2
        %vm2872 = vcmp.gt.s32.totalorder 0, %v2871
        %v2873 = vsel %vm2872, 0, %v2871
        %v2874 = vsub.s32 32, %v2873
        %v2875 = vshll.u32 %v2866, %v2873
        %v2876 = vshrl.u32 %v2858, %v2874
        %v2877 = vor.u32 %v2875, %v2876
        %v2878 = vsub.s32 4294967266, %v2873
        %v2879 = vadd.s32 %v2878, 127
        %v2880 = vshll.u32 %v2879, 23
        %v2881 = vor.u32 4788187, %v2880
        %v2882 = vand.u32 2147483647, %v2881
        %v2884 = vcvt.s32.f32 %v2877
        %v2885 = vmul.f32 %v2884, %v2882
        %v2886 = vxor.u32 %v2885, 2147483648
        %v2887 = vsel %vm2804, %v2886, %v2885
        %v2888 = vsub.s32 4, %v2864
        %v2889 = vsel %vm2804, %v2888, %v2864
        %v2890 = vsel %vm2803, %v2485, %v2887
        %v2891 = vsel %vm2803, 0, %v2889
        %v2892 = vcosq.f32.pop %v2890
        %v2893 = vsinq.f32.pop %v2890
        %vm2894 = vweird.f32 %v2485
        %v2895 = vadd.s32 %v2891, 3
        %v2896 = vand.u32 %v2895, 3
        %vm2897 = vcmp.lt.s32.totalorder %v2896, 2
        %vm2898 = vcmp.eq.s32.totalorder %v2896, 0
        %v2899 = vxor.u32 %v2893, 2147483648
        %v2900 = vsel %vm2898, %v2892, %v2899
        %vm2901 = vcmp.eq.s32.totalorder %v2896, 2
        %v2902 = vxor.u32 %v2892, 2147483648
        %v2903 = vsel %vm2901, %v2902, %v2893
        %v2904 = vsel %vm2897, %v2900, %v2903
        %v2905 = vsel %vm2894, nan, %v2904
        %v2906 = vand.u32 2147483647, %v2486
        %vm2907 = vcmp.le.f32.partialorder %v2906, 0.7853982
        %vm2908 = vcmp.lt.s32.totalorder %v2486, 0
        %v2909 = vand.u32 %v2486, 2139095040
        %v2910 = vshrl.u32 %v2909, 23
        %v2911 = vsub.s32 %v2910, 127
        %v2912 = vand.u32 2147483647, %v2486
        %v2913 = vand.u32 %v2912, 8388607
        %v2914 = vor.u32 %v2913, 8388608
        %v2915 = vsub.s32 0, %v2914
        %v2916 = vadd.s32 %v2911, 1
        %vm2917 = vcmp.gt.s32.totalorder %v2916, 0
        %v2918 = vsel %vm2917, %v2916, 0
        %v2919 = vshrl.u32 %v2918, 5
        %v2920 = vand.u32 %v2918, 31
        %v2921 = vsub.s32 32, %v2920
        %v2922 = vshrl.u32 683565275, %v2921
        %v2923 = vshll.u32 683565275, %v2920
        %v2924 = vshrl.u32 2475754826, %v2921
        %v2925 = vor.u32 %v2923, %v2924
        %v2926 = vshll.u32 2475754826, %v2920
        %v2927 = vshrl.u32 2131351028, %v2921
        %v2928 = vor.u32 %v2926, %v2927
        %v2929 = vshll.u32 2131351028, %v2920
        %v2930 = vshrl.u32 2102212464, %v2921
        %v2931 = vor.u32 %v2929, %v2930
        %v2932 = vshll.u32 2102212464, %v2920
        %v2933 = vshrl.u32 920167782, %v2921
        %v2934 = vor.u32 %v2932, %v2933
        %v2935 = vshll.u32 920167782, %v2920
        %v2936 = vshrl.u32 1326507024, %v2921
        %v2937 = vor.u32 %v2935, %v2936
        %vm2938 = vcmp.lt.s32.totalorder %v2919, 1
        %vm2939 = vcmp.lt.s32.totalorder %v2919, 2
        %vm2940 = vcmp.lt.s32.totalorder %v2919, 3
        %vm2941 = vcmp.lt.s32.totalorder %v2919, 4
        %v2942 = vsel %vm2938, %v2922, %v2925
        %v2943 = vsel %vm2941, %v2931, 2102212464
        %v2944 = vsel %vm2940, %v2928, %v2943
        %v2945 = vsel %vm2939, %v2942, %v2944
        %v2946 = vsel %vm2938, %v2925, %v2928
        %v2947 = vsel %vm2941, %v2934, 920167782
        %v2948 = vsel %vm2940, %v2931, %v2947
        %v2949 = vsel %vm2939, %v2946, %v2948
        %v2950 = vsel %vm2938, %v2928, %v2931
        %v2951 = vsel %vm2941, %v2937, 1326507024
        %v2952 = vsel %vm2940, %v2934, %v2951
        %v2953 = vsel %vm2939, %v2950, %v2952
        %v2954 = vshll.u32 %v2914, 8
        %v2955 = vmul.u32.u64.compose %v2954, %v2953
        %v2956 = vextract.low.u32 %v2955
        %v2957 = vextract.high.u32 %v2955
        %v2958 = vmul.u32.u64.compose %v2954, %v2949
        %v2959 = vextract.low.u32 %v2958
        %v2960 = vextract.high.u32 %v2958
        %v2961 = vmul.u32 %v2954, %v2945
        %v2962 = vadd.s32 %v2957, %v2959
        %vm2963 = vc.u32 %v2957, %v2959
        %v2964 = vadd.s32 %v2960, 1
        %v2965 = vsel %vm2963, %v2964, %v2960
        %v2966 = vadd.s32 %v2961, %v2965
        %v2967 = vadd.s32 %v2966, 536870912
        %v2968 = vshrl.u32 %v2967, 30
        %v2969 = vshll.u32 %v2968, 30
        %v2970 = vsub.s32 %v2966, %v2969
        %vm2971 = vcmp.lt.s32.totalorder %v2970, 0
        %v2972 = vsub.s32 0, %v2970
        %v2973 = vsel %vm2971, %v2972, %v2970
        %v2974 = vclz %v2973
        %v2975 = vsub.s32 %v2974, 2
        %vm2976 = vcmp.gt.s32.totalorder 0, %v2975
        %v2977 = vsel %vm2976, 0, %v2975
        %v2978 = vsub.s32 32, %v2977
        %v2979 = vshll.u32 %v2970, %v2977
        %v2980 = vshrl.u32 %v2962, %v2978
        %v2981 = vor.u32 %v2979, %v2980
        %v2982 = vsub.s32 4294967266, %v2977
        %v2983 = vadd.s32 %v2982, 127
        %v2984 = vshll.u32 %v2983, 23
        %v2985 = vor.u32 4788187, %v2984
        %v2986 = vand.u32 2147483647, %v2985
        %v2988 = vcvt.s32.f32 %v2981
        %v2989 = vmul.f32 %v2988, %v2986
        %v2990 = vxor.u32 %v2989, 2147483648
        %v2991 = vsel %vm2908, %v2990, %v2989
        %v2992 = vsub.s32 4, %v2968
        %v2993 = vsel %vm2908, %v2992, %v2968
        %v2994 = vsel %vm2907, %v2486, %v2991
        %v2995 = vsel %vm2907, 0, %v2993
        %v2996 = vcosq.f32.pop %v2994
        %v2997 = vsinq.f32.pop %v2994
        %vm2998 = vweird.f32 %v2486
        %v2999 = vadd.s32 %v2995, 3
        %v3000 = vand.u32 %v2999, 3
        %vm3001 = vcmp.lt.s32.totalorder %v3000, 2
        %vm3002 = vcmp.eq.s32.totalorder %v3000, 0
        %v3003 = vxor.u32 %v2997, 2147483648
        %v3004 = vsel %vm3002, %v2996, %v3003
        %vm3005 = vcmp.eq.s32.totalorder %v3000, 2
        %v3006 = vxor.u32 %v2996, 2147483648
        %v3007 = vsel %vm3005, %v3006, %v2997
        %v3008 = vsel %vm3001, %v3004, %v3007
        %v3009 = vsel %vm2998, nan, %v3008
        %v3010 = vand.u32 2147483647, %v2487
        %vm3011 = vcmp.le.f32.partialorder %v3010, 0.7853982
        %vm3012 = vcmp.lt.s32.totalorder %v2487, 0
        %v3013 = vand.u32 %v2487, 2139095040
        %v3014 = vshrl.u32 %v3013, 23
        %v3015 = vsub.s32 %v3014, 127
        %v3016 = vand.u32 2147483647, %v2487
        %v3017 = vand.u32 %v3016, 8388607
        %v3018 = vor.u32 %v3017, 8388608
        %v3019 = vsub.s32 0, %v3018
        %v3020 = vadd.s32 %v3015, 1
        %vm3021 = vcmp.gt.s32.totalorder %v3020, 0
        %v3022 = vsel %vm3021, %v3020, 0
        %v3023 = vshrl.u32 %v3022, 5
        %v3024 = vand.u32 %v3022, 31
        %v3025 = vsub.s32 32, %v3024
        %v3026 = vshrl.u32 683565275, %v3025
        %v3027 = vshll.u32 683565275, %v3024
        %v3028 = vshrl.u32 2475754826, %v3025
        %v3029 = vor.u32 %v3027, %v3028
        %v3030 = vshll.u32 2475754826, %v3024
        %v3031 = vshrl.u32 2131351028, %v3025
        %v3032 = vor.u32 %v3030, %v3031
        %v3033 = vshll.u32 2131351028, %v3024
        %v3034 = vshrl.u32 2102212464, %v3025
        %v3035 = vor.u32 %v3033, %v3034
        %v3036 = vshll.u32 2102212464, %v3024
        %v3037 = vshrl.u32 920167782, %v3025
        %v3038 = vor.u32 %v3036, %v3037
        %v3039 = vshll.u32 920167782, %v3024
        %v3040 = vshrl.u32 1326507024, %v3025
        %v3041 = vor.u32 %v3039, %v3040
        %vm3042 = vcmp.lt.s32.totalorder %v3023, 1
        %vm3043 = vcmp.lt.s32.totalorder %v3023, 2
        %vm3044 = vcmp.lt.s32.totalorder %v3023, 3
        %vm3045 = vcmp.lt.s32.totalorder %v3023, 4
        %v3046 = vsel %vm3042, %v3026, %v3029
        %v3047 = vsel %vm3045, %v3035, 2102212464
        %v3048 = vsel %vm3044, %v3032, %v3047
        %v3049 = vsel %vm3043, %v3046, %v3048
        %v3050 = vsel %vm3042, %v3029, %v3032
        %v3051 = vsel %vm3045, %v3038, 920167782
        %v3052 = vsel %vm3044, %v3035, %v3051
        %v3053 = vsel %vm3043, %v3050, %v3052
        %v3054 = vsel %vm3042, %v3032, %v3035
        %v3055 = vsel %vm3045, %v3041, 1326507024
        %v3056 = vsel %vm3044, %v3038, %v3055
        %v3057 = vsel %vm3043, %v3054, %v3056
        %v3058 = vshll.u32 %v3018, 8
        %v3059 = vmul.u32.u64.compose %v3058, %v3057
        %v3060 = vextract.low.u32 %v3059
        %v3061 = vextract.high.u32 %v3059
        %v3062 = vmul.u32.u64.compose %v3058, %v3053
        %v3063 = vextract.low.u32 %v3062
        %v3064 = vextract.high.u32 %v3062
        %v3065 = vmul.u32 %v3058, %v3049
        %v3066 = vadd.s32 %v3061, %v3063
        %vm3067 = vc.u32 %v3061, %v3063
        %v3068 = vadd.s32 %v3064, 1
        %v3069 = vsel %vm3067, %v3068, %v3064
        %v3070 = vadd.s32 %v3065, %v3069
        %v3071 = vadd.s32 %v3070, 536870912
        %v3072 = vshrl.u32 %v3071, 30
        %v3073 = vshll.u32 %v3072, 30
        %v3074 = vsub.s32 %v3070, %v3073
        %vm3075 = vcmp.lt.s32.totalorder %v3074, 0
        %v3076 = vsub.s32 0, %v3074
        %v3077 = vsel %vm3075, %v3076, %v3074
        %v3078 = vclz %v3077
        %v3079 = vsub.s32 %v3078, 2
        %vm3080 = vcmp.gt.s32.totalorder 0, %v3079
        %v3081 = vsel %vm3080, 0, %v3079
        %v3082 = vsub.s32 32, %v3081
        %v3083 = vshll.u32 %v3074, %v3081
        %v3084 = vshrl.u32 %v3066, %v3082
        %v3085 = vor.u32 %v3083, %v3084
        %v3086 = vsub.s32 4294967266, %v3081
        %v3087 = vadd.s32 %v3086, 127
        %v3088 = vshll.u32 %v3087, 23
        %v3089 = vor.u32 4788187, %v3088
        %v3090 = vand.u32 2147483647, %v3089
        %v3092 = vcvt.s32.f32 %v3085
        %v3093 = vmul.f32 %v3092, %v3090
        %v3094 = vxor.u32 %v3093, 2147483648
        %v3095 = vsel %vm3012, %v3094, %v3093
        %v3096 = vsub.s32 4, %v3072
        %v3097 = vsel %vm3012, %v3096, %v3072
        %v3098 = vsel %vm3011, %v2487, %v3095
        %v3099 = vsel %vm3011, 0, %v3097
        %v3100 = vcosq.f32.pop %v3098
        %v3101 = vsinq.f32.pop %v3098
        %vm3102 = vweird.f32 %v2487
        %v3103 = vadd.s32 %v3099, 3
        %v3104 = vand.u32 %v3103, 3
        %vm3105 = vcmp.lt.s32.totalorder %v3104, 2
        %vm3106 = vcmp.eq.s32.totalorder %v3104, 0
        %v3107 = vxor.u32 %v3101, 2147483648
        %v3108 = vsel %vm3106, %v3100, %v3107
        %vm3109 = vcmp.eq.s32.totalorder %v3104, 2
        %v3110 = vxor.u32 %v3100, 2147483648
        %v3111 = vsel %vm3109, %v3110, %v3101
        %v3112 = vsel %vm3105, %v3108, %v3111
        %v3113 = vsel %vm3102, nan, %v3112
        %v3114 = vand.u32 2147483647, %v2488
        %vm3115 = vcmp.le.f32.partialorder %v3114, 0.7853982
        %vm3116 = vcmp.lt.s32.totalorder %v2488, 0
        %v3117 = vand.u32 %v2488, 2139095040
        %v3118 = vshrl.u32 %v3117, 23
        %v3119 = vsub.s32 %v3118, 127
        %v3120 = vand.u32 2147483647, %v2488
        %v3121 = vand.u32 %v3120, 8388607
        %v3122 = vor.u32 %v3121, 8388608
        %v3123 = vsub.s32 0, %v3122
        %v3124 = vadd.s32 %v3119, 1
        %vm3125 = vcmp.gt.s32.totalorder %v3124, 0
        %v3126 = vsel %vm3125, %v3124, 0
        %v3127 = vshrl.u32 %v3126, 5
        %v3128 = vand.u32 %v3126, 31
        %v3129 = vsub.s32 32, %v3128
        %v3130 = vshrl.u32 683565275, %v3129
        %v3131 = vshll.u32 683565275, %v3128
        %v3132 = vshrl.u32 2475754826, %v3129
        %v3133 = vor.u32 %v3131, %v3132
        %v3134 = vshll.u32 2475754826, %v3128
        %v3135 = vshrl.u32 2131351028, %v3129
        %v3136 = vor.u32 %v3134, %v3135
        %v3137 = vshll.u32 2131351028, %v3128
        %v3138 = vshrl.u32 2102212464, %v3129
        %v3139 = vor.u32 %v3137, %v3138
        %v3140 = vshll.u32 2102212464, %v3128
        %v3141 = vshrl.u32 920167782, %v3129
        %v3142 = vor.u32 %v3140, %v3141
        %v3143 = vshll.u32 920167782, %v3128
        %v3144 = vshrl.u32 1326507024, %v3129
        %v3145 = vor.u32 %v3143, %v3144
        %vm3146 = vcmp.lt.s32.totalorder %v3127, 1
        %vm3147 = vcmp.lt.s32.totalorder %v3127, 2
        %vm3148 = vcmp.lt.s32.totalorder %v3127, 3
        %vm3149 = vcmp.lt.s32.totalorder %v3127, 4
        %v3150 = vsel %vm3146, %v3130, %v3133
        %v3151 = vsel %vm3149, %v3139, 2102212464
        %v3152 = vsel %vm3148, %v3136, %v3151
        %v3153 = vsel %vm3147, %v3150, %v3152
        %v3154 = vsel %vm3146, %v3133, %v3136
        %v3155 = vsel %vm3149, %v3142, 920167782
        %v3156 = vsel %vm3148, %v3139, %v3155
        %v3157 = vsel %vm3147, %v3154, %v3156
        %v3158 = vsel %vm3146, %v3136, %v3139
        %v3159 = vsel %vm3149, %v3145, 1326507024
        %v3160 = vsel %vm3148, %v3142, %v3159
        %v3161 = vsel %vm3147, %v3158, %v3160
        %v3162 = vshll.u32 %v3122, 8
        %v3163 = vmul.u32.u64.compose %v3162, %v3161
        %v3164 = vextract.low.u32 %v3163
        %v3165 = vextract.high.u32 %v3163
        %v3166 = vmul.u32.u64.compose %v3162, %v3157
        %v3167 = vextract.low.u32 %v3166
        %v3168 = vextract.high.u32 %v3166
        %v3169 = vmul.u32 %v3162, %v3153
        %v3170 = vadd.s32 %v3165, %v3167
        %vm3171 = vc.u32 %v3165, %v3167
        %v3172 = vadd.s32 %v3168, 1
        %v3173 = vsel %vm3171, %v3172, %v3168
        %v3174 = vadd.s32 %v3169, %v3173
        %v3175 = vadd.s32 %v3174, 536870912
        %v3176 = vshrl.u32 %v3175, 30
        %v3177 = vshll.u32 %v3176, 30
        %v3178 = vsub.s32 %v3174, %v3177
        %vm3179 = vcmp.lt.s32.totalorder %v3178, 0
        %v3180 = vsub.s32 0, %v3178
        %v3181 = vsel %vm3179, %v3180, %v3178
        %v3182 = vclz %v3181
        %v3183 = vsub.s32 %v3182, 2
        %vm3184 = vcmp.gt.s32.totalorder 0, %v3183
        %v3185 = vsel %vm3184, 0, %v3183
        %v3186 = vsub.s32 32, %v3185
        %v3187 = vshll.u32 %v3178, %v3185
        %v3188 = vshrl.u32 %v3170, %v3186
        %v3189 = vor.u32 %v3187, %v3188
        %v3190 = vsub.s32 4294967266, %v3185
        %v3191 = vadd.s32 %v3190, 127
        %v3192 = vshll.u32 %v3191, 23
        %v3193 = vor.u32 4788187, %v3192
        %v3194 = vand.u32 2147483647, %v3193
        %v3196 = vcvt.s32.f32 %v3189
        %v3197 = vmul.f32 %v3196, %v3194
        %v3198 = vxor.u32 %v3197, 2147483648
        %v3199 = vsel %vm3116, %v3198, %v3197
        %v3200 = vsub.s32 4, %v3176
        %v3201 = vsel %vm3116, %v3200, %v3176
        %v3202 = vsel %vm3115, %v2488, %v3199
        %v3203 = vsel %vm3115, 0, %v3201
        %v3204 = vcosq.f32.pop %v3202
        %v3205 = vsinq.f32.pop %v3202
        %vm3206 = vweird.f32 %v2488
        %v3207 = vadd.s32 %v3203, 3
        %v3208 = vand.u32 %v3207, 3
        %vm3209 = vcmp.lt.s32.totalorder %v3208, 2
        %vm3210 = vcmp.eq.s32.totalorder %v3208, 0
        %v3211 = vxor.u32 %v3205, 2147483648
        %v3212 = vsel %vm3210, %v3204, %v3211
        %vm3213 = vcmp.eq.s32.totalorder %v3208, 2
        %v3214 = vxor.u32 %v3204, 2147483648
        %v3215 = vsel %vm3213, %v3214, %v3205
        %v3216 = vsel %vm3209, %v3212, %v3215
        %v3217 = vsel %vm3206, nan, %v3216
        %v3218 = vand.u32 2147483647, %v2489
        %vm3219 = vcmp.le.f32.partialorder %v3218, 0.7853982
        %vm3220 = vcmp.lt.s32.totalorder %v2489, 0
        %v3221 = vand.u32 %v2489, 2139095040
        %v3222 = vshrl.u32 %v3221, 23
        %v3223 = vsub.s32 %v3222, 127
        %v3224 = vand.u32 2147483647, %v2489
        %v3225 = vand.u32 %v3224, 8388607
        %v3226 = vor.u32 %v3225, 8388608
        %v3227 = vsub.s32 0, %v3226
        %v3228 = vadd.s32 %v3223, 1
        %vm3229 = vcmp.gt.s32.totalorder %v3228, 0
        %v3230 = vsel %vm3229, %v3228, 0
        %v3231 = vshrl.u32 %v3230, 5
        %v3232 = vand.u32 %v3230, 31
        %v3233 = vsub.s32 32, %v3232
        %v3234 = vshrl.u32 683565275, %v3233
        %v3235 = vshll.u32 683565275, %v3232
        %v3236 = vshrl.u32 2475754826, %v3233
        %v3237 = vor.u32 %v3235, %v3236
        %v3238 = vshll.u32 2475754826, %v3232
        %v3239 = vshrl.u32 2131351028, %v3233
        %v3240 = vor.u32 %v3238, %v3239
        %v3241 = vshll.u32 2131351028, %v3232
        %v3242 = vshrl.u32 2102212464, %v3233
        %v3243 = vor.u32 %v3241, %v3242
        %v3244 = vshll.u32 2102212464, %v3232
        %v3245 = vshrl.u32 920167782, %v3233
        %v3246 = vor.u32 %v3244, %v3245
        %v3247 = vshll.u32 920167782, %v3232
        %v3248 = vshrl.u32 1326507024, %v3233
        %v3249 = vor.u32 %v3247, %v3248
        %vm3250 = vcmp.lt.s32.totalorder %v3231, 1
        %vm3251 = vcmp.lt.s32.totalorder %v3231, 2
        %vm3252 = vcmp.lt.s32.totalorder %v3231, 3
        %vm3253 = vcmp.lt.s32.totalorder %v3231, 4
        %v3254 = vsel %vm3250, %v3234, %v3237
        %v3255 = vsel %vm3253, %v3243, 2102212464
        %v3256 = vsel %vm3252, %v3240, %v3255
        %v3257 = vsel %vm3251, %v3254, %v3256
        %v3258 = vsel %vm3250, %v3237, %v3240
        %v3259 = vsel %vm3253, %v3246, 920167782
        %v3260 = vsel %vm3252, %v3243, %v3259
        %v3261 = vsel %vm3251, %v3258, %v3260
        %v3262 = vsel %vm3250, %v3240, %v3243
        %v3263 = vsel %vm3253, %v3249, 1326507024
        %v3264 = vsel %vm3252, %v3246, %v3263
        %v3265 = vsel %vm3251, %v3262, %v3264
        %v3266 = vshll.u32 %v3226, 8
        %v3267 = vmul.u32.u64.compose %v3266, %v3265
        %v3268 = vextract.low.u32 %v3267
        %v3269 = vextract.high.u32 %v3267
        %v3270 = vmul.u32.u64.compose %v3266, %v3261
        %v3271 = vextract.low.u32 %v3270
        %v3272 = vextract.high.u32 %v3270
        %v3273 = vmul.u32 %v3266, %v3257
        %v3274 = vadd.s32 %v3269, %v3271
        %vm3275 = vc.u32 %v3269, %v3271
        %v3276 = vadd.s32 %v3272, 1
        %v3277 = vsel %vm3275, %v3276, %v3272
        %v3278 = vadd.s32 %v3273, %v3277
        %v3279 = vadd.s32 %v3278, 536870912
        %v3280 = vshrl.u32 %v3279, 30
        %v3281 = vshll.u32 %v3280, 30
        %v3282 = vsub.s32 %v3278, %v3281
        %vm3283 = vcmp.lt.s32.totalorder %v3282, 0
        %v3284 = vsub.s32 0, %v3282
        %v3285 = vsel %vm3283, %v3284, %v3282
        %v3286 = vclz %v3285
        %v3287 = vsub.s32 %v3286, 2
        %vm3288 = vcmp.gt.s32.totalorder 0, %v3287
        %v3289 = vsel %vm3288, 0, %v3287
        %v3290 = vsub.s32 32, %v3289
        %v3291 = vshll.u32 %v3282, %v3289
        %v3292 = vshrl.u32 %v3274, %v3290
        %v3293 = vor.u32 %v3291, %v3292
        %v3294 = vsub.s32 4294967266, %v3289
        %v3295 = vadd.s32 %v3294, 127
        %v3296 = vshll.u32 %v3295, 23
        %v3297 = vor.u32 4788187, %v3296
        %v3298 = vand.u32 2147483647, %v3297
        %v3300 = vcvt.s32.f32 %v3293
        %v3301 = vmul.f32 %v3300, %v3298
        %v3302 = vxor.u32 %v3301, 2147483648
        %v3303 = vsel %vm3220, %v3302, %v3301
        %v3304 = vsub.s32 4, %v3280
        %v3305 = vsel %vm3220, %v3304, %v3280
        %v3306 = vsel %vm3219, %v2489, %v3303
        %v3307 = vsel %vm3219, 0, %v3305
        %v3308 = vcosq.f32.pop %v3306
        %v3309 = vsinq.f32.pop %v3306
        %vm3310 = vweird.f32 %v2489
        %v3311 = vadd.s32 %v3307, 3
        %v3312 = vand.u32 %v3311, 3
        %vm3313 = vcmp.lt.s32.totalorder %v3312, 2
        %vm3314 = vcmp.eq.s32.totalorder %v3312, 0
        %v3315 = vxor.u32 %v3309, 2147483648
        %v3316 = vsel %vm3314, %v3308, %v3315
        %vm3317 = vcmp.eq.s32.totalorder %v3312, 2
        %v3318 = vxor.u32 %v3308, 2147483648
        %v3319 = vsel %vm3317, %v3318, %v3309
        %v3320 = vsel %vm3313, %v3316, %v3319
        %v3321 = vsel %vm3310, nan, %v3320
        %v3322 = vpack.c.bf16 %v1267, %v851
        %v3323 = vpack.c.bf16 %v1371, %v955
        %v3324 = vpack.c.bf16 %v1475, %v1059
        %v3325 = vpack.c.bf16 %v1579, %v1163
        %v3326 = vpack.c.bf16 %v2138, %v1722
        %v3327 = vpack.c.bf16 %v2242, %v1826
        %v3328 = vpack.c.bf16 %v2346, %v1930
        %v3329 = vpack.c.bf16 %v2450, %v2034
        %v3330 = vpack.c.bf16 %v3009, %v2593
        %v3331 = vpack.c.bf16 %v3113, %v2697
        %v3332 = vpack.c.bf16 %v3217, %v2801
        %v3333 = vpack.c.bf16 %v3321, %v2905
        %v3334 = vld [vmem:[%s3] sm:$0xf]
        %v3335 = vld [vmem:[%s3 + $0x4] sm:$0xf]
        %v3336 = vld [vmem:[%s3 + $0x8] sm:$0xf]
        %v3337 = vld [vmem:[%s3 + $0xc] sm:$0xf]
        %v3338 = vld [vmem:[%s3 + $0x10] sm:$0xf]
        %v3339 = vld [vmem:[%s3 + $0x14] sm:$0xf]
        %v3340 = vld [vmem:[%s3 + $0x18] sm:$0xf]
        %v3341 = vld [vmem:[%s3 + $0x1c] sm:$0xf]
        %v3342 = vld [vmem:[%s4] sm:$0xff]
        %v3343 = vld [vmem:[%s4 + $0x8] sm:$0xff]
        %v3344 = vld [vmem:[%s4 + $0x10] sm:$0xff]
        %v3345 = vld [vmem:[%s4 + $0x18] sm:$0xff]
        %v3346 = vld [vmem:[%s4 + $0x20] sm:$0xff]
        %v3347 = vld [vmem:[%s4 + $0x28] sm:$0xff]
        %v3348 = vld [vmem:[%s4 + $0x30] sm:$0xff]
        %v3349 = vld [vmem:[%s4 + $0x38] sm:$0xff]
        %3351 = vset.pattern.permute.xlu0 0
        %3352 = vperm.xlu0 %3351, %v3342
        %v3353 = vpop.permute.xlu0 %3352
        %3356 = vset.pattern.permute.xlu0 0
        %3357 = vperm.xlu0 %3356, %v3343
        %v3358 = vpop.permute.xlu0 %3357
        %3361 = vset.pattern.permute.xlu0 0
        %3362 = vperm.xlu0 %3361, %v3344
        %v3363 = vpop.permute.xlu0 %3362
        %3366 = vset.pattern.permute.xlu0 0
        %3367 = vperm.xlu0 %3366, %v3345
        %v3368 = vpop.permute.xlu0 %3367
        %3371 = vset.pattern.permute.xlu0 0
        %3372 = vperm.xlu0 %3371, %v3346
        %v3373 = vpop.permute.xlu0 %3372
        %3376 = vset.pattern.permute.xlu0 0
        %3377 = vperm.xlu0 %3376, %v3347
        %v3378 = vpop.permute.xlu0 %3377
        %3381 = vset.pattern.permute.xlu0 0
        %3382 = vperm.xlu0 %3381, %v3348
        %v3383 = vpop.permute.xlu0 %3382
        %3386 = vset.pattern.permute.xlu0 0
        %3387 = vperm.xlu0 %3386, %v3349
        %v3388 = vpop.permute.xlu0 %3387
        %v3398 = vunpack.c.l.b16 %v3334
        %v3399 = vunpack.c.l.b16 %v3335
        %v3400 = vunpack.c.l.b16 %v3336
        %v3401 = vunpack.c.l.b16 %v3337
        %v3402 = vunpack.c.l.b16 %v3338
        %v3403 = vunpack.c.l.b16 %v3339
        %v3404 = vunpack.c.l.b16 %v3340
        %v3405 = vunpack.c.l.b16 %v3341
        %v3406 = vpack.c.b16 %v3399, %v3398
        %v3407 = vpack.c.b16 %v3401, %v3400
        %v3408 = vpack.c.b16 %v3403, %v3402
        %v3409 = vpack.c.b16 %v3405, %v3404
        %vm3410 = vcmask 392192
        %v3412 = vsel %vm3410, %v3406, 0
        %v3415 = vsel %vm3410, %v3407, 0
        %v3418 = vsel %vm3410, %v3408, 0
        %v3421 = vsel %vm3410, %v3409, 0
        %3423 = vmatprep.subr.bf16.mxu0 0
        %3424 = vmatpush1.bf16.msra.mxu0 0
        %3425 = vmatprep.subr.bf16.mxu0 0
        %3426 = vmatpush1.bf16.msra.mxu0 0
        %3427 = vmatprep.subr.bf16.mxu0 0
        %3428 = vmatpush1.bf16.msra.mxu0 0
        %3429 = vmatprep.subr.bf16.mxu0 0
        %3430 = vmatpush1.bf16.msra.mxu0 0
        %3431 = vmatprep.subr.bf16.mxu0 0
        %3432 = vmatpush1.bf16.msra.mxu0 0
        %3433 = vmatprep.subr.bf16.mxu0 %v3331
        %3434 = vmatpush1.bf16.msra.mxu0 %v3330
        %3435 = vmatprep.subr.bf16.mxu0 %v3327
        %3436 = vmatpush1.bf16.msra.mxu0 %v3326
        %3437 = vmatprep.subr.bf16.mxu0 %v3323
        %3438 = vmatpush1.bf16.msra.mxu0 %v3322
        %3439 = vmatprep.subr.bf16.mxu0 0
        %3440 = vmatpush2.bf16.msra.mxu0 0
        %3441 = vmatprep.subr.bf16.mxu0 0
        %3442 = vmatpush2.bf16.msra.mxu0 0
        %3443 = vmatprep.subr.bf16.mxu0 0
        %3444 = vmatpush2.bf16.msra.mxu0 0
        %3445 = vmatprep.subr.bf16.mxu0 0
        %3446 = vmatpush2.bf16.msra.mxu0 0
        %3447 = vmatprep.subr.bf16.mxu0 0
        %3448 = vmatpush2.bf16.msra.mxu0 0
        %3449 = vmatprep.subr.bf16.mxu0 0
        %3450 = vmatpush2.bf16.msra.mxu0 0
        %3451 = vmatprep.subr.bf16.mxu0 0
        %3452 = vmatpush2.bf16.msra.mxu0 0
        %3453 = vmatprep.subr.bf16.mxu0 0
        %3454 = vmatpush2.bf16.msra.mxu0 0
        %3455 = vmatprep.mubr.bf16.mxu0 0
        %3456 = vmatmul.mubr.bf16.gmra.mxu0 %v3412
        %v3457 = vpop.f32.mrf.mxu0
        %v3458 = vadd.f32 %v3353, %v3457
        %v3459 = vpop.f32.mrf.mxu0
        %v3460 = vadd.f32 %v3353, %v3459
        %v3461 = vpop.f32.mrf.mxu0
        %v3462 = vadd.f32 %v3358, %v3461
        %v3463 = vpop.f32.mrf.mxu0
        %v3464 = vadd.f32 %v3358, %v3463
        %3465 = vmatprep.mubr.bf16.mxu0 0
        %3466 = vmatmul.mubr.bf16.gmra.mxu0 %v3415
        %v3467 = vpop.f32.mrf.mxu0
        %v3468 = vadd.f32 %v3363, %v3467
        %v3469 = vpop.f32.mrf.mxu0
        %v3470 = vadd.f32 %v3363, %v3469
        %v3471 = vpop.f32.mrf.mxu0
        %v3472 = vadd.f32 %v3368, %v3471
        %v3473 = vpop.f32.mrf.mxu0
        %v3474 = vadd.f32 %v3368, %v3473
        %3475 = vmatprep.mubr.bf16.mxu0 0
        %3476 = vmatmul.mubr.bf16.gmra.mxu0 %v3418
        %v3477 = vpop.f32.mrf.mxu0
        %v3478 = vadd.f32 %v3373, %v3477
        %v3479 = vpop.f32.mrf.mxu0
        %v3480 = vadd.f32 %v3373, %v3479
        %v3481 = vpop.f32.mrf.mxu0
        %v3482 = vadd.f32 %v3378, %v3481
        %v3483 = vpop.f32.mrf.mxu0
        %v3484 = vadd.f32 %v3378, %v3483
        %3485 = vmatprep.mubr.bf16.mxu0 0
        %3486 = vmatmul.mubr.bf16.gmra.mxu0 %v3421
        %v3487 = vpop.f32.mrf.mxu0
        %v3488 = vadd.f32 %v3383, %v3487
        %v3489 = vpop.f32.mrf.mxu0
        %v3490 = vadd.f32 %v3383, %v3489
        %v3491 = vpop.f32.mrf.mxu0
        %v3492 = vadd.f32 %v3388, %v3491
        %v3493 = vpop.f32.mrf.mxu0
        %v3494 = vadd.f32 %v3388, %v3493
        %3495 = vdwg.mxu0
        %3496 = vmatprep.subr.bf16.mxu0 0
        %3497 = vmatpush1.bf16.msra.mxu0 0
        %3498 = vmatprep.subr.bf16.mxu0 0
        %3499 = vmatpush1.bf16.msra.mxu0 0
        %3500 = vmatprep.subr.bf16.mxu0 0
        %3501 = vmatpush1.bf16.msra.mxu0 0
        %3502 = vmatprep.subr.bf16.mxu0 0
        %3503 = vmatpush1.bf16.msra.mxu0 0
        %3504 = vmatprep.subr.bf16.mxu0 0
        %3505 = vmatpush1.bf16.msra.mxu0 0
        %3506 = vmatprep.subr.bf16.mxu0 %v3333
        %3507 = vmatpush1.bf16.msra.mxu0 %v3332
        %3508 = vmatprep.subr.bf16.mxu0 %v3329
        %3509 = vmatpush1.bf16.msra.mxu0 %v3328
        %3510 = vmatprep.subr.bf16.mxu0 %v3325
        %3511 = vmatpush1.bf16.msra.mxu0 %v3324
        %3512 = vmatprep.subr.bf16.mxu0 0
        %3513 = vmatpush2.bf16.msra.mxu0 0
        %3514 = vmatprep.subr.bf16.mxu0 0
        %3515 = vmatpush2.bf16.msra.mxu0 0
        %3516 = vmatprep.subr.bf16.mxu0 0
        %3517 = vmatpush2.bf16.msra.mxu0 0
        %3518 = vmatprep.subr.bf16.mxu0 0
        %3519 = vmatpush2.bf16.msra.mxu0 0
        %3520 = vmatprep.subr.bf16.mxu0 0
        %3521 = vmatpush2.bf16.msra.mxu0 0
        %3522 = vmatprep.subr.bf16.mxu0 0
        %3523 = vmatpush2.bf16.msra.mxu0 0
        %3524 = vmatprep.subr.bf16.mxu0 0
        %3525 = vmatpush2.bf16.msra.mxu0 0
        %3526 = vmatprep.subr.bf16.mxu0 0
        %3527 = vmatpush2.bf16.msra.mxu0 0
        %3528 = vmatprep.mubr.bf16.mxu0 0
        %3529 = vmatmul.mubr.bf16.gmra.mxu0 %v3412
        %v3530 = vpop.f32.mrf.mxu0
        %v3531 = vadd.f32 %v3353, %v3530
        %v3532 = vpop.f32.mrf.mxu0
        %v3533 = vadd.f32 %v3353, %v3532
        %v3534 = vpop.f32.mrf.mxu0
        %v3535 = vadd.f32 %v3358, %v3534
        %v3536 = vpop.f32.mrf.mxu0
        %v3537 = vadd.f32 %v3358, %v3536
        %3538 = vmatprep.mubr.bf16.mxu0 0
        %3539 = vmatmul.mubr.bf16.gmra.mxu0 %v3415
        %v3540 = vpop.f32.mrf.mxu0
        %v3541 = vadd.f32 %v3363, %v3540
        %v3542 = vpop.f32.mrf.mxu0
        %v3543 = vadd.f32 %v3363, %v3542
        %v3544 = vpop.f32.mrf.mxu0
        %v3545 = vadd.f32 %v3368, %v3544
        %v3546 = vpop.f32.mrf.mxu0
        %v3547 = vadd.f32 %v3368, %v3546
        %3548 = vmatprep.mubr.bf16.mxu0 0
        %3549 = vmatmul.mubr.bf16.gmra.mxu0 %v3418
        %v3550 = vpop.f32.mrf.mxu0
        %v3551 = vadd.f32 %v3373, %v3550
        %v3552 = vpop.f32.mrf.mxu0
        %v3553 = vadd.f32 %v3373, %v3552
        %v3554 = vpop.f32.mrf.mxu0
        %v3555 = vadd.f32 %v3378, %v3554
        %v3556 = vpop.f32.mrf.mxu0
        %v3557 = vadd.f32 %v3378, %v3556
        %3558 = vmatprep.mubr.bf16.mxu0 0
        %3559 = vmatmul.mubr.bf16.gmra.mxu0 %v3421
        %v3560 = vpop.f32.mrf.mxu0
        %v3561 = vadd.f32 %v3383, %v3560
        %v3562 = vpop.f32.mrf.mxu0
        %v3563 = vadd.f32 %v3383, %v3562
        %v3564 = vpop.f32.mrf.mxu0
        %v3565 = vadd.f32 %v3388, %v3564
        %v3566 = vpop.f32.mrf.mxu0
        %v3567 = vadd.f32 %v3388, %v3566
        %3568 = vdwg.mxu0
        %vm3569 = vcmp.ge.f32.partialorder %v3458, 0.0
        %vm3570 = vcmp.ge.f32.partialorder %v3460, 0.0
        %vm3571 = vcmp.ge.f32.partialorder %v3531, 0.0
        %vm3572 = vcmp.ge.f32.partialorder %v3533, 0.0
        %vm3573 = vcmp.ge.f32.partialorder %v3462, 0.0
        %vm3574 = vcmp.ge.f32.partialorder %v3464, 0.0
        %vm3575 = vcmp.ge.f32.partialorder %v3535, 0.0
        %vm3576 = vcmp.ge.f32.partialorder %v3537, 0.0
        %vm3577 = vcmp.ge.f32.partialorder %v3468, 0.0
        %vm3578 = vcmp.ge.f32.partialorder %v3470, 0.0
        %vm3579 = vcmp.ge.f32.partialorder %v3541, 0.0
        %vm3580 = vcmp.ge.f32.partialorder %v3543, 0.0
        %vm3581 = vcmp.ge.f32.partialorder %v3472, 0.0
        %vm3582 = vcmp.ge.f32.partialorder %v3474, 0.0
        %vm3583 = vcmp.ge.f32.partialorder %v3545, 0.0
        %vm3584 = vcmp.ge.f32.partialorder %v3547, 0.0
        %vm3585 = vcmp.ge.f32.partialorder %v3478, 0.0
        %vm3586 = vcmp.ge.f32.partialorder %v3480, 0.0
        %vm3587 = vcmp.ge.f32.partialorder %v3551, 0.0
        %vm3588 = vcmp.ge.f32.partialorder %v3553, 0.0
        %vm3589 = vcmp.ge.f32.partialorder %v3482, 0.0
        %vm3590 = vcmp.ge.f32.partialorder %v3484, 0.0
        %vm3591 = vcmp.ge.f32.partialorder %v3555, 0.0
        %vm3592 = vcmp.ge.f32.partialorder %v3557, 0.0
        %vm3593 = vcmp.ge.f32.partialorder %v3488, 0.0
        %vm3594 = vcmp.ge.f32.partialorder %v3490, 0.0
        %vm3595 = vcmp.ge.f32.partialorder %v3561, 0.0
        %vm3596 = vcmp.ge.f32.partialorder %v3563, 0.0
        %vm3597 = vcmp.ge.f32.partialorder %v3492, 0.0
        %vm3598 = vcmp.ge.f32.partialorder %v3494, 0.0
        %vm3599 = vcmp.ge.f32.partialorder %v3565, 0.0
        %vm3600 = vcmp.ge.f32.partialorder %v3567, 0.0
        %v3601 = vmul.f32 %v3458, 0.01
        %v3602 = vmul.f32 %v3460, 0.01
        %v3603 = vmul.f32 %v3531, 0.01
        %v3604 = vmul.f32 %v3533, 0.01
        %v3605 = vmul.f32 %v3462, 0.01
        %v3606 = vmul.f32 %v3464, 0.01
        %v3607 = vmul.f32 %v3535, 0.01
        %v3608 = vmul.f32 %v3537, 0.01
        %v3609 = vmul.f32 %v3468, 0.01
        %v3610 = vmul.f32 %v3470, 0.01
        %v3611 = vmul.f32 %v3541, 0.01
        %v3612 = vmul.f32 %v3543, 0.01
        %v3613 = vmul.f32 %v3472, 0.01
        %v3614 = vmul.f32 %v3474, 0.01
        %v3615 = vmul.f32 %v3545, 0.01
        %v3616 = vmul.f32 %v3547, 0.01
        %v3617 = vmul.f32 %v3478, 0.01
        %v3618 = vmul.f32 %v3480, 0.01
        %v3619 = vmul.f32 %v3551, 0.01
        %v3620 = vmul.f32 %v3553, 0.01
        %v3621 = vmul.f32 %v3482, 0.01
        %v3622 = vmul.f32 %v3484, 0.01
        %v3623 = vmul.f32 %v3555, 0.01
        %v3624 = vmul.f32 %v3557, 0.01
        %v3625 = vmul.f32 %v3488, 0.01
        %v3626 = vmul.f32 %v3490, 0.01
        %v3627 = vmul.f32 %v3561, 0.01
        %v3628 = vmul.f32 %v3563, 0.01
        %v3629 = vmul.f32 %v3492, 0.01
        %v3630 = vmul.f32 %v3494, 0.01
        %v3631 = vmul.f32 %v3565, 0.01
        %v3632 = vmul.f32 %v3567, 0.01
        %v3633 = vsel %vm3569, %v3458, %v3601
        %v3634 = vsel %vm3570, %v3460, %v3602
        %v3635 = vsel %vm3571, %v3531, %v3603
        %v3636 = vsel %vm3572, %v3533, %v3604
        %v3637 = vsel %vm3573, %v3462, %v3605
        %v3638 = vsel %vm3574, %v3464, %v3606
        %v3639 = vsel %vm3575, %v3535, %v3607
        %v3640 = vsel %vm3576, %v3537, %v3608
        %v3641 = vsel %vm3577, %v3468, %v3609
        %v3642 = vsel %vm3578, %v3470, %v3610
        %v3643 = vsel %vm3579, %v3541, %v3611
        %v3644 = vsel %vm3580, %v3543, %v3612
        %v3645 = vsel %vm3581, %v3472, %v3613
        %v3646 = vsel %vm3582, %v3474, %v3614
        %v3647 = vsel %vm3583, %v3545, %v3615
        %v3648 = vsel %vm3584, %v3547, %v3616
        %v3649 = vsel %vm3585, %v3478, %v3617
        %v3650 = vsel %vm3586, %v3480, %v3618
        %v3651 = vsel %vm3587, %v3551, %v3619
        %v3652 = vsel %vm3588, %v3553, %v3620
        %v3653 = vsel %vm3589, %v3482, %v3621
        %v3654 = vsel %vm3590, %v3484, %v3622
        %v3655 = vsel %vm3591, %v3555, %v3623
        %v3656 = vsel %vm3592, %v3557, %v3624
        %v3657 = vsel %vm3593, %v3488, %v3625
        %v3658 = vsel %vm3594, %v3490, %v3626
        %v3659 = vsel %vm3595, %v3561, %v3627
        %v3660 = vsel %vm3596, %v3563, %v3628
        %v3661 = vsel %vm3597, %v3492, %v3629
        %v3662 = vsel %vm3598, %v3494, %v3630
        %v3663 = vsel %vm3599, %v3565, %v3631
        %v3664 = vsel %vm3600, %v3567, %v3632
        %v3665 = vld [vmem:[%s5] sm:$0xf]
        %v3666 = vld [vmem:[%s5 + $0x4] sm:$0xf]
        %v3667 = vld [vmem:[%s5 + $0x8] sm:$0xf]
        %v3668 = vld [vmem:[%s5 + $0xc] sm:$0xf]
        %v3669 = vld [vmem:[%s5 + $0x10] sm:$0xf]
        %v3670 = vld [vmem:[%s5 + $0x14] sm:$0xf]
        %v3671 = vld [vmem:[%s5 + $0x18] sm:$0xf]
        %v3672 = vld [vmem:[%s5 + $0x1c] sm:$0xf]
        %v3673 = vld [vmem:[%s6] sm:$0xff]
        %v3674 = vld [vmem:[%s6 + $0x8] sm:$0xff]
        %v3675 = vld [vmem:[%s6 + $0x10] sm:$0xff]
        %v3676 = vld [vmem:[%s6 + $0x18] sm:$0xff]
        %v3677 = vld [vmem:[%s6 + $0x20] sm:$0xff]
        %v3678 = vld [vmem:[%s6 + $0x28] sm:$0xff]
        %v3679 = vld [vmem:[%s6 + $0x30] sm:$0xff]
        %v3680 = vld [vmem:[%s6 + $0x38] sm:$0xff]
        %v3681 = vpack.c.bf16 %v3637, %v3633
        %v3682 = vpack.c.bf16 %v3638, %v3634
        %v3683 = vpack.c.bf16 %v3639, %v3635
        %v3684 = vpack.c.bf16 %v3640, %v3636
        %v3685 = vpack.c.bf16 %v3645, %v3641
        %v3686 = vpack.c.bf16 %v3646, %v3642
        %v3687 = vpack.c.bf16 %v3647, %v3643
        %v3688 = vpack.c.bf16 %v3648, %v3644
        %v3689 = vpack.c.bf16 %v3653, %v3649
        %v3690 = vpack.c.bf16 %v3654, %v3650
        %v3691 = vpack.c.bf16 %v3655, %v3651
        %v3692 = vpack.c.bf16 %v3656, %v3652
        %v3693 = vpack.c.bf16 %v3661, %v3657
        %v3694 = vpack.c.bf16 %v3662, %v3658
        %v3695 = vpack.c.bf16 %v3663, %v3659
        %v3696 = vpack.c.bf16 %v3664, %v3660
        %3698 = vset.pattern.permute.xlu0 0
        %3699 = vperm.xlu0 %3698, %v3673
        %v3700 = vpop.permute.xlu0 %3699
        %3703 = vset.pattern.permute.xlu0 0
        %3704 = vperm.xlu0 %3703, %v3674
        %v3705 = vpop.permute.xlu0 %3704
        %3708 = vset.pattern.permute.xlu0 0
        %3709 = vperm.xlu0 %3708, %v3675
        %v3710 = vpop.permute.xlu0 %3709
        %3713 = vset.pattern.permute.xlu0 0
        %3714 = vperm.xlu0 %3713, %v3676
        %v3715 = vpop.permute.xlu0 %3714
        %3718 = vset.pattern.permute.xlu0 0
        %3719 = vperm.xlu0 %3718, %v3677
        %v3720 = vpop.permute.xlu0 %3719
        %3723 = vset.pattern.permute.xlu0 0
        %3724 = vperm.xlu0 %3723, %v3678
        %v3725 = vpop.permute.xlu0 %3724
        %3728 = vset.pattern.permute.xlu0 0
        %3729 = vperm.xlu0 %3728, %v3679
        %v3730 = vpop.permute.xlu0 %3729
        %3733 = vset.pattern.permute.xlu0 0
        %3734 = vperm.xlu0 %3733, %v3680
        %v3735 = vpop.permute.xlu0 %3734
        %v3745 = vunpack.c.l.b16 %v3665
        %v3746 = vunpack.c.l.b16 %v3666
        %v3747 = vunpack.c.l.b16 %v3667
        %v3748 = vunpack.c.l.b16 %v3668
        %v3749 = vunpack.c.l.b16 %v3669
        %v3750 = vunpack.c.l.b16 %v3670
        %v3751 = vunpack.c.l.b16 %v3671
        %v3752 = vunpack.c.l.b16 %v3672
        %v3753 = vpack.c.b16 %v3746, %v3745
        %v3754 = vpack.c.b16 %v3748, %v3747
        %v3755 = vpack.c.b16 %v3750, %v3749
        %v3756 = vpack.c.b16 %v3752, %v3751
        %vm3757 = vcmask 523264
        %v3759 = vsel %vm3757, %v3753, 0
        %v3762 = vsel %vm3757, %v3754, 0
        %v3765 = vsel %vm3757, %v3755, 0
        %v3768 = vsel %vm3757, %v3756, 0
        %3770 = vmatprep.subr.bf16.mxu0 0
        %3771 = vmatpush1.bf16.msra.mxu0 0
        %3772 = vmatprep.subr.bf16.mxu0 0
        %3773 = vmatpush1.bf16.msra.mxu0 0
        %3774 = vmatprep.subr.bf16.mxu0 0
        %3775 = vmatpush1.bf16.msra.mxu0 0
        %3776 = vmatprep.subr.bf16.mxu0 0
        %3777 = vmatpush1.bf16.msra.mxu0 0
        %3778 = vmatprep.subr.bf16.mxu0 %v3694
        %3779 = vmatpush1.bf16.msra.mxu0 %v3693
        %3780 = vmatprep.subr.bf16.mxu0 %v3690
        %3781 = vmatpush1.bf16.msra.mxu0 %v3689
        %3782 = vmatprep.subr.bf16.mxu0 %v3686
        %3783 = vmatpush1.bf16.msra.mxu0 %v3685
        %3784 = vmatprep.subr.bf16.mxu0 %v3682
        %3785 = vmatpush1.bf16.msra.mxu0 %v3681
        %3786 = vmatprep.subr.bf16.mxu0 0
        %3787 = vmatpush2.bf16.msra.mxu0 0
        %3788 = vmatprep.subr.bf16.mxu0 0
        %3789 = vmatpush2.bf16.msra.mxu0 0
        %3790 = vmatprep.subr.bf16.mxu0 0
        %3791 = vmatpush2.bf16.msra.mxu0 0
        %3792 = vmatprep.subr.bf16.mxu0 0
        %3793 = vmatpush2.bf16.msra.mxu0 0
        %3794 = vmatprep.subr.bf16.mxu0 0
        %3795 = vmatpush2.bf16.msra.mxu0 0
        %3796 = vmatprep.subr.bf16.mxu0 0
        %3797 = vmatpush2.bf16.msra.mxu0 0
        %3798 = vmatprep.subr.bf16.mxu0 0
        %3799 = vmatpush2.bf16.msra.mxu0 0
        %3800 = vmatprep.subr.bf16.mxu0 0
        %3801 = vmatpush2.bf16.msra.mxu0 0
        %3802 = vmatprep.mubr.bf16.mxu0 0
        %3803 = vmatmul.mubr.bf16.gmra.mxu0 %v3759
        %v3804 = vpop.f32.mrf.mxu0
        %v3805 = vadd.f32 %v3700, %v3804
        %v3806 = vpop.f32.mrf.mxu0
        %v3807 = vadd.f32 %v3700, %v3806
        %v3808 = vpop.f32.mrf.mxu0
        %v3809 = vadd.f32 %v3705, %v3808
        %v3810 = vpop.f32.mrf.mxu0
        %v3811 = vadd.f32 %v3705, %v3810
        %3812 = vmatprep.mubr.bf16.mxu0 0
        %3813 = vmatmul.mubr.bf16.gmra.mxu0 %v3762
        %v3814 = vpop.f32.mrf.mxu0
        %v3815 = vadd.f32 %v3710, %v3814
        %v3816 = vpop.f32.mrf.mxu0
        %v3817 = vadd.f32 %v3710, %v3816
        %v3818 = vpop.f32.mrf.mxu0
        %v3819 = vadd.f32 %v3715, %v3818
        %v3820 = vpop.f32.mrf.mxu0
        %v3821 = vadd.f32 %v3715, %v3820
        %3822 = vmatprep.mubr.bf16.mxu0 0
        %3823 = vmatmul.mubr.bf16.gmra.mxu0 %v3765
        %v3824 = vpop.f32.mrf.mxu0
        %v3825 = vadd.f32 %v3720, %v3824
        %v3826 = vpop.f32.mrf.mxu0
        %v3827 = vadd.f32 %v3720, %v3826
        %v3828 = vpop.f32.mrf.mxu0
        %v3829 = vadd.f32 %v3725, %v3828
        %v3830 = vpop.f32.mrf.mxu0
        %v3831 = vadd.f32 %v3725, %v3830
        %3832 = vmatprep.mubr.bf16.mxu0 0
        %3833 = vmatmul.mubr.bf16.gmra.mxu0 %v3768
        %v3834 = vpop.f32.mrf.mxu0
        %v3835 = vadd.f32 %v3730, %v3834
        %v3836 = vpop.f32.mrf.mxu0
        %v3837 = vadd.f32 %v3730, %v3836
        %v3838 = vpop.f32.mrf.mxu0
        %v3839 = vadd.f32 %v3735, %v3838
        %v3840 = vpop.f32.mrf.mxu0
        %v3841 = vadd.f32 %v3735, %v3840
        %3842 = vdwg.mxu0
        %3843 = vmatprep.subr.bf16.mxu0 0
        %3844 = vmatpush1.bf16.msra.mxu0 0
        %3845 = vmatprep.subr.bf16.mxu0 0
        %3846 = vmatpush1.bf16.msra.mxu0 0
        %3847 = vmatprep.subr.bf16.mxu0 0
        %3848 = vmatpush1.bf16.msra.mxu0 0
        %3849 = vmatprep.subr.bf16.mxu0 0
        %3850 = vmatpush1.bf16.msra.mxu0 0
        %3851 = vmatprep.subr.bf16.mxu0 %v3696
        %3852 = vmatpush1.bf16.msra.mxu0 %v3695
        %3853 = vmatprep.subr.bf16.mxu0 %v3692
        %3854 = vmatpush1.bf16.msra.mxu0 %v3691
        %3855 = vmatprep.subr.bf16.mxu0 %v3688
        %3856 = vmatpush1.bf16.msra.mxu0 %v3687
        %3857 = vmatprep.subr.bf16.mxu0 %v3684
        %3858 = vmatpush1.bf16.msra.mxu0 %v3683
        %3859 = vmatprep.subr.bf16.mxu0 0
        %3860 = vmatpush2.bf16.msra.mxu0 0
        %3861 = vmatprep.subr.bf16.mxu0 0
        %3862 = vmatpush2.bf16.msra.mxu0 0
        %3863 = vmatprep.subr.bf16.mxu0 0
        %3864 = vmatpush2.bf16.msra.mxu0 0
        %3865 = vmatprep.subr.bf16.mxu0 0
        %3866 = vmatpush2.bf16.msra.mxu0 0
        %3867 = vmatprep.subr.bf16.mxu0 0
        %3868 = vmatpush2.bf16.msra.mxu0 0
        %3869 = vmatprep.subr.bf16.mxu0 0
        %3870 = vmatpush2.bf16.msra.mxu0 0
        %3871 = vmatprep.subr.bf16.mxu0 0
        %3872 = vmatpush2.bf16.msra.mxu0 0
        %3873 = vmatprep.subr.bf16.mxu0 0
        %3874 = vmatpush2.bf16.msra.mxu0 0
        %3875 = vmatprep.mubr.bf16.mxu0 0
        %3876 = vmatmul.mubr.bf16.gmra.mxu0 %v3759
        %v3877 = vpop.f32.mrf.mxu0
        %v3878 = vadd.f32 %v3700, %v3877
        %v3879 = vpop.f32.mrf.mxu0
        %v3880 = vadd.f32 %v3700, %v3879
        %v3881 = vpop.f32.mrf.mxu0
        %v3882 = vadd.f32 %v3705, %v3881
        %v3883 = vpop.f32.mrf.mxu0
        %v3884 = vadd.f32 %v3705, %v3883
        %3885 = vmatprep.mubr.bf16.mxu0 0
        %3886 = vmatmul.mubr.bf16.gmra.mxu0 %v3762
        %v3887 = vpop.f32.mrf.mxu0
        %v3888 = vadd.f32 %v3710, %v3887
        %v3889 = vpop.f32.mrf.mxu0
        %v3890 = vadd.f32 %v3710, %v3889
        %v3891 = vpop.f32.mrf.mxu0
        %v3892 = vadd.f32 %v3715, %v3891
        %v3893 = vpop.f32.mrf.mxu0
        %v3894 = vadd.f32 %v3715, %v3893
        %3895 = vmatprep.mubr.bf16.mxu0 0
        %3896 = vmatmul.mubr.bf16.gmra.mxu0 %v3765
        %v3897 = vpop.f32.mrf.mxu0
        %v3898 = vadd.f32 %v3720, %v3897
        %v3899 = vpop.f32.mrf.mxu0
        %v3900 = vadd.f32 %v3720, %v3899
        %v3901 = vpop.f32.mrf.mxu0
        %v3902 = vadd.f32 %v3725, %v3901
        %v3903 = vpop.f32.mrf.mxu0
        %v3904 = vadd.f32 %v3725, %v3903
        %3905 = vmatprep.mubr.bf16.mxu0 0
        %3906 = vmatmul.mubr.bf16.gmra.mxu0 %v3768
        %v3907 = vpop.f32.mrf.mxu0
        %v3908 = vadd.f32 %v3730, %v3907
        %v3909 = vpop.f32.mrf.mxu0
        %v3910 = vadd.f32 %v3730, %v3909
        %v3911 = vpop.f32.mrf.mxu0
        %v3912 = vadd.f32 %v3735, %v3911
        %v3913 = vpop.f32.mrf.mxu0
        %v3914 = vadd.f32 %v3735, %v3913
        %3915 = vdwg.mxu0
        %vm3916 = vcmp.ge.f32.partialorder %v3805, 0.0
        %vm3917 = vcmp.ge.f32.partialorder %v3807, 0.0
        %vm3918 = vcmp.ge.f32.partialorder %v3878, 0.0
        %vm3919 = vcmp.ge.f32.partialorder %v3880, 0.0
        %vm3920 = vcmp.ge.f32.partialorder %v3809, 0.0
        %vm3921 = vcmp.ge.f32.partialorder %v3811, 0.0
        %vm3922 = vcmp.ge.f32.partialorder %v3882, 0.0
        %vm3923 = vcmp.ge.f32.partialorder %v3884, 0.0
        %vm3924 = vcmp.ge.f32.partialorder %v3815, 0.0
        %vm3925 = vcmp.ge.f32.partialorder %v3817, 0.0
        %vm3926 = vcmp.ge.f32.partialorder %v3888, 0.0
        %vm3927 = vcmp.ge.f32.partialorder %v3890, 0.0
        %vm3928 = vcmp.ge.f32.partialorder %v3819, 0.0
        %vm3929 = vcmp.ge.f32.partialorder %v3821, 0.0
        %vm3930 = vcmp.ge.f32.partialorder %v3892, 0.0
        %vm3931 = vcmp.ge.f32.partialorder %v3894, 0.0
        %vm3932 = vcmp.ge.f32.partialorder %v3825, 0.0
        %vm3933 = vcmp.ge.f32.partialorder %v3827, 0.0
        %vm3934 = vcmp.ge.f32.partialorder %v3898, 0.0
        %vm3935 = vcmp.ge.f32.partialorder %v3900, 0.0
        %vm3936 = vcmp.ge.f32.partialorder %v3829, 0.0
        %vm3937 = vcmp.ge.f32.partialorder %v3831, 0.0
        %vm3938 = vcmp.ge.f32.partialorder %v3902, 0.0
        %vm3939 = vcmp.ge.f32.partialorder %v3904, 0.0
        %vm3940 = vcmp.ge.f32.partialorder %v3835, 0.0
        %vm3941 = vcmp.ge.f32.partialorder %v3837, 0.0
        %vm3942 = vcmp.ge.f32.partialorder %v3908, 0.0
        %vm3943 = vcmp.ge.f32.partialorder %v3910, 0.0
        %vm3944 = vcmp.ge.f32.partialorder %v3839, 0.0
        %vm3945 = vcmp.ge.f32.partialorder %v3841, 0.0
        %vm3946 = vcmp.ge.f32.partialorder %v3912, 0.0
        %vm3947 = vcmp.ge.f32.partialorder %v3914, 0.0
        %v3948 = vmul.f32 %v3805, 0.01
        %v3949 = vmul.f32 %v3807, 0.01
        %v3950 = vmul.f32 %v3878, 0.01
        %v3951 = vmul.f32 %v3880, 0.01
        %v3952 = vmul.f32 %v3809, 0.01
        %v3953 = vmul.f32 %v3811, 0.01
        %v3954 = vmul.f32 %v3882, 0.01
        %v3955 = vmul.f32 %v3884, 0.01
        %v3956 = vmul.f32 %v3815, 0.01
        %v3957 = vmul.f32 %v3817, 0.01
        %v3958 = vmul.f32 %v3888, 0.01
        %v3959 = vmul.f32 %v3890, 0.01
        %v3960 = vmul.f32 %v3819, 0.01
        %v3961 = vmul.f32 %v3821, 0.01
        %v3962 = vmul.f32 %v3892, 0.01
        %v3963 = vmul.f32 %v3894, 0.01
        %v3964 = vmul.f32 %v3825, 0.01
        %v3965 = vmul.f32 %v3827, 0.01
        %v3966 = vmul.f32 %v3898, 0.01
        %v3967 = vmul.f32 %v3900, 0.01
        %v3968 = vmul.f32 %v3829, 0.01
        %v3969 = vmul.f32 %v3831, 0.01
        %v3970 = vmul.f32 %v3902, 0.01
        %v3971 = vmul.f32 %v3904, 0.01
        %v3972 = vmul.f32 %v3835, 0.01
        %v3973 = vmul.f32 %v3837, 0.01
        %v3974 = vmul.f32 %v3908, 0.01
        %v3975 = vmul.f32 %v3910, 0.01
        %v3976 = vmul.f32 %v3839, 0.01
        %v3977 = vmul.f32 %v3841, 0.01
        %v3978 = vmul.f32 %v3912, 0.01
        %v3979 = vmul.f32 %v3914, 0.01
        %v3980 = vsel %vm3916, %v3805, %v3948
        %v3981 = vsel %vm3917, %v3807, %v3949
        %v3982 = vsel %vm3918, %v3878, %v3950
        %v3983 = vsel %vm3919, %v3880, %v3951
        %v3984 = vsel %vm3920, %v3809, %v3952
        %v3985 = vsel %vm3921, %v3811, %v3953
        %v3986 = vsel %vm3922, %v3882, %v3954
        %v3987 = vsel %vm3923, %v3884, %v3955
        %v3988 = vsel %vm3924, %v3815, %v3956
        %v3989 = vsel %vm3925, %v3817, %v3957
        %v3990 = vsel %vm3926, %v3888, %v3958
        %v3991 = vsel %vm3927, %v3890, %v3959
        %v3992 = vsel %vm3928, %v3819, %v3960
        %v3993 = vsel %vm3929, %v3821, %v3961
        %v3994 = vsel %vm3930, %v3892, %v3962
        %v3995 = vsel %vm3931, %v3894, %v3963
        %v3996 = vsel %vm3932, %v3825, %v3964
        %v3997 = vsel %vm3933, %v3827, %v3965
        %v3998 = vsel %vm3934, %v3898, %v3966
        %v3999 = vsel %vm3935, %v3900, %v3967
        %v4000 = vsel %vm3936, %v3829, %v3968
        %v4001 = vsel %vm3937, %v3831, %v3969
        %v4002 = vsel %vm3938, %v3902, %v3970
        %v4003 = vsel %vm3939, %v3904, %v3971
        %v4004 = vsel %vm3940, %v3835, %v3972
        %v4005 = vsel %vm3941, %v3837, %v3973
        %v4006 = vsel %vm3942, %v3908, %v3974
        %v4007 = vsel %vm3943, %v3910, %v3975
        %v4008 = vsel %vm3944, %v3839, %v3976
        %v4009 = vsel %vm3945, %v3841, %v3977
        %v4010 = vsel %vm3946, %v3912, %v3978
        %v4011 = vsel %vm3947, %v3914, %v3979
        %v4012 = vld [vmem:[%s7] sm:$0xf]
        %v4013 = vld [vmem:[%s7 + $0x4] sm:$0xf]
        %v4014 = vld [vmem:[%s7 + $0x8] sm:$0xf]
        %v4015 = vld [vmem:[%s7 + $0xc] sm:$0xf]
        %v4016 = vld [vmem:[%s7 + $0x10] sm:$0xf]
        %v4017 = vld [vmem:[%s7 + $0x14] sm:$0xf]
        %v4018 = vld [vmem:[%s7 + $0x18] sm:$0xf]
        %v4019 = vld [vmem:[%s7 + $0x1c] sm:$0xf]
        %v4020 = vld [vmem:[%s8] sm:$0xf]
        %v4021 = vld [vmem:[%s8 + $0x4] sm:$0xf]
        %v4022 = vld [vmem:[%s8 + $0x8] sm:$0xf]
        %v4023 = vld [vmem:[%s8 + $0xc] sm:$0xf]
        %v4024 = vld [vmem:[%s8 + $0x10] sm:$0xf]
        %v4025 = vld [vmem:[%s8 + $0x14] sm:$0xf]
        %v4026 = vld [vmem:[%s8 + $0x18] sm:$0xf]
        %v4027 = vld [vmem:[%s8 + $0x1c] sm:$0xf]
        %v4028 = vld [vmem:[%s9] sm:$0xff]
        %v4029 = vld [vmem:[%s9 + $0x8] sm:$0xff]
        %v4030 = vld [vmem:[%s9 + $0x10] sm:$0xff]
        %v4031 = vld [vmem:[%s9 + $0x18] sm:$0xff]
        %v4032 = vld [vmem:[%s9 + $0x20] sm:$0xff]
        %v4033 = vld [vmem:[%s9 + $0x28] sm:$0xff]
        %v4034 = vld [vmem:[%s9 + $0x30] sm:$0xff]
        %v4035 = vld [vmem:[%s9 + $0x38] sm:$0xff]
        %v4036 = vpack.c.bf16 %v3984, %v3980
        %v4037 = vpack.c.bf16 %v3985, %v3981
        %v4038 = vpack.c.bf16 %v3986, %v3982
        %v4039 = vpack.c.bf16 %v3987, %v3983
        %v4040 = vpack.c.bf16 %v3992, %v3988
        %v4041 = vpack.c.bf16 %v3993, %v3989
        %v4042 = vpack.c.bf16 %v3994, %v3990
        %v4043 = vpack.c.bf16 %v3995, %v3991
        %v4044 = vpack.c.bf16 %v4000, %v3996
        %v4045 = vpack.c.bf16 %v4001, %v3997
        %v4046 = vpack.c.bf16 %v4002, %v3998
        %v4047 = vpack.c.bf16 %v4003, %v3999
        %v4048 = vpack.c.bf16 %v4008, %v4004
        %v4049 = vpack.c.bf16 %v4009, %v4005
        %v4050 = vpack.c.bf16 %v4010, %v4006
        %v4051 = vpack.c.bf16 %v4011, %v4007
        %v4060 = vunpack.c.l.b16 %v4020
        %v4061 = vunpack.c.l.b16 %v4021
        %v4062 = vunpack.c.l.b16 %v4022
        %v4063 = vunpack.c.l.b16 %v4023
        %v4064 = vunpack.c.l.b16 %v4024
        %v4065 = vunpack.c.l.b16 %v4025
        %v4066 = vunpack.c.l.b16 %v4026
        %v4067 = vunpack.c.l.b16 %v4027
        %v4068 = vpack.c.b16 %v4061, %v4060
        %v4069 = vpack.c.b16 %v4063, %v4062
        %v4070 = vpack.c.b16 %v4065, %v4064
        %v4071 = vpack.c.b16 %v4067, %v4066
        %v4073 = vsel %vm3410, %v4068, 0
        %v4076 = vsel %vm3410, %v4069, 0
        %v4079 = vsel %vm3410, %v4070, 0
        %v4082 = vsel %vm3410, %v4071, 0
        %4084 = vmatprep.subr.bf16.mxu0 0
        %4085 = vmatpush1.bf16.msra.mxu0 0
        %4086 = vmatprep.subr.bf16.mxu0 0
        %4087 = vmatpush1.bf16.msra.mxu0 0
        %4088 = vmatprep.subr.bf16.mxu0 0
        %4089 = vmatpush1.bf16.msra.mxu0 0
        %4090 = vmatprep.subr.bf16.mxu0 0
        %4091 = vmatpush1.bf16.msra.mxu0 0
        %4092 = vmatprep.subr.bf16.mxu0 0
        %4093 = vmatpush1.bf16.msra.mxu0 0
        %4094 = vmatprep.subr.bf16.mxu0 %v3331
        %4095 = vmatpush1.bf16.msra.mxu0 %v3330
        %4096 = vmatprep.subr.bf16.mxu0 %v3327
        %4097 = vmatpush1.bf16.msra.mxu0 %v3326
        %4098 = vmatprep.subr.bf16.mxu0 %v3323
        %4099 = vmatpush1.bf16.msra.mxu0 %v3322
        %4100 = vmatprep.subr.bf16.mxu0 0
        %4101 = vmatpush2.bf16.msra.mxu0 0
        %4102 = vmatprep.subr.bf16.mxu0 0
        %4103 = vmatpush2.bf16.msra.mxu0 0
        %4104 = vmatprep.subr.bf16.mxu0 0
        %4105 = vmatpush2.bf16.msra.mxu0 0
        %4106 = vmatprep.subr.bf16.mxu0 0
        %4107 = vmatpush2.bf16.msra.mxu0 0
        %4108 = vmatprep.subr.bf16.mxu0 0
        %4109 = vmatpush2.bf16.msra.mxu0 0
        %4110 = vmatprep.subr.bf16.mxu0 0
        %4111 = vmatpush2.bf16.msra.mxu0 0
        %4112 = vmatprep.subr.bf16.mxu0 0
        %4113 = vmatpush2.bf16.msra.mxu0 0
        %4114 = vmatprep.subr.bf16.mxu0 0
        %4115 = vmatpush2.bf16.msra.mxu0 0
        %4116 = vmatprep.mubr.bf16.mxu0 0
        %4117 = vmatmul.mubr.bf16.gmra.mxu0 %v4073
        %v4118 = vpop.f32.mrf.mxu0
        %v4119 = vadd.f32 0.0, %v4118
        %v4120 = vpop.f32.mrf.mxu0
        %v4121 = vadd.f32 0.0, %v4120
        %v4122 = vpop.f32.mrf.mxu0
        %v4123 = vadd.f32 0.0, %v4122
        %v4124 = vpop.f32.mrf.mxu0
        %v4125 = vadd.f32 0.0, %v4124
        %4126 = vmatprep.mubr.bf16.mxu0 0
        %4127 = vmatmul.mubr.bf16.gmra.mxu0 %v4076
        %v4128 = vpop.f32.mrf.mxu0
        %v4129 = vadd.f32 0.0, %v4128
        %v4130 = vpop.f32.mrf.mxu0
        %v4131 = vadd.f32 0.0, %v4130
        %v4132 = vpop.f32.mrf.mxu0
        %v4133 = vadd.f32 0.0, %v4132
        %v4134 = vpop.f32.mrf.mxu0
        %v4135 = vadd.f32 0.0, %v4134
        %4136 = vmatprep.mubr.bf16.mxu0 0
        %4137 = vmatmul.mubr.bf16.gmra.mxu0 %v4079
        %v4138 = vpop.f32.mrf.mxu0
        %v4139 = vadd.f32 0.0, %v4138
        %v4140 = vpop.f32.mrf.mxu0
        %v4141 = vadd.f32 0.0, %v4140
        %v4142 = vpop.f32.mrf.mxu0
        %v4143 = vadd.f32 0.0, %v4142
        %v4144 = vpop.f32.mrf.mxu0
        %v4145 = vadd.f32 0.0, %v4144
        %4146 = vmatprep.mubr.bf16.mxu0 0
        %4147 = vmatmul.mubr.bf16.gmra.mxu0 %v4082
        %v4148 = vpop.f32.mrf.mxu0
        %v4149 = vadd.f32 0.0, %v4148
        %v4150 = vpop.f32.mrf.mxu0
        %v4151 = vadd.f32 0.0, %v4150
        %v4152 = vpop.f32.mrf.mxu0
        %v4153 = vadd.f32 0.0, %v4152
        %v4154 = vpop.f32.mrf.mxu0
        %v4155 = vadd.f32 0.0, %v4154
        %4156 = vdwg.mxu0
        %4157 = vmatprep.subr.bf16.mxu0 0
        %4158 = vmatpush1.bf16.msra.mxu0 0
        %4159 = vmatprep.subr.bf16.mxu0 0
        %4160 = vmatpush1.bf16.msra.mxu0 0
        %4161 = vmatprep.subr.bf16.mxu0 0
        %4162 = vmatpush1.bf16.msra.mxu0 0
        %4163 = vmatprep.subr.bf16.mxu0 0
        %4164 = vmatpush1.bf16.msra.mxu0 0
        %4165 = vmatprep.subr.bf16.mxu0 0
        %4166 = vmatpush1.bf16.msra.mxu0 0
        %4167 = vmatprep.subr.bf16.mxu0 %v3333
        %4168 = vmatpush1.bf16.msra.mxu0 %v3332
        %4169 = vmatprep.subr.bf16.mxu0 %v3329
        %4170 = vmatpush1.bf16.msra.mxu0 %v3328
        %4171 = vmatprep.subr.bf16.mxu0 %v3325
        %4172 = vmatpush1.bf16.msra.mxu0 %v3324
        %4173 = vmatprep.subr.bf16.mxu0 0
        %4174 = vmatpush2.bf16.msra.mxu0 0
        %4175 = vmatprep.subr.bf16.mxu0 0
        %4176 = vmatpush2.bf16.msra.mxu0 0
        %4177 = vmatprep.subr.bf16.mxu0 0
        %4178 = vmatpush2.bf16.msra.mxu0 0
        %4179 = vmatprep.subr.bf16.mxu0 0
        %4180 = vmatpush2.bf16.msra.mxu0 0
        %4181 = vmatprep.subr.bf16.mxu0 0
        %4182 = vmatpush2.bf16.msra.mxu0 0
        %4183 = vmatprep.subr.bf16.mxu0 0
        %4184 = vmatpush2.bf16.msra.mxu0 0
        %4185 = vmatprep.subr.bf16.mxu0 0
        %4186 = vmatpush2.bf16.msra.mxu0 0
        %4187 = vmatprep.subr.bf16.mxu0 0
        %4188 = vmatpush2.bf16.msra.mxu0 0
        %4189 = vmatprep.mubr.bf16.mxu0 0
        %4190 = vmatmul.mubr.bf16.gmra.mxu0 %v4073
        %v4191 = vpop.f32.mrf.mxu0
        %v4192 = vadd.f32 0.0, %v4191
        %v4193 = vpop.f32.mrf.mxu0
        %v4194 = vadd.f32 0.0, %v4193
        %v4195 = vpop.f32.mrf.mxu0
        %v4196 = vadd.f32 0.0, %v4195
        %v4197 = vpop.f32.mrf.mxu0
        %v4198 = vadd.f32 0.0, %v4197
        %4199 = vmatprep.mubr.bf16.mxu0 0
        %4200 = vmatmul.mubr.bf16.gmra.mxu0 %v4076
        %v4201 = vpop.f32.mrf.mxu0
        %v4202 = vadd.f32 0.0, %v4201
        %v4203 = vpop.f32.mrf.mxu0
        %v4204 = vadd.f32 0.0, %v4203
        %v4205 = vpop.f32.mrf.mxu0
        %v4206 = vadd.f32 0.0, %v4205
        %v4207 = vpop.f32.mrf.mxu0
        %v4208 = vadd.f32 0.0, %v4207
        %4209 = vmatprep.mubr.bf16.mxu0 0
        %4210 = vmatmul.mubr.bf16.gmra.mxu0 %v4079
        %v4211 = vpop.f32.mrf.mxu0
        %v4212 = vadd.f32 0.0, %v4211
        %v4213 = vpop.f32.mrf.mxu0
        %v4214 = vadd.f32 0.0, %v4213
        %v4215 = vpop.f32.mrf.mxu0
        %v4216 = vadd.f32 0.0, %v4215
        %v4217 = vpop.f32.mrf.mxu0
        %v4218 = vadd.f32 0.0, %v4217
        %4219 = vmatprep.mubr.bf16.mxu0 0
        %4220 = vmatmul.mubr.bf16.gmra.mxu0 %v4082
        %v4221 = vpop.f32.mrf.mxu0
        %v4222 = vadd.f32 0.0, %v4221
        %v4223 = vpop.f32.mrf.mxu0
        %v4224 = vadd.f32 0.0, %v4223
        %v4225 = vpop.f32.mrf.mxu0
        %v4226 = vadd.f32 0.0, %v4225
        %v4227 = vpop.f32.mrf.mxu0
        %v4228 = vadd.f32 0.0, %v4227
        %4229 = vdwg.mxu0
        %v4238 = vunpack.c.l.b16 %v4012
        %v4239 = vunpack.c.l.b16 %v4013
        %v4240 = vunpack.c.l.b16 %v4014
        %v4241 = vunpack.c.l.b16 %v4015
        %v4242 = vunpack.c.l.b16 %v4016
        %v4243 = vunpack.c.l.b16 %v4017
        %v4244 = vunpack.c.l.b16 %v4018
        %v4245 = vunpack.c.l.b16 %v4019
        %v4246 = vpack.c.b16 %v4239, %v4238
        %v4247 = vpack.c.b16 %v4241, %v4240
        %v4248 = vpack.c.b16 %v4243, %v4242
        %v4249 = vpack.c.b16 %v4245, %v4244
        %v4251 = vsel %vm3757, %v4246, 0
        %v4254 = vsel %vm3757, %v4247, 0
        %v4257 = vsel %vm3757, %v4248, 0
        %v4260 = vsel %vm3757, %v4249, 0
        %4262 = vmatprep.subr.bf16.mxu0 0
        %4263 = vmatpush1.bf16.msra.mxu0 0
        %4264 = vmatprep.subr.bf16.mxu0 0
        %4265 = vmatpush1.bf16.msra.mxu0 0
        %4266 = vmatprep.subr.bf16.mxu0 0
        %4267 = vmatpush1.bf16.msra.mxu0 0
        %4268 = vmatprep.subr.bf16.mxu0 0
        %4269 = vmatpush1.bf16.msra.mxu0 0
        %4270 = vmatprep.subr.bf16.mxu0 %v4049
        %4271 = vmatpush1.bf16.msra.mxu0 %v4048
        %4272 = vmatprep.subr.bf16.mxu0 %v4045
        %4273 = vmatpush1.bf16.msra.mxu0 %v4044
        %4274 = vmatprep.subr.bf16.mxu0 %v4041
        %4275 = vmatpush1.bf16.msra.mxu0 %v4040
        %4276 = vmatprep.subr.bf16.mxu0 %v4037
        %4277 = vmatpush1.bf16.msra.mxu0 %v4036
        %4278 = vmatprep.subr.bf16.mxu0 0
        %4279 = vmatpush2.bf16.msra.mxu0 0
        %4280 = vmatprep.subr.bf16.mxu0 0
        %4281 = vmatpush2.bf16.msra.mxu0 0
        %4282 = vmatprep.subr.bf16.mxu0 0
        %4283 = vmatpush2.bf16.msra.mxu0 0
        %4284 = vmatprep.subr.bf16.mxu0 0
        %4285 = vmatpush2.bf16.msra.mxu0 0
        %4286 = vmatprep.subr.bf16.mxu0 0
        %4287 = vmatpush2.bf16.msra.mxu0 0
        %4288 = vmatprep.subr.bf16.mxu0 0
        %4289 = vmatpush2.bf16.msra.mxu0 0
        %4290 = vmatprep.subr.bf16.mxu0 0
        %4291 = vmatpush2.bf16.msra.mxu0 0
        %4292 = vmatprep.subr.bf16.mxu0 0
        %4293 = vmatpush2.bf16.msra.mxu0 0
        %4294 = vmatprep.mubr.bf16.mxu0 0
        %4295 = vmatmul.mubr.bf16.gmra.mxu0 %v4251
        %v4296 = vpop.f32.mrf.mxu0
        %v4297 = vadd.f32 %v4119, %v4296
        %v4298 = vpop.f32.mrf.mxu0
        %v4299 = vadd.f32 %v4121, %v4298
        %v4300 = vpop.f32.mrf.mxu0
        %v4301 = vadd.f32 %v4123, %v4300
        %v4302 = vpop.f32.mrf.mxu0
        %v4303 = vadd.f32 %v4125, %v4302
        %4304 = vmatprep.mubr.bf16.mxu0 0
        %4305 = vmatmul.mubr.bf16.gmra.mxu0 %v4254
        %v4306 = vpop.f32.mrf.mxu0
        %v4307 = vadd.f32 %v4129, %v4306
        %v4308 = vpop.f32.mrf.mxu0
        %v4309 = vadd.f32 %v4131, %v4308
        %v4310 = vpop.f32.mrf.mxu0
        %v4311 = vadd.f32 %v4133, %v4310
        %v4312 = vpop.f32.mrf.mxu0
        %v4313 = vadd.f32 %v4135, %v4312
        %4314 = vmatprep.mubr.bf16.mxu0 0
        %4315 = vmatmul.mubr.bf16.gmra.mxu0 %v4257
        %v4316 = vpop.f32.mrf.mxu0
        %v4317 = vadd.f32 %v4139, %v4316
        %v4318 = vpop.f32.mrf.mxu0
        %v4319 = vadd.f32 %v4141, %v4318
        %v4320 = vpop.f32.mrf.mxu0
        %v4321 = vadd.f32 %v4143, %v4320
        %v4322 = vpop.f32.mrf.mxu0
        %v4323 = vadd.f32 %v4145, %v4322
        %4324 = vmatprep.mubr.bf16.mxu0 0
        %4325 = vmatmul.mubr.bf16.gmra.mxu0 %v4260
        %v4326 = vpop.f32.mrf.mxu0
        %v4327 = vadd.f32 %v4149, %v4326
        %v4328 = vpop.f32.mrf.mxu0
        %v4329 = vadd.f32 %v4151, %v4328
        %v4330 = vpop.f32.mrf.mxu0
        %v4331 = vadd.f32 %v4153, %v4330
        %v4332 = vpop.f32.mrf.mxu0
        %v4333 = vadd.f32 %v4155, %v4332
        %4334 = vdwg.mxu0
        %4335 = vmatprep.subr.bf16.mxu0 0
        %4336 = vmatpush1.bf16.msra.mxu0 0
        %4337 = vmatprep.subr.bf16.mxu0 0
        %4338 = vmatpush1.bf16.msra.mxu0 0
        %4339 = vmatprep.subr.bf16.mxu0 0
        %4340 = vmatpush1.bf16.msra.mxu0 0
        %4341 = vmatprep.subr.bf16.mxu0 0
        %4342 = vmatpush1.bf16.msra.mxu0 0
        %4343 = vmatprep.subr.bf16.mxu0 %v4051
        %4344 = vmatpush1.bf16.msra.mxu0 %v4050
        %4345 = vmatprep.subr.bf16.mxu0 %v4047
        %4346 = vmatpush1.bf16.msra.mxu0 %v4046
        %4347 = vmatprep.subr.bf16.mxu0 %v4043
        %4348 = vmatpush1.bf16.msra.mxu0 %v4042
        %4349 = vmatprep.subr.bf16.mxu0 %v4039
        %4350 = vmatpush1.bf16.msra.mxu0 %v4038
        %4351 = vmatprep.subr.bf16.mxu0 0
        %4352 = vmatpush2.bf16.msra.mxu0 0
        %4353 = vmatprep.subr.bf16.mxu0 0
        %4354 = vmatpush2.bf16.msra.mxu0 0
        %4355 = vmatprep.subr.bf16.mxu0 0
        %4356 = vmatpush2.bf16.msra.mxu0 0
        %4357 = vmatprep.subr.bf16.mxu0 0
        %4358 = vmatpush2.bf16.msra.mxu0 0
        %4359 = vmatprep.subr.bf16.mxu0 0
        %4360 = vmatpush2.bf16.msra.mxu0 0
        %4361 = vmatprep.subr.bf16.mxu0 0
        %4362 = vmatpush2.bf16.msra.mxu0 0
        %4363 = vmatprep.subr.bf16.mxu0 0
        %4364 = vmatpush2.bf16.msra.mxu0 0
        %4365 = vmatprep.subr.bf16.mxu0 0
        %4366 = vmatpush2.bf16.msra.mxu0 0
        %4367 = vmatprep.mubr.bf16.mxu0 0
        %4368 = vmatmul.mubr.bf16.gmra.mxu0 %v4251
        %v4369 = vpop.f32.mrf.mxu0
        %v4370 = vadd.f32 %v4192, %v4369
        %v4371 = vpop.f32.mrf.mxu0
        %v4372 = vadd.f32 %v4194, %v4371
        %v4373 = vpop.f32.mrf.mxu0
        %v4374 = vadd.f32 %v4196, %v4373
        %v4375 = vpop.f32.mrf.mxu0
        %v4376 = vadd.f32 %v4198, %v4375
        %4377 = vmatprep.mubr.bf16.mxu0 0
        %4378 = vmatmul.mubr.bf16.gmra.mxu0 %v4254
        %v4379 = vpop.f32.mrf.mxu0
        %v4380 = vadd.f32 %v4202, %v4379
        %v4381 = vpop.f32.mrf.mxu0
        %v4382 = vadd.f32 %v4204, %v4381
        %v4383 = vpop.f32.mrf.mxu0
        %v4384 = vadd.f32 %v4206, %v4383
        %v4385 = vpop.f32.mrf.mxu0
        %v4386 = vadd.f32 %v4208, %v4385
        %4387 = vmatprep.mubr.bf16.mxu0 0
        %4388 = vmatmul.mubr.bf16.gmra.mxu0 %v4257
        %v4389 = vpop.f32.mrf.mxu0
        %v4390 = vadd.f32 %v4212, %v4389
        %v4391 = vpop.f32.mrf.mxu0
        %v4392 = vadd.f32 %v4214, %v4391
        %v4393 = vpop.f32.mrf.mxu0
        %v4394 = vadd.f32 %v4216, %v4393
        %v4395 = vpop.f32.mrf.mxu0
        %v4396 = vadd.f32 %v4218, %v4395
        %4397 = vmatprep.mubr.bf16.mxu0 0
        %4398 = vmatmul.mubr.bf16.gmra.mxu0 %v4260
        %v4399 = vpop.f32.mrf.mxu0
        %v4400 = vadd.f32 %v4222, %v4399
        %v4401 = vpop.f32.mrf.mxu0
        %v4402 = vadd.f32 %v4224, %v4401
        %v4403 = vpop.f32.mrf.mxu0
        %v4404 = vadd.f32 %v4226, %v4403
        %v4405 = vpop.f32.mrf.mxu0
        %v4406 = vadd.f32 %v4228, %v4405
        %4407 = vdwg.mxu0
        %4409 = vset.pattern.permute.xlu0 0
        %4410 = vperm.xlu0 %4409, %v4028
        %v4411 = vpop.permute.xlu0 %4410
        %4414 = vset.pattern.permute.xlu0 0
        %4415 = vperm.xlu0 %4414, %v4029
        %v4416 = vpop.permute.xlu0 %4415
        %4419 = vset.pattern.permute.xlu0 0
        %4420 = vperm.xlu0 %4419, %v4030
        %v4421 = vpop.permute.xlu0 %4420
        %4424 = vset.pattern.permute.xlu0 0
        %4425 = vperm.xlu0 %4424, %v4031
        %v4426 = vpop.permute.xlu0 %4425
        %4429 = vset.pattern.permute.xlu0 0
        %4430 = vperm.xlu0 %4429, %v4032
        %v4431 = vpop.permute.xlu0 %4430
        %4434 = vset.pattern.permute.xlu0 0
        %4435 = vperm.xlu0 %4434, %v4033
        %v4436 = vpop.permute.xlu0 %4435
        %4439 = vset.pattern.permute.xlu0 0
        %4440 = vperm.xlu0 %4439, %v4034
        %v4441 = vpop.permute.xlu0 %4440
        %4444 = vset.pattern.permute.xlu0 0
        %4445 = vperm.xlu0 %4444, %v4035
        %v4446 = vpop.permute.xlu0 %4445
        %v4448 = vadd.f32 %v4297, %v4411
        %v4449 = vadd.f32 %v4299, %v4411
        %v4450 = vadd.f32 %v4370, %v4411
        %v4451 = vadd.f32 %v4372, %v4411
        %v4452 = vadd.f32 %v4301, %v4416
        %v4453 = vadd.f32 %v4303, %v4416
        %v4454 = vadd.f32 %v4374, %v4416
        %v4455 = vadd.f32 %v4376, %v4416
        %v4456 = vadd.f32 %v4307, %v4421
        %v4457 = vadd.f32 %v4309, %v4421
        %v4458 = vadd.f32 %v4380, %v4421
        %v4459 = vadd.f32 %v4382, %v4421
        %v4460 = vadd.f32 %v4311, %v4426
        %v4461 = vadd.f32 %v4313, %v4426
        %v4462 = vadd.f32 %v4384, %v4426
        %v4463 = vadd.f32 %v4386, %v4426
        %v4464 = vadd.f32 %v4317, %v4431
        %v4465 = vadd.f32 %v4319, %v4431
        %v4466 = vadd.f32 %v4390, %v4431
        %v4467 = vadd.f32 %v4392, %v4431
        %v4468 = vadd.f32 %v4321, %v4436
        %v4469 = vadd.f32 %v4323, %v4436
        %v4470 = vadd.f32 %v4394, %v4436
        %v4471 = vadd.f32 %v4396, %v4436
        %v4472 = vadd.f32 %v4327, %v4441
        %v4473 = vadd.f32 %v4329, %v4441
        %v4474 = vadd.f32 %v4400, %v4441
        %v4475 = vadd.f32 %v4402, %v4441
        %v4476 = vadd.f32 %v4331, %v4446
        %v4477 = vadd.f32 %v4333, %v4446
        %v4478 = vadd.f32 %v4404, %v4446
        %v4479 = vadd.f32 %v4406, %v4446
        %vm4480 = vcmp.ge.f32.partialorder %v4448, 0.0
        %vm4481 = vcmp.ge.f32.partialorder %v4449, 0.0
        %vm4482 = vcmp.ge.f32.partialorder %v4450, 0.0
        %vm4483 = vcmp.ge.f32.partialorder %v4451, 0.0
        %vm4484 = vcmp.ge.f32.partialorder %v4452, 0.0
        %vm4485 = vcmp.ge.f32.partialorder %v4453, 0.0
        %vm4486 = vcmp.ge.f32.partialorder %v4454, 0.0
        %vm4487 = vcmp.ge.f32.partialorder %v4455, 0.0
        %vm4488 = vcmp.ge.f32.partialorder %v4456, 0.0
        %vm4489 = vcmp.ge.f32.partialorder %v4457, 0.0
        %vm4490 = vcmp.ge.f32.partialorder %v4458, 0.0
        %vm4491 = vcmp.ge.f32.partialorder %v4459, 0.0
        %vm4492 = vcmp.ge.f32.partialorder %v4460, 0.0
        %vm4493 = vcmp.ge.f32.partialorder %v4461, 0.0
        %vm4494 = vcmp.ge.f32.partialorder %v4462, 0.0
        %vm4495 = vcmp.ge.f32.partialorder %v4463, 0.0
        %vm4496 = vcmp.ge.f32.partialorder %v4464, 0.0
        %vm4497 = vcmp.ge.f32.partialorder %v4465, 0.0
        %vm4498 = vcmp.ge.f32.partialorder %v4466, 0.0
        %vm4499 = vcmp.ge.f32.partialorder %v4467, 0.0
        %vm4500 = vcmp.ge.f32.partialorder %v4468, 0.0
        %vm4501 = vcmp.ge.f32.partialorder %v4469, 0.0
        %vm4502 = vcmp.ge.f32.partialorder %v4470, 0.0
        %vm4503 = vcmp.ge.f32.partialorder %v4471, 0.0
        %vm4504 = vcmp.ge.f32.partialorder %v4472, 0.0
        %vm4505 = vcmp.ge.f32.partialorder %v4473, 0.0
        %vm4506 = vcmp.ge.f32.partialorder %v4474, 0.0
        %vm4507 = vcmp.ge.f32.partialorder %v4475, 0.0
        %vm4508 = vcmp.ge.f32.partialorder %v4476, 0.0
        %vm4509 = vcmp.ge.f32.partialorder %v4477, 0.0
        %vm4510 = vcmp.ge.f32.partialorder %v4478, 0.0
        %vm4511 = vcmp.ge.f32.partialorder %v4479, 0.0
        %v4512 = vmul.f32 %v4448, 0.01
        %v4513 = vmul.f32 %v4449, 0.01
        %v4514 = vmul.f32 %v4450, 0.01
        %v4515 = vmul.f32 %v4451, 0.01
        %v4516 = vmul.f32 %v4452, 0.01
        %v4517 = vmul.f32 %v4453, 0.01
        %v4518 = vmul.f32 %v4454, 0.01
        %v4519 = vmul.f32 %v4455, 0.01
        %v4520 = vmul.f32 %v4456, 0.01
        %v4521 = vmul.f32 %v4457, 0.01
        %v4522 = vmul.f32 %v4458, 0.01
        %v4523 = vmul.f32 %v4459, 0.01
        %v4524 = vmul.f32 %v4460, 0.01
        %v4525 = vmul.f32 %v4461, 0.01
        %v4526 = vmul.f32 %v4462, 0.01
        %v4527 = vmul.f32 %v4463, 0.01
        %v4528 = vmul.f32 %v4464, 0.01
        %v4529 = vmul.f32 %v4465, 0.01
        %v4530 = vmul.f32 %v4466, 0.01
        %v4531 = vmul.f32 %v4467, 0.01
        %v4532 = vmul.f32 %v4468, 0.01
        %v4533 = vmul.f32 %v4469, 0.01
        %v4534 = vmul.f32 %v4470, 0.01
        %v4535 = vmul.f32 %v4471, 0.01
        %v4536 = vmul.f32 %v4472, 0.01
        %v4537 = vmul.f32 %v4473, 0.01
        %v4538 = vmul.f32 %v4474, 0.01
        %v4539 = vmul.f32 %v4475, 0.01
        %v4540 = vmul.f32 %v4476, 0.01
        %v4541 = vmul.f32 %v4477, 0.01
        %v4542 = vmul.f32 %v4478, 0.01
        %v4543 = vmul.f32 %v4479, 0.01
        %v4544 = vsel %vm4480, %v4448, %v4512
        %v4545 = vsel %vm4481, %v4449, %v4513
        %v4546 = vsel %vm4482, %v4450, %v4514
        %v4547 = vsel %vm4483, %v4451, %v4515
        %v4548 = vsel %vm4484, %v4452, %v4516
        %v4549 = vsel %vm4485, %v4453, %v4517
        %v4550 = vsel %vm4486, %v4454, %v4518
        %v4551 = vsel %vm4487, %v4455, %v4519
        %v4552 = vsel %vm4488, %v4456, %v4520
        %v4553 = vsel %vm4489, %v4457, %v4521
        %v4554 = vsel %vm4490, %v4458, %v4522
        %v4555 = vsel %vm4491, %v4459, %v4523
        %v4556 = vsel %vm4492, %v4460, %v4524
        %v4557 = vsel %vm4493, %v4461, %v4525
        %v4558 = vsel %vm4494, %v4462, %v4526
        %v4559 = vsel %vm4495, %v4463, %v4527
        %v4560 = vsel %vm4496, %v4464, %v4528
        %v4561 = vsel %vm4497, %v4465, %v4529
        %v4562 = vsel %vm4498, %v4466, %v4530
        %v4563 = vsel %vm4499, %v4467, %v4531
        %v4564 = vsel %vm4500, %v4468, %v4532
        %v4565 = vsel %vm4501, %v4469, %v4533
        %v4566 = vsel %vm4502, %v4470, %v4534
        %v4567 = vsel %vm4503, %v4471, %v4535
        %v4568 = vsel %vm4504, %v4472, %v4536
        %v4569 = vsel %vm4505, %v4473, %v4537
        %v4570 = vsel %vm4506, %v4474, %v4538
        %v4571 = vsel %vm4507, %v4475, %v4539
        %v4572 = vsel %vm4508, %v4476, %v4540
        %v4573 = vsel %vm4509, %v4477, %v4541
        %v4574 = vsel %vm4510, %v4478, %v4542
        %v4575 = vsel %vm4511, %v4479, %v4543
        %v4576 = vld [vmem:[%s10] sm:$0xf]
        %v4577 = vld [vmem:[%s10 + $0x4] sm:$0xf]
        %v4578 = vld [vmem:[%s10 + $0x8] sm:$0xf]
        %v4579 = vld [vmem:[%s10 + $0xc] sm:$0xf]
        %v4580 = vld [vmem:[%s10 + $0x10] sm:$0xf]
        %v4581 = vld [vmem:[%s10 + $0x14] sm:$0xf]
        %v4582 = vld [vmem:[%s10 + $0x18] sm:$0xf]
        %v4583 = vld [vmem:[%s10 + $0x1c] sm:$0xf]
        %v4584 = vld [vmem:[%s11] sm:$0xff]
        %v4585 = vld [vmem:[%s11 + $0x8] sm:$0xff]
        %v4586 = vld [vmem:[%s11 + $0x10] sm:$0xff]
        %v4587 = vld [vmem:[%s11 + $0x18] sm:$0xff]
        %v4588 = vld [vmem:[%s11 + $0x20] sm:$0xff]
        %v4589 = vld [vmem:[%s11 + $0x28] sm:$0xff]
        %v4590 = vld [vmem:[%s11 + $0x30] sm:$0xff]
        %v4591 = vld [vmem:[%s11 + $0x38] sm:$0xff]
        %v4592 = vpack.c.bf16 %v4548, %v4544
        %v4593 = vpack.c.bf16 %v4549, %v4545
        %v4594 = vpack.c.bf16 %v4550, %v4546
        %v4595 = vpack.c.bf16 %v4551, %v4547
        %v4596 = vpack.c.bf16 %v4556, %v4552
        %v4597 = vpack.c.bf16 %v4557, %v4553
        %v4598 = vpack.c.bf16 %v4558, %v4554
        %v4599 = vpack.c.bf16 %v4559, %v4555
        %v4600 = vpack.c.bf16 %v4564, %v4560
        %v4601 = vpack.c.bf16 %v4565, %v4561
        %v4602 = vpack.c.bf16 %v4566, %v4562
        %v4603 = vpack.c.bf16 %v4567, %v4563
        %v4604 = vpack.c.bf16 %v4572, %v4568
        %v4605 = vpack.c.bf16 %v4573, %v4569
        %v4606 = vpack.c.bf16 %v4574, %v4570
        %v4607 = vpack.c.bf16 %v4575, %v4571
        %4609 = vset.pattern.permute.xlu0 0
        %4610 = vperm.xlu0 %4609, %v4584
        %v4611 = vpop.permute.xlu0 %4610
        %4614 = vset.pattern.permute.xlu0 0
        %4615 = vperm.xlu0 %4614, %v4585
        %v4616 = vpop.permute.xlu0 %4615
        %4619 = vset.pattern.permute.xlu0 0
        %4620 = vperm.xlu0 %4619, %v4586
        %v4621 = vpop.permute.xlu0 %4620
        %4624 = vset.pattern.permute.xlu0 0
        %4625 = vperm.xlu0 %4624, %v4587
        %v4626 = vpop.permute.xlu0 %4625
        %4629 = vset.pattern.permute.xlu0 0
        %4630 = vperm.xlu0 %4629, %v4588
        %v4631 = vpop.permute.xlu0 %4630
        %4634 = vset.pattern.permute.xlu0 0
        %4635 = vperm.xlu0 %4634, %v4589
        %v4636 = vpop.permute.xlu0 %4635
        %4639 = vset.pattern.permute.xlu0 0
        %4640 = vperm.xlu0 %4639, %v4590
        %v4641 = vpop.permute.xlu0 %4640
        %4644 = vset.pattern.permute.xlu0 0
        %4645 = vperm.xlu0 %4644, %v4591
        %v4646 = vpop.permute.xlu0 %4645
        %v4656 = vunpack.c.l.b16 %v4576
        %v4657 = vunpack.c.l.b16 %v4577
        %v4658 = vunpack.c.l.b16 %v4578
        %v4659 = vunpack.c.l.b16 %v4579
        %v4660 = vunpack.c.l.b16 %v4580
        %v4661 = vunpack.c.l.b16 %v4581
        %v4662 = vunpack.c.l.b16 %v4582
        %v4663 = vunpack.c.l.b16 %v4583
        %v4664 = vpack.c.b16 %v4657, %v4656
        %v4665 = vpack.c.b16 %v4659, %v4658
        %v4666 = vpack.c.b16 %v4661, %v4660
        %v4667 = vpack.c.b16 %v4663, %v4662
        %v4669 = vsel %vm3757, %v4664, 0
        %v4672 = vsel %vm3757, %v4665, 0
        %v4675 = vsel %vm3757, %v4666, 0
        %v4678 = vsel %vm3757, %v4667, 0
        %4680 = vmatprep.subr.bf16.mxu0 0
        %4681 = vmatpush1.bf16.msra.mxu0 0
        %4682 = vmatprep.subr.bf16.mxu0 0
        %4683 = vmatpush1.bf16.msra.mxu0 0
        %4684 = vmatprep.subr.bf16.mxu0 0
        %4685 = vmatpush1.bf16.msra.mxu0 0
        %4686 = vmatprep.subr.bf16.mxu0 0
        %4687 = vmatpush1.bf16.msra.mxu0 0
        %4688 = vmatprep.subr.bf16.mxu0 %v4605
        %4689 = vmatpush1.bf16.msra.mxu0 %v4604
        %4690 = vmatprep.subr.bf16.mxu0 %v4601
        %4691 = vmatpush1.bf16.msra.mxu0 %v4600
        %4692 = vmatprep.subr.bf16.mxu0 %v4597
        %4693 = vmatpush1.bf16.msra.mxu0 %v4596
        %4694 = vmatprep.subr.bf16.mxu0 %v4593
        %4695 = vmatpush1.bf16.msra.mxu0 %v4592
        %4696 = vmatprep.subr.bf16.mxu0 0
        %4697 = vmatpush2.bf16.msra.mxu0 0
        %4698 = vmatprep.subr.bf16.mxu0 0
        %4699 = vmatpush2.bf16.msra.mxu0 0
        %4700 = vmatprep.subr.bf16.mxu0 0
        %4701 = vmatpush2.bf16.msra.mxu0 0
        %4702 = vmatprep.subr.bf16.mxu0 0
        %4703 = vmatpush2.bf16.msra.mxu0 0
        %4704 = vmatprep.subr.bf16.mxu0 0
        %4705 = vmatpush2.bf16.msra.mxu0 0
        %4706 = vmatprep.subr.bf16.mxu0 0
        %4707 = vmatpush2.bf16.msra.mxu0 0
        %4708 = vmatprep.subr.bf16.mxu0 0
        %4709 = vmatpush2.bf16.msra.mxu0 0
        %4710 = vmatprep.subr.bf16.mxu0 0
        %4711 = vmatpush2.bf16.msra.mxu0 0
        %4712 = vmatprep.mubr.bf16.mxu0 0
        %4713 = vmatmul.mubr.bf16.gmra.mxu0 %v4669
        %v4714 = vpop.f32.mrf.mxu0
        %v4715 = vadd.f32 %v4611, %v4714
        %v4716 = vpop.f32.mrf.mxu0
        %v4717 = vadd.f32 %v4611, %v4716
        %v4718 = vpop.f32.mrf.mxu0
        %v4719 = vadd.f32 %v4616, %v4718
        %v4720 = vpop.f32.mrf.mxu0
        %v4721 = vadd.f32 %v4616, %v4720
        %4722 = vmatprep.mubr.bf16.mxu0 0
        %4723 = vmatmul.mubr.bf16.gmra.mxu0 %v4672
        %v4724 = vpop.f32.mrf.mxu0
        %v4725 = vadd.f32 %v4621, %v4724
        %v4726 = vpop.f32.mrf.mxu0
        %v4727 = vadd.f32 %v4621, %v4726
        %v4728 = vpop.f32.mrf.mxu0
        %v4729 = vadd.f32 %v4626, %v4728
        %v4730 = vpop.f32.mrf.mxu0
        %v4731 = vadd.f32 %v4626, %v4730
        %4732 = vmatprep.mubr.bf16.mxu0 0
        %4733 = vmatmul.mubr.bf16.gmra.mxu0 %v4675
        %v4734 = vpop.f32.mrf.mxu0
        %v4735 = vadd.f32 %v4631, %v4734
        %v4736 = vpop.f32.mrf.mxu0
        %v4737 = vadd.f32 %v4631, %v4736
        %v4738 = vpop.f32.mrf.mxu0
        %v4739 = vadd.f32 %v4636, %v4738
        %v4740 = vpop.f32.mrf.mxu0
        %v4741 = vadd.f32 %v4636, %v4740
        %4742 = vmatprep.mubr.bf16.mxu0 0
        %4743 = vmatmul.mubr.bf16.gmra.mxu0 %v4678
        %v4744 = vpop.f32.mrf.mxu0
        %v4745 = vadd.f32 %v4641, %v4744
        %v4746 = vpop.f32.mrf.mxu0
        %v4747 = vadd.f32 %v4641, %v4746
        %v4748 = vpop.f32.mrf.mxu0
        %v4749 = vadd.f32 %v4646, %v4748
        %v4750 = vpop.f32.mrf.mxu0
        %v4751 = vadd.f32 %v4646, %v4750
        %4752 = vdwg.mxu0
        %4753 = vmatprep.subr.bf16.mxu0 0
        %4754 = vmatpush1.bf16.msra.mxu0 0
        %4755 = vmatprep.subr.bf16.mxu0 0
        %4756 = vmatpush1.bf16.msra.mxu0 0
        %4757 = vmatprep.subr.bf16.mxu0 0
        %4758 = vmatpush1.bf16.msra.mxu0 0
        %4759 = vmatprep.subr.bf16.mxu0 0
        %4760 = vmatpush1.bf16.msra.mxu0 0
        %4761 = vmatprep.subr.bf16.mxu0 %v4607
        %4762 = vmatpush1.bf16.msra.mxu0 %v4606
        %4763 = vmatprep.subr.bf16.mxu0 %v4603
        %4764 = vmatpush1.bf16.msra.mxu0 %v4602
        %4765 = vmatprep.subr.bf16.mxu0 %v4599
        %4766 = vmatpush1.bf16.msra.mxu0 %v4598
        %4767 = vmatprep.subr.bf16.mxu0 %v4595
        %4768 = vmatpush1.bf16.msra.mxu0 %v4594
        %4769 = vmatprep.subr.bf16.mxu0 0
        %4770 = vmatpush2.bf16.msra.mxu0 0
        %4771 = vmatprep.subr.bf16.mxu0 0
        %4772 = vmatpush2.bf16.msra.mxu0 0
        %4773 = vmatprep.subr.bf16.mxu0 0
        %4774 = vmatpush2.bf16.msra.mxu0 0
        %4775 = vmatprep.subr.bf16.mxu0 0
        %4776 = vmatpush2.bf16.msra.mxu0 0
        %4777 = vmatprep.subr.bf16.mxu0 0
        %4778 = vmatpush2.bf16.msra.mxu0 0
        %4779 = vmatprep.subr.bf16.mxu0 0
        %4780 = vmatpush2.bf16.msra.mxu0 0
        %4781 = vmatprep.subr.bf16.mxu0 0
        %4782 = vmatpush2.bf16.msra.mxu0 0
        %4783 = vmatprep.subr.bf16.mxu0 0
        %4784 = vmatpush2.bf16.msra.mxu0 0
        %4785 = vmatprep.mubr.bf16.mxu0 0
        %4786 = vmatmul.mubr.bf16.gmra.mxu0 %v4669
        %v4787 = vpop.f32.mrf.mxu0
        %v4788 = vadd.f32 %v4611, %v4787
        %v4789 = vpop.f32.mrf.mxu0
        %v4790 = vadd.f32 %v4611, %v4789
        %v4791 = vpop.f32.mrf.mxu0
        %v4792 = vadd.f32 %v4616, %v4791
        %v4793 = vpop.f32.mrf.mxu0
        %v4794 = vadd.f32 %v4616, %v4793
        %4795 = vmatprep.mubr.bf16.mxu0 0
        %4796 = vmatmul.mubr.bf16.gmra.mxu0 %v4672
        %v4797 = vpop.f32.mrf.mxu0
        %v4798 = vadd.f32 %v4621, %v4797
        %v4799 = vpop.f32.mrf.mxu0
        %v4800 = vadd.f32 %v4621, %v4799
        %v4801 = vpop.f32.mrf.mxu0
        %v4802 = vadd.f32 %v4626, %v4801
        %v4803 = vpop.f32.mrf.mxu0
        %v4804 = vadd.f32 %v4626, %v4803
        %4805 = vmatprep.mubr.bf16.mxu0 0
        %4806 = vmatmul.mubr.bf16.gmra.mxu0 %v4675
        %v4807 = vpop.f32.mrf.mxu0
        %v4808 = vadd.f32 %v4631, %v4807
        %v4809 = vpop.f32.mrf.mxu0
        %v4810 = vadd.f32 %v4631, %v4809
        %v4811 = vpop.f32.mrf.mxu0
        %v4812 = vadd.f32 %v4636, %v4811
        %v4813 = vpop.f32.mrf.mxu0
        %v4814 = vadd.f32 %v4636, %v4813
        %4815 = vmatprep.mubr.bf16.mxu0 0
        %4816 = vmatmul.mubr.bf16.gmra.mxu0 %v4678
        %v4817 = vpop.f32.mrf.mxu0
        %v4818 = vadd.f32 %v4641, %v4817
        %v4819 = vpop.f32.mrf.mxu0
        %v4820 = vadd.f32 %v4641, %v4819
        %v4821 = vpop.f32.mrf.mxu0
        %v4822 = vadd.f32 %v4646, %v4821
        %v4823 = vpop.f32.mrf.mxu0
        %v4824 = vadd.f32 %v4646, %v4823
        %4825 = vdwg.mxu0
        %vm4826 = vcmp.ge.f32.partialorder %v4715, 0.0
        %vm4827 = vcmp.ge.f32.partialorder %v4717, 0.0
        %vm4828 = vcmp.ge.f32.partialorder %v4788, 0.0
        %vm4829 = vcmp.ge.f32.partialorder %v4790, 0.0
        %vm4830 = vcmp.ge.f32.partialorder %v4719, 0.0
        %vm4831 = vcmp.ge.f32.partialorder %v4721, 0.0
        %vm4832 = vcmp.ge.f32.partialorder %v4792, 0.0
        %vm4833 = vcmp.ge.f32.partialorder %v4794, 0.0
        %vm4834 = vcmp.ge.f32.partialorder %v4725, 0.0
        %vm4835 = vcmp.ge.f32.partialorder %v4727, 0.0
        %vm4836 = vcmp.ge.f32.partialorder %v4798, 0.0
        %vm4837 = vcmp.ge.f32.partialorder %v4800, 0.0
        %vm4838 = vcmp.ge.f32.partialorder %v4729, 0.0
        %vm4839 = vcmp.ge.f32.partialorder %v4731, 0.0
        %vm4840 = vcmp.ge.f32.partialorder %v4802, 0.0
        %vm4841 = vcmp.ge.f32.partialorder %v4804, 0.0
        %vm4842 = vcmp.ge.f32.partialorder %v4735, 0.0
        %vm4843 = vcmp.ge.f32.partialorder %v4737, 0.0
        %vm4844 = vcmp.ge.f32.partialorder %v4808, 0.0
        %vm4845 = vcmp.ge.f32.partialorder %v4810, 0.0
        %vm4846 = vcmp.ge.f32.partialorder %v4739, 0.0
        %vm4847 = vcmp.ge.f32.partialorder %v4741, 0.0
        %vm4848 = vcmp.ge.f32.partialorder %v4812, 0.0
        %vm4849 = vcmp.ge.f32.partialorder %v4814, 0.0
        %vm4850 = vcmp.ge.f32.partialorder %v4745, 0.0
        %vm4851 = vcmp.ge.f32.partialorder %v4747, 0.0
        %vm4852 = vcmp.ge.f32.partialorder %v4818, 0.0
        %vm4853 = vcmp.ge.f32.partialorder %v4820, 0.0
        %vm4854 = vcmp.ge.f32.partialorder %v4749, 0.0
        %vm4855 = vcmp.ge.f32.partialorder %v4751, 0.0
        %vm4856 = vcmp.ge.f32.partialorder %v4822, 0.0
        %vm4857 = vcmp.ge.f32.partialorder %v4824, 0.0
        %v4858 = vmul.f32 %v4715, 0.01
        %v4859 = vmul.f32 %v4717, 0.01
        %v4860 = vmul.f32 %v4788, 0.01
        %v4861 = vmul.f32 %v4790, 0.01
        %v4862 = vmul.f32 %v4719, 0.01
        %v4863 = vmul.f32 %v4721, 0.01
        %v4864 = vmul.f32 %v4792, 0.01
        %v4865 = vmul.f32 %v4794, 0.01
        %v4866 = vmul.f32 %v4725, 0.01
        %v4867 = vmul.f32 %v4727, 0.01
        %v4868 = vmul.f32 %v4798, 0.01
        %v4869 = vmul.f32 %v4800, 0.01
        %v4870 = vmul.f32 %v4729, 0.01
        %v4871 = vmul.f32 %v4731, 0.01
        %v4872 = vmul.f32 %v4802, 0.01
        %v4873 = vmul.f32 %v4804, 0.01
        %v4874 = vmul.f32 %v4735, 0.01
        %v4875 = vmul.f32 %v4737, 0.01
        %v4876 = vmul.f32 %v4808, 0.01
        %v4877 = vmul.f32 %v4810, 0.01
        %v4878 = vmul.f32 %v4739, 0.01
        %v4879 = vmul.f32 %v4741, 0.01
        %v4880 = vmul.f32 %v4812, 0.01
        %v4881 = vmul.f32 %v4814, 0.01
        %v4882 = vmul.f32 %v4745, 0.01
        %v4883 = vmul.f32 %v4747, 0.01
        %v4884 = vmul.f32 %v4818, 0.01
        %v4885 = vmul.f32 %v4820, 0.01
        %v4886 = vmul.f32 %v4749, 0.01
        %v4887 = vmul.f32 %v4751, 0.01
        %v4888 = vmul.f32 %v4822, 0.01
        %v4889 = vmul.f32 %v4824, 0.01
        %v4890 = vsel %vm4826, %v4715, %v4858
        %v4891 = vsel %vm4827, %v4717, %v4859
        %v4892 = vsel %vm4828, %v4788, %v4860
        %v4893 = vsel %vm4829, %v4790, %v4861
        %v4894 = vsel %vm4830, %v4719, %v4862
        %v4895 = vsel %vm4831, %v4721, %v4863
        %v4896 = vsel %vm4832, %v4792, %v4864
        %v4897 = vsel %vm4833, %v4794, %v4865
        %v4898 = vsel %vm4834, %v4725, %v4866
        %v4899 = vsel %vm4835, %v4727, %v4867
        %v4900 = vsel %vm4836, %v4798, %v4868
        %v4901 = vsel %vm4837, %v4800, %v4869
        %v4902 = vsel %vm4838, %v4729, %v4870
        %v4903 = vsel %vm4839, %v4731, %v4871
        %v4904 = vsel %vm4840, %v4802, %v4872
        %v4905 = vsel %vm4841, %v4804, %v4873
        %v4906 = vsel %vm4842, %v4735, %v4874
        %v4907 = vsel %vm4843, %v4737, %v4875
        %v4908 = vsel %vm4844, %v4808, %v4876
        %v4909 = vsel %vm4845, %v4810, %v4877
        %v4910 = vsel %vm4846, %v4739, %v4878
        %v4911 = vsel %vm4847, %v4741, %v4879
        %v4912 = vsel %vm4848, %v4812, %v4880
        %v4913 = vsel %vm4849, %v4814, %v4881
        %v4914 = vsel %vm4850, %v4745, %v4882
        %v4915 = vsel %vm4851, %v4747, %v4883
        %v4916 = vsel %vm4852, %v4818, %v4884
        %v4917 = vsel %vm4853, %v4820, %v4885
        %v4918 = vsel %vm4854, %v4749, %v4886
        %v4919 = vsel %vm4855, %v4751, %v4887
        %v4920 = vsel %vm4856, %v4822, %v4888
        %v4921 = vsel %vm4857, %v4824, %v4889
        %v4922 = vld [vmem:[%s12] sm:$0xf]
        %v4923 = vld [vmem:[%s12 + $0x4] sm:$0xf]
        %v4924 = vld [vmem:[%s12 + $0x8] sm:$0xf]
        %v4925 = vld [vmem:[%s12 + $0xc] sm:$0xf]
        %v4926 = vld [vmem:[%s12 + $0x10] sm:$0xf]
        %v4927 = vld [vmem:[%s12 + $0x14] sm:$0xf]
        %v4928 = vld [vmem:[%s12 + $0x18] sm:$0xf]
        %v4929 = vld [vmem:[%s12 + $0x1c] sm:$0xf]
        %v4930 = vld [vmem:[%s13] sm:$0xf]
        %v4931 = vld [vmem:[%s13 + $0x4] sm:$0xf]
        %v4932 = vld [vmem:[%s13 + $0x8] sm:$0xf]
        %v4933 = vld [vmem:[%s13 + $0xc] sm:$0xf]
        %v4934 = vld [vmem:[%s13 + $0x10] sm:$0xf]
        %v4935 = vld [vmem:[%s13 + $0x14] sm:$0xf]
        %v4936 = vld [vmem:[%s13 + $0x18] sm:$0xf]
        %v4937 = vld [vmem:[%s13 + $0x1c] sm:$0xf]
        %v4938 = vld [vmem:[%s14] sm:$0xff]
        %v4939 = vld [vmem:[%s14 + $0x8] sm:$0xff]
        %v4940 = vld [vmem:[%s14 + $0x10] sm:$0xff]
        %v4941 = vld [vmem:[%s14 + $0x18] sm:$0xff]
        %v4942 = vld [vmem:[%s14 + $0x20] sm:$0xff]
        %v4943 = vld [vmem:[%s14 + $0x28] sm:$0xff]
        %v4944 = vld [vmem:[%s14 + $0x30] sm:$0xff]
        %v4945 = vld [vmem:[%s14 + $0x38] sm:$0xff]
        %v4946 = vpack.c.bf16 %v4894, %v4890
        %v4947 = vpack.c.bf16 %v4895, %v4891
        %v4948 = vpack.c.bf16 %v4896, %v4892
        %v4949 = vpack.c.bf16 %v4897, %v4893
        %v4950 = vpack.c.bf16 %v4902, %v4898
        %v4951 = vpack.c.bf16 %v4903, %v4899
        %v4952 = vpack.c.bf16 %v4904, %v4900
        %v4953 = vpack.c.bf16 %v4905, %v4901
        %v4954 = vpack.c.bf16 %v4910, %v4906
        %v4955 = vpack.c.bf16 %v4911, %v4907
        %v4956 = vpack.c.bf16 %v4912, %v4908
        %v4957 = vpack.c.bf16 %v4913, %v4909
        %v4958 = vpack.c.bf16 %v4918, %v4914
        %v4959 = vpack.c.bf16 %v4919, %v4915
        %v4960 = vpack.c.bf16 %v4920, %v4916
        %v4961 = vpack.c.bf16 %v4921, %v4917
        %v4970 = vunpack.c.l.b16 %v4930
        %v4971 = vunpack.c.l.b16 %v4931
        %v4972 = vunpack.c.l.b16 %v4932
        %v4973 = vunpack.c.l.b16 %v4933
        %v4974 = vunpack.c.l.b16 %v4934
        %v4975 = vunpack.c.l.b16 %v4935
        %v4976 = vunpack.c.l.b16 %v4936
        %v4977 = vunpack.c.l.b16 %v4937
        %v4978 = vpack.c.b16 %v4971, %v4970
        %v4979 = vpack.c.b16 %v4973, %v4972
        %v4980 = vpack.c.b16 %v4975, %v4974
        %v4981 = vpack.c.b16 %v4977, %v4976
        %v4983 = vsel %vm3410, %v4978, 0
        %v4986 = vsel %vm3410, %v4979, 0
        %v4989 = vsel %vm3410, %v4980, 0
        %v4992 = vsel %vm3410, %v4981, 0
        %4994 = vmatprep.subr.bf16.mxu0 0
        %4995 = vmatpush1.bf16.msra.mxu0 0
        %4996 = vmatprep.subr.bf16.mxu0 0
        %4997 = vmatpush1.bf16.msra.mxu0 0
        %4998 = vmatprep.subr.bf16.mxu0 0
        %4999 = vmatpush1.bf16.msra.mxu0 0
        %5000 = vmatprep.subr.bf16.mxu0 0
        %5001 = vmatpush1.bf16.msra.mxu0 0
        %5002 = vmatprep.subr.bf16.mxu0 0
        %5003 = vmatpush1.bf16.msra.mxu0 0
        %5004 = vmatprep.subr.bf16.mxu0 %v3331
        %5005 = vmatpush1.bf16.msra.mxu0 %v3330
        %5006 = vmatprep.subr.bf16.mxu0 %v3327
        %5007 = vmatpush1.bf16.msra.mxu0 %v3326
        %5008 = vmatprep.subr.bf16.mxu0 %v3323
        %5009 = vmatpush1.bf16.msra.mxu0 %v3322
        %5010 = vmatprep.subr.bf16.mxu0 0
        %5011 = vmatpush2.bf16.msra.mxu0 0
        %5012 = vmatprep.subr.bf16.mxu0 0
        %5013 = vmatpush2.bf16.msra.mxu0 0
        %5014 = vmatprep.subr.bf16.mxu0 0
        %5015 = vmatpush2.bf16.msra.mxu0 0
        %5016 = vmatprep.subr.bf16.mxu0 0
        %5017 = vmatpush2.bf16.msra.mxu0 0
        %5018 = vmatprep.subr.bf16.mxu0 0
        %5019 = vmatpush2.bf16.msra.mxu0 0
        %5020 = vmatprep.subr.bf16.mxu0 0
        %5021 = vmatpush2.bf16.msra.mxu0 0
        %5022 = vmatprep.subr.bf16.mxu0 0
        %5023 = vmatpush2.bf16.msra.mxu0 0
        %5024 = vmatprep.subr.bf16.mxu0 0
        %5025 = vmatpush2.bf16.msra.mxu0 0
        %5026 = vmatprep.mubr.bf16.mxu0 0
        %5027 = vmatmul.mubr.bf16.gmra.mxu0 %v4983
        %v5028 = vpop.f32.mrf.mxu0
        %v5029 = vadd.f32 0.0, %v5028
        %v5030 = vpop.f32.mrf.mxu0
        %v5031 = vadd.f32 0.0, %v5030
        %v5032 = vpop.f32.mrf.mxu0
        %v5033 = vadd.f32 0.0, %v5032
        %v5034 = vpop.f32.mrf.mxu0
        %v5035 = vadd.f32 0.0, %v5034
        %5036 = vmatprep.mubr.bf16.mxu0 0
        %5037 = vmatmul.mubr.bf16.gmra.mxu0 %v4986
        %v5038 = vpop.f32.mrf.mxu0
        %v5039 = vadd.f32 0.0, %v5038
        %v5040 = vpop.f32.mrf.mxu0
        %v5041 = vadd.f32 0.0, %v5040
        %v5042 = vpop.f32.mrf.mxu0
        %v5043 = vadd.f32 0.0, %v5042
        %v5044 = vpop.f32.mrf.mxu0
        %v5045 = vadd.f32 0.0, %v5044
        %5046 = vmatprep.mubr.bf16.mxu0 0
        %5047 = vmatmul.mubr.bf16.gmra.mxu0 %v4989
        %v5048 = vpop.f32.mrf.mxu0
        %v5049 = vadd.f32 0.0, %v5048
        %v5050 = vpop.f32.mrf.mxu0
        %v5051 = vadd.f32 0.0, %v5050
        %v5052 = vpop.f32.mrf.mxu0
        %v5053 = vadd.f32 0.0, %v5052
        %v5054 = vpop.f32.mrf.mxu0
        %v5055 = vadd.f32 0.0, %v5054
        %5056 = vmatprep.mubr.bf16.mxu0 0
        %5057 = vmatmul.mubr.bf16.gmra.mxu0 %v4992
        %v5058 = vpop.f32.mrf.mxu0
        %v5059 = vadd.f32 0.0, %v5058
        %v5060 = vpop.f32.mrf.mxu0
        %v5061 = vadd.f32 0.0, %v5060
        %v5062 = vpop.f32.mrf.mxu0
        %v5063 = vadd.f32 0.0, %v5062
        %v5064 = vpop.f32.mrf.mxu0
        %v5065 = vadd.f32 0.0, %v5064
        %5066 = vdwg.mxu0
        %5067 = vmatprep.subr.bf16.mxu0 0
        %5068 = vmatpush1.bf16.msra.mxu0 0
        %5069 = vmatprep.subr.bf16.mxu0 0
        %5070 = vmatpush1.bf16.msra.mxu0 0
        %5071 = vmatprep.subr.bf16.mxu0 0
        %5072 = vmatpush1.bf16.msra.mxu0 0
        %5073 = vmatprep.subr.bf16.mxu0 0
        %5074 = vmatpush1.bf16.msra.mxu0 0
        %5075 = vmatprep.subr.bf16.mxu0 0
        %5076 = vmatpush1.bf16.msra.mxu0 0
        %5077 = vmatprep.subr.bf16.mxu0 %v3333
        %5078 = vmatpush1.bf16.msra.mxu0 %v3332
        %5079 = vmatprep.subr.bf16.mxu0 %v3329
        %5080 = vmatpush1.bf16.msra.mxu0 %v3328
        %5081 = vmatprep.subr.bf16.mxu0 %v3325
        %5082 = vmatpush1.bf16.msra.mxu0 %v3324
        %5083 = vmatprep.subr.bf16.mxu0 0
        %5084 = vmatpush2.bf16.msra.mxu0 0
        %5085 = vmatprep.subr.bf16.mxu0 0
        %5086 = vmatpush2.bf16.msra.mxu0 0
        %5087 = vmatprep.subr.bf16.mxu0 0
        %5088 = vmatpush2.bf16.msra.mxu0 0
        %5089 = vmatprep.subr.bf16.mxu0 0
        %5090 = vmatpush2.bf16.msra.mxu0 0
        %5091 = vmatprep.subr.bf16.mxu0 0
        %5092 = vmatpush2.bf16.msra.mxu0 0
        %5093 = vmatprep.subr.bf16.mxu0 0
        %5094 = vmatpush2.bf16.msra.mxu0 0
        %5095 = vmatprep.subr.bf16.mxu0 0
        %5096 = vmatpush2.bf16.msra.mxu0 0
        %5097 = vmatprep.subr.bf16.mxu0 0
        %5098 = vmatpush2.bf16.msra.mxu0 0
        %5099 = vmatprep.mubr.bf16.mxu0 0
        %5100 = vmatmul.mubr.bf16.gmra.mxu0 %v4983
        %v5101 = vpop.f32.mrf.mxu0
        %v5102 = vadd.f32 0.0, %v5101
        %v5103 = vpop.f32.mrf.mxu0
        %v5104 = vadd.f32 0.0, %v5103
        %v5105 = vpop.f32.mrf.mxu0
        %v5106 = vadd.f32 0.0, %v5105
        %v5107 = vpop.f32.mrf.mxu0
        %v5108 = vadd.f32 0.0, %v5107
        %5109 = vmatprep.mubr.bf16.mxu0 0
        %5110 = vmatmul.mubr.bf16.gmra.mxu0 %v4986
        %v5111 = vpop.f32.mrf.mxu0
        %v5112 = vadd.f32 0.0, %v5111
        %v5113 = vpop.f32.mrf.mxu0
        %v5114 = vadd.f32 0.0, %v5113
        %v5115 = vpop.f32.mrf.mxu0
        %v5116 = vadd.f32 0.0, %v5115
        %v5117 = vpop.f32.mrf.mxu0
        %v5118 = vadd.f32 0.0, %v5117
        %5119 = vmatprep.mubr.bf16.mxu0 0
        %5120 = vmatmul.mubr.bf16.gmra.mxu0 %v4989
        %v5121 = vpop.f32.mrf.mxu0
        %v5122 = vadd.f32 0.0, %v5121
        %v5123 = vpop.f32.mrf.mxu0
        %v5124 = vadd.f32 0.0, %v5123
        %v5125 = vpop.f32.mrf.mxu0
        %v5126 = vadd.f32 0.0, %v5125
        %v5127 = vpop.f32.mrf.mxu0
        %v5128 = vadd.f32 0.0, %v5127
        %5129 = vmatprep.mubr.bf16.mxu0 0
        %5130 = vmatmul.mubr.bf16.gmra.mxu0 %v4992
        %v5131 = vpop.f32.mrf.mxu0
        %v5132 = vadd.f32 0.0, %v5131
        %v5133 = vpop.f32.mrf.mxu0
        %v5134 = vadd.f32 0.0, %v5133
        %v5135 = vpop.f32.mrf.mxu0
        %v5136 = vadd.f32 0.0, %v5135
        %v5137 = vpop.f32.mrf.mxu0
        %v5138 = vadd.f32 0.0, %v5137
        %5139 = vdwg.mxu0
        %v5148 = vunpack.c.l.b16 %v4922
        %v5149 = vunpack.c.l.b16 %v4923
        %v5150 = vunpack.c.l.b16 %v4924
        %v5151 = vunpack.c.l.b16 %v4925
        %v5152 = vunpack.c.l.b16 %v4926
        %v5153 = vunpack.c.l.b16 %v4927
        %v5154 = vunpack.c.l.b16 %v4928
        %v5155 = vunpack.c.l.b16 %v4929
        %v5156 = vpack.c.b16 %v5149, %v5148
        %v5157 = vpack.c.b16 %v5151, %v5150
        %v5158 = vpack.c.b16 %v5153, %v5152
        %v5159 = vpack.c.b16 %v5155, %v5154
        %v5161 = vsel %vm3757, %v5156, 0
        %v5164 = vsel %vm3757, %v5157, 0
        %v5167 = vsel %vm3757, %v5158, 0
        %v5170 = vsel %vm3757, %v5159, 0
        %5172 = vmatprep.subr.bf16.mxu0 0
        %5173 = vmatpush1.bf16.msra.mxu0 0
        %5174 = vmatprep.subr.bf16.mxu0 0
        %5175 = vmatpush1.bf16.msra.mxu0 0
        %5176 = vmatprep.subr.bf16.mxu0 0
        %5177 = vmatpush1.bf16.msra.mxu0 0
        %5178 = vmatprep.subr.bf16.mxu0 0
        %5179 = vmatpush1.bf16.msra.mxu0 0
        %5180 = vmatprep.subr.bf16.mxu0 %v4959
        %5181 = vmatpush1.bf16.msra.mxu0 %v4958
        %5182 = vmatprep.subr.bf16.mxu0 %v4955
        %5183 = vmatpush1.bf16.msra.mxu0 %v4954
        %5184 = vmatprep.subr.bf16.mxu0 %v4951
        %5185 = vmatpush1.bf16.msra.mxu0 %v4950
        %5186 = vmatprep.subr.bf16.mxu0 %v4947
        %5187 = vmatpush1.bf16.msra.mxu0 %v4946
        %5188 = vmatprep.subr.bf16.mxu0 0
        %5189 = vmatpush2.bf16.msra.mxu0 0
        %5190 = vmatprep.subr.bf16.mxu0 0
        %5191 = vmatpush2.bf16.msra.mxu0 0
        %5192 = vmatprep.subr.bf16.mxu0 0
        %5193 = vmatpush2.bf16.msra.mxu0 0
        %5194 = vmatprep.subr.bf16.mxu0 0
        %5195 = vmatpush2.bf16.msra.mxu0 0
        %5196 = vmatprep.subr.bf16.mxu0 0
        %5197 = vmatpush2.bf16.msra.mxu0 0
        %5198 = vmatprep.subr.bf16.mxu0 0
        %5199 = vmatpush2.bf16.msra.mxu0 0
        %5200 = vmatprep.subr.bf16.mxu0 0
        %5201 = vmatpush2.bf16.msra.mxu0 0
        %5202 = vmatprep.subr.bf16.mxu0 0
        %5203 = vmatpush2.bf16.msra.mxu0 0
        %5204 = vmatprep.mubr.bf16.mxu0 0
        %5205 = vmatmul.mubr.bf16.gmra.mxu0 %v5161
        %v5206 = vpop.f32.mrf.mxu0
        %v5207 = vadd.f32 %v5029, %v5206
        %v5208 = vpop.f32.mrf.mxu0
        %v5209 = vadd.f32 %v5031, %v5208
        %v5210 = vpop.f32.mrf.mxu0
        %v5211 = vadd.f32 %v5033, %v5210
        %v5212 = vpop.f32.mrf.mxu0
        %v5213 = vadd.f32 %v5035, %v5212
        %5214 = vmatprep.mubr.bf16.mxu0 0
        %5215 = vmatmul.mubr.bf16.gmra.mxu0 %v5164
        %v5216 = vpop.f32.mrf.mxu0
        %v5217 = vadd.f32 %v5039, %v5216
        %v5218 = vpop.f32.mrf.mxu0
        %v5219 = vadd.f32 %v5041, %v5218
        %v5220 = vpop.f32.mrf.mxu0
        %v5221 = vadd.f32 %v5043, %v5220
        %v5222 = vpop.f32.mrf.mxu0
        %v5223 = vadd.f32 %v5045, %v5222
        %5224 = vmatprep.mubr.bf16.mxu0 0
        %5225 = vmatmul.mubr.bf16.gmra.mxu0 %v5167
        %v5226 = vpop.f32.mrf.mxu0
        %v5227 = vadd.f32 %v5049, %v5226
        %v5228 = vpop.f32.mrf.mxu0
        %v5229 = vadd.f32 %v5051, %v5228
        %v5230 = vpop.f32.mrf.mxu0
        %v5231 = vadd.f32 %v5053, %v5230
        %v5232 = vpop.f32.mrf.mxu0
        %v5233 = vadd.f32 %v5055, %v5232
        %5234 = vmatprep.mubr.bf16.mxu0 0
        %5235 = vmatmul.mubr.bf16.gmra.mxu0 %v5170
        %v5236 = vpop.f32.mrf.mxu0
        %v5237 = vadd.f32 %v5059, %v5236
        %v5238 = vpop.f32.mrf.mxu0
        %v5239 = vadd.f32 %v5061, %v5238
        %v5240 = vpop.f32.mrf.mxu0
        %v5241 = vadd.f32 %v5063, %v5240
        %v5242 = vpop.f32.mrf.mxu0
        %v5243 = vadd.f32 %v5065, %v5242
        %5244 = vdwg.mxu0
        %5245 = vmatprep.subr.bf16.mxu0 0
        %5246 = vmatpush1.bf16.msra.mxu0 0
        %5247 = vmatprep.subr.bf16.mxu0 0
        %5248 = vmatpush1.bf16.msra.mxu0 0
        %5249 = vmatprep.subr.bf16.mxu0 0
        %5250 = vmatpush1.bf16.msra.mxu0 0
        %5251 = vmatprep.subr.bf16.mxu0 0
        %5252 = vmatpush1.bf16.msra.mxu0 0
        %5253 = vmatprep.subr.bf16.mxu0 %v4961
        %5254 = vmatpush1.bf16.msra.mxu0 %v4960
        %5255 = vmatprep.subr.bf16.mxu0 %v4957
        %5256 = vmatpush1.bf16.msra.mxu0 %v4956
        %5257 = vmatprep.subr.bf16.mxu0 %v4953
        %5258 = vmatpush1.bf16.msra.mxu0 %v4952
        %5259 = vmatprep.subr.bf16.mxu0 %v4949
        %5260 = vmatpush1.bf16.msra.mxu0 %v4948
        %5261 = vmatprep.subr.bf16.mxu0 0
        %5262 = vmatpush2.bf16.msra.mxu0 0
        %5263 = vmatprep.subr.bf16.mxu0 0
        %5264 = vmatpush2.bf16.msra.mxu0 0
        %5265 = vmatprep.subr.bf16.mxu0 0
        %5266 = vmatpush2.bf16.msra.mxu0 0
        %5267 = vmatprep.subr.bf16.mxu0 0
        %5268 = vmatpush2.bf16.msra.mxu0 0
        %5269 = vmatprep.subr.bf16.mxu0 0
        %5270 = vmatpush2.bf16.msra.mxu0 0
        %5271 = vmatprep.subr.bf16.mxu0 0
        %5272 = vmatpush2.bf16.msra.mxu0 0
        %5273 = vmatprep.subr.bf16.mxu0 0
        %5274 = vmatpush2.bf16.msra.mxu0 0
        %5275 = vmatprep.subr.bf16.mxu0 0
        %5276 = vmatpush2.bf16.msra.mxu0 0
        %5277 = vmatprep.mubr.bf16.mxu0 0
        %5278 = vmatmul.mubr.bf16.gmra.mxu0 %v5161
        %v5279 = vpop.f32.mrf.mxu0
        %v5280 = vadd.f32 %v5102, %v5279
        %v5281 = vpop.f32.mrf.mxu0
        %v5282 = vadd.f32 %v5104, %v5281
        %v5283 = vpop.f32.mrf.mxu0
        %v5284 = vadd.f32 %v5106, %v5283
        %v5285 = vpop.f32.mrf.mxu0
        %v5286 = vadd.f32 %v5108, %v5285
        %5287 = vmatprep.mubr.bf16.mxu0 0
        %5288 = vmatmul.mubr.bf16.gmra.mxu0 %v5164
        %v5289 = vpop.f32.mrf.mxu0
        %v5290 = vadd.f32 %v5112, %v5289
        %v5291 = vpop.f32.mrf.mxu0
        %v5292 = vadd.f32 %v5114, %v5291
        %v5293 = vpop.f32.mrf.mxu0
        %v5294 = vadd.f32 %v5116, %v5293
        %v5295 = vpop.f32.mrf.mxu0
        %v5296 = vadd.f32 %v5118, %v5295
        %5297 = vmatprep.mubr.bf16.mxu0 0
        %5298 = vmatmul.mubr.bf16.gmra.mxu0 %v5167
        %v5299 = vpop.f32.mrf.mxu0
        %v5300 = vadd.f32 %v5122, %v5299
        %v5301 = vpop.f32.mrf.mxu0
        %v5302 = vadd.f32 %v5124, %v5301
        %v5303 = vpop.f32.mrf.mxu0
        %v5304 = vadd.f32 %v5126, %v5303
        %v5305 = vpop.f32.mrf.mxu0
        %v5306 = vadd.f32 %v5128, %v5305
        %5307 = vmatprep.mubr.bf16.mxu0 0
        %5308 = vmatmul.mubr.bf16.gmra.mxu0 %v5170
        %v5309 = vpop.f32.mrf.mxu0
        %v5310 = vadd.f32 %v5132, %v5309
        %v5311 = vpop.f32.mrf.mxu0
        %v5312 = vadd.f32 %v5134, %v5311
        %v5313 = vpop.f32.mrf.mxu0
        %v5314 = vadd.f32 %v5136, %v5313
        %v5315 = vpop.f32.mrf.mxu0
        %v5316 = vadd.f32 %v5138, %v5315
        %5317 = vdwg.mxu0
        %5319 = vset.pattern.permute.xlu0 0
        %5320 = vperm.xlu0 %5319, %v4938
        %v5321 = vpop.permute.xlu0 %5320
        %5324 = vset.pattern.permute.xlu0 0
        %5325 = vperm.xlu0 %5324, %v4939
        %v5326 = vpop.permute.xlu0 %5325
        %5329 = vset.pattern.permute.xlu0 0
        %5330 = vperm.xlu0 %5329, %v4940
        %v5331 = vpop.permute.xlu0 %5330
        %5334 = vset.pattern.permute.xlu0 0
        %5335 = vperm.xlu0 %5334, %v4941
        %v5336 = vpop.permute.xlu0 %5335
        %5339 = vset.pattern.permute.xlu0 0
        %5340 = vperm.xlu0 %5339, %v4942
        %v5341 = vpop.permute.xlu0 %5340
        %5344 = vset.pattern.permute.xlu0 0
        %5345 = vperm.xlu0 %5344, %v4943
        %v5346 = vpop.permute.xlu0 %5345
        %5349 = vset.pattern.permute.xlu0 0
        %5350 = vperm.xlu0 %5349, %v4944
        %v5351 = vpop.permute.xlu0 %5350
        %5354 = vset.pattern.permute.xlu0 0
        %5355 = vperm.xlu0 %5354, %v4945
        %v5356 = vpop.permute.xlu0 %5355
        %v5358 = vadd.f32 %v5207, %v5321
        %v5359 = vadd.f32 %v5209, %v5321
        %v5360 = vadd.f32 %v5280, %v5321
        %v5361 = vadd.f32 %v5282, %v5321
        %v5362 = vadd.f32 %v5211, %v5326
        %v5363 = vadd.f32 %v5213, %v5326
        %v5364 = vadd.f32 %v5284, %v5326
        %v5365 = vadd.f32 %v5286, %v5326
        %v5366 = vadd.f32 %v5217, %v5331
        %v5367 = vadd.f32 %v5219, %v5331
        %v5368 = vadd.f32 %v5290, %v5331
        %v5369 = vadd.f32 %v5292, %v5331
        %v5370 = vadd.f32 %v5221, %v5336
        %v5371 = vadd.f32 %v5223, %v5336
        %v5372 = vadd.f32 %v5294, %v5336
        %v5373 = vadd.f32 %v5296, %v5336
        %v5374 = vadd.f32 %v5227, %v5341
        %v5375 = vadd.f32 %v5229, %v5341
        %v5376 = vadd.f32 %v5300, %v5341
        %v5377 = vadd.f32 %v5302, %v5341
        %v5378 = vadd.f32 %v5231, %v5346
        %v5379 = vadd.f32 %v5233, %v5346
        %v5380 = vadd.f32 %v5304, %v5346
        %v5381 = vadd.f32 %v5306, %v5346
        %v5382 = vadd.f32 %v5237, %v5351
        %v5383 = vadd.f32 %v5239, %v5351
        %v5384 = vadd.f32 %v5310, %v5351
        %v5385 = vadd.f32 %v5312, %v5351
        %v5386 = vadd.f32 %v5241, %v5356
        %v5387 = vadd.f32 %v5243, %v5356
        %v5388 = vadd.f32 %v5314, %v5356
        %v5389 = vadd.f32 %v5316, %v5356
        %vm5390 = vcmp.ge.f32.partialorder %v5358, 0.0
        %vm5391 = vcmp.ge.f32.partialorder %v5359, 0.0
        %vm5392 = vcmp.ge.f32.partialorder %v5360, 0.0
        %vm5393 = vcmp.ge.f32.partialorder %v5361, 0.0
        %vm5394 = vcmp.ge.f32.partialorder %v5362, 0.0
        %vm5395 = vcmp.ge.f32.partialorder %v5363, 0.0
        %vm5396 = vcmp.ge.f32.partialorder %v5364, 0.0
        %vm5397 = vcmp.ge.f32.partialorder %v5365, 0.0
        %vm5398 = vcmp.ge.f32.partialorder %v5366, 0.0
        %vm5399 = vcmp.ge.f32.partialorder %v5367, 0.0
        %vm5400 = vcmp.ge.f32.partialorder %v5368, 0.0
        %vm5401 = vcmp.ge.f32.partialorder %v5369, 0.0
        %vm5402 = vcmp.ge.f32.partialorder %v5370, 0.0
        %vm5403 = vcmp.ge.f32.partialorder %v5371, 0.0
        %vm5404 = vcmp.ge.f32.partialorder %v5372, 0.0
        %vm5405 = vcmp.ge.f32.partialorder %v5373, 0.0
        %vm5406 = vcmp.ge.f32.partialorder %v5374, 0.0
        %vm5407 = vcmp.ge.f32.partialorder %v5375, 0.0
        %vm5408 = vcmp.ge.f32.partialorder %v5376, 0.0
        %vm5409 = vcmp.ge.f32.partialorder %v5377, 0.0
        %vm5410 = vcmp.ge.f32.partialorder %v5378, 0.0
        %vm5411 = vcmp.ge.f32.partialorder %v5379, 0.0
        %vm5412 = vcmp.ge.f32.partialorder %v5380, 0.0
        %vm5413 = vcmp.ge.f32.partialorder %v5381, 0.0
        %vm5414 = vcmp.ge.f32.partialorder %v5382, 0.0
        %vm5415 = vcmp.ge.f32.partialorder %v5383, 0.0
        %vm5416 = vcmp.ge.f32.partialorder %v5384, 0.0
        %vm5417 = vcmp.ge.f32.partialorder %v5385, 0.0
        %vm5418 = vcmp.ge.f32.partialorder %v5386, 0.0
        %vm5419 = vcmp.ge.f32.partialorder %v5387, 0.0
        %vm5420 = vcmp.ge.f32.partialorder %v5388, 0.0
        %vm5421 = vcmp.ge.f32.partialorder %v5389, 0.0
        %v5422 = vmul.f32 %v5358, 0.01
        %v5423 = vmul.f32 %v5359, 0.01
        %v5424 = vmul.f32 %v5360, 0.01
        %v5425 = vmul.f32 %v5361, 0.01
        %v5426 = vmul.f32 %v5362, 0.01
        %v5427 = vmul.f32 %v5363, 0.01
        %v5428 = vmul.f32 %v5364, 0.01
        %v5429 = vmul.f32 %v5365, 0.01
        %v5430 = vmul.f32 %v5366, 0.01
        %v5431 = vmul.f32 %v5367, 0.01
        %v5432 = vmul.f32 %v5368, 0.01
        %v5433 = vmul.f32 %v5369, 0.01
        %v5434 = vmul.f32 %v5370, 0.01
        %v5435 = vmul.f32 %v5371, 0.01
        %v5436 = vmul.f32 %v5372, 0.01
        %v5437 = vmul.f32 %v5373, 0.01
        %v5438 = vmul.f32 %v5374, 0.01
        %v5439 = vmul.f32 %v5375, 0.01
        %v5440 = vmul.f32 %v5376, 0.01
        %v5441 = vmul.f32 %v5377, 0.01
        %v5442 = vmul.f32 %v5378, 0.01
        %v5443 = vmul.f32 %v5379, 0.01
        %v5444 = vmul.f32 %v5380, 0.01
        %v5445 = vmul.f32 %v5381, 0.01
        %v5446 = vmul.f32 %v5382, 0.01
        %v5447 = vmul.f32 %v5383, 0.01
        %v5448 = vmul.f32 %v5384, 0.01
        %v5449 = vmul.f32 %v5385, 0.01
        %v5450 = vmul.f32 %v5386, 0.01
        %v5451 = vmul.f32 %v5387, 0.01
        %v5452 = vmul.f32 %v5388, 0.01
        %v5453 = vmul.f32 %v5389, 0.01
        %v5454 = vsel %vm5390, %v5358, %v5422
        %v5455 = vsel %vm5391, %v5359, %v5423
        %v5456 = vsel %vm5392, %v5360, %v5424
        %v5457 = vsel %vm5393, %v5361, %v5425
        %v5458 = vsel %vm5394, %v5362, %v5426
        %v5459 = vsel %vm5395, %v5363, %v5427
        %v5460 = vsel %vm5396, %v5364, %v5428
        %v5461 = vsel %vm5397, %v5365, %v5429
        %v5462 = vsel %vm5398, %v5366, %v5430
        %v5463 = vsel %vm5399, %v5367, %v5431
        %v5464 = vsel %vm5400, %v5368, %v5432
        %v5465 = vsel %vm5401, %v5369, %v5433
        %v5466 = vsel %vm5402, %v5370, %v5434
        %v5467 = vsel %vm5403, %v5371, %v5435
        %v5468 = vsel %vm5404, %v5372, %v5436
        %v5469 = vsel %vm5405, %v5373, %v5437
        %v5470 = vsel %vm5406, %v5374, %v5438
        %v5471 = vsel %vm5407, %v5375, %v5439
        %v5472 = vsel %vm5408, %v5376, %v5440
        %v5473 = vsel %vm5409, %v5377, %v5441
        %v5474 = vsel %vm5410, %v5378, %v5442
        %v5475 = vsel %vm5411, %v5379, %v5443
        %v5476 = vsel %vm5412, %v5380, %v5444
        %v5477 = vsel %vm5413, %v5381, %v5445
        %v5478 = vsel %vm5414, %v5382, %v5446
        %v5479 = vsel %vm5415, %v5383, %v5447
        %v5480 = vsel %vm5416, %v5384, %v5448
        %v5481 = vsel %vm5417, %v5385, %v5449
        %v5482 = vsel %vm5418, %v5386, %v5450
        %v5483 = vsel %vm5419, %v5387, %v5451
        %v5484 = vsel %vm5420, %v5388, %v5452
        %v5485 = vsel %vm5421, %v5389, %v5453
        %v5486 = vld [vmem:[%s15] sm:$0xf]
        %v5487 = vld [vmem:[%s15 + $0x4] sm:$0xf]
        %v5488 = vld [vmem:[%s15 + $0x8] sm:$0xf]
        %v5489 = vld [vmem:[%s15 + $0xc] sm:$0xf]
        %v5490 = vld [vmem:[%s15 + $0x10] sm:$0xf]
        %v5491 = vld [vmem:[%s15 + $0x14] sm:$0xf]
        %v5492 = vld [vmem:[%s15 + $0x18] sm:$0xf]
        %v5493 = vld [vmem:[%s15 + $0x1c] sm:$0xf]
        %v5494 = vld [vmem:[%s16] sm:$0xff]
        %v5495 = vld [vmem:[%s16 + $0x8] sm:$0xff]
        %v5496 = vld [vmem:[%s16 + $0x10] sm:$0xff]
        %v5497 = vld [vmem:[%s16 + $0x18] sm:$0xff]
        %v5498 = vld [vmem:[%s16 + $0x20] sm:$0xff]
        %v5499 = vld [vmem:[%s16 + $0x28] sm:$0xff]
        %v5500 = vld [vmem:[%s16 + $0x30] sm:$0xff]
        %v5501 = vld [vmem:[%s16 + $0x38] sm:$0xff]
        %v5502 = vpack.c.bf16 %v5458, %v5454
        %v5503 = vpack.c.bf16 %v5459, %v5455
        %v5504 = vpack.c.bf16 %v5460, %v5456
        %v5505 = vpack.c.bf16 %v5461, %v5457
        %v5506 = vpack.c.bf16 %v5466, %v5462
        %v5507 = vpack.c.bf16 %v5467, %v5463
        %v5508 = vpack.c.bf16 %v5468, %v5464
        %v5509 = vpack.c.bf16 %v5469, %v5465
        %v5510 = vpack.c.bf16 %v5474, %v5470
        %v5511 = vpack.c.bf16 %v5475, %v5471
        %v5512 = vpack.c.bf16 %v5476, %v5472
        %v5513 = vpack.c.bf16 %v5477, %v5473
        %v5514 = vpack.c.bf16 %v5482, %v5478
        %v5515 = vpack.c.bf16 %v5483, %v5479
        %v5516 = vpack.c.bf16 %v5484, %v5480
        %v5517 = vpack.c.bf16 %v5485, %v5481
        %5519 = vset.pattern.permute.xlu0 0
        %5520 = vperm.xlu0 %5519, %v5494
        %v5521 = vpop.permute.xlu0 %5520
        %5524 = vset.pattern.permute.xlu0 0
        %5525 = vperm.xlu0 %5524, %v5495
        %v5526 = vpop.permute.xlu0 %5525
        %5529 = vset.pattern.permute.xlu0 0
        %5530 = vperm.xlu0 %5529, %v5496
        %v5531 = vpop.permute.xlu0 %5530
        %5534 = vset.pattern.permute.xlu0 0
        %5535 = vperm.xlu0 %5534, %v5497
        %v5536 = vpop.permute.xlu0 %5535
        %5539 = vset.pattern.permute.xlu0 0
        %5540 = vperm.xlu0 %5539, %v5498
        %v5541 = vpop.permute.xlu0 %5540
        %5544 = vset.pattern.permute.xlu0 0
        %5545 = vperm.xlu0 %5544, %v5499
        %v5546 = vpop.permute.xlu0 %5545
        %5549 = vset.pattern.permute.xlu0 0
        %5550 = vperm.xlu0 %5549, %v5500
        %v5551 = vpop.permute.xlu0 %5550
        %5554 = vset.pattern.permute.xlu0 0
        %5555 = vperm.xlu0 %5554, %v5501
        %v5556 = vpop.permute.xlu0 %5555
        %v5566 = vunpack.c.l.b16 %v5486
        %v5567 = vunpack.c.l.b16 %v5487
        %v5568 = vunpack.c.l.b16 %v5488
        %v5569 = vunpack.c.l.b16 %v5489
        %v5570 = vunpack.c.l.b16 %v5490
        %v5571 = vunpack.c.l.b16 %v5491
        %v5572 = vunpack.c.l.b16 %v5492
        %v5573 = vunpack.c.l.b16 %v5493
        %v5574 = vpack.c.b16 %v5567, %v5566
        %v5575 = vpack.c.b16 %v5569, %v5568
        %v5576 = vpack.c.b16 %v5571, %v5570
        %v5577 = vpack.c.b16 %v5573, %v5572
        %v5579 = vsel %vm3757, %v5574, 0
        %v5582 = vsel %vm3757, %v5575, 0
        %v5585 = vsel %vm3757, %v5576, 0
        %v5588 = vsel %vm3757, %v5577, 0
        %5590 = vmatprep.subr.bf16.mxu0 0
        %5591 = vmatpush1.bf16.msra.mxu0 0
        %5592 = vmatprep.subr.bf16.mxu0 0
        %5593 = vmatpush1.bf16.msra.mxu0 0
        %5594 = vmatprep.subr.bf16.mxu0 0
        %5595 = vmatpush1.bf16.msra.mxu0 0
        %5596 = vmatprep.subr.bf16.mxu0 0
        %5597 = vmatpush1.bf16.msra.mxu0 0
        %5598 = vmatprep.subr.bf16.mxu0 %v5515
        %5599 = vmatpush1.bf16.msra.mxu0 %v5514
        %5600 = vmatprep.subr.bf16.mxu0 %v5511
        %5601 = vmatpush1.bf16.msra.mxu0 %v5510
        %5602 = vmatprep.subr.bf16.mxu0 %v5507
        %5603 = vmatpush1.bf16.msra.mxu0 %v5506
        %5604 = vmatprep.subr.bf16.mxu0 %v5503
        %5605 = vmatpush1.bf16.msra.mxu0 %v5502
        %5606 = vmatprep.subr.bf16.mxu0 0
        %5607 = vmatpush2.bf16.msra.mxu0 0
        %5608 = vmatprep.subr.bf16.mxu0 0
        %5609 = vmatpush2.bf16.msra.mxu0 0
        %5610 = vmatprep.subr.bf16.mxu0 0
        %5611 = vmatpush2.bf16.msra.mxu0 0
        %5612 = vmatprep.subr.bf16.mxu0 0
        %5613 = vmatpush2.bf16.msra.mxu0 0
        %5614 = vmatprep.subr.bf16.mxu0 0
        %5615 = vmatpush2.bf16.msra.mxu0 0
        %5616 = vmatprep.subr.bf16.mxu0 0
        %5617 = vmatpush2.bf16.msra.mxu0 0
        %5618 = vmatprep.subr.bf16.mxu0 0
        %5619 = vmatpush2.bf16.msra.mxu0 0
        %5620 = vmatprep.subr.bf16.mxu0 0
        %5621 = vmatpush2.bf16.msra.mxu0 0
        %5622 = vmatprep.mubr.bf16.mxu0 0
        %5623 = vmatmul.mubr.bf16.gmra.mxu0 %v5579
        %v5624 = vpop.f32.mrf.mxu0
        %v5625 = vadd.f32 %v5521, %v5624
        %v5626 = vpop.f32.mrf.mxu0
        %v5627 = vadd.f32 %v5521, %v5626
        %v5628 = vpop.f32.mrf.mxu0
        %v5629 = vadd.f32 %v5526, %v5628
        %v5630 = vpop.f32.mrf.mxu0
        %v5631 = vadd.f32 %v5526, %v5630
        %5632 = vmatprep.mubr.bf16.mxu0 0
        %5633 = vmatmul.mubr.bf16.gmra.mxu0 %v5582
        %v5634 = vpop.f32.mrf.mxu0
        %v5635 = vadd.f32 %v5531, %v5634
        %v5636 = vpop.f32.mrf.mxu0
        %v5637 = vadd.f32 %v5531, %v5636
        %v5638 = vpop.f32.mrf.mxu0
        %v5639 = vadd.f32 %v5536, %v5638
        %v5640 = vpop.f32.mrf.mxu0
        %v5641 = vadd.f32 %v5536, %v5640
        %5642 = vmatprep.mubr.bf16.mxu0 0
        %5643 = vmatmul.mubr.bf16.gmra.mxu0 %v5585
        %v5644 = vpop.f32.mrf.mxu0
        %v5645 = vadd.f32 %v5541, %v5644
        %v5646 = vpop.f32.mrf.mxu0
        %v5647 = vadd.f32 %v5541, %v5646
        %v5648 = vpop.f32.mrf.mxu0
        %v5649 = vadd.f32 %v5546, %v5648
        %v5650 = vpop.f32.mrf.mxu0
        %v5651 = vadd.f32 %v5546, %v5650
        %5652 = vmatprep.mubr.bf16.mxu0 0
        %5653 = vmatmul.mubr.bf16.gmra.mxu0 %v5588
        %v5654 = vpop.f32.mrf.mxu0
        %v5655 = vadd.f32 %v5551, %v5654
        %v5656 = vpop.f32.mrf.mxu0
        %v5657 = vadd.f32 %v5551, %v5656
        %v5658 = vpop.f32.mrf.mxu0
        %v5659 = vadd.f32 %v5556, %v5658
        %v5660 = vpop.f32.mrf.mxu0
        %v5661 = vadd.f32 %v5556, %v5660
        %5662 = vdwg.mxu0
        %5663 = vmatprep.subr.bf16.mxu0 0
        %5664 = vmatpush1.bf16.msra.mxu0 0
        %5665 = vmatprep.subr.bf16.mxu0 0
        %5666 = vmatpush1.bf16.msra.mxu0 0
        %5667 = vmatprep.subr.bf16.mxu0 0
        %5668 = vmatpush1.bf16.msra.mxu0 0
        %5669 = vmatprep.subr.bf16.mxu0 0
        %5670 = vmatpush1.bf16.msra.mxu0 0
        %5671 = vmatprep.subr.bf16.mxu0 %v5517
        %5672 = vmatpush1.bf16.msra.mxu0 %v5516
        %5673 = vmatprep.subr.bf16.mxu0 %v5513
        %5674 = vmatpush1.bf16.msra.mxu0 %v5512
        %5675 = vmatprep.subr.bf16.mxu0 %v5509
        %5676 = vmatpush1.bf16.msra.mxu0 %v5508
        %5677 = vmatprep.subr.bf16.mxu0 %v5505
        %5678 = vmatpush1.bf16.msra.mxu0 %v5504
        %5679 = vmatprep.subr.bf16.mxu0 0
        %5680 = vmatpush2.bf16.msra.mxu0 0
        %5681 = vmatprep.subr.bf16.mxu0 0
        %5682 = vmatpush2.bf16.msra.mxu0 0
        %5683 = vmatprep.subr.bf16.mxu0 0
        %5684 = vmatpush2.bf16.msra.mxu0 0
        %5685 = vmatprep.subr.bf16.mxu0 0
        %5686 = vmatpush2.bf16.msra.mxu0 0
        %5687 = vmatprep.subr.bf16.mxu0 0
        %5688 = vmatpush2.bf16.msra.mxu0 0
        %5689 = vmatprep.subr.bf16.mxu0 0
        %5690 = vmatpush2.bf16.msra.mxu0 0
        %5691 = vmatprep.subr.bf16.mxu0 0
        %5692 = vmatpush2.bf16.msra.mxu0 0
        %5693 = vmatprep.subr.bf16.mxu0 0
        %5694 = vmatpush2.bf16.msra.mxu0 0
        %5695 = vmatprep.mubr.bf16.mxu0 0
        %5696 = vmatmul.mubr.bf16.gmra.mxu0 %v5579
        %v5697 = vpop.f32.mrf.mxu0
        %v5698 = vadd.f32 %v5521, %v5697
        %v5699 = vpop.f32.mrf.mxu0
        %v5700 = vadd.f32 %v5521, %v5699
        %v5701 = vpop.f32.mrf.mxu0
        %v5702 = vadd.f32 %v5526, %v5701
        %v5703 = vpop.f32.mrf.mxu0
        %v5704 = vadd.f32 %v5526, %v5703
        %5705 = vmatprep.mubr.bf16.mxu0 0
        %5706 = vmatmul.mubr.bf16.gmra.mxu0 %v5582
        %v5707 = vpop.f32.mrf.mxu0
        %v5708 = vadd.f32 %v5531, %v5707
        %v5709 = vpop.f32.mrf.mxu0
        %v5710 = vadd.f32 %v5531, %v5709
        %v5711 = vpop.f32.mrf.mxu0
        %v5712 = vadd.f32 %v5536, %v5711
        %v5713 = vpop.f32.mrf.mxu0
        %v5714 = vadd.f32 %v5536, %v5713
        %5715 = vmatprep.mubr.bf16.mxu0 0
        %5716 = vmatmul.mubr.bf16.gmra.mxu0 %v5585
        %v5717 = vpop.f32.mrf.mxu0
        %v5718 = vadd.f32 %v5541, %v5717
        %v5719 = vpop.f32.mrf.mxu0
        %v5720 = vadd.f32 %v5541, %v5719
        %v5721 = vpop.f32.mrf.mxu0
        %v5722 = vadd.f32 %v5546, %v5721
        %v5723 = vpop.f32.mrf.mxu0
        %v5724 = vadd.f32 %v5546, %v5723
        %5725 = vmatprep.mubr.bf16.mxu0 0
        %5726 = vmatmul.mubr.bf16.gmra.mxu0 %v5588
        %v5727 = vpop.f32.mrf.mxu0
        %v5728 = vadd.f32 %v5551, %v5727
        %v5729 = vpop.f32.mrf.mxu0
        %v5730 = vadd.f32 %v5551, %v5729
        %v5731 = vpop.f32.mrf.mxu0
        %v5732 = vadd.f32 %v5556, %v5731
        %v5733 = vpop.f32.mrf.mxu0
        %v5734 = vadd.f32 %v5556, %v5733
        %5735 = vdwg.mxu0
        %vm5736 = vcmp.ge.f32.partialorder %v5625, 0.0
        %vm5737 = vcmp.ge.f32.partialorder %v5627, 0.0
        %vm5738 = vcmp.ge.f32.partialorder %v5698, 0.0
        %vm5739 = vcmp.ge.f32.partialorder %v5700, 0.0
        %vm5740 = vcmp.ge.f32.partialorder %v5629, 0.0
        %vm5741 = vcmp.ge.f32.partialorder %v5631, 0.0
        %vm5742 = vcmp.ge.f32.partialorder %v5702, 0.0
        %vm5743 = vcmp.ge.f32.partialorder %v5704, 0.0
        %vm5744 = vcmp.ge.f32.partialorder %v5635, 0.0
        %vm5745 = vcmp.ge.f32.partialorder %v5637, 0.0
        %vm5746 = vcmp.ge.f32.partialorder %v5708, 0.0
        %vm5747 = vcmp.ge.f32.partialorder %v5710, 0.0
        %vm5748 = vcmp.ge.f32.partialorder %v5639, 0.0
        %vm5749 = vcmp.ge.f32.partialorder %v5641, 0.0
        %vm5750 = vcmp.ge.f32.partialorder %v5712, 0.0
        %vm5751 = vcmp.ge.f32.partialorder %v5714, 0.0
        %vm5752 = vcmp.ge.f32.partialorder %v5645, 0.0
        %vm5753 = vcmp.ge.f32.partialorder %v5647, 0.0
        %vm5754 = vcmp.ge.f32.partialorder %v5718, 0.0
        %vm5755 = vcmp.ge.f32.partialorder %v5720, 0.0
        %vm5756 = vcmp.ge.f32.partialorder %v5649, 0.0
        %vm5757 = vcmp.ge.f32.partialorder %v5651, 0.0
        %vm5758 = vcmp.ge.f32.partialorder %v5722, 0.0
        %vm5759 = vcmp.ge.f32.partialorder %v5724, 0.0
        %vm5760 = vcmp.ge.f32.partialorder %v5655, 0.0
        %vm5761 = vcmp.ge.f32.partialorder %v5657, 0.0
        %vm5762 = vcmp.ge.f32.partialorder %v5728, 0.0
        %vm5763 = vcmp.ge.f32.partialorder %v5730, 0.0
        %vm5764 = vcmp.ge.f32.partialorder %v5659, 0.0
        %vm5765 = vcmp.ge.f32.partialorder %v5661, 0.0
        %vm5766 = vcmp.ge.f32.partialorder %v5732, 0.0
        %vm5767 = vcmp.ge.f32.partialorder %v5734, 0.0
        %v5768 = vmul.f32 %v5625, 0.01
        %v5769 = vmul.f32 %v5627, 0.01
        %v5770 = vmul.f32 %v5698, 0.01
        %v5771 = vmul.f32 %v5700, 0.01
        %v5772 = vmul.f32 %v5629, 0.01
        %v5773 = vmul.f32 %v5631, 0.01
        %v5774 = vmul.f32 %v5702, 0.01
        %v5775 = vmul.f32 %v5704, 0.01
        %v5776 = vmul.f32 %v5635, 0.01
        %v5777 = vmul.f32 %v5637, 0.01
        %v5778 = vmul.f32 %v5708, 0.01
        %v5779 = vmul.f32 %v5710, 0.01
        %v5780 = vmul.f32 %v5639, 0.01
        %v5781 = vmul.f32 %v5641, 0.01
        %v5782 = vmul.f32 %v5712, 0.01
        %v5783 = vmul.f32 %v5714, 0.01
        %v5784 = vmul.f32 %v5645, 0.01
        %v5785 = vmul.f32 %v5647, 0.01
        %v5786 = vmul.f32 %v5718, 0.01
        %v5787 = vmul.f32 %v5720, 0.01
        %v5788 = vmul.f32 %v5649, 0.01
        %v5789 = vmul.f32 %v5651, 0.01
        %v5790 = vmul.f32 %v5722, 0.01
        %v5791 = vmul.f32 %v5724, 0.01
        %v5792 = vmul.f32 %v5655, 0.01
        %v5793 = vmul.f32 %v5657, 0.01
        %v5794 = vmul.f32 %v5728, 0.01
        %v5795 = vmul.f32 %v5730, 0.01
        %v5796 = vmul.f32 %v5659, 0.01
        %v5797 = vmul.f32 %v5661, 0.01
        %v5798 = vmul.f32 %v5732, 0.01
        %v5799 = vmul.f32 %v5734, 0.01
        %v5800 = vsel %vm5736, %v5625, %v5768
        %v5801 = vsel %vm5737, %v5627, %v5769
        %v5802 = vsel %vm5738, %v5698, %v5770
        %v5803 = vsel %vm5739, %v5700, %v5771
        %v5804 = vsel %vm5740, %v5629, %v5772
        %v5805 = vsel %vm5741, %v5631, %v5773
        %v5806 = vsel %vm5742, %v5702, %v5774
        %v5807 = vsel %vm5743, %v5704, %v5775
        %v5808 = vsel %vm5744, %v5635, %v5776
        %v5809 = vsel %vm5745, %v5637, %v5777
        %v5810 = vsel %vm5746, %v5708, %v5778
        %v5811 = vsel %vm5747, %v5710, %v5779
        %v5812 = vsel %vm5748, %v5639, %v5780
        %v5813 = vsel %vm5749, %v5641, %v5781
        %v5814 = vsel %vm5750, %v5712, %v5782
        %v5815 = vsel %vm5751, %v5714, %v5783
        %v5816 = vsel %vm5752, %v5645, %v5784
        %v5817 = vsel %vm5753, %v5647, %v5785
        %v5818 = vsel %vm5754, %v5718, %v5786
        %v5819 = vsel %vm5755, %v5720, %v5787
        %v5820 = vsel %vm5756, %v5649, %v5788
        %v5821 = vsel %vm5757, %v5651, %v5789
        %v5822 = vsel %vm5758, %v5722, %v5790
        %v5823 = vsel %vm5759, %v5724, %v5791
        %v5824 = vsel %vm5760, %v5655, %v5792
        %v5825 = vsel %vm5761, %v5657, %v5793
        %v5826 = vsel %vm5762, %v5728, %v5794
        %v5827 = vsel %vm5763, %v5730, %v5795
        %v5828 = vsel %vm5764, %v5659, %v5796
        %v5829 = vsel %vm5765, %v5661, %v5797
        %v5830 = vsel %vm5766, %v5732, %v5798
        %v5831 = vsel %vm5767, %v5734, %v5799
        %v5832 = vld [vmem:[%s17] sm:$0xf]
        %v5833 = vld [vmem:[%s17 + $0x4] sm:$0xf]
        %v5834 = vld [vmem:[%s17 + $0x8] sm:$0xf]
        %v5835 = vld [vmem:[%s17 + $0xc] sm:$0xf]
        %v5836 = vld [vmem:[%s17 + $0x10] sm:$0xf]
        %v5837 = vld [vmem:[%s17 + $0x14] sm:$0xf]
        %v5838 = vld [vmem:[%s17 + $0x18] sm:$0xf]
        %v5839 = vld [vmem:[%s17 + $0x1c] sm:$0xf]
        %v5840 = vld [vmem:[%s18] sm:$0xf]
        %v5841 = vld [vmem:[%s18 + $0x4] sm:$0xf]
        %v5842 = vld [vmem:[%s18 + $0x8] sm:$0xf]
        %v5843 = vld [vmem:[%s18 + $0xc] sm:$0xf]
        %v5844 = vld [vmem:[%s18 + $0x10] sm:$0xf]
        %v5845 = vld [vmem:[%s18 + $0x14] sm:$0xf]
        %v5846 = vld [vmem:[%s18 + $0x18] sm:$0xf]
        %v5847 = vld [vmem:[%s18 + $0x1c] sm:$0xf]
        %v5848 = vld [vmem:[%s19] sm:$0xff]
        %v5849 = vld [vmem:[%s19 + $0x8] sm:$0xff]
        %v5850 = vld [vmem:[%s19 + $0x10] sm:$0xff]
        %v5851 = vld [vmem:[%s19 + $0x18] sm:$0xff]
        %v5852 = vld [vmem:[%s19 + $0x20] sm:$0xff]
        %v5853 = vld [vmem:[%s19 + $0x28] sm:$0xff]
        %v5854 = vld [vmem:[%s19 + $0x30] sm:$0xff]
        %v5855 = vld [vmem:[%s19 + $0x38] sm:$0xff]
        %v5856 = vpack.c.bf16 %v5804, %v5800
        %v5857 = vpack.c.bf16 %v5805, %v5801
        %v5858 = vpack.c.bf16 %v5806, %v5802
        %v5859 = vpack.c.bf16 %v5807, %v5803
        %v5860 = vpack.c.bf16 %v5812, %v5808
        %v5861 = vpack.c.bf16 %v5813, %v5809
        %v5862 = vpack.c.bf16 %v5814, %v5810
        %v5863 = vpack.c.bf16 %v5815, %v5811
        %v5864 = vpack.c.bf16 %v5820, %v5816
        %v5865 = vpack.c.bf16 %v5821, %v5817
        %v5866 = vpack.c.bf16 %v5822, %v5818
        %v5867 = vpack.c.bf16 %v5823, %v5819
        %v5868 = vpack.c.bf16 %v5828, %v5824
        %v5869 = vpack.c.bf16 %v5829, %v5825
        %v5870 = vpack.c.bf16 %v5830, %v5826
        %v5871 = vpack.c.bf16 %v5831, %v5827
        %v5880 = vunpack.c.l.b16 %v5840
        %v5881 = vunpack.c.l.b16 %v5841
        %v5882 = vunpack.c.l.b16 %v5842
        %v5883 = vunpack.c.l.b16 %v5843
        %v5884 = vunpack.c.l.b16 %v5844
        %v5885 = vunpack.c.l.b16 %v5845
        %v5886 = vunpack.c.l.b16 %v5846
        %v5887 = vunpack.c.l.b16 %v5847
        %v5888 = vpack.c.b16 %v5881, %v5880
        %v5889 = vpack.c.b16 %v5883, %v5882
        %v5890 = vpack.c.b16 %v5885, %v5884
        %v5891 = vpack.c.b16 %v5887, %v5886
        %v5893 = vsel %vm3410, %v5888, 0
        %v5896 = vsel %vm3410, %v5889, 0
        %v5899 = vsel %vm3410, %v5890, 0
        %v5902 = vsel %vm3410, %v5891, 0
        %5904 = vmatprep.subr.bf16.mxu0 0
        %5905 = vmatpush1.bf16.msra.mxu0 0
        %5906 = vmatprep.subr.bf16.mxu0 0
        %5907 = vmatpush1.bf16.msra.mxu0 0
        %5908 = vmatprep.subr.bf16.mxu0 0
        %5909 = vmatpush1.bf16.msra.mxu0 0
        %5910 = vmatprep.subr.bf16.mxu0 0
        %5911 = vmatpush1.bf16.msra.mxu0 0
        %5912 = vmatprep.subr.bf16.mxu0 0
        %5913 = vmatpush1.bf16.msra.mxu0 0
        %5914 = vmatprep.subr.bf16.mxu0 %v3331
        %5915 = vmatpush1.bf16.msra.mxu0 %v3330
        %5916 = vmatprep.subr.bf16.mxu0 %v3327
        %5917 = vmatpush1.bf16.msra.mxu0 %v3326
        %5918 = vmatprep.subr.bf16.mxu0 %v3323
        %5919 = vmatpush1.bf16.msra.mxu0 %v3322
        %5920 = vmatprep.subr.bf16.mxu0 0
        %5921 = vmatpush2.bf16.msra.mxu0 0
        %5922 = vmatprep.subr.bf16.mxu0 0
        %5923 = vmatpush2.bf16.msra.mxu0 0
        %5924 = vmatprep.subr.bf16.mxu0 0
        %5925 = vmatpush2.bf16.msra.mxu0 0
        %5926 = vmatprep.subr.bf16.mxu0 0
        %5927 = vmatpush2.bf16.msra.mxu0 0
        %5928 = vmatprep.subr.bf16.mxu0 0
        %5929 = vmatpush2.bf16.msra.mxu0 0
        %5930 = vmatprep.subr.bf16.mxu0 0
        %5931 = vmatpush2.bf16.msra.mxu0 0
        %5932 = vmatprep.subr.bf16.mxu0 0
        %5933 = vmatpush2.bf16.msra.mxu0 0
        %5934 = vmatprep.subr.bf16.mxu0 0
        %5935 = vmatpush2.bf16.msra.mxu0 0
        %5936 = vmatprep.mubr.bf16.mxu0 0
        %5937 = vmatmul.mubr.bf16.gmra.mxu0 %v5893
        %v5938 = vpop.f32.mrf.mxu0
        %v5939 = vadd.f32 0.0, %v5938
        %v5940 = vpop.f32.mrf.mxu0
        %v5941 = vadd.f32 0.0, %v5940
        %v5942 = vpop.f32.mrf.mxu0
        %v5943 = vadd.f32 0.0, %v5942
        %v5944 = vpop.f32.mrf.mxu0
        %v5945 = vadd.f32 0.0, %v5944
        %5946 = vmatprep.mubr.bf16.mxu0 0
        %5947 = vmatmul.mubr.bf16.gmra.mxu0 %v5896
        %v5948 = vpop.f32.mrf.mxu0
        %v5949 = vadd.f32 0.0, %v5948
        %v5950 = vpop.f32.mrf.mxu0
        %v5951 = vadd.f32 0.0, %v5950
        %v5952 = vpop.f32.mrf.mxu0
        %v5953 = vadd.f32 0.0, %v5952
        %v5954 = vpop.f32.mrf.mxu0
        %v5955 = vadd.f32 0.0, %v5954
        %5956 = vmatprep.mubr.bf16.mxu0 0
        %5957 = vmatmul.mubr.bf16.gmra.mxu0 %v5899
        %v5958 = vpop.f32.mrf.mxu0
        %v5959 = vadd.f32 0.0, %v5958
        %v5960 = vpop.f32.mrf.mxu0
        %v5961 = vadd.f32 0.0, %v5960
        %v5962 = vpop.f32.mrf.mxu0
        %v5963 = vadd.f32 0.0, %v5962
        %v5964 = vpop.f32.mrf.mxu0
        %v5965 = vadd.f32 0.0, %v5964
        %5966 = vmatprep.mubr.bf16.mxu0 0
        %5967 = vmatmul.mubr.bf16.gmra.mxu0 %v5902
        %v5968 = vpop.f32.mrf.mxu0
        %v5969 = vadd.f32 0.0, %v5968
        %v5970 = vpop.f32.mrf.mxu0
        %v5971 = vadd.f32 0.0, %v5970
        %v5972 = vpop.f32.mrf.mxu0
        %v5973 = vadd.f32 0.0, %v5972
        %v5974 = vpop.f32.mrf.mxu0
        %v5975 = vadd.f32 0.0, %v5974
        %5976 = vdwg.mxu0
        %5977 = vmatprep.subr.bf16.mxu0 0
        %5978 = vmatpush1.bf16.msra.mxu0 0
        %5979 = vmatprep.subr.bf16.mxu0 0
        %5980 = vmatpush1.bf16.msra.mxu0 0
        %5981 = vmatprep.subr.bf16.mxu0 0
        %5982 = vmatpush1.bf16.msra.mxu0 0
        %5983 = vmatprep.subr.bf16.mxu0 0
        %5984 = vmatpush1.bf16.msra.mxu0 0
        %5985 = vmatprep.subr.bf16.mxu0 0
        %5986 = vmatpush1.bf16.msra.mxu0 0
        %5987 = vmatprep.subr.bf16.mxu0 %v3333
        %5988 = vmatpush1.bf16.msra.mxu0 %v3332
        %5989 = vmatprep.subr.bf16.mxu0 %v3329
        %5990 = vmatpush1.bf16.msra.mxu0 %v3328
        %5991 = vmatprep.subr.bf16.mxu0 %v3325
        %5992 = vmatpush1.bf16.msra.mxu0 %v3324
        %5993 = vmatprep.subr.bf16.mxu0 0
        %5994 = vmatpush2.bf16.msra.mxu0 0
        %5995 = vmatprep.subr.bf16.mxu0 0
        %5996 = vmatpush2.bf16.msra.mxu0 0
        %5997 = vmatprep.subr.bf16.mxu0 0
        %5998 = vmatpush2.bf16.msra.mxu0 0
        %5999 = vmatprep.subr.bf16.mxu0 0
        %6000 = vmatpush2.bf16.msra.mxu0 0
        %6001 = vmatprep.subr.bf16.mxu0 0
        %6002 = vmatpush2.bf16.msra.mxu0 0
        %6003 = vmatprep.subr.bf16.mxu0 0
        %6004 = vmatpush2.bf16.msra.mxu0 0
        %6005 = vmatprep.subr.bf16.mxu0 0
        %6006 = vmatpush2.bf16.msra.mxu0 0
        %6007 = vmatprep.subr.bf16.mxu0 0
        %6008 = vmatpush2.bf16.msra.mxu0 0
        %6009 = vmatprep.mubr.bf16.mxu0 0
        %6010 = vmatmul.mubr.bf16.gmra.mxu0 %v5893
        %v6011 = vpop.f32.mrf.mxu0
        %v6012 = vadd.f32 0.0, %v6011
        %v6013 = vpop.f32.mrf.mxu0
        %v6014 = vadd.f32 0.0, %v6013
        %v6015 = vpop.f32.mrf.mxu0
        %v6016 = vadd.f32 0.0, %v6015
        %v6017 = vpop.f32.mrf.mxu0
        %v6018 = vadd.f32 0.0, %v6017
        %6019 = vmatprep.mubr.bf16.mxu0 0
        %6020 = vmatmul.mubr.bf16.gmra.mxu0 %v5896
        %v6021 = vpop.f32.mrf.mxu0
        %v6022 = vadd.f32 0.0, %v6021
        %v6023 = vpop.f32.mrf.mxu0
        %v6024 = vadd.f32 0.0, %v6023
        %v6025 = vpop.f32.mrf.mxu0
        %v6026 = vadd.f32 0.0, %v6025
        %v6027 = vpop.f32.mrf.mxu0
        %v6028 = vadd.f32 0.0, %v6027
        %6029 = vmatprep.mubr.bf16.mxu0 0
        %6030 = vmatmul.mubr.bf16.gmra.mxu0 %v5899
        %v6031 = vpop.f32.mrf.mxu0
        %v6032 = vadd.f32 0.0, %v6031
        %v6033 = vpop.f32.mrf.mxu0
        %v6034 = vadd.f32 0.0, %v6033
        %v6035 = vpop.f32.mrf.mxu0
        %v6036 = vadd.f32 0.0, %v6035
        %v6037 = vpop.f32.mrf.mxu0
        %v6038 = vadd.f32 0.0, %v6037
        %6039 = vmatprep.mubr.bf16.mxu0 0
        %6040 = vmatmul.mubr.bf16.gmra.mxu0 %v5902
        %v6041 = vpop.f32.mrf.mxu0
        %v6042 = vadd.f32 0.0, %v6041
        %v6043 = vpop.f32.mrf.mxu0
        %v6044 = vadd.f32 0.0, %v6043
        %v6045 = vpop.f32.mrf.mxu0
        %v6046 = vadd.f32 0.0, %v6045
        %v6047 = vpop.f32.mrf.mxu0
        %v6048 = vadd.f32 0.0, %v6047
        %6049 = vdwg.mxu0
        %v6058 = vunpack.c.l.b16 %v5832
        %v6059 = vunpack.c.l.b16 %v5833
        %v6060 = vunpack.c.l.b16 %v5834
        %v6061 = vunpack.c.l.b16 %v5835
        %v6062 = vunpack.c.l.b16 %v5836
        %v6063 = vunpack.c.l.b16 %v5837
        %v6064 = vunpack.c.l.b16 %v5838
        %v6065 = vunpack.c.l.b16 %v5839
        %v6066 = vpack.c.b16 %v6059, %v6058
        %v6067 = vpack.c.b16 %v6061, %v6060
        %v6068 = vpack.c.b16 %v6063, %v6062
        %v6069 = vpack.c.b16 %v6065, %v6064
        %v6071 = vsel %vm3757, %v6066, 0
        %v6074 = vsel %vm3757, %v6067, 0
        %v6077 = vsel %vm3757, %v6068, 0
        %v6080 = vsel %vm3757, %v6069, 0
        %6082 = vmatprep.subr.bf16.mxu0 0
        %6083 = vmatpush1.bf16.msra.mxu0 0
        %6084 = vmatprep.subr.bf16.mxu0 0
        %6085 = vmatpush1.bf16.msra.mxu0 0
        %6086 = vmatprep.subr.bf16.mxu0 0
        %6087 = vmatpush1.bf16.msra.mxu0 0
        %6088 = vmatprep.subr.bf16.mxu0 0
        %6089 = vmatpush1.bf16.msra.mxu0 0
        %6090 = vmatprep.subr.bf16.mxu0 %v5869
        %6091 = vmatpush1.bf16.msra.mxu0 %v5868
        %6092 = vmatprep.subr.bf16.mxu0 %v5865
        %6093 = vmatpush1.bf16.msra.mxu0 %v5864
        %6094 = vmatprep.subr.bf16.mxu0 %v5861
        %6095 = vmatpush1.bf16.msra.mxu0 %v5860
        %6096 = vmatprep.subr.bf16.mxu0 %v5857
        %6097 = vmatpush1.bf16.msra.mxu0 %v5856
        %6098 = vmatprep.subr.bf16.mxu0 0
        %6099 = vmatpush2.bf16.msra.mxu0 0
        %6100 = vmatprep.subr.bf16.mxu0 0
        %6101 = vmatpush2.bf16.msra.mxu0 0
        %6102 = vmatprep.subr.bf16.mxu0 0
        %6103 = vmatpush2.bf16.msra.mxu0 0
        %6104 = vmatprep.subr.bf16.mxu0 0
        %6105 = vmatpush2.bf16.msra.mxu0 0
        %6106 = vmatprep.subr.bf16.mxu0 0
        %6107 = vmatpush2.bf16.msra.mxu0 0
        %6108 = vmatprep.subr.bf16.mxu0 0
        %6109 = vmatpush2.bf16.msra.mxu0 0
        %6110 = vmatprep.subr.bf16.mxu0 0
        %6111 = vmatpush2.bf16.msra.mxu0 0
        %6112 = vmatprep.subr.bf16.mxu0 0
        %6113 = vmatpush2.bf16.msra.mxu0 0
        %6114 = vmatprep.mubr.bf16.mxu0 0
        %6115 = vmatmul.mubr.bf16.gmra.mxu0 %v6071
        %v6116 = vpop.f32.mrf.mxu0
        %v6117 = vadd.f32 %v5939, %v6116
        %v6118 = vpop.f32.mrf.mxu0
        %v6119 = vadd.f32 %v5941, %v6118
        %v6120 = vpop.f32.mrf.mxu0
        %v6121 = vadd.f32 %v5943, %v6120
        %v6122 = vpop.f32.mrf.mxu0
        %v6123 = vadd.f32 %v5945, %v6122
        %6124 = vmatprep.mubr.bf16.mxu0 0
        %6125 = vmatmul.mubr.bf16.gmra.mxu0 %v6074
        %v6126 = vpop.f32.mrf.mxu0
        %v6127 = vadd.f32 %v5949, %v6126
        %v6128 = vpop.f32.mrf.mxu0
        %v6129 = vadd.f32 %v5951, %v6128
        %v6130 = vpop.f32.mrf.mxu0
        %v6131 = vadd.f32 %v5953, %v6130
        %v6132 = vpop.f32.mrf.mxu0
        %v6133 = vadd.f32 %v5955, %v6132
        %6134 = vmatprep.mubr.bf16.mxu0 0
        %6135 = vmatmul.mubr.bf16.gmra.mxu0 %v6077
        %v6136 = vpop.f32.mrf.mxu0
        %v6137 = vadd.f32 %v5959, %v6136
        %v6138 = vpop.f32.mrf.mxu0
        %v6139 = vadd.f32 %v5961, %v6138
        %v6140 = vpop.f32.mrf.mxu0
        %v6141 = vadd.f32 %v5963, %v6140
        %v6142 = vpop.f32.mrf.mxu0
        %v6143 = vadd.f32 %v5965, %v6142
        %6144 = vmatprep.mubr.bf16.mxu0 0
        %6145 = vmatmul.mubr.bf16.gmra.mxu0 %v6080
        %v6146 = vpop.f32.mrf.mxu0
        %v6147 = vadd.f32 %v5969, %v6146
        %v6148 = vpop.f32.mrf.mxu0
        %v6149 = vadd.f32 %v5971, %v6148
        %v6150 = vpop.f32.mrf.mxu0
        %v6151 = vadd.f32 %v5973, %v6150
        %v6152 = vpop.f32.mrf.mxu0
        %v6153 = vadd.f32 %v5975, %v6152
        %6154 = vdwg.mxu0
        %6155 = vmatprep.subr.bf16.mxu0 0
        %6156 = vmatpush1.bf16.msra.mxu0 0
        %6157 = vmatprep.subr.bf16.mxu0 0
        %6158 = vmatpush1.bf16.msra.mxu0 0
        %6159 = vmatprep.subr.bf16.mxu0 0
        %6160 = vmatpush1.bf16.msra.mxu0 0
        %6161 = vmatprep.subr.bf16.mxu0 0
        %6162 = vmatpush1.bf16.msra.mxu0 0
        %6163 = vmatprep.subr.bf16.mxu0 %v5871
        %6164 = vmatpush1.bf16.msra.mxu0 %v5870
        %6165 = vmatprep.subr.bf16.mxu0 %v5867
        %6166 = vmatpush1.bf16.msra.mxu0 %v5866
        %6167 = vmatprep.subr.bf16.mxu0 %v5863
        %6168 = vmatpush1.bf16.msra.mxu0 %v5862
        %6169 = vmatprep.subr.bf16.mxu0 %v5859
        %6170 = vmatpush1.bf16.msra.mxu0 %v5858
        %6171 = vmatprep.subr.bf16.mxu0 0
        %6172 = vmatpush2.bf16.msra.mxu0 0
        %6173 = vmatprep.subr.bf16.mxu0 0
        %6174 = vmatpush2.bf16.msra.mxu0 0
        %6175 = vmatprep.subr.bf16.mxu0 0
        %6176 = vmatpush2.bf16.msra.mxu0 0
        %6177 = vmatprep.subr.bf16.mxu0 0
        %6178 = vmatpush2.bf16.msra.mxu0 0
        %6179 = vmatprep.subr.bf16.mxu0 0
        %6180 = vmatpush2.bf16.msra.mxu0 0
        %6181 = vmatprep.subr.bf16.mxu0 0
        %6182 = vmatpush2.bf16.msra.mxu0 0
        %6183 = vmatprep.subr.bf16.mxu0 0
        %6184 = vmatpush2.bf16.msra.mxu0 0
        %6185 = vmatprep.subr.bf16.mxu0 0
        %6186 = vmatpush2.bf16.msra.mxu0 0
        %6187 = vmatprep.mubr.bf16.mxu0 0
        %6188 = vmatmul.mubr.bf16.gmra.mxu0 %v6071
        %v6189 = vpop.f32.mrf.mxu0
        %v6190 = vadd.f32 %v6012, %v6189
        %v6191 = vpop.f32.mrf.mxu0
        %v6192 = vadd.f32 %v6014, %v6191
        %v6193 = vpop.f32.mrf.mxu0
        %v6194 = vadd.f32 %v6016, %v6193
        %v6195 = vpop.f32.mrf.mxu0
        %v6196 = vadd.f32 %v6018, %v6195
        %6197 = vmatprep.mubr.bf16.mxu0 0
        %6198 = vmatmul.mubr.bf16.gmra.mxu0 %v6074
        %v6199 = vpop.f32.mrf.mxu0
        %v6200 = vadd.f32 %v6022, %v6199
        %v6201 = vpop.f32.mrf.mxu0
        %v6202 = vadd.f32 %v6024, %v6201
        %v6203 = vpop.f32.mrf.mxu0
        %v6204 = vadd.f32 %v6026, %v6203
        %v6205 = vpop.f32.mrf.mxu0
        %v6206 = vadd.f32 %v6028, %v6205
        %6207 = vmatprep.mubr.bf16.mxu0 0
        %6208 = vmatmul.mubr.bf16.gmra.mxu0 %v6077
        %v6209 = vpop.f32.mrf.mxu0
        %v6210 = vadd.f32 %v6032, %v6209
        %v6211 = vpop.f32.mrf.mxu0
        %v6212 = vadd.f32 %v6034, %v6211
        %v6213 = vpop.f32.mrf.mxu0
        %v6214 = vadd.f32 %v6036, %v6213
        %v6215 = vpop.f32.mrf.mxu0
        %v6216 = vadd.f32 %v6038, %v6215
        %6217 = vmatprep.mubr.bf16.mxu0 0
        %6218 = vmatmul.mubr.bf16.gmra.mxu0 %v6080
        %v6219 = vpop.f32.mrf.mxu0
        %v6220 = vadd.f32 %v6042, %v6219
        %v6221 = vpop.f32.mrf.mxu0
        %v6222 = vadd.f32 %v6044, %v6221
        %v6223 = vpop.f32.mrf.mxu0
        %v6224 = vadd.f32 %v6046, %v6223
        %v6225 = vpop.f32.mrf.mxu0
        %v6226 = vadd.f32 %v6048, %v6225
        %6227 = vdwg.mxu0
        %6229 = vset.pattern.permute.xlu0 0
        %6230 = vperm.xlu0 %6229, %v5848
        %v6231 = vpop.permute.xlu0 %6230
        %6234 = vset.pattern.permute.xlu0 0
        %6235 = vperm.xlu0 %6234, %v5849
        %v6236 = vpop.permute.xlu0 %6235
        %6239 = vset.pattern.permute.xlu0 0
        %6240 = vperm.xlu0 %6239, %v5850
        %v6241 = vpop.permute.xlu0 %6240
        %6244 = vset.pattern.permute.xlu0 0
        %6245 = vperm.xlu0 %6244, %v5851
        %v6246 = vpop.permute.xlu0 %6245
        %6249 = vset.pattern.permute.xlu0 0
        %6250 = vperm.xlu0 %6249, %v5852
        %v6251 = vpop.permute.xlu0 %6250
        %6254 = vset.pattern.permute.xlu0 0
        %6255 = vperm.xlu0 %6254, %v5853
        %v6256 = vpop.permute.xlu0 %6255
        %6259 = vset.pattern.permute.xlu0 0
        %6260 = vperm.xlu0 %6259, %v5854
        %v6261 = vpop.permute.xlu0 %6260
        %6264 = vset.pattern.permute.xlu0 0
        %6265 = vperm.xlu0 %6264, %v5855
        %v6266 = vpop.permute.xlu0 %6265
        %v6268 = vadd.f32 %v6117, %v6231
        %v6269 = vadd.f32 %v6119, %v6231
        %v6270 = vadd.f32 %v6190, %v6231
        %v6271 = vadd.f32 %v6192, %v6231
        %v6272 = vadd.f32 %v6121, %v6236
        %v6273 = vadd.f32 %v6123, %v6236
        %v6274 = vadd.f32 %v6194, %v6236
        %v6275 = vadd.f32 %v6196, %v6236
        %v6276 = vadd.f32 %v6127, %v6241
        %v6277 = vadd.f32 %v6129, %v6241
        %v6278 = vadd.f32 %v6200, %v6241
        %v6279 = vadd.f32 %v6202, %v6241
        %v6280 = vadd.f32 %v6131, %v6246
        %v6281 = vadd.f32 %v6133, %v6246
        %v6282 = vadd.f32 %v6204, %v6246
        %v6283 = vadd.f32 %v6206, %v6246
        %v6284 = vadd.f32 %v6137, %v6251
        %v6285 = vadd.f32 %v6139, %v6251
        %v6286 = vadd.f32 %v6210, %v6251
        %v6287 = vadd.f32 %v6212, %v6251
        %v6288 = vadd.f32 %v6141, %v6256
        %v6289 = vadd.f32 %v6143, %v6256
        %v6290 = vadd.f32 %v6214, %v6256
        %v6291 = vadd.f32 %v6216, %v6256
        %v6292 = vadd.f32 %v6147, %v6261
        %v6293 = vadd.f32 %v6149, %v6261
        %v6294 = vadd.f32 %v6220, %v6261
        %v6295 = vadd.f32 %v6222, %v6261
        %v6296 = vadd.f32 %v6151, %v6266
        %v6297 = vadd.f32 %v6153, %v6266
        %v6298 = vadd.f32 %v6224, %v6266
        %v6299 = vadd.f32 %v6226, %v6266
        %vm6300 = vcmp.ge.f32.partialorder %v6268, 0.0
        %vm6301 = vcmp.ge.f32.partialorder %v6269, 0.0
        %vm6302 = vcmp.ge.f32.partialorder %v6270, 0.0
        %vm6303 = vcmp.ge.f32.partialorder %v6271, 0.0
        %vm6304 = vcmp.ge.f32.partialorder %v6272, 0.0
        %vm6305 = vcmp.ge.f32.partialorder %v6273, 0.0
        %vm6306 = vcmp.ge.f32.partialorder %v6274, 0.0
        %vm6307 = vcmp.ge.f32.partialorder %v6275, 0.0
        %vm6308 = vcmp.ge.f32.partialorder %v6276, 0.0
        %vm6309 = vcmp.ge.f32.partialorder %v6277, 0.0
        %vm6310 = vcmp.ge.f32.partialorder %v6278, 0.0
        %vm6311 = vcmp.ge.f32.partialorder %v6279, 0.0
        %vm6312 = vcmp.ge.f32.partialorder %v6280, 0.0
        %vm6313 = vcmp.ge.f32.partialorder %v6281, 0.0
        %vm6314 = vcmp.ge.f32.partialorder %v6282, 0.0
        %vm6315 = vcmp.ge.f32.partialorder %v6283, 0.0
        %vm6316 = vcmp.ge.f32.partialorder %v6284, 0.0
        %vm6317 = vcmp.ge.f32.partialorder %v6285, 0.0
        %vm6318 = vcmp.ge.f32.partialorder %v6286, 0.0
        %vm6319 = vcmp.ge.f32.partialorder %v6287, 0.0
        %vm6320 = vcmp.ge.f32.partialorder %v6288, 0.0
        %vm6321 = vcmp.ge.f32.partialorder %v6289, 0.0
        %vm6322 = vcmp.ge.f32.partialorder %v6290, 0.0
        %vm6323 = vcmp.ge.f32.partialorder %v6291, 0.0
        %vm6324 = vcmp.ge.f32.partialorder %v6292, 0.0
        %vm6325 = vcmp.ge.f32.partialorder %v6293, 0.0
        %vm6326 = vcmp.ge.f32.partialorder %v6294, 0.0
        %vm6327 = vcmp.ge.f32.partialorder %v6295, 0.0
        %vm6328 = vcmp.ge.f32.partialorder %v6296, 0.0
        %vm6329 = vcmp.ge.f32.partialorder %v6297, 0.0
        %vm6330 = vcmp.ge.f32.partialorder %v6298, 0.0
        %vm6331 = vcmp.ge.f32.partialorder %v6299, 0.0
        %v6332 = vmul.f32 %v6268, 0.01
        %v6333 = vmul.f32 %v6269, 0.01
        %v6334 = vmul.f32 %v6270, 0.01
        %v6335 = vmul.f32 %v6271, 0.01
        %v6336 = vmul.f32 %v6272, 0.01
        %v6337 = vmul.f32 %v6273, 0.01
        %v6338 = vmul.f32 %v6274, 0.01
        %v6339 = vmul.f32 %v6275, 0.01
        %v6340 = vmul.f32 %v6276, 0.01
        %v6341 = vmul.f32 %v6277, 0.01
        %v6342 = vmul.f32 %v6278, 0.01
        %v6343 = vmul.f32 %v6279, 0.01
        %v6344 = vmul.f32 %v6280, 0.01
        %v6345 = vmul.f32 %v6281, 0.01
        %v6346 = vmul.f32 %v6282, 0.01
        %v6347 = vmul.f32 %v6283, 0.01
        %v6348 = vmul.f32 %v6284, 0.01
        %v6349 = vmul.f32 %v6285, 0.01
        %v6350 = vmul.f32 %v6286, 0.01
        %v6351 = vmul.f32 %v6287, 0.01
        %v6352 = vmul.f32 %v6288, 0.01
        %v6353 = vmul.f32 %v6289, 0.01
        %v6354 = vmul.f32 %v6290, 0.01
        %v6355 = vmul.f32 %v6291, 0.01
        %v6356 = vmul.f32 %v6292, 0.01
        %v6357 = vmul.f32 %v6293, 0.01
        %v6358 = vmul.f32 %v6294, 0.01
        %v6359 = vmul.f32 %v6295, 0.01
        %v6360 = vmul.f32 %v6296, 0.01
        %v6361 = vmul.f32 %v6297, 0.01
        %v6362 = vmul.f32 %v6298, 0.01
        %v6363 = vmul.f32 %v6299, 0.01
        %v6364 = vsel %vm6300, %v6268, %v6332
        %v6365 = vsel %vm6301, %v6269, %v6333
        %v6366 = vsel %vm6302, %v6270, %v6334
        %v6367 = vsel %vm6303, %v6271, %v6335
        %v6368 = vsel %vm6304, %v6272, %v6336
        %v6369 = vsel %vm6305, %v6273, %v6337
        %v6370 = vsel %vm6306, %v6274, %v6338
        %v6371 = vsel %vm6307, %v6275, %v6339
        %v6372 = vsel %vm6308, %v6276, %v6340
        %v6373 = vsel %vm6309, %v6277, %v6341
        %v6374 = vsel %vm6310, %v6278, %v6342
        %v6375 = vsel %vm6311, %v6279, %v6343
        %v6376 = vsel %vm6312, %v6280, %v6344
        %v6377 = vsel %vm6313, %v6281, %v6345
        %v6378 = vsel %vm6314, %v6282, %v6346
        %v6379 = vsel %vm6315, %v6283, %v6347
        %v6380 = vsel %vm6316, %v6284, %v6348
        %v6381 = vsel %vm6317, %v6285, %v6349
        %v6382 = vsel %vm6318, %v6286, %v6350
        %v6383 = vsel %vm6319, %v6287, %v6351
        %v6384 = vsel %vm6320, %v6288, %v6352
        %v6385 = vsel %vm6321, %v6289, %v6353
        %v6386 = vsel %vm6322, %v6290, %v6354
        %v6387 = vsel %vm6323, %v6291, %v6355
        %v6388 = vsel %vm6324, %v6292, %v6356
        %v6389 = vsel %vm6325, %v6293, %v6357
        %v6390 = vsel %vm6326, %v6294, %v6358
        %v6391 = vsel %vm6327, %v6295, %v6359
        %v6392 = vsel %vm6328, %v6296, %v6360
        %v6393 = vsel %vm6329, %v6297, %v6361
        %v6394 = vsel %vm6330, %v6298, %v6362
        %v6395 = vsel %vm6331, %v6299, %v6363
        %v6396 = vld [vmem:[%s20] sm:$0x3]
        %v6397 = vld [vmem:[%s21] sm:$0xf]
        %v6398 = vpack.c.bf16 %v6368, %v6364
        %v6399 = vpack.c.bf16 %v6369, %v6365
        %v6400 = vpack.c.bf16 %v6370, %v6366
        %v6401 = vpack.c.bf16 %v6371, %v6367
        %v6402 = vpack.c.bf16 %v6376, %v6372
        %v6403 = vpack.c.bf16 %v6377, %v6373
        %v6404 = vpack.c.bf16 %v6378, %v6374
        %v6405 = vpack.c.bf16 %v6379, %v6375
        %v6406 = vpack.c.bf16 %v6384, %v6380
        %v6407 = vpack.c.bf16 %v6385, %v6381
        %v6408 = vpack.c.bf16 %v6386, %v6382
        %v6409 = vpack.c.bf16 %v6387, %v6383
        %v6410 = vpack.c.bf16 %v6392, %v6388
        %v6411 = vpack.c.bf16 %v6393, %v6389
        %v6412 = vpack.c.bf16 %v6394, %v6390
        %v6413 = vpack.c.bf16 %v6395, %v6391
        %6415 = vset.pattern.permute.xlu0 0
        %6416 = vperm.xlu0 %6415, %v6397
        %v6417 = vpop.permute.xlu0 %6416
        %v6420 = vsel %vm3757, %v6396, 0
        %6422 = vmatprep.subr.bf16.mxu0 0
        %6423 = vmatpush1.bf16.msra.mxu0 0
        %6424 = vmatprep.subr.bf16.mxu0 0
        %6425 = vmatpush1.bf16.msra.mxu0 0
        %6426 = vmatprep.subr.bf16.mxu0 0
        %6427 = vmatpush1.bf16.msra.mxu0 0
        %6428 = vmatprep.subr.bf16.mxu0 0
        %6429 = vmatpush1.bf16.msra.mxu0 0
        %6430 = vmatprep.subr.bf16.mxu0 %v6411
        %6431 = vmatpush1.bf16.msra.mxu0 %v6410
        %6432 = vmatprep.subr.bf16.mxu0 %v6407
        %6433 = vmatpush1.bf16.msra.mxu0 %v6406
        %6434 = vmatprep.subr.bf16.mxu0 %v6403
        %6435 = vmatpush1.bf16.msra.mxu0 %v6402
        %6436 = vmatprep.subr.bf16.mxu0 %v6399
        %6437 = vmatpush1.bf16.msra.mxu0 %v6398
        %6438 = vmatprep.subr.bf16.mxu0 0
        %6439 = vmatpush2.bf16.msra.mxu0 0
        %6440 = vmatprep.subr.bf16.mxu0 0
        %6441 = vmatpush2.bf16.msra.mxu0 0
        %6442 = vmatprep.subr.bf16.mxu0 0
        %6443 = vmatpush2.bf16.msra.mxu0 0
        %6444 = vmatprep.subr.bf16.mxu0 0
        %6445 = vmatpush2.bf16.msra.mxu0 0
        %6446 = vmatprep.subr.bf16.mxu0 0
        %6447 = vmatpush2.bf16.msra.mxu0 0
        %6448 = vmatprep.subr.bf16.mxu0 0
        %6449 = vmatpush2.bf16.msra.mxu0 0
        %6450 = vmatprep.subr.bf16.mxu0 0
        %6451 = vmatpush2.bf16.msra.mxu0 0
        %6452 = vmatprep.subr.bf16.mxu0 0
        %6453 = vmatpush2.bf16.msra.mxu0 0
        %6454 = vmatprep.mubr.bf16.mxu0 0
        %6455 = vmatmul.mubr.bf16.gmra.mxu0 %v6420
        %v6456 = vpop.f32.mrf.mxu0
        %v6457 = vadd.f32 %v6417, %v6456
        %v6458 = vpop.f32.mrf.mxu0
        %v6459 = vadd.f32 %v6417, %v6458
        %v6460 = vpop.f32.mrf.mxu0
        %v6461 = vpop.f32.mrf.mxu0
        %6462 = vdwg.mxu0
        %6463 = vmatprep.subr.bf16.mxu0 0
        %6464 = vmatpush1.bf16.msra.mxu0 0
        %6465 = vmatprep.subr.bf16.mxu0 0
        %6466 = vmatpush1.bf16.msra.mxu0 0
        %6467 = vmatprep.subr.bf16.mxu0 0
        %6468 = vmatpush1.bf16.msra.mxu0 0
        %6469 = vmatprep.subr.bf16.mxu0 0
        %6470 = vmatpush1.bf16.msra.mxu0 0
        %6471 = vmatprep.subr.bf16.mxu0 %v6413
        %6472 = vmatpush1.bf16.msra.mxu0 %v6412
        %6473 = vmatprep.subr.bf16.mxu0 %v6409
        %6474 = vmatpush1.bf16.msra.mxu0 %v6408
        %6475 = vmatprep.subr.bf16.mxu0 %v6405
        %6476 = vmatpush1.bf16.msra.mxu0 %v6404
        %6477 = vmatprep.subr.bf16.mxu0 %v6401
        %6478 = vmatpush1.bf16.msra.mxu0 %v6400
        %6479 = vmatprep.subr.bf16.mxu0 0
        %6480 = vmatpush2.bf16.msra.mxu0 0
        %6481 = vmatprep.subr.bf16.mxu0 0
        %6482 = vmatpush2.bf16.msra.mxu0 0
        %6483 = vmatprep.subr.bf16.mxu0 0
        %6484 = vmatpush2.bf16.msra.mxu0 0
        %6485 = vmatprep.subr.bf16.mxu0 0
        %6486 = vmatpush2.bf16.msra.mxu0 0
        %6487 = vmatprep.subr.bf16.mxu0 0
        %6488 = vmatpush2.bf16.msra.mxu0 0
        %6489 = vmatprep.subr.bf16.mxu0 0
        %6490 = vmatpush2.bf16.msra.mxu0 0
        %6491 = vmatprep.subr.bf16.mxu0 0
        %6492 = vmatpush2.bf16.msra.mxu0 0
        %6493 = vmatprep.subr.bf16.mxu0 0
        %6494 = vmatpush2.bf16.msra.mxu0 0
        %6495 = vmatprep.mubr.bf16.mxu0 0
        %6496 = vmatmul.mubr.bf16.gmra.mxu0 %v6420
        %v6497 = vpop.f32.mrf.mxu0
        %v6498 = vadd.f32 %v6417, %v6497
        %v6499 = vpop.f32.mrf.mxu0
        %v6500 = vadd.f32 %v6417, %v6499
        %v6501 = vpop.f32.mrf.mxu0
        %v6502 = vpop.f32.mrf.mxu0
        %6503 = vdwg.mxu0
        %v6504 = vxor.u32 %v6457, 2147483648
        %v6505 = vxor.u32 %v6459, 2147483648
        %v6506 = vxor.u32 %v6498, 2147483648
        %v6507 = vxor.u32 %v6500, 2147483648
        %v6508 = vmul.f32 %v6504, 1.442695
        %v6509 = vpow.pop %v6508
        %v6510 = vmul.f32 %v6505, 1.442695
        %v6511 = vpow.pop %v6510
        %v6512 = vmul.f32 %v6506, 1.442695
        %v6513 = vpow.pop %v6512
        %v6514 = vmul.f32 %v6507, 1.442695
        %v6515 = vpow.pop %v6514
        %v6516 = vadd.f32 %v6509, 1.0
        %v6517 = vadd.f32 %v6511, 1.0
        %v6518 = vadd.f32 %v6513, 1.0
        %v6519 = vadd.f32 %v6515, 1.0
        %v6520 = vrcp.pop %v6516
        %v6521 = vmul.f32 1.0, %v6520
        %v6522 = vrcp.pop %v6517
        %v6523 = vmul.f32 1.0, %v6522
        %v6524 = vrcp.pop %v6518
        %v6525 = vmul.f32 1.0, %v6524
        %v6526 = vrcp.pop %v6519
        %v6527 = vmul.f32 1.0, %v6526
        %v6532 = vcombine.low %v6521, %v6523
        %v6533 = vcombine.low %v6525, %v6527
        %6536 = vst [vmem:[%s677] sm:$0xff] %v6532
        %6537 = vst [vmem:[%s677 + $0x8] sm:$0xff] %v6533
        %s6538 = sand.u32 %s511, 1
        %s6539 = scalar_lea.sflag [#allocation3], %s6538
        %s6540 = sand.u32 %s511, 1
        %s6541 = smul.addr %s6540, 16
        %s6542 = scalar_lea.vmem [#allocation2], %s6541
        // Predicated region
        $region109: #{nerf_forward.1} parent=107 // pred_check
          %p6543 = pneg %p521
        $region110: #{nerf_forward.1} parent=107 // pred_check_branch
          %6545 = sbr.rel (%p6543) target = $region112
        $region111: #{nerf_forward.1} parent=107 // pred_region
          %s6546 = smul.u32 4, %s36
          %s6548 = ssub.s32 256, 256
          %6549 = vsyncadd %s6539, %s6548
          %s6550 = smul.addr %s6546, 64
          %s6551 = scalar_lea.hbm %s22, %s6550
          %s6553 = sshll.u32 %s6542, 4
          %s6554 = int_to_ptr.vmem [resolvable:$true] %s6553
          %6556 = dma.vmem_to_hbm [thread:$0]  %s6554, 256, %s6551, %s6539
        $region112: #{nerf_forward.1} parent=107 // pred_fallthru
          _
      $region108: #{nerf_forward.1} parent=5 // pred_fallthru
        _
      %p6557 = scmp.le.s32.totalorder 2, %s31
      // Predicated region
      $region113: #{nerf_forward.1} parent=5 // pred_check
        %p6558 = pneg %p6557
      $region114: #{nerf_forward.1} parent=5 // pred_check_branch
        %6560 = sbr.rel (%p6558) target = $region116
      $region115: #{nerf_forward.1} parent=5 // pred_region
        %s6561 = ssub.s32 %s31, 2
        // Predicated region
        $region117: #{nerf_forward.1} parent=115 // pred_check
          %p6562 = pneg %p527
        $region118: #{nerf_forward.1} parent=115 // pred_check_branch
          %6564 = sbr.rel (%p6562) target = $region120
        $region119: #{nerf_forward.1} parent=115 // pred_region
          %s6565 = sand.u32 %s512, 1
          %s6566 = scalar_lea.sflag [#allocation3], %s6565
          %s6567 = sand.u32 %s512, 1
          %s6568 = smul.addr %s6567, 16
          %s6569 = scalar_lea.vmem [#allocation2], %s6568
          %6570 = dma.done %s6566, 256
        $region120: #{nerf_forward.1} parent=115 // pred_fallthru
          _
      $region116: #{nerf_forward.1} parent=5 // pred_fallthru
        _
    $region6: #{nerf_forward.1} parent=1 // loop_footer
      %s35 = sadd.s32 1, %s31
    $region7: #{nerf_forward.1} parent=1 // loop_footer_branch
      %30 = sbr.rel target = $region3
    $region8: #{nerf_forward.1} parent=1 // loop_exit
      _
    %6571 = vsyncpa [#allocation3], 1
    %s6572 = scalar_lea.sflag [#allocation3], 1
    %6573 = vsyncpa %s6572, 1

</llo_original>
